<compile_context>
chip_gen: v6e
topology: v6e:2x2x1
jax: 0.10.0
libtpu: 0.0.40
codegen_flags: <defaults>
</compile_context>

<pallas_src>
import math

import jax
import jax.numpy as jnp
import numpy as np
from jax import lax
from jax.experimental import pallas as pl
from jax.experimental.pallas import tpu as pltpu

# ----------------------------- static module config (small shapes) -----------------------------
HIDDEN = 32
NUM_HEADS = 4
HEAD_DIM = HIDDEN // NUM_HEADS
NGRAM = 2
NUM_BUCKETS = 32
REL_MAX_DISTANCE = 128
BATCH = 2
SEQ = 8                                   # main-stream sequence length
NGRAM_SEQ = (1 + NGRAM) * SEQ             # 24
PROJ_W = 3 * HIDDEN + NUM_HEADS * NUM_BUCKETS   # fused projection width = 224

# The static-slice reproduction of torch's cross-ordered predict-stream rel-pos gather
# relies on these relations (re-derive if the config changes); the runtime reference
# assertions below guard the result either way.
assert NUM_HEADS * NGRAM == SEQ
assert SEQ % NUM_HEADS == 0 and SEQ % NGRAM == 0
assert NGRAM % BATCH == 0


# ----------------------------- fused Pallas kernel (one batch per grid step) -----------------------------
def _ngram_attention_kernel(
    x_ref, wall_ref, ball_ref, wo_ref, bo_ref,
    ohm_ref, ohp_ref, amask_ref, pmask_ref,
    out_ref, mainp_ref, predp_ref, pk_ref, pv_ref,
    proj_ref, ctx_ref, relscr_ref,
):
    H, S, NH, HD, NB, NG = HIDDEN, SEQ, NUM_HEADS, HEAD_DIM, NUM_BUCKETS, NGRAM
    f32 = jnp.float32

    # ---- fused [Wq*scale | Wk | Wv | Wrel(head-major)] projection into VMEM scratch ----
    proj_ref[...] = (
        jnp.dot(x_ref[...].astype(jnp.bfloat16), wall_ref[...],
                preferred_element_type=f32)
        + ball_ref[...])                                            # (N, 224) f32

    # ---- past key / value (main stream, all heads); wrapper transposes to (B,NH,S,HD) ----
    pk_ref[...] = proj_ref[0:S, H:2 * H]
    pv_ref[...] = proj_ref[0:S, 2 * H:3 * H]

    def softmax_rows(s):
        m = jnp.max(s, axis=-1, keepdims=True)
        e = jnp.exp(s - m)
        return e * pl.reciprocal(jnp.sum(e, axis=-1, keepdims=True), approx=True)

    # ------------------------------ main stream ------------------------------
    oh_main = ohm_ref[...].astype(f32)                              # (S, S, NB)
    for h in range(NH):
        q = proj_ref[0:S, h * HD:(h + 1) * HD]                      # (S, HD)
        k = proj_ref[0:S, H + h * HD:H + (h + 1) * HD]
        v = proj_ref[0:S, 2 * H + h * HD:2 * H + (h + 1) * HD]
        relm = proj_ref[0:S, 3 * H + h * NB:3 * H + (h + 1) * NB]   # (S, NB)
        bias = (jnp.sum(relm[:, None, :] * oh_main, axis=-1)
                + amask_ref[h * S:(h + 1) * S, :])                  # (S, S)
        scores = lax.dot_general(q, k, (((1,), (1,)), ((), ())),
                                 preferred_element_type=f32) + bias
        p = softmax_rows(scores)                                    # (S, S) f32
        mainp_ref[h * S:(h + 1) * S, :] = p
        ctx_ref[0:S, h * HD:(h + 1) * HD] = jnp.dot(p, v, preferred_element_type=f32)

    # ------------------------------ predict (ngram) streams ------------------------------
    for g in range(NG):
        # bucket one-hot for this ngram stream (independent of head and batch -> hoisted)
        oh_pred = ohp_ref[g * S:(g + 1) * S].astype(f32)            # (S, 2S, NB)
        row_p = (1 + g) * S                                         # predict-stream rows in proj

        for h in range(NH):
            q = proj_ref[row_p:row_p + S, h * HD:(h + 1) * HD]
            k_c = jnp.concatenate(
                [proj_ref[0:S, H + h * HD:H + (h + 1) * HD],
                 proj_ref[row_p:row_p + S, H + h * HD:H + (h + 1) * HD]], axis=0)   # (2S, HD)
            v_c = jnp.concatenate(
                [proj_ref[0:S, 2 * H + h * HD:2 * H + (h + 1) * HD],
                 proj_ref[row_p:row_p + S, 2 * H + h * HD:2 * H + (h + 1) * HD]], axis=0)

            # Stage the predict-stream rel-pos vectors reproducing torch's cross-ordered
            # gather: output row s uses rel head (s % NH) of projection row
            # (1 + s // NH)*S + g*NH + h   (static slices; no selection matmuls).
            rA = S + g * NH + h
            rB = 2 * S + g * NH + h
            for i in range(NH):
                relscr_ref[i:i + 1, :] = \
                    proj_ref[rA:rA + 1, 3 * H + i * NB:3 * H + (i + 1) * NB]
                relscr_ref[NH + i:NH + i + 1, :] = \
                    proj_ref[rB:rB + 1, 3 * H + i * NB:3 * H + (i + 1) * NB]
            rel_p = relscr_ref[...]                                  # (S, NB)

            bias = (jnp.sum(rel_p[:, None, :] * oh_pred, axis=-1)
                    + pmask_ref[(h * NG + g) * S:(h * NG + g + 1) * S, :])   # (S, 2S)
            scores = lax.dot_general(q, k_c, (((1,), (1,)), ((), ())),
                                     preferred_element_type=f32) + bias
            p = softmax_rows(scores)                                 # (S, 2S)
            predp_ref[(g * NH + h) * S:(g * NH + h + 1) * S, :] = p
            ctx_ref[row_p:row_p + S, h * HD:(h + 1) * HD] = jnp.dot(
                p, v_c, preferred_element_type=f32)

    # ---- single fused output projection for all streams of this batch ----
    out_ref[...] = (jnp.dot(ctx_ref[...], wo_ref[...], preferred_element_type=f32)
                    + bo_ref[...])


# ----------------------------- Pallas forward wrapper -----------------------------
def prophetnet_ngram_attention_pallas(hidden_states, params, attention_mask,
                                      extended_predict_attention_mask,
                                      main_relative_position_buckets,
                                      predict_relative_position_buckets):
    B, N, H = hidden_states.shape
    S, NH, HD, NB, NG = SEQ, NUM_HEADS, HEAD_DIM, NUM_BUCKETS, NGRAM
    assert (B, N, H) == (BATCH, NGRAM_SEQ, HIDDEN)
    scale = 1.0 / math.sqrt(HD)

    # fused projection weights: [Wq*scale | Wk | Wv | Wrel (head-major columns)] in bf16
    w_rel_hm = params["w_rel"].reshape(H, NB, NH).transpose(0, 2, 1).reshape(H, NH * NB)
    b_rel_hm = params["b_rel"].reshape(NB, NH).transpose(1, 0).reshape(NH * NB)
    w_all = jnp.concatenate([params["wq"] * scale, params["wk"], params["wv"], w_rel_hm],
                            axis=1).astype(jnp.bfloat16)
    b_all = jnp.concatenate([params["bq"] * scale, params["bk"], params["bv"], b_rel_hm],
                            axis=0)[None, :].astype(jnp.float32)

    # unexpanded bucket one-hot tables (bf16 is exact for 0/1); kernel slices + upcasts
    onehot_main = jax.nn.one_hot(main_relative_position_buckets, NB,
                                 dtype=jnp.bfloat16).reshape(B * S, S, NB)
    onehot_pred = jax.nn.one_hot(predict_relative_position_buckets, NB,
                                 dtype=jnp.bfloat16).reshape(B * S, 2 * S, NB)

    amask = attention_mask if attention_mask is not None else jnp.zeros((B, NH, S, S), jnp.float32)
    pmask = (extended_predict_attention_mask
             if extended_predict_attention_mask is not None
             else jnp.zeros((B, NH, NG, S, 2 * S), jnp.float32))
    amask = amask.astype(jnp.float32).reshape(B * NH * S, S)
    pmask = pmask.astype(jnp.float32).reshape(B * NH * NG * S, 2 * S)

    x2d = hidden_states.reshape(B * N, H).astype(jnp.float32)
    wo = params["wo"].astype(jnp.float32)
    bo = params["bo"][None, :].astype(jnp.float32)

    inputs = (x2d, w_all, b_all, wo, bo, onehot_main, onehot_pred, amask, pmask)

    in_specs = [
        pl.BlockSpec((N, H), lambda b: (b, 0)),                  # hidden states (per batch)
        pl.BlockSpec((H, PROJ_W), lambda b: (0, 0)),             # fused projection weight
        pl.BlockSpec((1, PROJ_W), lambda b: (0, 0)),             # fused projection bias
        pl.BlockSpec((H, H), lambda b: (0, 0)),                  # out-proj weight
        pl.BlockSpec((1, H), lambda b: (0, 0)),                  # out-proj bias
        pl.BlockSpec((S, S, NB), lambda b: (b, 0, 0)),           # main bucket one-hot (per batch)
        pl.BlockSpec((B * S, 2 * S, NB), lambda b: (0, 0, 0)),   # predict bucket one-hot (per g rows)
        pl.BlockSpec((NH * S, S), lambda b: (b, 0)),             # attention mask (per batch)
        pl.BlockSpec((NH * NG * S, 2 * S), lambda b: (b, 0)),    # extended predict mask (per batch)
    ]

    out_shapes = (
        jax.ShapeDtypeStruct((B * N, H), jnp.float32),           # attn_output (flat)
        jax.ShapeDtypeStruct((B * NH * S, S), jnp.float32),      # main attn probs (flat)
        jax.ShapeDtypeStruct((B * NG * NH * S, 2 * S), jnp.float32),   # predict attn probs (flat)
        jax.ShapeDtypeStruct((B * S, H), jnp.float32),           # past key  (b, s, h*hd)
        jax.ShapeDtypeStruct((B * S, H), jnp.float32),           # past value (b, s, h*hd)
    )
    out_specs = (
        pl.BlockSpec((N, H), lambda b: (b, 0)),
        pl.BlockSpec((NH * S, S), lambda b: (b, 0)),
        pl.BlockSpec((NG * NH * S, 2 * S), lambda b: (b, 0)),
        pl.BlockSpec((S, H), lambda b: (b, 0)),
        pl.BlockSpec((S, H), lambda b: (b, 0)),
    )

    cost = pl.CostEstimate(flops=1_100_000, transcendentals=2_700, bytes_accessed=82_000)

    out2d, mainp, predp, pk, pv = pl.pallas_call(
        _ngram_attention_kernel,
        grid=(B,),
        out_shape=out_shapes,
        in_specs=in_specs,
        out_specs=out_specs,
        scratch_shapes=[
            pltpu.VMEM((N, PROJ_W), jnp.float32),    # fused projection
            pltpu.VMEM((N, H), jnp.float32),         # per-stream context (pre out-proj)
            pltpu.VMEM((S, NB), jnp.float32),        # predict-stream rel-pos staging
        ],
        compiler_params=pltpu.CompilerParams(dimension_semantics=("parallel",)),
        cost_estimate=cost,
    )(*inputs)

    attn_output = out2d.reshape(B, N, H)
    main_attn_probs = mainp.reshape(B, NH, S, S)
    predict_attn_probs = predp.reshape(B, NG, NH, S, 2 * S)
    past_key_value = tuple(t.reshape(B, S, NH, HD).transpose(0, 2, 1, 3) for t in (pk, pv))
    # TODO(synk): dropout/attention_dropout are identity (eval mode); incoming past_key_value
    #             and layer_head_mask paths are not supported by the fused kernel.
    return attn_output, main_attn_probs, predict_attn_probs, past_key_value


# ----------------------------- plain-JAX reference (torch transliteration) -----------------------------
def prophetnet_ngram_attention_ref(hidden_states, params, attention_mask,
                                   extended_predict_attention_mask,
                                   main_relative_position_buckets,
                                   predict_relative_position_buckets):
    B, N, H = hidden_states.shape
    nh, hd, ngram, nb = NUM_HEADS, HEAD_DIM, NGRAM, NUM_BUCKETS
    S = N // (1 + ngram)
    lin = lambda x, w, b: x @ w + b

    x2d = hidden_states.reshape(B * N, H)
    q = lin(x2d, params["wq"], params["bq"]).reshape(B, N, H) / (hd ** 0.5)
    k = lin(x2d, params["wk"], params["bk"]).reshape(B, N, H)
    v = lin(x2d, params["wv"], params["bv"]).reshape(B, N, H)
    shape_ = lambda t: t.reshape(B, N, nh, hd).transpose(0, 2, 1, 3)
    q, k, v = shape_(q), shape_(k), shape_(v)

    main_h = hidden_states[:, :S]
    pred_h = hidden_states[:, S:].reshape(B, ngram, S, H).transpose(0, 2, 1, 3)  # (B,S,ngram,H)
    main_q, main_k, main_v = q[:, :, :S], k[:, :, :S], v[:, :, :S]
    pred_q = q[:, :, S:].reshape(B, nh, ngram, S, hd).transpose(0, 2, 1, 3, 4)
    pred_k_ch = k[:, :, S:].reshape(B, nh, ngram, S, hd).transpose(0, 2, 1, 3, 4)
    pred_v_ch = v[:, :, S:].reshape(B, nh, ngram, S, hd).transpose(0, 2, 1, 3, 4)
    pred_k = jnp.concatenate(
        [jnp.broadcast_to(main_k[:, None], (B, ngram, nh, S, hd)), pred_k_ch], axis=3)
    pred_v = jnp.concatenate(
        [jnp.broadcast_to(main_v[:, None], (B, ngram, nh, S, hd)), pred_v_ch], axis=3)
    past_key_value = (main_k, main_v)

    # main-stream relative position embeddings
    rel = lin(main_h.reshape(B * S, H), params["w_rel"], params["b_rel"])
    rel = rel.reshape(B, S, nb, nh).transpose(0, 3, 1, 2).reshape(B * nh * S, nb)
    buckets = jnp.tile(main_relative_position_buckets, (1, nh, 1)).reshape(-1, S)
    main_rel = jnp.take_along_axis(rel, buckets, axis=1).reshape(B, nh, S, S)

    main_w = jnp.einsum("bhtc,bhsc->bhts", main_q, main_k) + main_rel
    if attention_mask is not None:
        main_w = main_w + attention_mask
    main_probs = jax.nn.softmax(main_w.astype(jnp.float32), axis=-1)
    main_out = jnp.einsum("bhts,bhsc->bhtc", main_probs, main_v)
    main_out = main_out.transpose(0, 2, 1, 3).reshape(B * S, H)
    main_out = lin(main_out, params["wo"], params["bo"]).reshape(B, 1, S, H)

    # predict-stream relative position embeddings (exact torch gather ordering)
    hs_t = pred_h.transpose(0, 2, 1, 3)                                   # (B, ngram, S, H)
    rel_p = lin(hs_t.reshape(B * ngram * S, H), params["w_rel"], params["b_rel"])
    rel_p = rel_p.reshape(B, ngram, S, nb, nh).transpose(0, 2, 1, 4, 3).reshape(-1, nb)
    p_buckets = jnp.tile(predict_relative_position_buckets[None],
                         (ngram, 1, nh, 1)).reshape(-1, 2 * S)
    pred_rel = jnp.take_along_axis(rel_p, p_buckets, axis=1).reshape(B, ngram, nh, S, 2 * S)

    pred_w = jnp.einsum("bghtc,bghsc->bghts", pred_q, pred_k) + pred_rel
    if extended_predict_attention_mask is not None:
        pred_w = pred_w + extended_predict_attention_mask.transpose(0, 2, 1, 3, 4)
    pred_probs = jax.nn.softmax(pred_w.astype(jnp.float32), axis=-1)
    pred_out = jnp.einsum("bghts,bghsc->bghtc", pred_probs, pred_v)
    pred_out = pred_out.transpose(0, 1, 3, 2, 4).reshape(B * ngram * S, H)
    pred_out = lin(pred_out, params["wo"], params["bo"]).reshape(B, ngram, S, H)

    attn_output = jnp.concatenate([main_out, pred_out], axis=1).reshape(B, (1 + ngram) * S, H)
    return attn_output, main_probs, pred_probs, past_key_value


# ----------------------------- relative buckets / masks (test input construction) -----------------------------
def compute_relative_buckets(num_buckets, max_distance, relative_positions):
    inv = -relative_positions
    inv = jnp.maximum(inv, jnp.zeros_like(inv))
    max_exact = num_buckets // 2
    is_small = inv < max_exact
    val_if_large = max_exact + (
        jnp.log(inv.astype(jnp.float32) / max_exact)
        / math.log(max_distance / max_exact) * (num_buckets - max_exact))
    val_if_large = jnp.minimum(val_if_large, jnp.full_like(val_if_large, num_buckets - 1)).astype(jnp.int32)
    return jnp.where(is_small, inv.astype(jnp.int32), val_if_large)


def build_relative_buckets(batch, seq, num_buckets, max_distance):
    position_ids = jnp.arange(1, seq + 1, dtype=jnp.int32)[None, :]
    main_rel = position_ids[:, None, :] - position_ids[:, :, None]
    pred_pos = jnp.concatenate([position_ids - 1, position_ids], axis=-1)
    pred_rel = pred_pos[:, None, :] - position_ids[:, :, None]
    main_buckets = jnp.tile(compute_relative_buckets(num_buckets, max_distance, main_rel), (batch, 1, 1))
    pred_buckets = jnp.tile(compute_relative_buckets(num_buckets, max_distance, pred_rel), (batch, 1, 1))
    return main_buckets, pred_buckets


def build_masks(batch, nh, ngram, seq):
    neg = -1e9
    i = jnp.arange(seq)
    causal = jnp.where(i[None, :] <= i[:, None], 0.0, neg).astype(jnp.float32)
    attention_mask = jnp.broadcast_to(causal, (batch, nh, seq, seq))
    pred_pred = jnp.where(i[None, :] == i[:, None], 0.0, neg).astype(jnp.float32)
    pred = jnp.concatenate([causal, pred_pred], axis=-1)
    extended_predict_attention_mask = jnp.broadcast_to(pred, (batch, nh, ngram, seq, 2 * seq))
    return attention_mask, extended_predict_attention_mask


# ----------------------------- main -----------------------------
if __name__ == "__main__":
    key = jax.random.PRNGKey(0)
    keys = jax.random.split(key, 11)

    def lin_params(kw, kb, fan_in, fan_out):
        w = jax.random.normal(kw, (fan_in, fan_out), jnp.float32) * 0.02
        b = jax.random.normal(kb, (fan_out,), jnp.float32) * 0.02
        return w, b

    params = {}
    params["wq"], params["bq"] = lin_params(keys[0], keys[1], HIDDEN, HIDDEN)
    params["wk"], params["bk"] = lin_params(keys[2], keys[3], HIDDEN, HIDDEN)
    params["wv"], params["bv"] = lin_params(keys[4], keys[5], HIDDEN, HIDDEN)
    params["wo"], params["bo"] = lin_params(keys[6], keys[7], HIDDEN, HIDDEN)
    params["w_rel"], params["b_rel"] = lin_params(keys[8], keys[9], HIDDEN, NUM_BUCKETS * NUM_HEADS)

    hidden_states = jax.random.normal(keys[10], (BATCH, NGRAM_SEQ, HIDDEN), jnp.float32)
    main_buckets, pred_buckets = build_relative_buckets(BATCH, SEQ, NUM_BUCKETS, REL_MAX_DISTANCE)
    attn_mask, ext_pred_mask = build_masks(BATCH, NUM_HEADS, NGRAM, SEQ)

    pallas_fwd = jax.jit(prophetnet_ngram_attention_pallas)
    out, main_probs, pred_probs, past_kv = pallas_fwd(
        hidden_states, params, attn_mask, ext_pred_mask, main_buckets, pred_buckets)
    jax.block_until_ready((out, main_probs, pred_probs, past_kv))

    ref_out, ref_mp, ref_pp, ref_pkv = prophetnet_ngram_attention_ref(
        hidden_states, params, attn_mask, ext_pred_mask, main_buckets, pred_buckets)

    assert out.shape == (BATCH, NGRAM_SEQ, HIDDEN)
    assert main_probs.shape == (BATCH, NUM_HEADS, SEQ, SEQ)
    assert pred_probs.shape == (BATCH, NGRAM, NUM_HEADS, SEQ, 2 * SEQ)
    assert past_kv[0].shape == (BATCH, NUM_HEADS, SEQ, HEAD_DIM)

    np.testing.assert_allclose(np.asarray(out), np.asarray(ref_out), atol=1e-2, rtol=1e-2)
    np.testing.assert_allclose(np.asarray(main_probs), np.asarray(ref_mp), atol=1e-2, rtol=1e-2)
    np.testing.assert_allclose(np.asarray(pred_probs), np.asarray(ref_pp), atol=1e-2, rtol=1e-2)
    np.testing.assert_allclose(np.asarray(past_kv[0]), np.asarray(ref_pkv[0]), atol=1e-2, rtol=1e-2)
    np.testing.assert_allclose(np.asarray(past_kv[1]), np.asarray(ref_pkv[1]), atol=1e-2, rtol=1e-2)

    print("KERNEL_OK")
</pallas_src>

<mosaic_0001>
module attributes {stable_mosaic.version = 11 : i64} {
  func.func @_ngram_attention_kernel(%arg0: i32, %arg1: memref<24x32xf32, #tpu.memory_space<vmem>>, %arg2: memref<32x224xbf16, #tpu.memory_space<vmem>>, %arg3: memref<1x224xf32, #tpu.memory_space<vmem>>, %arg4: memref<32x32xf32, #tpu.memory_space<vmem>>, %arg5: memref<1x32xf32, #tpu.memory_space<vmem>>, %arg6: memref<8x8x32xbf16, #tpu.memory_space<vmem>>, %arg7: memref<16x16x32xbf16, #tpu.memory_space<vmem>>, %arg8: memref<32x8xf32, #tpu.memory_space<vmem>>, %arg9: memref<64x16xf32, #tpu.memory_space<vmem>>, %arg10: memref<24x32xf32, #tpu.memory_space<vmem>>, %arg11: memref<32x8xf32, #tpu.memory_space<vmem>>, %arg12: memref<64x16xf32, #tpu.memory_space<vmem>>, %arg13: memref<8x32xf32, #tpu.memory_space<vmem>>, %arg14: memref<8x32xf32, #tpu.memory_space<vmem>>, %arg15: memref<24x224xf32, #tpu.memory_space<vmem>>, %arg16: memref<24x32xf32, #tpu.memory_space<vmem>>, %arg17: memref<8x32xf32, #tpu.memory_space<vmem>>) attributes {dimension_semantics = [#tpu.dimension_semantics<parallel>], iteration_bounds = array<i64: 2>, scalar_prefetch = 0 : i64, scratch_operands = 3 : i64, tpu.core_type = #tpu.core_type<tc>, window_params = [{transform_indices = @transform_0, window_bounds = array<i64: 24, 32>}, {pipeline_mode = #tpu.pipeline_mode<synchronous>, transform_indices = @transform_1, window_bounds = array<i64: 32, 224>}, {pipeline_mode = #tpu.pipeline_mode<synchronous>, transform_indices = @transform_2, window_bounds = array<i64: 1, 224>}, {pipeline_mode = #tpu.pipeline_mode<synchronous>, transform_indices = @transform_3, window_bounds = array<i64: 32, 32>}, {pipeline_mode = #tpu.pipeline_mode<synchronous>, transform_indices = @transform_4, window_bounds = array<i64: 1, 32>}, {transform_indices = @transform_5, window_bounds = array<i64: 8, 8, 32>}, {pipeline_mode = #tpu.pipeline_mode<synchronous>, transform_indices = @transform_6, window_bounds = array<i64: 16, 16, 32>}, {transform_indices = @transform_7, window_bounds = array<i64: 32, 8>}, {transform_indices = @transform_8, window_bounds = array<i64: 64, 16>}, {transform_indices = @transform_9, window_bounds = array<i64: 24, 32>}, {transform_indices = @transform_10, window_bounds = array<i64: 32, 8>}, {transform_indices = @transform_11, window_bounds = array<i64: 64, 16>}, {transform_indices = @transform_12, window_bounds = array<i64: 8, 32>}, {transform_indices = @transform_13, window_bounds = array<i64: 8, 32>}]} {
    %c0 = arith.constant 0 : index
    %c0_0 = arith.constant 0 : index
    %0 = vector.load %arg1[%c0, %c0_0] : memref<24x32xf32, #tpu.memory_space<vmem>>, vector<24x32xf32>
    %1 = arith.truncf %0 : vector<24x32xf32> to vector<24x32xbf16>
    %c0_1 = arith.constant 0 : index
    %c0_2 = arith.constant 0 : index
    %2 = vector.load %arg2[%c0_1, %c0_2] : memref<32x224xbf16, #tpu.memory_space<vmem>>, vector<32x224xbf16>
    %cst = arith.constant dense<0.000000e+00> : vector<24x224xf32>
    %3 = tpu.matmul %1, %2, %cst {dimension_numbers = #tpu.dot_dimension_numbers<[1], [0], [0], [1], [0, 0, 1, 1], [], []>} : vector<24x32xbf16>, vector<32x224xbf16>, vector<24x224xf32> -> vector<24x224xf32>
    %c0_3 = arith.constant 0 : index
    %c0_4 = arith.constant 0 : index
    %4 = vector.load %arg3[%c0_3, %c0_4] : memref<1x224xf32, #tpu.memory_space<vmem>>, vector<1x224xf32>
    %5 = vector.broadcast %4 : vector<1x224xf32> to vector<24x224xf32>
    %6 = arith.addf %3, %5 : vector<24x224xf32>
    %c0_5 = arith.constant 0 : index
    %c0_6 = arith.constant 0 : index
    %7 = vector.load %arg15[%c0_5, %c0_6] : memref<24x224xf32, #tpu.memory_space<vmem>>, vector<24x224xf32>
    tpu.vector_store %arg15[%c0_5, %c0_6], %6 {strides = array<i32>} : memref<24x224xf32, #tpu.memory_space<vmem>>, vector<24x224xf32>,
    %c0_7 = arith.constant 0 : index
    %c32 = arith.constant 32 : index
    %8 = vector.load %arg15[%c0_7, %c32] : memref<24x224xf32, #tpu.memory_space<vmem>>, vector<8x32xf32>
    %c0_8 = arith.constant 0 : index
    %c0_9 = arith.constant 0 : index
    %9 = vector.load %arg13[%c0_8, %c0_9] : memref<8x32xf32, #tpu.memory_space<vmem>>, vector<8x32xf32>
    tpu.vector_store %arg13[%c0_8, %c0_9], %8 {strides = array<i32>} : memref<8x32xf32, #tpu.memory_space<vmem>>, vector<8x32xf32>,
    %c0_10 = arith.constant 0 : index
    %c64 = arith.constant 64 : index
    %10 = vector.load %arg15[%c0_10, %c64] : memref<24x224xf32, #tpu.memory_space<vmem>>, vector<8x32xf32>
    %c0_11 = arith.constant 0 : index
    %c0_12 = arith.constant 0 : index
    %11 = vector.load %arg14[%c0_11, %c0_12] : memref<8x32xf32, #tpu.memory_space<vmem>>, vector<8x32xf32>
    tpu.vector_store %arg14[%c0_11, %c0_12], %10 {strides = array<i32>} : memref<8x32xf32, #tpu.memory_space<vmem>>, vector<8x32xf32>,
    %c0_13 = arith.constant 0 : index
    %c0_14 = arith.constant 0 : index
    %c0_15 = arith.constant 0 : index
    %12 = vector.load %arg6[%c0_13, %c0_14, %c0_15] : memref<8x8x32xbf16, #tpu.memory_space<vmem>>, vector<8x8x32xbf16>
    %13 = arith.extf %12 : vector<8x8x32xbf16> to vector<8x8x32xf32>
    %c0_16 = arith.constant 0 : index
    %c0_17 = arith.constant 0 : index
    %14 = vector.load %arg15[%c0_16, %c0_17] : memref<24x224xf32, #tpu.memory_space<vmem>>, vector<8x8xf32>
    %c0_18 = arith.constant 0 : index
    %c32_19 = arith.constant 32 : index
    %15 = vector.load %arg15[%c0_18, %c32_19] : memref<24x224xf32, #tpu.memory_space<vmem>>, vector<8x8xf32>
    %c0_20 = arith.constant 0 : index
    %c64_21 = arith.constant 64 : index
    %16 = vector.load %arg15[%c0_20, %c64_21] : memref<24x224xf32, #tpu.memory_space<vmem>>, vector<8x8xf32>
    %c0_22 = arith.constant 0 : index
    %c96 = arith.constant 96 : index
    %17 = vector.load %arg15[%c0_22, %c96] : memref<24x224xf32, #tpu.memory_space<vmem>>, vector<8x32xf32>
    %18 = vector.shape_cast %17 : vector<8x32xf32> to vector<8x1x32xf32>
    %19 = vector.broadcast %18 : vector<8x1x32xf32> to vector<8x8x32xf32>
    %20 = arith.mulf %19, %13 : vector<8x8x32xf32>
    %cst_23 = arith.constant dense<0.000000e+00> : vector<8x8xf32>
    %21 = vector.multi_reduction <add>, %20, %cst_23 [2] : vector<8x8x32xf32> to vector<8x8xf32>
    %c0_24 = arith.constant 0 : index
    %c0_25 = arith.constant 0 : index
    %22 = vector.load %arg8[%c0_24, %c0_25] : memref<32x8xf32, #tpu.memory_space<vmem>>, vector<8x8xf32>
    %23 = arith.addf %21, %22 : vector<8x8xf32>
    %cst_26 = arith.constant dense<0.000000e+00> : vector<8x8xf32>
    %24 = tpu.matmul %14, %15, %cst_26 {dimension_numbers = #tpu.dot_dimension_numbers<[1], [1], [0], [0], [0, 0, 1, 0], [], []>} : vector<8x8xf32>, vector<8x8xf32>, vector<8x8xf32> -> vector<8x8xf32>
    %25 = arith.addf %24, %23 : vector<8x8xf32>
    %cst_27 = arith.constant dense<0xFF800000> : vector<8xf32>
    %26 = vector.multi_reduction <maximumf>, %25, %cst_27 [1] : vector<8x8xf32> to vector<8xf32>
    %27 = vector.shape_cast %26 : vector<8xf32> to vector<8x1xf32>
    %28 = vector.broadcast %27 : vector<8x1xf32> to vector<8x8xf32>
    %29 = arith.subf %25, %28 : vector<8x8xf32>
    %30 = math.exp %29 : vector<8x8xf32>
    %cst_28 = arith.constant dense<0.000000e+00> : vector<8xf32>
    %31 = vector.multi_reduction <add>, %30, %cst_28 [1] : vector<8x8xf32> to vector<8xf32>
    %32 = vector.shape_cast %31 : vector<8xf32> to vector<8x1xf32>
    %33 = tpu.reciprocal %32 {approx = true} : vector<8x1xf32> -> vector<8x1xf32>
    %34 = vector.broadcast %33 : vector<8x1xf32> to vector<8x8xf32>
    %35 = arith.mulf %30, %34 : vector<8x8xf32>
    %c0_29 = arith.constant 0 : index
    %c0_30 = arith.constant 0 : index
    %36 = vector.load %arg11[%c0_29, %c0_30] : memref<32x8xf32, #tpu.memory_space<vmem>>, vector<8x8xf32>
    tpu.vector_store %arg11[%c0_29, %c0_30], %35 {strides = array<i32>} : memref<32x8xf32, #tpu.memory_space<vmem>>, vector<8x8xf32>,
    %cst_31 = arith.constant dense<0.000000e+00> : vector<8x8xf32>
    %37 = tpu.matmul %35, %16, %cst_31 {dimension_numbers = #tpu.dot_dimension_numbers<[1], [0], [0], [1], [0, 0, 1, 1], [], []>} : vector<8x8xf32>, vector<8x8xf32>, vector<8x8xf32> -> vector<8x8xf32>
    %c0_32 = arith.constant 0 : index
    %c0_33 = arith.constant 0 : index
    %38 = vector.load %arg16[%c0_32, %c0_33] : memref<24x32xf32, #tpu.memory_space<vmem>>, vector<8x8xf32>
    tpu.vector_store %arg16[%c0_32, %c0_33], %37 {strides = array<i32>} : memref<24x32xf32, #tpu.memory_space<vmem>>, vector<8x8xf32>,
    %c0_34 = arith.constant 0 : index
    %c8 = arith.constant 8 : index
    %39 = vector.load %arg15[%c0_34, %c8] : memref<24x224xf32, #tpu.memory_space<vmem>>, vector<8x8xf32>
    %c0_35 = arith.constant 0 : index
    %c40 = arith.constant 40 : index
    %40 = vector.load %arg15[%c0_35, %c40] : memref<24x224xf32, #tpu.memory_space<vmem>>, vector<8x8xf32>
    %c0_36 = arith.constant 0 : index
    %c72 = arith.constant 72 : index
    %41 = vector.load %arg15[%c0_36, %c72] : memref<24x224xf32, #tpu.memory_space<vmem>>, vector<8x8xf32>
    %c0_37 = arith.constant 0 : index
    %c128 = arith.constant 128 : index
    %42 = vector.load %arg15[%c0_37, %c128] : memref<24x224xf32, #tpu.memory_space<vmem>>, vector<8x32xf32>
    %43 = vector.shape_cast %42 : vector<8x32xf32> to vector<8x1x32xf32>
    %44 = vector.broadcast %43 : vector<8x1x32xf32> to vector<8x8x32xf32>
    %45 = arith.mulf %44, %13 : vector<8x8x32xf32>
    %cst_38 = arith.constant dense<0.000000e+00> : vector<8x8xf32>
    %46 = vector.multi_reduction <add>, %45, %cst_38 [2] : vector<8x8x32xf32> to vector<8x8xf32>
    %c8_39 = arith.constant 8 : index
    %c0_40 = arith.constant 0 : index
    %47 = vector.load %arg8[%c8_39, %c0_40] : memref<32x8xf32, #tpu.memory_space<vmem>>, vector<8x8xf32>
    %48 = arith.addf %46, %47 : vector<8x8xf32>
    %cst_41 = arith.constant dense<0.000000e+00> : vector<8x8xf32>
    %49 = tpu.matmul %39, %40, %cst_41 {dimension_numbers = #tpu.dot_dimension_numbers<[1], [1], [0], [0], [0, 0, 1, 0], [], []>} : vector<8x8xf32>, vector<8x8xf32>, vector<8x8xf32> -> vector<8x8xf32>
    %50 = arith.addf %49, %48 : vector<8x8xf32>
    %cst_42 = arith.constant dense<0xFF800000> : vector<8xf32>
    %51 = vector.multi_reduction <maximumf>, %50, %cst_42 [1] : vector<8x8xf32> to vector<8xf32>
    %52 = vector.shape_cast %51 : vector<8xf32> to vector<8x1xf32>
    %53 = vector.broadcast %52 : vector<8x1xf32> to vector<8x8xf32>
    %54 = arith.subf %50, %53 : vector<8x8xf32>
    %55 = math.exp %54 : vector<8x8xf32>
    %cst_43 = arith.constant dense<0.000000e+00> : vector<8xf32>
    %56 = vector.multi_reduction <add>, %55, %cst_43 [1] : vector<8x8xf32> to vector<8xf32>
    %57 = vector.shape_cast %56 : vector<8xf32> to vector<8x1xf32>
    %58 = tpu.reciprocal %57 {approx = true} : vector<8x1xf32> -> vector<8x1xf32>
    %59 = vector.broadcast %58 : vector<8x1xf32> to vector<8x8xf32>
    %60 = arith.mulf %55, %59 : vector<8x8xf32>
    %c8_44 = arith.constant 8 : index
    %c0_45 = arith.constant 0 : index
    %61 = vector.load %arg11[%c8_44, %c0_45] : memref<32x8xf32, #tpu.memory_space<vmem>>, vector<8x8xf32>
    tpu.vector_store %arg11[%c8_44, %c0_45], %60 {strides = array<i32>} : memref<32x8xf32, #tpu.memory_space<vmem>>, vector<8x8xf32>,
    %cst_46 = arith.constant dense<0.000000e+00> : vector<8x8xf32>
    %62 = tpu.matmul %60, %41, %cst_46 {dimension_numbers = #tpu.dot_dimension_numbers<[1], [0], [0], [1], [0, 0, 1, 1], [], []>} : vector<8x8xf32>, vector<8x8xf32>, vector<8x8xf32> -> vector<8x8xf32>
    %c0_47 = arith.constant 0 : index
    %c8_48 = arith.constant 8 : index
    %63 = vector.load %arg16[%c0_47, %c8_48] : memref<24x32xf32, #tpu.memory_space<vmem>>, vector<8x8xf32>
    tpu.vector_store %arg16[%c0_47, %c8_48], %62 {strides = array<i32>} : memref<24x32xf32, #tpu.memory_space<vmem>>, vector<8x8xf32>,
    %c0_49 = arith.constant 0 : index
    %c16 = arith.constant 16 : index
    %64 = vector.load %arg15[%c0_49, %c16] : memref<24x224xf32, #tpu.memory_space<vmem>>, vector<8x8xf32>
    %c0_50 = arith.constant 0 : index
    %c48 = arith.constant 48 : index
    %65 = vector.load %arg15[%c0_50, %c48] : memref<24x224xf32, #tpu.memory_space<vmem>>, vector<8x8xf32>
    %c0_51 = arith.constant 0 : index
    %c80 = arith.constant 80 : index
    %66 = vector.load %arg15[%c0_51, %c80] : memref<24x224xf32, #tpu.memory_space<vmem>>, vector<8x8xf32>
    %c0_52 = arith.constant 0 : index
    %c160 = arith.constant 160 : index
    %67 = vector.load %arg15[%c0_52, %c160] : memref<24x224xf32, #tpu.memory_space<vmem>>, vector<8x32xf32>
    %68 = vector.shape_cast %67 : vector<8x32xf32> to vector<8x1x32xf32>
    %69 = vector.broadcast %68 : vector<8x1x32xf32> to vector<8x8x32xf32>
    %70 = arith.mulf %69, %13 : vector<8x8x32xf32>
    %cst_53 = arith.constant dense<0.000000e+00> : vector<8x8xf32>
    %71 = vector.multi_reduction <add>, %70, %cst_53 [2] : vector<8x8x32xf32> to vector<8x8xf32>
    %c16_54 = arith.constant 16 : index
    %c0_55 = arith.constant 0 : index
    %72 = vector.load %arg8[%c16_54, %c0_55] : memref<32x8xf32, #tpu.memory_space<vmem>>, vector<8x8xf32>
    %73 = arith.addf %71, %72 : vector<8x8xf32>
    %cst_56 = arith.constant dense<0.000000e+00> : vector<8x8xf32>
    %74 = tpu.matmul %64, %65, %cst_56 {dimension_numbers = #tpu.dot_dimension_numbers<[1], [1], [0], [0], [0, 0, 1, 0], [], []>} : vector<8x8xf32>, vector<8x8xf32>, vector<8x8xf32> -> vector<8x8xf32>
    %75 = arith.addf %74, %73 : vector<8x8xf32>
    %cst_57 = arith.constant dense<0xFF800000> : vector<8xf32>
    %76 = vector.multi_reduction <maximumf>, %75, %cst_57 [1] : vector<8x8xf32> to vector<8xf32>
    %77 = vector.shape_cast %76 : vector<8xf32> to vector<8x1xf32>
    %78 = vector.broadcast %77 : vector<8x1xf32> to vector<8x8xf32>
    %79 = arith.subf %75, %78 : vector<8x8xf32>
    %80 = math.exp %79 : vector<8x8xf32>
    %cst_58 = arith.constant dense<0.000000e+00> : vector<8xf32>
    %81 = vector.multi_reduction <add>, %80, %cst_58 [1] : vector<8x8xf32> to vector<8xf32>
    %82 = vector.shape_cast %81 : vector<8xf32> to vector<8x1xf32>
    %83 = tpu.reciprocal %82 {approx = true} : vector<8x1xf32> -> vector<8x1xf32>
    %84 = vector.broadcast %83 : vector<8x1xf32> to vector<8x8xf32>
    %85 = arith.mulf %80, %84 : vector<8x8xf32>
    %c16_59 = arith.constant 16 : index
    %c0_60 = arith.constant 0 : index
    %86 = vector.load %arg11[%c16_59, %c0_60] : memref<32x8xf32, #tpu.memory_space<vmem>>, vector<8x8xf32>
    tpu.vector_store %arg11[%c16_59, %c0_60], %85 {strides = array<i32>} : memref<32x8xf32, #tpu.memory_space<vmem>>, vector<8x8xf32>,
    %cst_61 = arith.constant dense<0.000000e+00> : vector<8x8xf32>
    %87 = tpu.matmul %85, %66, %cst_61 {dimension_numbers = #tpu.dot_dimension_numbers<[1], [0], [0], [1], [0, 0, 1, 1], [], []>} : vector<8x8xf32>, vector<8x8xf32>, vector<8x8xf32> -> vector<8x8xf32>
    %c0_62 = arith.constant 0 : index
    %c16_63 = arith.constant 16 : index
    %88 = vector.load %arg16[%c0_62, %c16_63] : memref<24x32xf32, #tpu.memory_space<vmem>>, vector<8x8xf32>
    tpu.vector_store %arg16[%c0_62, %c16_63], %87 {strides = array<i32>} : memref<24x32xf32, #tpu.memory_space<vmem>>, vector<8x8xf32>,
    %c0_64 = arith.constant 0 : index
    %c24 = arith.constant 24 : index
    %89 = vector.load %arg15[%c0_64, %c24] : memref<24x224xf32, #tpu.memory_space<vmem>>, vector<8x8xf32>
    %c0_65 = arith.constant 0 : index
    %c56 = arith.constant 56 : index
    %90 = vector.load %arg15[%c0_65, %c56] : memref<24x224xf32, #tpu.memory_space<vmem>>, vector<8x8xf32>
    %c0_66 = arith.constant 0 : index
    %c88 = arith.constant 88 : index
    %91 = vector.load %arg15[%c0_66, %c88] : memref<24x224xf32, #tpu.memory_space<vmem>>, vector<8x8xf32>
    %c0_67 = arith.constant 0 : index
    %c192 = arith.constant 192 : index
    %92 = vector.load %arg15[%c0_67, %c192] : memref<24x224xf32, #tpu.memory_space<vmem>>, vector<8x32xf32>
    %93 = vector.shape_cast %92 : vector<8x32xf32> to vector<8x1x32xf32>
    %94 = vector.broadcast %93 : vector<8x1x32xf32> to vector<8x8x32xf32>
    %95 = arith.mulf %94, %13 : vector<8x8x32xf32>
    %cst_68 = arith.constant dense<0.000000e+00> : vector<8x8xf32>
    %96 = vector.multi_reduction <add>, %95, %cst_68 [2] : vector<8x8x32xf32> to vector<8x8xf32>
    %c24_69 = arith.constant 24 : index
    %c0_70 = arith.constant 0 : index
    %97 = vector.load %arg8[%c24_69, %c0_70] : memref<32x8xf32, #tpu.memory_space<vmem>>, vector<8x8xf32>
    %98 = arith.addf %96, %97 : vector<8x8xf32>
    %cst_71 = arith.constant dense<0.000000e+00> : vector<8x8xf32>
    %99 = tpu.matmul %89, %90, %cst_71 {dimension_numbers = #tpu.dot_dimension_numbers<[1], [1], [0], [0], [0, 0, 1, 0], [], []>} : vector<8x8xf32>, vector<8x8xf32>, vector<8x8xf32> -> vector<8x8xf32>
    %100 = arith.addf %99, %98 : vector<8x8xf32>
    %cst_72 = arith.constant dense<0xFF800000> : vector<8xf32>
    %101 = vector.multi_reduction <maximumf>, %100, %cst_72 [1] : vector<8x8xf32> to vector<8xf32>
    %102 = vector.shape_cast %101 : vector<8xf32> to vector<8x1xf32>
    %103 = vector.broadcast %102 : vector<8x1xf32> to vector<8x8xf32>
    %104 = arith.subf %100, %103 : vector<8x8xf32>
    %105 = math.exp %104 : vector<8x8xf32>
    %cst_73 = arith.constant dense<0.000000e+00> : vector<8xf32>
    %106 = vector.multi_reduction <add>, %105, %cst_73 [1] : vector<8x8xf32> to vector<8xf32>
    %107 = vector.shape_cast %106 : vector<8xf32> to vector<8x1xf32>
    %108 = tpu.reciprocal %107 {approx = true} : vector<8x1xf32> -> vector<8x1xf32>
    %109 = vector.broadcast %108 : vector<8x1xf32> to vector<8x8xf32>
    %110 = arith.mulf %105, %109 : vector<8x8xf32>
    %c24_74 = arith.constant 24 : index
    %c0_75 = arith.constant 0 : index
    %111 = vector.load %arg11[%c24_74, %c0_75] : memref<32x8xf32, #tpu.memory_space<vmem>>, vector<8x8xf32>
    tpu.vector_store %arg11[%c24_74, %c0_75], %110 {strides = array<i32>} : memref<32x8xf32, #tpu.memory_space<vmem>>, vector<8x8xf32>,
    %cst_76 = arith.constant dense<0.000000e+00> : vector<8x8xf32>
    %112 = tpu.matmul %110, %91, %cst_76 {dimension_numbers = #tpu.dot_dimension_numbers<[1], [0], [0], [1], [0, 0, 1, 1], [], []>} : vector<8x8xf32>, vector<8x8xf32>, vector<8x8xf32> -> vector<8x8xf32>
    %c0_77 = arith.constant 0 : index
    %c24_78 = arith.constant 24 : index
    %113 = vector.load %arg16[%c0_77, %c24_78] : memref<24x32xf32, #tpu.memory_space<vmem>>, vector<8x8xf32>
    tpu.vector_store %arg16[%c0_77, %c24_78], %112 {strides = array<i32>} : memref<24x32xf32, #tpu.memory_space<vmem>>, vector<8x8xf32>,
    %c0_79 = arith.constant 0 : index
    %c0_80 = arith.constant 0 : index
    %c0_81 = arith.constant 0 : index
    %114 = vector.load %arg7[%c0_79, %c0_80, %c0_81] : memref<16x16x32xbf16, #tpu.memory_space<vmem>>, vector<8x16x32xbf16>
    %115 = arith.extf %114 : vector<8x16x32xbf16> to vector<8x16x32xf32>
    %c8_82 = arith.constant 8 : index
    %c0_83 = arith.constant 0 : index
    %116 = vector.load %arg15[%c8_82, %c0_83] : memref<24x224xf32, #tpu.memory_space<vmem>>, vector<8x8xf32>
    %c0_84 = arith.constant 0 : index
    %c32_85 = arith.constant 32 : index
    %117 = vector.load %arg15[%c0_84, %c32_85] : memref<24x224xf32, #tpu.memory_space<vmem>>, vector<8x8xf32>
    %c8_86 = arith.constant 8 : index
    %c32_87 = arith.constant 32 : index
    %118 = vector.load %arg15[%c8_86, %c32_87] : memref<24x224xf32, #tpu.memory_space<vmem>>, vector<8x8xf32>
    %119 = tpu.concatenate %117, %118 in 0 : vector<8x8xf32>, vector<8x8xf32> -> vector<16x8xf32>
    %c0_88 = arith.constant 0 : index
    %c64_89 = arith.constant 64 : index
    %120 = vector.load %arg15[%c0_88, %c64_89] : memref<24x224xf32, #tpu.memory_space<vmem>>, vector<8x8xf32>
    %c8_90 = arith.constant 8 : index
    %c64_91 = arith.constant 64 : index
    %121 = vector.load %arg15[%c8_90, %c64_91] : memref<24x224xf32, #tpu.memory_space<vmem>>, vector<8x8xf32>
    %122 = tpu.concatenate %120, %121 in 0 : vector<8x8xf32>, vector<8x8xf32> -> vector<16x8xf32>
    %c8_92 = arith.constant 8 : index
    %c96_93 = arith.constant 96 : index
    %123 = vector.load %arg15[%c8_92, %c96_93] : memref<24x224xf32, #tpu.memory_space<vmem>>, vector<1x32xf32>
    %c0_94 = arith.constant 0 : index
    %c0_95 = arith.constant 0 : index
    %124 = vector.load %arg17[%c0_94, %c0_95] : memref<8x32xf32, #tpu.memory_space<vmem>>, vector<1x32xf32>
    tpu.vector_store %arg17[%c0_94, %c0_95], %123 {strides = array<i32>} : memref<8x32xf32, #tpu.memory_space<vmem>>, vector<1x32xf32>,
    %c16_96 = arith.constant 16 : index
    %c96_97 = arith.constant 96 : index
    %125 = vector.load %arg15[%c16_96, %c96_97] : memref<24x224xf32, #tpu.memory_space<vmem>>, vector<1x32xf32>
    %c4 = arith.constant 4 : index
    %c0_98 = arith.constant 0 : index
    %126 = vector.load %arg17[%c4, %c0_98] : memref<8x32xf32, #tpu.memory_space<vmem>>, vector<1x32xf32>
    tpu.vector_store %arg17[%c4, %c0_98], %125 {strides = array<i32>} : memref<8x32xf32, #tpu.memory_space<vmem>>, vector<1x32xf32>,
    %c8_99 = arith.constant 8 : index
    %c128_100 = arith.constant 128 : index
    %127 = vector.load %arg15[%c8_99, %c128_100] : memref<24x224xf32, #tpu.memory_space<vmem>>, vector<1x32xf32>
    %c1 = arith.constant 1 : index
    %c0_101 = arith.constant 0 : index
    %128 = vector.load %arg17[%c1, %c0_101] : memref<8x32xf32, #tpu.memory_space<vmem>>, vector<1x32xf32>
    tpu.vector_store %arg17[%c1, %c0_101], %127 {strides = array<i32>} : memref<8x32xf32, #tpu.memory_space<vmem>>, vector<1x32xf32>,
    %c16_102 = arith.constant 16 : index
    %c128_103 = arith.constant 128 : index
    %129 = vector.load %arg15[%c16_102, %c128_103] : memref<24x224xf32, #tpu.memory_space<vmem>>, vector<1x32xf32>
    %c5 = arith.constant 5 : index
    %c0_104 = arith.constant 0 : index
    %130 = vector.load %arg17[%c5, %c0_104] : memref<8x32xf32, #tpu.memory_space<vmem>>, vector<1x32xf32>
    tpu.vector_store %arg17[%c5, %c0_104], %129 {strides = array<i32>} : memref<8x32xf32, #tpu.memory_space<vmem>>, vector<1x32xf32>,
    %c8_105 = arith.constant 8 : index
    %c160_106 = arith.constant 160 : index
    %131 = vector.load %arg15[%c8_105, %c160_106] : memref<24x224xf32, #tpu.memory_space<vmem>>, vector<1x32xf32>
    %c2 = arith.constant 2 : index
    %c0_107 = arith.constant 0 : index
    %132 = vector.load %arg17[%c2, %c0_107] : memref<8x32xf32, #tpu.memory_space<vmem>>, vector<1x32xf32>
    tpu.vector_store %arg17[%c2, %c0_107], %131 {strides = array<i32>} : memref<8x32xf32, #tpu.memory_space<vmem>>, vector<1x32xf32>,
    %c16_108 = arith.constant 16 : index
    %c160_109 = arith.constant 160 : index
    %133 = vector.load %arg15[%c16_108, %c160_109] : memref<24x224xf32, #tpu.memory_space<vmem>>, vector<1x32xf32>
    %c6 = arith.constant 6 : index
    %c0_110 = arith.constant 0 : index
    %134 = vector.load %arg17[%c6, %c0_110] : memref<8x32xf32, #tpu.memory_space<vmem>>, vector<1x32xf32>
    tpu.vector_store %arg17[%c6, %c0_110], %133 {strides = array<i32>} : memref<8x32xf32, #tpu.memory_space<vmem>>, vector<1x32xf32>,
    %c8_111 = arith.constant 8 : index
    %c192_112 = arith.constant 192 : index
    %135 = vector.load %arg15[%c8_111, %c192_112] : memref<24x224xf32, #tpu.memory_space<vmem>>, vector<1x32xf32>
    %c3 = arith.constant 3 : index
    %c0_113 = arith.constant 0 : index
    %136 = vector.load %arg17[%c3, %c0_113] : memref<8x32xf32, #tpu.memory_space<vmem>>, vector<1x32xf32>
    tpu.vector_store %arg17[%c3, %c0_113], %135 {strides = array<i32>} : memref<8x32xf32, #tpu.memory_space<vmem>>, vector<1x32xf32>,
    %c16_114 = arith.constant 16 : index
    %c192_115 = arith.constant 192 : index
    %137 = vector.load %arg15[%c16_114, %c192_115] : memref<24x224xf32, #tpu.memory_space<vmem>>, vector<1x32xf32>
    %c7 = arith.constant 7 : index
    %c0_116 = arith.constant 0 : index
    %138 = vector.load %arg17[%c7, %c0_116] : memref<8x32xf32, #tpu.memory_space<vmem>>, vector<1x32xf32>
    tpu.vector_store %arg17[%c7, %c0_116], %137 {strides = array<i32>} : memref<8x32xf32, #tpu.memory_space<vmem>>, vector<1x32xf32>,
    %c0_117 = arith.constant 0 : index
    %c0_118 = arith.constant 0 : index
    %139 = vector.load %arg17[%c0_117, %c0_118] : memref<8x32xf32, #tpu.memory_space<vmem>>, vector<8x32xf32>
    %140 = vector.shape_cast %139 : vector<8x32xf32> to vector<8x1x32xf32>
    %141 = vector.broadcast %140 : vector<8x1x32xf32> to vector<8x16x32xf32>
    %142 = arith.mulf %141, %115 : vector<8x16x32xf32>
    %cst_119 = arith.constant dense<0.000000e+00> : vector<8x16xf32>
    %143 = vector.multi_reduction <add>, %142, %cst_119 [2] : vector<8x16x32xf32> to vector<8x16xf32>
    %c0_120 = arith.constant 0 : index
    %c0_121 = arith.constant 0 : index
    %144 = vector.load %arg9[%c0_120, %c0_121] : memref<64x16xf32, #tpu.memory_space<vmem>>, vector<8x16xf32>
    %145 = arith.addf %143, %144 : vector<8x16xf32>
    %cst_122 = arith.constant dense<0.000000e+00> : vector<8x16xf32>
    %146 = tpu.matmul %116, %119, %cst_122 {dimension_numbers = #tpu.dot_dimension_numbers<[1], [1], [0], [0], [0, 0, 1, 0], [], []>} : vector<8x8xf32>, vector<16x8xf32>, vector<8x16xf32> -> vector<8x16xf32>
    %147 = arith.addf %146, %145 : vector<8x16xf32>
    %cst_123 = arith.constant dense<0xFF800000> : vector<8xf32>
    %148 = vector.multi_reduction <maximumf>, %147, %cst_123 [1] : vector<8x16xf32> to vector<8xf32>
    %149 = vector.shape_cast %148 : vector<8xf32> to vector<8x1xf32>
    %150 = vector.broadcast %149 : vector<8x1xf32> to vector<8x16xf32>
    %151 = arith.subf %147, %150 : vector<8x16xf32>
    %152 = math.exp %151 : vector<8x16xf32>
    %cst_124 = arith.constant dense<0.000000e+00> : vector<8xf32>
    %153 = vector.multi_reduction <add>, %152, %cst_124 [1] : vector<8x16xf32> to vector<8xf32>
    %154 = vector.shape_cast %153 : vector<8xf32> to vector<8x1xf32>
    %155 = tpu.reciprocal %154 {approx = true} : vector<8x1xf32> -> vector<8x1xf32>
    %156 = vector.broadcast %155 : vector<8x1xf32> to vector<8x16xf32>
    %157 = arith.mulf %152, %156 : vector<8x16xf32>
    %c0_125 = arith.constant 0 : index
    %c0_126 = arith.constant 0 : index
    %158 = vector.load %arg12[%c0_125, %c0_126] : memref<64x16xf32, #tpu.memory_space<vmem>>, vector<8x16xf32>
    tpu.vector_store %arg12[%c0_125, %c0_126], %157 {strides = array<i32>} : memref<64x16xf32, #tpu.memory_space<vmem>>, vector<8x16xf32>,
    %cst_127 = arith.constant dense<0.000000e+00> : vector<8x8xf32>
    %159 = tpu.matmul %157, %122, %cst_127 {dimension_numbers = #tpu.dot_dimension_numbers<[1], [0], [0], [1], [0, 0, 1, 1], [], []>} : vector<8x16xf32>, vector<16x8xf32>, vector<8x8xf32> -> vector<8x8xf32>
    %c8_128 = arith.constant 8 : index
    %c0_129 = arith.constant 0 : index
    %160 = vector.load %arg16[%c8_128, %c0_129] : memref<24x32xf32, #tpu.memory_space<vmem>>, vector<8x8xf32>
    tpu.vector_store %arg16[%c8_128, %c0_129], %159 {strides = array<i32>} : memref<24x32xf32, #tpu.memory_space<vmem>>, vector<8x8xf32>,
    %c8_130 = arith.constant 8 : index
    %c8_131 = arith.constant 8 : index
    %161 = vector.load %arg15[%c8_130, %c8_131] : memref<24x224xf32, #tpu.memory_space<vmem>>, vector<8x8xf32>
    %c0_132 = arith.constant 0 : index
    %c40_133 = arith.constant 40 : index
    %162 = vector.load %arg15[%c0_132, %c40_133] : memref<24x224xf32, #tpu.memory_space<vmem>>, vector<8x8xf32>
    %c8_134 = arith.constant 8 : index
    %c40_135 = arith.constant 40 : index
    %163 = vector.load %arg15[%c8_134, %c40_135] : memref<24x224xf32, #tpu.memory_space<vmem>>, vector<8x8xf32>
    %164 = tpu.concatenate %162, %163 in 0 : vector<8x8xf32>, vector<8x8xf32> -> vector<16x8xf32>
    %c0_136 = arith.constant 0 : index
    %c72_137 = arith.constant 72 : index
    %165 = vector.load %arg15[%c0_136, %c72_137] : memref<24x224xf32, #tpu.memory_space<vmem>>, vector<8x8xf32>
    %c8_138 = arith.constant 8 : index
    %c72_139 = arith.constant 72 : index
    %166 = vector.load %arg15[%c8_138, %c72_139] : memref<24x224xf32, #tpu.memory_space<vmem>>, vector<8x8xf32>
    %167 = tpu.concatenate %165, %166 in 0 : vector<8x8xf32>, vector<8x8xf32> -> vector<16x8xf32>
    %c9 = arith.constant 9 : index
    %c96_140 = arith.constant 96 : index
    %168 = vector.load %arg15[%c9, %c96_140] : memref<24x224xf32, #tpu.memory_space<vmem>>, vector<1x32xf32>
    %c0_141 = arith.constant 0 : index
    %c0_142 = arith.constant 0 : index
    %169 = vector.load %arg17[%c0_141, %c0_142] : memref<8x32xf32, #tpu.memory_space<vmem>>, vector<1x32xf32>
    tpu.vector_store %arg17[%c0_141, %c0_142], %168 {strides = array<i32>} : memref<8x32xf32, #tpu.memory_space<vmem>>, vector<1x32xf32>,
    %c17 = arith.constant 17 : index
    %c96_143 = arith.constant 96 : index
    %170 = vector.load %arg15[%c17, %c96_143] : memref<24x224xf32, #tpu.memory_space<vmem>>, vector<1x32xf32>
    %c4_144 = arith.constant 4 : index
    %c0_145 = arith.constant 0 : index
    %171 = vector.load %arg17[%c4_144, %c0_145] : memref<8x32xf32, #tpu.memory_space<vmem>>, vector<1x32xf32>
    tpu.vector_store %arg17[%c4_144, %c0_145], %170 {strides = array<i32>} : memref<8x32xf32, #tpu.memory_space<vmem>>, vector<1x32xf32>,
    %c9_146 = arith.constant 9 : index
    %c128_147 = arith.constant 128 : index
    %172 = vector.load %arg15[%c9_146, %c128_147] : memref<24x224xf32, #tpu.memory_space<vmem>>, vector<1x32xf32>
    %c1_148 = arith.constant 1 : index
    %c0_149 = arith.constant 0 : index
    %173 = vector.load %arg17[%c1_148, %c0_149] : memref<8x32xf32, #tpu.memory_space<vmem>>, vector<1x32xf32>
    tpu.vector_store %arg17[%c1_148, %c0_149], %172 {strides = array<i32>} : memref<8x32xf32, #tpu.memory_space<vmem>>, vector<1x32xf32>,
    %c17_150 = arith.constant 17 : index
    %c128_151 = arith.constant 128 : index
    %174 = vector.load %arg15[%c17_150, %c128_151] : memref<24x224xf32, #tpu.memory_space<vmem>>, vector<1x32xf32>
    %c5_152 = arith.constant 5 : index
    %c0_153 = arith.constant 0 : index
    %175 = vector.load %arg17[%c5_152, %c0_153] : memref<8x32xf32, #tpu.memory_space<vmem>>, vector<1x32xf32>
    tpu.vector_store %arg17[%c5_152, %c0_153], %174 {strides = array<i32>} : memref<8x32xf32, #tpu.memory_space<vmem>>, vector<1x32xf32>,
    %c9_154 = arith.constant 9 : index
    %c160_155 = arith.constant 160 : index
    %176 = vector.load %arg15[%c9_154, %c160_155] : memref<24x224xf32, #tpu.memory_space<vmem>>, vector<1x32xf32>
    %c2_156 = arith.constant 2 : index
    %c0_157 = arith.constant 0 : index
    %177 = vector.load %arg17[%c2_156, %c0_157] : memref<8x32xf32, #tpu.memory_space<vmem>>, vector<1x32xf32>
    tpu.vector_store %arg17[%c2_156, %c0_157], %176 {strides = array<i32>} : memref<8x32xf32, #tpu.memory_space<vmem>>, vector<1x32xf32>,
    %c17_158 = arith.constant 17 : index
    %c160_159 = arith.constant 160 : index
    %178 = vector.load %arg15[%c17_158, %c160_159] : memref<24x224xf32, #tpu.memory_space<vmem>>, vector<1x32xf32>
    %c6_160 = arith.constant 6 : index
    %c0_161 = arith.constant 0 : index
    %179 = vector.load %arg17[%c6_160, %c0_161] : memref<8x32xf32, #tpu.memory_space<vmem>>, vector<1x32xf32>
    tpu.vector_store %arg17[%c6_160, %c0_161], %178 {strides = array<i32>} : memref<8x32xf32, #tpu.memory_space<vmem>>, vector<1x32xf32>,
    %c9_162 = arith.constant 9 : index
    %c192_163 = arith.constant 192 : index
    %180 = vector.load %arg15[%c9_162, %c192_163] : memref<24x224xf32, #tpu.memory_space<vmem>>, vector<1x32xf32>
    %c3_164 = arith.constant 3 : index
    %c0_165 = arith.constant 0 : index
    %181 = vector.load %arg17[%c3_164, %c0_165] : memref<8x32xf32, #tpu.memory_space<vmem>>, vector<1x32xf32>
    tpu.vector_store %arg17[%c3_164, %c0_165], %180 {strides = array<i32>} : memref<8x32xf32, #tpu.memory_space<vmem>>, vector<1x32xf32>,
    %c17_166 = arith.constant 17 : index
    %c192_167 = arith.constant 192 : index
    %182 = vector.load %arg15[%c17_166, %c192_167] : memref<24x224xf32, #tpu.memory_space<vmem>>, vector<1x32xf32>
    %c7_168 = arith.constant 7 : index
    %c0_169 = arith.constant 0 : index
    %183 = vector.load %arg17[%c7_168, %c0_169] : memref<8x32xf32, #tpu.memory_space<vmem>>, vector<1x32xf32>
    tpu.vector_store %arg17[%c7_168, %c0_169], %182 {strides = array<i32>} : memref<8x32xf32, #tpu.memory_space<vmem>>, vector<1x32xf32>,
    %c0_170 = arith.constant 0 : index
    %c0_171 = arith.constant 0 : index
    %184 = vector.load %arg17[%c0_170, %c0_171] : memref<8x32xf32, #tpu.memory_space<vmem>>, vector<8x32xf32>
    %185 = vector.shape_cast %184 : vector<8x32xf32> to vector<8x1x32xf32>
    %186 = vector.broadcast %185 : vector<8x1x32xf32> to vector<8x16x32xf32>
    %187 = arith.mulf %186, %115 : vector<8x16x32xf32>
    %cst_172 = arith.constant dense<0.000000e+00> : vector<8x16xf32>
    %188 = vector.multi_reduction <add>, %187, %cst_172 [2] : vector<8x16x32xf32> to vector<8x16xf32>
    %c16_173 = arith.constant 16 : index
    %c0_174 = arith.constant 0 : index
    %189 = vector.load %arg9[%c16_173, %c0_174] : memref<64x16xf32, #tpu.memory_space<vmem>>, vector<8x16xf32>
    %190 = arith.addf %188, %189 : vector<8x16xf32>
    %cst_175 = arith.constant dense<0.000000e+00> : vector<8x16xf32>
    %191 = tpu.matmul %161, %164, %cst_175 {dimension_numbers = #tpu.dot_dimension_numbers<[1], [1], [0], [0], [0, 0, 1, 0], [], []>} : vector<8x8xf32>, vector<16x8xf32>, vector<8x16xf32> -> vector<8x16xf32>
    %192 = arith.addf %191, %190 : vector<8x16xf32>
    %cst_176 = arith.constant dense<0xFF800000> : vector<8xf32>
    %193 = vector.multi_reduction <maximumf>, %192, %cst_176 [1] : vector<8x16xf32> to vector<8xf32>
    %194 = vector.shape_cast %193 : vector<8xf32> to vector<8x1xf32>
    %195 = vector.broadcast %194 : vector<8x1xf32> to vector<8x16xf32>
    %196 = arith.subf %192, %195 : vector<8x16xf32>
    %197 = math.exp %196 : vector<8x16xf32>
    %cst_177 = arith.constant dense<0.000000e+00> : vector<8xf32>
    %198 = vector.multi_reduction <add>, %197, %cst_177 [1] : vector<8x16xf32> to vector<8xf32>
    %199 = vector.shape_cast %198 : vector<8xf32> to vector<8x1xf32>
    %200 = tpu.reciprocal %199 {approx = true} : vector<8x1xf32> -> vector<8x1xf32>
    %201 = vector.broadcast %200 : vector<8x1xf32> to vector<8x16xf32>
    %202 = arith.mulf %197, %201 : vector<8x16xf32>
    %c8_178 = arith.constant 8 : index
    %c0_179 = arith.constant 0 : index
    %203 = vector.load %arg12[%c8_178, %c0_179] : memref<64x16xf32, #tpu.memory_space<vmem>>, vector<8x16xf32>
    tpu.vector_store %arg12[%c8_178, %c0_179], %202 {strides = array<i32>} : memref<64x16xf32, #tpu.memory_space<vmem>>, vector<8x16xf32>,
    %cst_180 = arith.constant dense<0.000000e+00> : vector<8x8xf32>
    %204 = tpu.matmul %202, %167, %cst_180 {dimension_numbers = #tpu.dot_dimension_numbers<[1], [0], [0], [1], [0, 0, 1, 1], [], []>} : vector<8x16xf32>, vector<16x8xf32>, vector<8x8xf32> -> vector<8x8xf32>
    %c8_181 = arith.constant 8 : index
    %c8_182 = arith.constant 8 : index
    %205 = vector.load %arg16[%c8_181, %c8_182] : memref<24x32xf32, #tpu.memory_space<vmem>>, vector<8x8xf32>
    tpu.vector_store %arg16[%c8_181, %c8_182], %204 {strides = array<i32>} : memref<24x32xf32, #tpu.memory_space<vmem>>, vector<8x8xf32>,
    %c8_183 = arith.constant 8 : index
    %c16_184 = arith.constant 16 : index
    %206 = vector.load %arg15[%c8_183, %c16_184] : memref<24x224xf32, #tpu.memory_space<vmem>>, vector<8x8xf32>
    %c0_185 = arith.constant 0 : index
    %c48_186 = arith.constant 48 : index
    %207 = vector.load %arg15[%c0_185, %c48_186] : memref<24x224xf32, #tpu.memory_space<vmem>>, vector<8x8xf32>
    %c8_187 = arith.constant 8 : index
    %c48_188 = arith.constant 48 : index
    %208 = vector.load %arg15[%c8_187, %c48_188] : memref<24x224xf32, #tpu.memory_space<vmem>>, vector<8x8xf32>
    %209 = tpu.concatenate %207, %208 in 0 : vector<8x8xf32>, vector<8x8xf32> -> vector<16x8xf32>
    %c0_189 = arith.constant 0 : index
    %c80_190 = arith.constant 80 : index
    %210 = vector.load %arg15[%c0_189, %c80_190] : memref<24x224xf32, #tpu.memory_space<vmem>>, vector<8x8xf32>
    %c8_191 = arith.constant 8 : index
    %c80_192 = arith.constant 80 : index
    %211 = vector.load %arg15[%c8_191, %c80_192] : memref<24x224xf32, #tpu.memory_space<vmem>>, vector<8x8xf32>
    %212 = tpu.concatenate %210, %211 in 0 : vector<8x8xf32>, vector<8x8xf32> -> vector<16x8xf32>
    %c10 = arith.constant 10 : index
    %c96_193 = arith.constant 96 : index
    %213 = vector.load %arg15[%c10, %c96_193] : memref<24x224xf32, #tpu.memory_space<vmem>>, vector<1x32xf32>
    %c0_194 = arith.constant 0 : index
    %c0_195 = arith.constant 0 : index
    %214 = vector.load %arg17[%c0_194, %c0_195] : memref<8x32xf32, #tpu.memory_space<vmem>>, vector<1x32xf32>
    tpu.vector_store %arg17[%c0_194, %c0_195], %213 {strides = array<i32>} : memref<8x32xf32, #tpu.memory_space<vmem>>, vector<1x32xf32>,
    %c18 = arith.constant 18 : index
    %c96_196 = arith.constant 96 : index
    %215 = vector.load %arg15[%c18, %c96_196] : memref<24x224xf32, #tpu.memory_space<vmem>>, vector<1x32xf32>
    %c4_197 = arith.constant 4 : index
    %c0_198 = arith.constant 0 : index
    %216 = vector.load %arg17[%c4_197, %c0_198] : memref<8x32xf32, #tpu.memory_space<vmem>>, vector<1x32xf32>
    tpu.vector_store %arg17[%c4_197, %c0_198], %215 {strides = array<i32>} : memref<8x32xf32, #tpu.memory_space<vmem>>, vector<1x32xf32>,
    %c10_199 = arith.constant 10 : index
    %c128_200 = arith.constant 128 : index
    %217 = vector.load %arg15[%c10_199, %c128_200] : memref<24x224xf32, #tpu.memory_space<vmem>>, vector<1x32xf32>
    %c1_201 = arith.constant 1 : index
    %c0_202 = arith.constant 0 : index
    %218 = vector.load %arg17[%c1_201, %c0_202] : memref<8x32xf32, #tpu.memory_space<vmem>>, vector<1x32xf32>
    tpu.vector_store %arg17[%c1_201, %c0_202], %217 {strides = array<i32>} : memref<8x32xf32, #tpu.memory_space<vmem>>, vector<1x32xf32>,
    %c18_203 = arith.constant 18 : index
    %c128_204 = arith.constant 128 : index
    %219 = vector.load %arg15[%c18_203, %c128_204] : memref<24x224xf32, #tpu.memory_space<vmem>>, vector<1x32xf32>
    %c5_205 = arith.constant 5 : index
    %c0_206 = arith.constant 0 : index
    %220 = vector.load %arg17[%c5_205, %c0_206] : memref<8x32xf32, #tpu.memory_space<vmem>>, vector<1x32xf32>
    tpu.vector_store %arg17[%c5_205, %c0_206], %219 {strides = array<i32>} : memref<8x32xf32, #tpu.memory_space<vmem>>, vector<1x32xf32>,
    %c10_207 = arith.constant 10 : index
    %c160_208 = arith.constant 160 : index
    %221 = vector.load %arg15[%c10_207, %c160_208] : memref<24x224xf32, #tpu.memory_space<vmem>>, vector<1x32xf32>
    %c2_209 = arith.constant 2 : index
    %c0_210 = arith.constant 0 : index
    %222 = vector.load %arg17[%c2_209, %c0_210] : memref<8x32xf32, #tpu.memory_space<vmem>>, vector<1x32xf32>
    tpu.vector_store %arg17[%c2_209, %c0_210], %221 {strides = array<i32>} : memref<8x32xf32, #tpu.memory_space<vmem>>, vector<1x32xf32>,
    %c18_211 = arith.constant 18 : index
    %c160_212 = arith.constant 160 : index
    %223 = vector.load %arg15[%c18_211, %c160_212] : memref<24x224xf32, #tpu.memory_space<vmem>>, vector<1x32xf32>
    %c6_213 = arith.constant 6 : index
    %c0_214 = arith.constant 0 : index
    %224 = vector.load %arg17[%c6_213, %c0_214] : memref<8x32xf32, #tpu.memory_space<vmem>>, vector<1x32xf32>
    tpu.vector_store %arg17[%c6_213, %c0_214], %223 {strides = array<i32>} : memref<8x32xf32, #tpu.memory_space<vmem>>, vector<1x32xf32>,
    %c10_215 = arith.constant 10 : index
    %c192_216 = arith.constant 192 : index
    %225 = vector.load %arg15[%c10_215, %c192_216] : memref<24x224xf32, #tpu.memory_space<vmem>>, vector<1x32xf32>
    %c3_217 = arith.constant 3 : index
    %c0_218 = arith.constant 0 : index
    %226 = vector.load %arg17[%c3_217, %c0_218] : memref<8x32xf32, #tpu.memory_space<vmem>>, vector<1x32xf32>
    tpu.vector_store %arg17[%c3_217, %c0_218], %225 {strides = array<i32>} : memref<8x32xf32, #tpu.memory_space<vmem>>, vector<1x32xf32>,
    %c18_219 = arith.constant 18 : index
    %c192_220 = arith.constant 192 : index
    %227 = vector.load %arg15[%c18_219, %c192_220] : memref<24x224xf32, #tpu.memory_space<vmem>>, vector<1x32xf32>
    %c7_221 = arith.constant 7 : index
    %c0_222 = arith.constant 0 : index
    %228 = vector.load %arg17[%c7_221, %c0_222] : memref<8x32xf32, #tpu.memory_space<vmem>>, vector<1x32xf32>
    tpu.vector_store %arg17[%c7_221, %c0_222], %227 {strides = array<i32>} : memref<8x32xf32, #tpu.memory_space<vmem>>, vector<1x32xf32>,
    %c0_223 = arith.constant 0 : index
    %c0_224 = arith.constant 0 : index
    %229 = vector.load %arg17[%c0_223, %c0_224] : memref<8x32xf32, #tpu.memory_space<vmem>>, vector<8x32xf32>
    %230 = vector.shape_cast %229 : vector<8x32xf32> to vector<8x1x32xf32>
    %231 = vector.broadcast %230 : vector<8x1x32xf32> to vector<8x16x32xf32>
    %232 = arith.mulf %231, %115 : vector<8x16x32xf32>
    %cst_225 = arith.constant dense<0.000000e+00> : vector<8x16xf32>
    %233 = vector.multi_reduction <add>, %232, %cst_225 [2] : vector<8x16x32xf32> to vector<8x16xf32>
    %c32_226 = arith.constant 32 : index
    %c0_227 = arith.constant 0 : index
    %234 = vector.load %arg9[%c32_226, %c0_227] : memref<64x16xf32, #tpu.memory_space<vmem>>, vector<8x16xf32>
    %235 = arith.addf %233, %234 : vector<8x16xf32>
    %cst_228 = arith.constant dense<0.000000e+00> : vector<8x16xf32>
    %236 = tpu.matmul %206, %209, %cst_228 {dimension_numbers = #tpu.dot_dimension_numbers<[1], [1], [0], [0], [0, 0, 1, 0], [], []>} : vector<8x8xf32>, vector<16x8xf32>, vector<8x16xf32> -> vector<8x16xf32>
    %237 = arith.addf %236, %235 : vector<8x16xf32>
    %cst_229 = arith.constant dense<0xFF800000> : vector<8xf32>
    %238 = vector.multi_reduction <maximumf>, %237, %cst_229 [1] : vector<8x16xf32> to vector<8xf32>
    %239 = vector.shape_cast %238 : vector<8xf32> to vector<8x1xf32>
    %240 = vector.broadcast %239 : vector<8x1xf32> to vector<8x16xf32>
    %241 = arith.subf %237, %240 : vector<8x16xf32>
    %242 = math.exp %241 : vector<8x16xf32>
    %cst_230 = arith.constant dense<0.000000e+00> : vector<8xf32>
    %243 = vector.multi_reduction <add>, %242, %cst_230 [1] : vector<8x16xf32> to vector<8xf32>
    %244 = vector.shape_cast %243 : vector<8xf32> to vector<8x1xf32>
    %245 = tpu.reciprocal %244 {approx = true} : vector<8x1xf32> -> vector<8x1xf32>
    %246 = vector.broadcast %245 : vector<8x1xf32> to vector<8x16xf32>
    %247 = arith.mulf %242, %246 : vector<8x16xf32>
    %c16_231 = arith.constant 16 : index
    %c0_232 = arith.constant 0 : index
    %248 = vector.load %arg12[%c16_231, %c0_232] : memref<64x16xf32, #tpu.memory_space<vmem>>, vector<8x16xf32>
    tpu.vector_store %arg12[%c16_231, %c0_232], %247 {strides = array<i32>} : memref<64x16xf32, #tpu.memory_space<vmem>>, vector<8x16xf32>,
    %cst_233 = arith.constant dense<0.000000e+00> : vector<8x8xf32>
    %249 = tpu.matmul %247, %212, %cst_233 {dimension_numbers = #tpu.dot_dimension_numbers<[1], [0], [0], [1], [0, 0, 1, 1], [], []>} : vector<8x16xf32>, vector<16x8xf32>, vector<8x8xf32> -> vector<8x8xf32>
    %c8_234 = arith.constant 8 : index
    %c16_235 = arith.constant 16 : index
    %250 = vector.load %arg16[%c8_234, %c16_235] : memref<24x32xf32, #tpu.memory_space<vmem>>, vector<8x8xf32>
    tpu.vector_store %arg16[%c8_234, %c16_235], %249 {strides = array<i32>} : memref<24x32xf32, #tpu.memory_space<vmem>>, vector<8x8xf32>,
    %c8_236 = arith.constant 8 : index
    %c24_237 = arith.constant 24 : index
    %251 = vector.load %arg15[%c8_236, %c24_237] : memref<24x224xf32, #tpu.memory_space<vmem>>, vector<8x8xf32>
    %c0_238 = arith.constant 0 : index
    %c56_239 = arith.constant 56 : index
    %252 = vector.load %arg15[%c0_238, %c56_239] : memref<24x224xf32, #tpu.memory_space<vmem>>, vector<8x8xf32>
    %c8_240 = arith.constant 8 : index
    %c56_241 = arith.constant 56 : index
    %253 = vector.load %arg15[%c8_240, %c56_241] : memref<24x224xf32, #tpu.memory_space<vmem>>, vector<8x8xf32>
    %254 = tpu.concatenate %252, %253 in 0 : vector<8x8xf32>, vector<8x8xf32> -> vector<16x8xf32>
    %c0_242 = arith.constant 0 : index
    %c88_243 = arith.constant 88 : index
    %255 = vector.load %arg15[%c0_242, %c88_243] : memref<24x224xf32, #tpu.memory_space<vmem>>, vector<8x8xf32>
    %c8_244 = arith.constant 8 : index
    %c88_245 = arith.constant 88 : index
    %256 = vector.load %arg15[%c8_244, %c88_245] : memref<24x224xf32, #tpu.memory_space<vmem>>, vector<8x8xf32>
    %257 = tpu.concatenate %255, %256 in 0 : vector<8x8xf32>, vector<8x8xf32> -> vector<16x8xf32>
    %c11 = arith.constant 11 : index
    %c96_246 = arith.constant 96 : index
    %258 = vector.load %arg15[%c11, %c96_246] : memref<24x224xf32, #tpu.memory_space<vmem>>, vector<1x32xf32>
    %c0_247 = arith.constant 0 : index
    %c0_248 = arith.constant 0 : index
    %259 = vector.load %arg17[%c0_247, %c0_248] : memref<8x32xf32, #tpu.memory_space<vmem>>, vector<1x32xf32>
    tpu.vector_store %arg17[%c0_247, %c0_248], %258 {strides = array<i32>} : memref<8x32xf32, #tpu.memory_space<vmem>>, vector<1x32xf32>,
    %c19 = arith.constant 19 : index
    %c96_249 = arith.constant 96 : index
    %260 = vector.load %arg15[%c19, %c96_249] : memref<24x224xf32, #tpu.memory_space<vmem>>, vector<1x32xf32>
    %c4_250 = arith.constant 4 : index
    %c0_251 = arith.constant 0 : index
    %261 = vector.load %arg17[%c4_250, %c0_251] : memref<8x32xf32, #tpu.memory_space<vmem>>, vector<1x32xf32>
    tpu.vector_store %arg17[%c4_250, %c0_251], %260 {strides = array<i32>} : memref<8x32xf32, #tpu.memory_space<vmem>>, vector<1x32xf32>,
    %c11_252 = arith.constant 11 : index
    %c128_253 = arith.constant 128 : index
    %262 = vector.load %arg15[%c11_252, %c128_253] : memref<24x224xf32, #tpu.memory_space<vmem>>, vector<1x32xf32>
    %c1_254 = arith.constant 1 : index
    %c0_255 = arith.constant 0 : index
    %263 = vector.load %arg17[%c1_254, %c0_255] : memref<8x32xf32, #tpu.memory_space<vmem>>, vector<1x32xf32>
    tpu.vector_store %arg17[%c1_254, %c0_255], %262 {strides = array<i32>} : memref<8x32xf32, #tpu.memory_space<vmem>>, vector<1x32xf32>,
    %c19_256 = arith.constant 19 : index
    %c128_257 = arith.constant 128 : index
    %264 = vector.load %arg15[%c19_256, %c128_257] : memref<24x224xf32, #tpu.memory_space<vmem>>, vector<1x32xf32>
    %c5_258 = arith.constant 5 : index
    %c0_259 = arith.constant 0 : index
    %265 = vector.load %arg17[%c5_258, %c0_259] : memref<8x32xf32, #tpu.memory_space<vmem>>, vector<1x32xf32>
    tpu.vector_store %arg17[%c5_258, %c0_259], %264 {strides = array<i32>} : memref<8x32xf32, #tpu.memory_space<vmem>>, vector<1x32xf32>,
    %c11_260 = arith.constant 11 : index
    %c160_261 = arith.constant 160 : index
    %266 = vector.load %arg15[%c11_260, %c160_261] : memref<24x224xf32, #tpu.memory_space<vmem>>, vector<1x32xf32>
    %c2_262 = arith.constant 2 : index
    %c0_263 = arith.constant 0 : index
    %267 = vector.load %arg17[%c2_262, %c0_263] : memref<8x32xf32, #tpu.memory_space<vmem>>, vector<1x32xf32>
    tpu.vector_store %arg17[%c2_262, %c0_263], %266 {strides = array<i32>} : memref<8x32xf32, #tpu.memory_space<vmem>>, vector<1x32xf32>,
    %c19_264 = arith.constant 19 : index
    %c160_265 = arith.constant 160 : index
    %268 = vector.load %arg15[%c19_264, %c160_265] : memref<24x224xf32, #tpu.memory_space<vmem>>, vector<1x32xf32>
    %c6_266 = arith.constant 6 : index
    %c0_267 = arith.constant 0 : index
    %269 = vector.load %arg17[%c6_266, %c0_267] : memref<8x32xf32, #tpu.memory_space<vmem>>, vector<1x32xf32>
    tpu.vector_store %arg17[%c6_266, %c0_267], %268 {strides = array<i32>} : memref<8x32xf32, #tpu.memory_space<vmem>>, vector<1x32xf32>,
    %c11_268 = arith.constant 11 : index
    %c192_269 = arith.constant 192 : index
    %270 = vector.load %arg15[%c11_268, %c192_269] : memref<24x224xf32, #tpu.memory_space<vmem>>, vector<1x32xf32>
    %c3_270 = arith.constant 3 : index
    %c0_271 = arith.constant 0 : index
    %271 = vector.load %arg17[%c3_270, %c0_271] : memref<8x32xf32, #tpu.memory_space<vmem>>, vector<1x32xf32>
    tpu.vector_store %arg17[%c3_270, %c0_271], %270 {strides = array<i32>} : memref<8x32xf32, #tpu.memory_space<vmem>>, vector<1x32xf32>,
    %c19_272 = arith.constant 19 : index
    %c192_273 = arith.constant 192 : index
    %272 = vector.load %arg15[%c19_272, %c192_273] : memref<24x224xf32, #tpu.memory_space<vmem>>, vector<1x32xf32>
    %c7_274 = arith.constant 7 : index
    %c0_275 = arith.constant 0 : index
    %273 = vector.load %arg17[%c7_274, %c0_275] : memref<8x32xf32, #tpu.memory_space<vmem>>, vector<1x32xf32>
    tpu.vector_store %arg17[%c7_274, %c0_275], %272 {strides = array<i32>} : memref<8x32xf32, #tpu.memory_space<vmem>>, vector<1x32xf32>,
    %c0_276 = arith.constant 0 : index
    %c0_277 = arith.constant 0 : index
    %274 = vector.load %arg17[%c0_276, %c0_277] : memref<8x32xf32, #tpu.memory_space<vmem>>, vector<8x32xf32>
    %275 = vector.shape_cast %274 : vector<8x32xf32> to vector<8x1x32xf32>
    %276 = vector.broadcast %275 : vector<8x1x32xf32> to vector<8x16x32xf32>
    %277 = arith.mulf %276, %115 : vector<8x16x32xf32>
    %cst_278 = arith.constant dense<0.000000e+00> : vector<8x16xf32>
    %278 = vector.multi_reduction <add>, %277, %cst_278 [2] : vector<8x16x32xf32> to vector<8x16xf32>
    %c48_279 = arith.constant 48 : index
    %c0_280 = arith.constant 0 : index
    %279 = vector.load %arg9[%c48_279, %c0_280] : memref<64x16xf32, #tpu.memory_space<vmem>>, vector<8x16xf32>
    %280 = arith.addf %278, %279 : vector<8x16xf32>
    %cst_281 = arith.constant dense<0.000000e+00> : vector<8x16xf32>
    %281 = tpu.matmul %251, %254, %cst_281 {dimension_numbers = #tpu.dot_dimension_numbers<[1], [1], [0], [0], [0, 0, 1, 0], [], []>} : vector<8x8xf32>, vector<16x8xf32>, vector<8x16xf32> -> vector<8x16xf32>
    %282 = arith.addf %281, %280 : vector<8x16xf32>
    %cst_282 = arith.constant dense<0xFF800000> : vector<8xf32>
    %283 = vector.multi_reduction <maximumf>, %282, %cst_282 [1] : vector<8x16xf32> to vector<8xf32>
    %284 = vector.shape_cast %283 : vector<8xf32> to vector<8x1xf32>
    %285 = vector.broadcast %284 : vector<8x1xf32> to vector<8x16xf32>
    %286 = arith.subf %282, %285 : vector<8x16xf32>
    %287 = math.exp %286 : vector<8x16xf32>
    %cst_283 = arith.constant dense<0.000000e+00> : vector<8xf32>
    %288 = vector.multi_reduction <add>, %287, %cst_283 [1] : vector<8x16xf32> to vector<8xf32>
    %289 = vector.shape_cast %288 : vector<8xf32> to vector<8x1xf32>
    %290 = tpu.reciprocal %289 {approx = true} : vector<8x1xf32> -> vector<8x1xf32>
    %291 = vector.broadcast %290 : vector<8x1xf32> to vector<8x16xf32>
    %292 = arith.mulf %287, %291 : vector<8x16xf32>
    %c24_284 = arith.constant 24 : index
    %c0_285 = arith.constant 0 : index
    %293 = vector.load %arg12[%c24_284, %c0_285] : memref<64x16xf32, #tpu.memory_space<vmem>>, vector<8x16xf32>
    tpu.vector_store %arg12[%c24_284, %c0_285], %292 {strides = array<i32>} : memref<64x16xf32, #tpu.memory_space<vmem>>, vector<8x16xf32>,
    %cst_286 = arith.constant dense<0.000000e+00> : vector<8x8xf32>
    %294 = tpu.matmul %292, %257, %cst_286 {dimension_numbers = #tpu.dot_dimension_numbers<[1], [0], [0], [1], [0, 0, 1, 1], [], []>} : vector<8x16xf32>, vector<16x8xf32>, vector<8x8xf32> -> vector<8x8xf32>
    %c8_287 = arith.constant 8 : index
    %c24_288 = arith.constant 24 : index
    %295 = vector.load %arg16[%c8_287, %c24_288] : memref<24x32xf32, #tpu.memory_space<vmem>>, vector<8x8xf32>
    tpu.vector_store %arg16[%c8_287, %c24_288], %294 {strides = array<i32>} : memref<24x32xf32, #tpu.memory_space<vmem>>, vector<8x8xf32>,
    %c8_289 = arith.constant 8 : index
    %c0_290 = arith.constant 0 : index
    %c0_291 = arith.constant 0 : index
    %296 = vector.load %arg7[%c8_289, %c0_290, %c0_291] : memref<16x16x32xbf16, #tpu.memory_space<vmem>>, vector<8x16x32xbf16>
    %297 = arith.extf %296 : vector<8x16x32xbf16> to vector<8x16x32xf32>
    %c16_292 = arith.constant 16 : index
    %c0_293 = arith.constant 0 : index
    %298 = vector.load %arg15[%c16_292, %c0_293] : memref<24x224xf32, #tpu.memory_space<vmem>>, vector<8x8xf32>
    %c0_294 = arith.constant 0 : index
    %c32_295 = arith.constant 32 : index
    %299 = vector.load %arg15[%c0_294, %c32_295] : memref<24x224xf32, #tpu.memory_space<vmem>>, vector<8x8xf32>
    %c16_296 = arith.constant 16 : index
    %c32_297 = arith.constant 32 : index
    %300 = vector.load %arg15[%c16_296, %c32_297] : memref<24x224xf32, #tpu.memory_space<vmem>>, vector<8x8xf32>
    %301 = tpu.concatenate %299, %300 in 0 : vector<8x8xf32>, vector<8x8xf32> -> vector<16x8xf32>
    %c0_298 = arith.constant 0 : index
    %c64_299 = arith.constant 64 : index
    %302 = vector.load %arg15[%c0_298, %c64_299] : memref<24x224xf32, #tpu.memory_space<vmem>>, vector<8x8xf32>
    %c16_300 = arith.constant 16 : index
    %c64_301 = arith.constant 64 : index
    %303 = vector.load %arg15[%c16_300, %c64_301] : memref<24x224xf32, #tpu.memory_space<vmem>>, vector<8x8xf32>
    %304 = tpu.concatenate %302, %303 in 0 : vector<8x8xf32>, vector<8x8xf32> -> vector<16x8xf32>
    %c12 = arith.constant 12 : index
    %c96_302 = arith.constant 96 : index
    %305 = vector.load %arg15[%c12, %c96_302] : memref<24x224xf32, #tpu.memory_space<vmem>>, vector<1x32xf32>
    %c0_303 = arith.constant 0 : index
    %c0_304 = arith.constant 0 : index
    %306 = vector.load %arg17[%c0_303, %c0_304] : memref<8x32xf32, #tpu.memory_space<vmem>>, vector<1x32xf32>
    tpu.vector_store %arg17[%c0_303, %c0_304], %305 {strides = array<i32>} : memref<8x32xf32, #tpu.memory_space<vmem>>, vector<1x32xf32>,
    %c20 = arith.constant 20 : index
    %c96_305 = arith.constant 96 : index
    %307 = vector.load %arg15[%c20, %c96_305] : memref<24x224xf32, #tpu.memory_space<vmem>>, vector<1x32xf32>
    %c4_306 = arith.constant 4 : index
    %c0_307 = arith.constant 0 : index
    %308 = vector.load %arg17[%c4_306, %c0_307] : memref<8x32xf32, #tpu.memory_space<vmem>>, vector<1x32xf32>
    tpu.vector_store %arg17[%c4_306, %c0_307], %307 {strides = array<i32>} : memref<8x32xf32, #tpu.memory_space<vmem>>, vector<1x32xf32>,
    %c12_308 = arith.constant 12 : index
    %c128_309 = arith.constant 128 : index
    %309 = vector.load %arg15[%c12_308, %c128_309] : memref<24x224xf32, #tpu.memory_space<vmem>>, vector<1x32xf32>
    %c1_310 = arith.constant 1 : index
    %c0_311 = arith.constant 0 : index
    %310 = vector.load %arg17[%c1_310, %c0_311] : memref<8x32xf32, #tpu.memory_space<vmem>>, vector<1x32xf32>
    tpu.vector_store %arg17[%c1_310, %c0_311], %309 {strides = array<i32>} : memref<8x32xf32, #tpu.memory_space<vmem>>, vector<1x32xf32>,
    %c20_312 = arith.constant 20 : index
    %c128_313 = arith.constant 128 : index
    %311 = vector.load %arg15[%c20_312, %c128_313] : memref<24x224xf32, #tpu.memory_space<vmem>>, vector<1x32xf32>
    %c5_314 = arith.constant 5 : index
    %c0_315 = arith.constant 0 : index
    %312 = vector.load %arg17[%c5_314, %c0_315] : memref<8x32xf32, #tpu.memory_space<vmem>>, vector<1x32xf32>
    tpu.vector_store %arg17[%c5_314, %c0_315], %311 {strides = array<i32>} : memref<8x32xf32, #tpu.memory_space<vmem>>, vector<1x32xf32>,
    %c12_316 = arith.constant 12 : index
    %c160_317 = arith.constant 160 : index
    %313 = vector.load %arg15[%c12_316, %c160_317] : memref<24x224xf32, #tpu.memory_space<vmem>>, vector<1x32xf32>
    %c2_318 = arith.constant 2 : index
    %c0_319 = arith.constant 0 : index
    %314 = vector.load %arg17[%c2_318, %c0_319] : memref<8x32xf32, #tpu.memory_space<vmem>>, vector<1x32xf32>
    tpu.vector_store %arg17[%c2_318, %c0_319], %313 {strides = array<i32>} : memref<8x32xf32, #tpu.memory_space<vmem>>, vector<1x32xf32>,
    %c20_320 = arith.constant 20 : index
    %c160_321 = arith.constant 160 : index
    %315 = vector.load %arg15[%c20_320, %c160_321] : memref<24x224xf32, #tpu.memory_space<vmem>>, vector<1x32xf32>
    %c6_322 = arith.constant 6 : index
    %c0_323 = arith.constant 0 : index
    %316 = vector.load %arg17[%c6_322, %c0_323] : memref<8x32xf32, #tpu.memory_space<vmem>>, vector<1x32xf32>
    tpu.vector_store %arg17[%c6_322, %c0_323], %315 {strides = array<i32>} : memref<8x32xf32, #tpu.memory_space<vmem>>, vector<1x32xf32>,
    %c12_324 = arith.constant 12 : index
    %c192_325 = arith.constant 192 : index
    %317 = vector.load %arg15[%c12_324, %c192_325] : memref<24x224xf32, #tpu.memory_space<vmem>>, vector<1x32xf32>
    %c3_326 = arith.constant 3 : index
    %c0_327 = arith.constant 0 : index
    %318 = vector.load %arg17[%c3_326, %c0_327] : memref<8x32xf32, #tpu.memory_space<vmem>>, vector<1x32xf32>
    tpu.vector_store %arg17[%c3_326, %c0_327], %317 {strides = array<i32>} : memref<8x32xf32, #tpu.memory_space<vmem>>, vector<1x32xf32>,
    %c20_328 = arith.constant 20 : index
    %c192_329 = arith.constant 192 : index
    %319 = vector.load %arg15[%c20_328, %c192_329] : memref<24x224xf32, #tpu.memory_space<vmem>>, vector<1x32xf32>
    %c7_330 = arith.constant 7 : index
    %c0_331 = arith.constant 0 : index
    %320 = vector.load %arg17[%c7_330, %c0_331] : memref<8x32xf32, #tpu.memory_space<vmem>>, vector<1x32xf32>
    tpu.vector_store %arg17[%c7_330, %c0_331], %319 {strides = array<i32>} : memref<8x32xf32, #tpu.memory_space<vmem>>, vector<1x32xf32>,
    %c0_332 = arith.constant 0 : index
    %c0_333 = arith.constant 0 : index
    %321 = vector.load %arg17[%c0_332, %c0_333] : memref<8x32xf32, #tpu.memory_space<vmem>>, vector<8x32xf32>
    %322 = vector.shape_cast %321 : vector<8x32xf32> to vector<8x1x32xf32>
    %323 = vector.broadcast %322 : vector<8x1x32xf32> to vector<8x16x32xf32>
    %324 = arith.mulf %323, %297 : vector<8x16x32xf32>
    %cst_334 = arith.constant dense<0.000000e+00> : vector<8x16xf32>
    %325 = vector.multi_reduction <add>, %324, %cst_334 [2] : vector<8x16x32xf32> to vector<8x16xf32>
    %c8_335 = arith.constant 8 : index
    %c0_336 = arith.constant 0 : index
    %326 = vector.load %arg9[%c8_335, %c0_336] : memref<64x16xf32, #tpu.memory_space<vmem>>, vector<8x16xf32>
    %327 = arith.addf %325, %326 : vector<8x16xf32>
    %cst_337 = arith.constant dense<0.000000e+00> : vector<8x16xf32>
    %328 = tpu.matmul %298, %301, %cst_337 {dimension_numbers = #tpu.dot_dimension_numbers<[1], [1], [0], [0], [0, 0, 1, 0], [], []>} : vector<8x8xf32>, vector<16x8xf32>, vector<8x16xf32> -> vector<8x16xf32>
    %329 = arith.addf %328, %327 : vector<8x16xf32>
    %cst_338 = arith.constant dense<0xFF800000> : vector<8xf32>
    %330 = vector.multi_reduction <maximumf>, %329, %cst_338 [1] : vector<8x16xf32> to vector<8xf32>
    %331 = vector.shape_cast %330 : vector<8xf32> to vector<8x1xf32>
    %332 = vector.broadcast %331 : vector<8x1xf32> to vector<8x16xf32>
    %333 = arith.subf %329, %332 : vector<8x16xf32>
    %334 = math.exp %333 : vector<8x16xf32>
    %cst_339 = arith.constant dense<0.000000e+00> : vector<8xf32>
    %335 = vector.multi_reduction <add>, %334, %cst_339 [1] : vector<8x16xf32> to vector<8xf32>
    %336 = vector.shape_cast %335 : vector<8xf32> to vector<8x1xf32>
    %337 = tpu.reciprocal %336 {approx = true} : vector<8x1xf32> -> vector<8x1xf32>
    %338 = vector.broadcast %337 : vector<8x1xf32> to vector<8x16xf32>
    %339 = arith.mulf %334, %338 : vector<8x16xf32>
    %c32_340 = arith.constant 32 : index
    %c0_341 = arith.constant 0 : index
    %340 = vector.load %arg12[%c32_340, %c0_341] : memref<64x16xf32, #tpu.memory_space<vmem>>, vector<8x16xf32>
    tpu.vector_store %arg12[%c32_340, %c0_341], %339 {strides = array<i32>} : memref<64x16xf32, #tpu.memory_space<vmem>>, vector<8x16xf32>,
    %cst_342 = arith.constant dense<0.000000e+00> : vector<8x8xf32>
    %341 = tpu.matmul %339, %304, %cst_342 {dimension_numbers = #tpu.dot_dimension_numbers<[1], [0], [0], [1], [0, 0, 1, 1], [], []>} : vector<8x16xf32>, vector<16x8xf32>, vector<8x8xf32> -> vector<8x8xf32>
    %c16_343 = arith.constant 16 : index
    %c0_344 = arith.constant 0 : index
    %342 = vector.load %arg16[%c16_343, %c0_344] : memref<24x32xf32, #tpu.memory_space<vmem>>, vector<8x8xf32>
    tpu.vector_store %arg16[%c16_343, %c0_344], %341 {strides = array<i32>} : memref<24x32xf32, #tpu.memory_space<vmem>>, vector<8x8xf32>,
    %c16_345 = arith.constant 16 : index
    %c8_346 = arith.constant 8 : index
    %343 = vector.load %arg15[%c16_345, %c8_346] : memref<24x224xf32, #tpu.memory_space<vmem>>, vector<8x8xf32>
    %c0_347 = arith.constant 0 : index
    %c40_348 = arith.constant 40 : index
    %344 = vector.load %arg15[%c0_347, %c40_348] : memref<24x224xf32, #tpu.memory_space<vmem>>, vector<8x8xf32>
    %c16_349 = arith.constant 16 : index
    %c40_350 = arith.constant 40 : index
    %345 = vector.load %arg15[%c16_349, %c40_350] : memref<24x224xf32, #tpu.memory_space<vmem>>, vector<8x8xf32>
    %346 = tpu.concatenate %344, %345 in 0 : vector<8x8xf32>, vector<8x8xf32> -> vector<16x8xf32>
    %c0_351 = arith.constant 0 : index
    %c72_352 = arith.constant 72 : index
    %347 = vector.load %arg15[%c0_351, %c72_352] : memref<24x224xf32, #tpu.memory_space<vmem>>, vector<8x8xf32>
    %c16_353 = arith.constant 16 : index
    %c72_354 = arith.constant 72 : index
    %348 = vector.load %arg15[%c16_353, %c72_354] : memref<24x224xf32, #tpu.memory_space<vmem>>, vector<8x8xf32>
    %349 = tpu.concatenate %347, %348 in 0 : vector<8x8xf32>, vector<8x8xf32> -> vector<16x8xf32>
    %c13 = arith.constant 13 : index
    %c96_355 = arith.constant 96 : index
    %350 = vector.load %arg15[%c13, %c96_355] : memref<24x224xf32, #tpu.memory_space<vmem>>, vector<1x32xf32>
    %c0_356 = arith.constant 0 : index
    %c0_357 = arith.constant 0 : index
    %351 = vector.load %arg17[%c0_356, %c0_357] : memref<8x32xf32, #tpu.memory_space<vmem>>, vector<1x32xf32>
    tpu.vector_store %arg17[%c0_356, %c0_357], %350 {strides = array<i32>} : memref<8x32xf32, #tpu.memory_space<vmem>>, vector<1x32xf32>,
    %c21 = arith.constant 21 : index
    %c96_358 = arith.constant 96 : index
    %352 = vector.load %arg15[%c21, %c96_358] : memref<24x224xf32, #tpu.memory_space<vmem>>, vector<1x32xf32>
    %c4_359 = arith.constant 4 : index
    %c0_360 = arith.constant 0 : index
    %353 = vector.load %arg17[%c4_359, %c0_360] : memref<8x32xf32, #tpu.memory_space<vmem>>, vector<1x32xf32>
    tpu.vector_store %arg17[%c4_359, %c0_360], %352 {strides = array<i32>} : memref<8x32xf32, #tpu.memory_space<vmem>>, vector<1x32xf32>,
    %c13_361 = arith.constant 13 : index
    %c128_362 = arith.constant 128 : index
    %354 = vector.load %arg15[%c13_361, %c128_362] : memref<24x224xf32, #tpu.memory_space<vmem>>, vector<1x32xf32>
    %c1_363 = arith.constant 1 : index
    %c0_364 = arith.constant 0 : index
    %355 = vector.load %arg17[%c1_363, %c0_364] : memref<8x32xf32, #tpu.memory_space<vmem>>, vector<1x32xf32>
    tpu.vector_store %arg17[%c1_363, %c0_364], %354 {strides = array<i32>} : memref<8x32xf32, #tpu.memory_space<vmem>>, vector<1x32xf32>,
    %c21_365 = arith.constant 21 : index
    %c128_366 = arith.constant 128 : index
    %356 = vector.load %arg15[%c21_365, %c128_366] : memref<24x224xf32, #tpu.memory_space<vmem>>, vector<1x32xf32>
    %c5_367 = arith.constant 5 : index
    %c0_368 = arith.constant 0 : index
    %357 = vector.load %arg17[%c5_367, %c0_368] : memref<8x32xf32, #tpu.memory_space<vmem>>, vector<1x32xf32>
    tpu.vector_store %arg17[%c5_367, %c0_368], %356 {strides = array<i32>} : memref<8x32xf32, #tpu.memory_space<vmem>>, vector<1x32xf32>,
    %c13_369 = arith.constant 13 : index
    %c160_370 = arith.constant 160 : index
    %358 = vector.load %arg15[%c13_369, %c160_370] : memref<24x224xf32, #tpu.memory_space<vmem>>, vector<1x32xf32>
    %c2_371 = arith.constant 2 : index
    %c0_372 = arith.constant 0 : index
    %359 = vector.load %arg17[%c2_371, %c0_372] : memref<8x32xf32, #tpu.memory_space<vmem>>, vector<1x32xf32>
    tpu.vector_store %arg17[%c2_371, %c0_372], %358 {strides = array<i32>} : memref<8x32xf32, #tpu.memory_space<vmem>>, vector<1x32xf32>,
    %c21_373 = arith.constant 21 : index
    %c160_374 = arith.constant 160 : index
    %360 = vector.load %arg15[%c21_373, %c160_374] : memref<24x224xf32, #tpu.memory_space<vmem>>, vector<1x32xf32>
    %c6_375 = arith.constant 6 : index
    %c0_376 = arith.constant 0 : index
    %361 = vector.load %arg17[%c6_375, %c0_376] : memref<8x32xf32, #tpu.memory_space<vmem>>, vector<1x32xf32>
    tpu.vector_store %arg17[%c6_375, %c0_376], %360 {strides = array<i32>} : memref<8x32xf32, #tpu.memory_space<vmem>>, vector<1x32xf32>,
    %c13_377 = arith.constant 13 : index
    %c192_378 = arith.constant 192 : index
    %362 = vector.load %arg15[%c13_377, %c192_378] : memref<24x224xf32, #tpu.memory_space<vmem>>, vector<1x32xf32>
    %c3_379 = arith.constant 3 : index
    %c0_380 = arith.constant 0 : index
    %363 = vector.load %arg17[%c3_379, %c0_380] : memref<8x32xf32, #tpu.memory_space<vmem>>, vector<1x32xf32>
    tpu.vector_store %arg17[%c3_379, %c0_380], %362 {strides = array<i32>} : memref<8x32xf32, #tpu.memory_space<vmem>>, vector<1x32xf32>,
    %c21_381 = arith.constant 21 : index
    %c192_382 = arith.constant 192 : index
    %364 = vector.load %arg15[%c21_381, %c192_382] : memref<24x224xf32, #tpu.memory_space<vmem>>, vector<1x32xf32>
    %c7_383 = arith.constant 7 : index
    %c0_384 = arith.constant 0 : index
    %365 = vector.load %arg17[%c7_383, %c0_384] : memref<8x32xf32, #tpu.memory_space<vmem>>, vector<1x32xf32>
    tpu.vector_store %arg17[%c7_383, %c0_384], %364 {strides = array<i32>} : memref<8x32xf32, #tpu.memory_space<vmem>>, vector<1x32xf32>,
    %c0_385 = arith.constant 0 : index
    %c0_386 = arith.constant 0 : index
    %366 = vector.load %arg17[%c0_385, %c0_386] : memref<8x32xf32, #tpu.memory_space<vmem>>, vector<8x32xf32>
    %367 = vector.shape_cast %366 : vector<8x32xf32> to vector<8x1x32xf32>
    %368 = vector.broadcast %367 : vector<8x1x32xf32> to vector<8x16x32xf32>
    %369 = arith.mulf %368, %297 : vector<8x16x32xf32>
    %cst_387 = arith.constant dense<0.000000e+00> : vector<8x16xf32>
    %370 = vector.multi_reduction <add>, %369, %cst_387 [2] : vector<8x16x32xf32> to vector<8x16xf32>
    %c24_388 = arith.constant 24 : index
    %c0_389 = arith.constant 0 : index
    %371 = vector.load %arg9[%c24_388, %c0_389] : memref<64x16xf32, #tpu.memory_space<vmem>>, vector<8x16xf32>
    %372 = arith.addf %370, %371 : vector<8x16xf32>
    %cst_390 = arith.constant dense<0.000000e+00> : vector<8x16xf32>
    %373 = tpu.matmul %343, %346, %cst_390 {dimension_numbers = #tpu.dot_dimension_numbers<[1], [1], [0], [0], [0, 0, 1, 0], [], []>} : vector<8x8xf32>, vector<16x8xf32>, vector<8x16xf32> -> vector<8x16xf32>
    %374 = arith.addf %373, %372 : vector<8x16xf32>
    %cst_391 = arith.constant dense<0xFF800000> : vector<8xf32>
    %375 = vector.multi_reduction <maximumf>, %374, %cst_391 [1] : vector<8x16xf32> to vector<8xf32>
    %376 = vector.shape_cast %375 : vector<8xf32> to vector<8x1xf32>
    %377 = vector.broadcast %376 : vector<8x1xf32> to vector<8x16xf32>
    %378 = arith.subf %374, %377 : vector<8x16xf32>
    %379 = math.exp %378 : vector<8x16xf32>
    %cst_392 = arith.constant dense<0.000000e+00> : vector<8xf32>
    %380 = vector.multi_reduction <add>, %379, %cst_392 [1] : vector<8x16xf32> to vector<8xf32>
    %381 = vector.shape_cast %380 : vector<8xf32> to vector<8x1xf32>
    %382 = tpu.reciprocal %381 {approx = true} : vector<8x1xf32> -> vector<8x1xf32>
    %383 = vector.broadcast %382 : vector<8x1xf32> to vector<8x16xf32>
    %384 = arith.mulf %379, %383 : vector<8x16xf32>
    %c40_393 = arith.constant 40 : index
    %c0_394 = arith.constant 0 : index
    %385 = vector.load %arg12[%c40_393, %c0_394] : memref<64x16xf32, #tpu.memory_space<vmem>>, vector<8x16xf32>
    tpu.vector_store %arg12[%c40_393, %c0_394], %384 {strides = array<i32>} : memref<64x16xf32, #tpu.memory_space<vmem>>, vector<8x16xf32>,
    %cst_395 = arith.constant dense<0.000000e+00> : vector<8x8xf32>
    %386 = tpu.matmul %384, %349, %cst_395 {dimension_numbers = #tpu.dot_dimension_numbers<[1], [0], [0], [1], [0, 0, 1, 1], [], []>} : vector<8x16xf32>, vector<16x8xf32>, vector<8x8xf32> -> vector<8x8xf32>
    %c16_396 = arith.constant 16 : index
    %c8_397 = arith.constant 8 : index
    %387 = vector.load %arg16[%c16_396, %c8_397] : memref<24x32xf32, #tpu.memory_space<vmem>>, vector<8x8xf32>
    tpu.vector_store %arg16[%c16_396, %c8_397], %386 {strides = array<i32>} : memref<24x32xf32, #tpu.memory_space<vmem>>, vector<8x8xf32>,
    %c16_398 = arith.constant 16 : index
    %c16_399 = arith.constant 16 : index
    %388 = vector.load %arg15[%c16_398, %c16_399] : memref<24x224xf32, #tpu.memory_space<vmem>>, vector<8x8xf32>
    %c0_400 = arith.constant 0 : index
    %c48_401 = arith.constant 48 : index
    %389 = vector.load %arg15[%c0_400, %c48_401] : memref<24x224xf32, #tpu.memory_space<vmem>>, vector<8x8xf32>
    %c16_402 = arith.constant 16 : index
    %c48_403 = arith.constant 48 : index
    %390 = vector.load %arg15[%c16_402, %c48_403] : memref<24x224xf32, #tpu.memory_space<vmem>>, vector<8x8xf32>
    %391 = tpu.concatenate %389, %390 in 0 : vector<8x8xf32>, vector<8x8xf32> -> vector<16x8xf32>
    %c0_404 = arith.constant 0 : index
    %c80_405 = arith.constant 80 : index
    %392 = vector.load %arg15[%c0_404, %c80_405] : memref<24x224xf32, #tpu.memory_space<vmem>>, vector<8x8xf32>
    %c16_406 = arith.constant 16 : index
    %c80_407 = arith.constant 80 : index
    %393 = vector.load %arg15[%c16_406, %c80_407] : memref<24x224xf32, #tpu.memory_space<vmem>>, vector<8x8xf32>
    %394 = tpu.concatenate %392, %393 in 0 : vector<8x8xf32>, vector<8x8xf32> -> vector<16x8xf32>
    %c14 = arith.constant 14 : index
    %c96_408 = arith.constant 96 : index
    %395 = vector.load %arg15[%c14, %c96_408] : memref<24x224xf32, #tpu.memory_space<vmem>>, vector<1x32xf32>
    %c0_409 = arith.constant 0 : index
    %c0_410 = arith.constant 0 : index
    %396 = vector.load %arg17[%c0_409, %c0_410] : memref<8x32xf32, #tpu.memory_space<vmem>>, vector<1x32xf32>
    tpu.vector_store %arg17[%c0_409, %c0_410], %395 {strides = array<i32>} : memref<8x32xf32, #tpu.memory_space<vmem>>, vector<1x32xf32>,
    %c22 = arith.constant 22 : index
    %c96_411 = arith.constant 96 : index
    %397 = vector.load %arg15[%c22, %c96_411] : memref<24x224xf32, #tpu.memory_space<vmem>>, vector<1x32xf32>
    %c4_412 = arith.constant 4 : index
    %c0_413 = arith.constant 0 : index
    %398 = vector.load %arg17[%c4_412, %c0_413] : memref<8x32xf32, #tpu.memory_space<vmem>>, vector<1x32xf32>
    tpu.vector_store %arg17[%c4_412, %c0_413], %397 {strides = array<i32>} : memref<8x32xf32, #tpu.memory_space<vmem>>, vector<1x32xf32>,
    %c14_414 = arith.constant 14 : index
    %c128_415 = arith.constant 128 : index
    %399 = vector.load %arg15[%c14_414, %c128_415] : memref<24x224xf32, #tpu.memory_space<vmem>>, vector<1x32xf32>
    %c1_416 = arith.constant 1 : index
    %c0_417 = arith.constant 0 : index
    %400 = vector.load %arg17[%c1_416, %c0_417] : memref<8x32xf32, #tpu.memory_space<vmem>>, vector<1x32xf32>
    tpu.vector_store %arg17[%c1_416, %c0_417], %399 {strides = array<i32>} : memref<8x32xf32, #tpu.memory_space<vmem>>, vector<1x32xf32>,
    %c22_418 = arith.constant 22 : index
    %c128_419 = arith.constant 128 : index
    %401 = vector.load %arg15[%c22_418, %c128_419] : memref<24x224xf32, #tpu.memory_space<vmem>>, vector<1x32xf32>
    %c5_420 = arith.constant 5 : index
    %c0_421 = arith.constant 0 : index
    %402 = vector.load %arg17[%c5_420, %c0_421] : memref<8x32xf32, #tpu.memory_space<vmem>>, vector<1x32xf32>
    tpu.vector_store %arg17[%c5_420, %c0_421], %401 {strides = array<i32>} : memref<8x32xf32, #tpu.memory_space<vmem>>, vector<1x32xf32>,
    %c14_422 = arith.constant 14 : index
    %c160_423 = arith.constant 160 : index
    %403 = vector.load %arg15[%c14_422, %c160_423] : memref<24x224xf32, #tpu.memory_space<vmem>>, vector<1x32xf32>
    %c2_424 = arith.constant 2 : index
    %c0_425 = arith.constant 0 : index
    %404 = vector.load %arg17[%c2_424, %c0_425] : memref<8x32xf32, #tpu.memory_space<vmem>>, vector<1x32xf32>
    tpu.vector_store %arg17[%c2_424, %c0_425], %403 {strides = array<i32>} : memref<8x32xf32, #tpu.memory_space<vmem>>, vector<1x32xf32>,
    %c22_426 = arith.constant 22 : index
    %c160_427 = arith.constant 160 : index
    %405 = vector.load %arg15[%c22_426, %c160_427] : memref<24x224xf32, #tpu.memory_space<vmem>>, vector<1x32xf32>
    %c6_428 = arith.constant 6 : index
    %c0_429 = arith.constant 0 : index
    %406 = vector.load %arg17[%c6_428, %c0_429] : memref<8x32xf32, #tpu.memory_space<vmem>>, vector<1x32xf32>
    tpu.vector_store %arg17[%c6_428, %c0_429], %405 {strides = array<i32>} : memref<8x32xf32, #tpu.memory_space<vmem>>, vector<1x32xf32>,
    %c14_430 = arith.constant 14 : index
    %c192_431 = arith.constant 192 : index
    %407 = vector.load %arg15[%c14_430, %c192_431] : memref<24x224xf32, #tpu.memory_space<vmem>>, vector<1x32xf32>
    %c3_432 = arith.constant 3 : index
    %c0_433 = arith.constant 0 : index
    %408 = vector.load %arg17[%c3_432, %c0_433] : memref<8x32xf32, #tpu.memory_space<vmem>>, vector<1x32xf32>
    tpu.vector_store %arg17[%c3_432, %c0_433], %407 {strides = array<i32>} : memref<8x32xf32, #tpu.memory_space<vmem>>, vector<1x32xf32>,
    %c22_434 = arith.constant 22 : index
    %c192_435 = arith.constant 192 : index
    %409 = vector.load %arg15[%c22_434, %c192_435] : memref<24x224xf32, #tpu.memory_space<vmem>>, vector<1x32xf32>
    %c7_436 = arith.constant 7 : index
    %c0_437 = arith.constant 0 : index
    %410 = vector.load %arg17[%c7_436, %c0_437] : memref<8x32xf32, #tpu.memory_space<vmem>>, vector<1x32xf32>
    tpu.vector_store %arg17[%c7_436, %c0_437], %409 {strides = array<i32>} : memref<8x32xf32, #tpu.memory_space<vmem>>, vector<1x32xf32>,
    %c0_438 = arith.constant 0 : index
    %c0_439 = arith.constant 0 : index
    %411 = vector.load %arg17[%c0_438, %c0_439] : memref<8x32xf32, #tpu.memory_space<vmem>>, vector<8x32xf32>
    %412 = vector.shape_cast %411 : vector<8x32xf32> to vector<8x1x32xf32>
    %413 = vector.broadcast %412 : vector<8x1x32xf32> to vector<8x16x32xf32>
    %414 = arith.mulf %413, %297 : vector<8x16x32xf32>
    %cst_440 = arith.constant dense<0.000000e+00> : vector<8x16xf32>
    %415 = vector.multi_reduction <add>, %414, %cst_440 [2] : vector<8x16x32xf32> to vector<8x16xf32>
    %c40_441 = arith.constant 40 : index
    %c0_442 = arith.constant 0 : index
    %416 = vector.load %arg9[%c40_441, %c0_442] : memref<64x16xf32, #tpu.memory_space<vmem>>, vector<8x16xf32>
    %417 = arith.addf %415, %416 : vector<8x16xf32>
    %cst_443 = arith.constant dense<0.000000e+00> : vector<8x16xf32>
    %418 = tpu.matmul %388, %391, %cst_443 {dimension_numbers = #tpu.dot_dimension_numbers<[1], [1], [0], [0], [0, 0, 1, 0], [], []>} : vector<8x8xf32>, vector<16x8xf32>, vector<8x16xf32> -> vector<8x16xf32>
    %419 = arith.addf %418, %417 : vector<8x16xf32>
    %cst_444 = arith.constant dense<0xFF800000> : vector<8xf32>
    %420 = vector.multi_reduction <maximumf>, %419, %cst_444 [1] : vector<8x16xf32> to vector<8xf32>
    %421 = vector.shape_cast %420 : vector<8xf32> to vector<8x1xf32>
    %422 = vector.broadcast %421 : vector<8x1xf32> to vector<8x16xf32>
    %423 = arith.subf %419, %422 : vector<8x16xf32>
    %424 = math.exp %423 : vector<8x16xf32>
    %cst_445 = arith.constant dense<0.000000e+00> : vector<8xf32>
    %425 = vector.multi_reduction <add>, %424, %cst_445 [1] : vector<8x16xf32> to vector<8xf32>
    %426 = vector.shape_cast %425 : vector<8xf32> to vector<8x1xf32>
    %427 = tpu.reciprocal %426 {approx = true} : vector<8x1xf32> -> vector<8x1xf32>
    %428 = vector.broadcast %427 : vector<8x1xf32> to vector<8x16xf32>
    %429 = arith.mulf %424, %428 : vector<8x16xf32>
    %c48_446 = arith.constant 48 : index
    %c0_447 = arith.constant 0 : index
    %430 = vector.load %arg12[%c48_446, %c0_447] : memref<64x16xf32, #tpu.memory_space<vmem>>, vector<8x16xf32>
    tpu.vector_store %arg12[%c48_446, %c0_447], %429 {strides = array<i32>} : memref<64x16xf32, #tpu.memory_space<vmem>>, vector<8x16xf32>,
    %cst_448 = arith.constant dense<0.000000e+00> : vector<8x8xf32>
    %431 = tpu.matmul %429, %394, %cst_448 {dimension_numbers = #tpu.dot_dimension_numbers<[1], [0], [0], [1], [0, 0, 1, 1], [], []>} : vector<8x16xf32>, vector<16x8xf32>, vector<8x8xf32> -> vector<8x8xf32>
    %c16_449 = arith.constant 16 : index
    %c16_450 = arith.constant 16 : index
    %432 = vector.load %arg16[%c16_449, %c16_450] : memref<24x32xf32, #tpu.memory_space<vmem>>, vector<8x8xf32>
    tpu.vector_store %arg16[%c16_449, %c16_450], %431 {strides = array<i32>} : memref<24x32xf32, #tpu.memory_space<vmem>>, vector<8x8xf32>,
    %c16_451 = arith.constant 16 : index
    %c24_452 = arith.constant 24 : index
    %433 = vector.load %arg15[%c16_451, %c24_452] : memref<24x224xf32, #tpu.memory_space<vmem>>, vector<8x8xf32>
    %c0_453 = arith.constant 0 : index
    %c56_454 = arith.constant 56 : index
    %434 = vector.load %arg15[%c0_453, %c56_454] : memref<24x224xf32, #tpu.memory_space<vmem>>, vector<8x8xf32>
    %c16_455 = arith.constant 16 : index
    %c56_456 = arith.constant 56 : index
    %435 = vector.load %arg15[%c16_455, %c56_456] : memref<24x224xf32, #tpu.memory_space<vmem>>, vector<8x8xf32>
    %436 = tpu.concatenate %434, %435 in 0 : vector<8x8xf32>, vector<8x8xf32> -> vector<16x8xf32>
    %c0_457 = arith.constant 0 : index
    %c88_458 = arith.constant 88 : index
    %437 = vector.load %arg15[%c0_457, %c88_458] : memref<24x224xf32, #tpu.memory_space<vmem>>, vector<8x8xf32>
    %c16_459 = arith.constant 16 : index
    %c88_460 = arith.constant 88 : index
    %438 = vector.load %arg15[%c16_459, %c88_460] : memref<24x224xf32, #tpu.memory_space<vmem>>, vector<8x8xf32>
    %439 = tpu.concatenate %437, %438 in 0 : vector<8x8xf32>, vector<8x8xf32> -> vector<16x8xf32>
    %c15 = arith.constant 15 : index
    %c96_461 = arith.constant 96 : index
    %440 = vector.load %arg15[%c15, %c96_461] : memref<24x224xf32, #tpu.memory_space<vmem>>, vector<1x32xf32>
    %c0_462 = arith.constant 0 : index
    %c0_463 = arith.constant 0 : index
    %441 = vector.load %arg17[%c0_462, %c0_463] : memref<8x32xf32, #tpu.memory_space<vmem>>, vector<1x32xf32>
    tpu.vector_store %arg17[%c0_462, %c0_463], %440 {strides = array<i32>} : memref<8x32xf32, #tpu.memory_space<vmem>>, vector<1x32xf32>,
    %c23 = arith.constant 23 : index
    %c96_464 = arith.constant 96 : index
    %442 = vector.load %arg15[%c23, %c96_464] : memref<24x224xf32, #tpu.memory_space<vmem>>, vector<1x32xf32>
    %c4_465 = arith.constant 4 : index
    %c0_466 = arith.constant 0 : index
    %443 = vector.load %arg17[%c4_465, %c0_466] : memref<8x32xf32, #tpu.memory_space<vmem>>, vector<1x32xf32>
    tpu.vector_store %arg17[%c4_465, %c0_466], %442 {strides = array<i32>} : memref<8x32xf32, #tpu.memory_space<vmem>>, vector<1x32xf32>,
    %c15_467 = arith.constant 15 : index
    %c128_468 = arith.constant 128 : index
    %444 = vector.load %arg15[%c15_467, %c128_468] : memref<24x224xf32, #tpu.memory_space<vmem>>, vector<1x32xf32>
    %c1_469 = arith.constant 1 : index
    %c0_470 = arith.constant 0 : index
    %445 = vector.load %arg17[%c1_469, %c0_470] : memref<8x32xf32, #tpu.memory_space<vmem>>, vector<1x32xf32>
    tpu.vector_store %arg17[%c1_469, %c0_470], %444 {strides = array<i32>} : memref<8x32xf32, #tpu.memory_space<vmem>>, vector<1x32xf32>,
    %c23_471 = arith.constant 23 : index
    %c128_472 = arith.constant 128 : index
    %446 = vector.load %arg15[%c23_471, %c128_472] : memref<24x224xf32, #tpu.memory_space<vmem>>, vector<1x32xf32>
    %c5_473 = arith.constant 5 : index
    %c0_474 = arith.constant 0 : index
    %447 = vector.load %arg17[%c5_473, %c0_474] : memref<8x32xf32, #tpu.memory_space<vmem>>, vector<1x32xf32>
    tpu.vector_store %arg17[%c5_473, %c0_474], %446 {strides = array<i32>} : memref<8x32xf32, #tpu.memory_space<vmem>>, vector<1x32xf32>,
    %c15_475 = arith.constant 15 : index
    %c160_476 = arith.constant 160 : index
    %448 = vector.load %arg15[%c15_475, %c160_476] : memref<24x224xf32, #tpu.memory_space<vmem>>, vector<1x32xf32>
    %c2_477 = arith.constant 2 : index
    %c0_478 = arith.constant 0 : index
    %449 = vector.load %arg17[%c2_477, %c0_478] : memref<8x32xf32, #tpu.memory_space<vmem>>, vector<1x32xf32>
    tpu.vector_store %arg17[%c2_477, %c0_478], %448 {strides = array<i32>} : memref<8x32xf32, #tpu.memory_space<vmem>>, vector<1x32xf32>,
    %c23_479 = arith.constant 23 : index
    %c160_480 = arith.constant 160 : index
    %450 = vector.load %arg15[%c23_479, %c160_480] : memref<24x224xf32, #tpu.memory_space<vmem>>, vector<1x32xf32>
    %c6_481 = arith.constant 6 : index
    %c0_482 = arith.constant 0 : index
    %451 = vector.load %arg17[%c6_481, %c0_482] : memref<8x32xf32, #tpu.memory_space<vmem>>, vector<1x32xf32>
    tpu.vector_store %arg17[%c6_481, %c0_482], %450 {strides = array<i32>} : memref<8x32xf32, #tpu.memory_space<vmem>>, vector<1x32xf32>,
    %c15_483 = arith.constant 15 : index
    %c192_484 = arith.constant 192 : index
    %452 = vector.load %arg15[%c15_483, %c192_484] : memref<24x224xf32, #tpu.memory_space<vmem>>, vector<1x32xf32>
    %c3_485 = arith.constant 3 : index
    %c0_486 = arith.constant 0 : index
    %453 = vector.load %arg17[%c3_485, %c0_486] : memref<8x32xf32, #tpu.memory_space<vmem>>, vector<1x32xf32>
    tpu.vector_store %arg17[%c3_485, %c0_486], %452 {strides = array<i32>} : memref<8x32xf32, #tpu.memory_space<vmem>>, vector<1x32xf32>,
    %c23_487 = arith.constant 23 : index
    %c192_488 = arith.constant 192 : index
    %454 = vector.load %arg15[%c23_487, %c192_488] : memref<24x224xf32, #tpu.memory_space<vmem>>, vector<1x32xf32>
    %c7_489 = arith.constant 7 : index
    %c0_490 = arith.constant 0 : index
    %455 = vector.load %arg17[%c7_489, %c0_490] : memref<8x32xf32, #tpu.memory_space<vmem>>, vector<1x32xf32>
    tpu.vector_store %arg17[%c7_489, %c0_490], %454 {strides = array<i32>} : memref<8x32xf32, #tpu.memory_space<vmem>>, vector<1x32xf32>,
    %c0_491 = arith.constant 0 : index
    %c0_492 = arith.constant 0 : index
    %456 = vector.load %arg17[%c0_491, %c0_492] : memref<8x32xf32, #tpu.memory_space<vmem>>, vector<8x32xf32>
    %457 = vector.shape_cast %456 : vector<8x32xf32> to vector<8x1x32xf32>
    %458 = vector.broadcast %457 : vector<8x1x32xf32> to vector<8x16x32xf32>
    %459 = arith.mulf %458, %297 : vector<8x16x32xf32>
    %cst_493 = arith.constant dense<0.000000e+00> : vector<8x16xf32>
    %460 = vector.multi_reduction <add>, %459, %cst_493 [2] : vector<8x16x32xf32> to vector<8x16xf32>
    %c56_494 = arith.constant 56 : index
    %c0_495 = arith.constant 0 : index
    %461 = vector.load %arg9[%c56_494, %c0_495] : memref<64x16xf32, #tpu.memory_space<vmem>>, vector<8x16xf32>
    %462 = arith.addf %460, %461 : vector<8x16xf32>
    %cst_496 = arith.constant dense<0.000000e+00> : vector<8x16xf32>
    %463 = tpu.matmul %433, %436, %cst_496 {dimension_numbers = #tpu.dot_dimension_numbers<[1], [1], [0], [0], [0, 0, 1, 0], [], []>} : vector<8x8xf32>, vector<16x8xf32>, vector<8x16xf32> -> vector<8x16xf32>
    %464 = arith.addf %463, %462 : vector<8x16xf32>
    %cst_497 = arith.constant dense<0xFF800000> : vector<8xf32>
    %465 = vector.multi_reduction <maximumf>, %464, %cst_497 [1] : vector<8x16xf32> to vector<8xf32>
    %466 = vector.shape_cast %465 : vector<8xf32> to vector<8x1xf32>
    %467 = vector.broadcast %466 : vector<8x1xf32> to vector<8x16xf32>
    %468 = arith.subf %464, %467 : vector<8x16xf32>
    %469 = math.exp %468 : vector<8x16xf32>
    %cst_498 = arith.constant dense<0.000000e+00> : vector<8xf32>
    %470 = vector.multi_reduction <add>, %469, %cst_498 [1] : vector<8x16xf32> to vector<8xf32>
    %471 = vector.shape_cast %470 : vector<8xf32> to vector<8x1xf32>
    %472 = tpu.reciprocal %471 {approx = true} : vector<8x1xf32> -> vector<8x1xf32>
    %473 = vector.broadcast %472 : vector<8x1xf32> to vector<8x16xf32>
    %474 = arith.mulf %469, %473 : vector<8x16xf32>
    %c56_499 = arith.constant 56 : index
    %c0_500 = arith.constant 0 : index
    %475 = vector.load %arg12[%c56_499, %c0_500] : memref<64x16xf32, #tpu.memory_space<vmem>>, vector<8x16xf32>
    tpu.vector_store %arg12[%c56_499, %c0_500], %474 {strides = array<i32>} : memref<64x16xf32, #tpu.memory_space<vmem>>, vector<8x16xf32>,
    %cst_501 = arith.constant dense<0.000000e+00> : vector<8x8xf32>
    %476 = tpu.matmul %474, %439, %cst_501 {dimension_numbers = #tpu.dot_dimension_numbers<[1], [0], [0], [1], [0, 0, 1, 1], [], []>} : vector<8x16xf32>, vector<16x8xf32>, vector<8x8xf32> -> vector<8x8xf32>
    %c16_502 = arith.constant 16 : index
    %c24_503 = arith.constant 24 : index
    %477 = vector.load %arg16[%c16_502, %c24_503] : memref<24x32xf32, #tpu.memory_space<vmem>>, vector<8x8xf32>
    tpu.vector_store %arg16[%c16_502, %c24_503], %476 {strides = array<i32>} : memref<24x32xf32, #tpu.memory_space<vmem>>, vector<8x8xf32>,
    %c0_504 = arith.constant 0 : index
    %c0_505 = arith.constant 0 : index
    %478 = vector.load %arg16[%c0_504, %c0_505] : memref<24x32xf32, #tpu.memory_space<vmem>>, vector<24x32xf32>
    %c0_506 = arith.constant 0 : index
    %c0_507 = arith.constant 0 : index
    %479 = vector.load %arg4[%c0_506, %c0_507] : memref<32x32xf32, #tpu.memory_space<vmem>>, vector<32x32xf32>
    %cst_508 = arith.constant dense<0.000000e+00> : vector<24x32xf32>
    %480 = tpu.matmul %478, %479, %cst_508 {dimension_numbers = #tpu.dot_dimension_numbers<[1], [0], [0], [1], [0, 0, 1, 1], [], []>} : vector<24x32xf32>, vector<32x32xf32>, vector<24x32xf32> -> vector<24x32xf32>
    %c0_509 = arith.constant 0 : index
    %c0_510 = arith.constant 0 : index
    %481 = vector.load %arg5[%c0_509, %c0_510] : memref<1x32xf32, #tpu.memory_space<vmem>>, vector<1x32xf32>
    %482 = vector.broadcast %481 : vector<1x32xf32> to vector<24x32xf32>
    %483 = arith.addf %480, %482 : vector<24x32xf32>
    %c0_511 = arith.constant 0 : index
    %c0_512 = arith.constant 0 : index
    %484 = vector.load %arg10[%c0_511, %c0_512] : memref<24x32xf32, #tpu.memory_space<vmem>>, vector<24x32xf32>
    tpu.vector_store %arg10[%c0_511, %c0_512], %483 {strides = array<i32>} : memref<24x32xf32, #tpu.memory_space<vmem>>, vector<24x32xf32>,
    return
  }
  func.func @transform_0(%arg0: i32) -> (i32, i32) {
    %c0_i32 = arith.constant 0 : i32
    %c0_i32_0 = arith.constant 0 : i32
    return %arg0, %c0_i32 : i32, i32
  }
  func.func @transform_1(%arg0: i32) -> (i32, i32) {
    %c0_i32 = arith.constant 0 : i32
    %c0_i32_0 = arith.constant 0 : i32
    %c0_i32_1 = arith.constant 0 : i32
    return %c0_i32, %c0_i32_0 : i32, i32
  }
  func.func @transform_2(%arg0: i32) -> (i32, i32) {
    %c0_i32 = arith.constant 0 : i32
    %c0_i32_0 = arith.constant 0 : i32
    %c0_i32_1 = arith.constant 0 : i32
    return %c0_i32, %c0_i32_0 : i32, i32
  }
  func.func @transform_3(%arg0: i32) -> (i32, i32) {
    %c0_i32 = arith.constant 0 : i32
    %c0_i32_0 = arith.constant 0 : i32
    %c0_i32_1 = arith.constant 0 : i32
    return %c0_i32, %c0_i32_0 : i32, i32
  }
  func.func @transform_4(%arg0: i32) -> (i32, i32) {
    %c0_i32 = arith.constant 0 : i32
    %c0_i32_0 = arith.constant 0 : i32
    %c0_i32_1 = arith.constant 0 : i32
    return %c0_i32, %c0_i32_0 : i32, i32
  }
  func.func @transform_5(%arg0: i32) -> (i32, i32, i32) {
    %c0_i32 = arith.constant 0 : i32
    %c0_i32_0 = arith.constant 0 : i32
    %c0_i32_1 = arith.constant 0 : i32
    return %arg0, %c0_i32, %c0_i32_0 : i32, i32, i32
  }
  func.func @transform_6(%arg0: i32) -> (i32, i32, i32) {
    %c0_i32 = arith.constant 0 : i32
    %c0_i32_0 = arith.constant 0 : i32
    %c0_i32_1 = arith.constant 0 : i32
    %c0_i32_2 = arith.constant 0 : i32
    return %c0_i32, %c0_i32_0, %c0_i32_1 : i32, i32, i32
  }
  func.func @transform_7(%arg0: i32) -> (i32, i32) {
    %c0_i32 = arith.constant 0 : i32
    %c0_i32_0 = arith.constant 0 : i32
    return %arg0, %c0_i32 : i32, i32
  }
  func.func @transform_8(%arg0: i32) -> (i32, i32) {
    %c0_i32 = arith.constant 0 : i32
    %c0_i32_0 = arith.constant 0 : i32
    return %arg0, %c0_i32 : i32, i32
  }
  func.func @transform_9(%arg0: i32) -> (i32, i32) {
    %c0_i32 = arith.constant 0 : i32
    %c0_i32_0 = arith.constant 0 : i32
    return %arg0, %c0_i32 : i32, i32
  }
  func.func @transform_10(%arg0: i32) -> (i32, i32) {
    %c0_i32 = arith.constant 0 : i32
    %c0_i32_0 = arith.constant 0 : i32
    return %arg0, %c0_i32 : i32, i32
  }
  func.func @transform_11(%arg0: i32) -> (i32, i32) {
    %c0_i32 = arith.constant 0 : i32
    %c0_i32_0 = arith.constant 0 : i32
    return %arg0, %c0_i32 : i32, i32
  }
  func.func @transform_12(%arg0: i32) -> (i32, i32) {
    %c0_i32 = arith.constant 0 : i32
    %c0_i32_0 = arith.constant 0 : i32
    return %arg0, %c0_i32 : i32, i32
  }
  func.func @transform_13(%arg0: i32) -> (i32, i32) {
    %c0_i32 = arith.constant 0 : i32
    %c0_i32_0 = arith.constant 0 : i32
    return %arg0, %c0_i32 : i32, i32
  }
}

</mosaic_0001>

<llo_original>
// kernel: prophetnet_ngram_attention_pallas.1
$region0: #{prophetnet_ngram_attention_pallas.1}
  #allocation0 [shape = 'u32[]', space=smem, size = 0x4, offset = 0x4, fixed_abs, tag = 'smem constant byte address 0x4 - core index']
  #allocation1 [shape = 'u32[144,128]{1,0:T(1,128)}', space=vmem, size = 0x12000, scoped, tag = 'internal scratch']
  #allocation2 [shape = 'f32[24,224]{1,0:T(8,128)}', space=vmem, size = 0x6000, scoped, tag = 'scratch operand']
  #allocation3 [shape = 'f32[24,32]{1,0:T(8,128)}', space=vmem, size = 0x3000, scoped, tag = 'scratch operand']
  #allocation4 [shape = 'f32[8,32]{1,0:T(8,128)}', space=vmem, size = 0x1000, scoped, tag = 'scratch operand']
  %s0 = inlined_call_operand.vmem [shape: f32[48,32], index: 0, kind: input, shape index: {}]
  %s1 = inlined_call_operand.vmem [shape: bf16[32,224], index: 1, kind: input, shape index: {}]
  %s2 = inlined_call_operand.vmem [shape: f32[1,224], index: 2, kind: input, shape index: {}]
  %s3 = inlined_call_operand.vmem [shape: f32[32,32], index: 3, kind: input, shape index: {}]
  %s4 = inlined_call_operand.vmem [shape: f32[1,32], index: 4, kind: input, shape index: {}]
  %s5 = inlined_call_operand.vmem [shape: bf16[16,8,32], index: 5, kind: input, shape index: {}]
  %s6 = inlined_call_operand.vmem [shape: bf16[16,16,32], index: 6, kind: input, shape index: {}]
  %s7 = inlined_call_operand.vmem [shape: f32[64,8], index: 7, kind: input, shape index: {}]
  %s8 = inlined_call_operand.vmem [shape: f32[128,16], index: 8, kind: input, shape index: {}]
  %s9 = inlined_call_operand.hbm [shape: f32[48,32], index: 9, kind: output, shape index: {0}]
  %s10 = inlined_call_operand.hbm [shape: f32[64,8], index: 10, kind: output, shape index: {1}]
  %s11 = inlined_call_operand.hbm [shape: f32[128,16], index: 11, kind: output, shape index: {2}]
  %s12 = inlined_call_operand.vmem [shape: f32[16,32], index: 12, kind: output, shape index: {3}]
  %s13 = inlined_call_operand.vmem [shape: f32[16,32], index: 13, kind: output, shape index: {4}]
  %14 = xla_tuple %s9, %s10, %s11, %s12, %s13
  %s15 = sld [smem:[#allocation0]]
  $region101: #{prophetnet_ngram_attention_pallas.1} parent=0
    _
  %s17 = ssub.s32 1, %s15
  %s18 = scalar_select 0, %s17, %s15
  $region1: #{prophetnet_ngram_attention_pallas.1} parent=0
    #allocation5 [shape = 'u8[24576]{0}', space=vmem, size = 0x6000, scoped, tag = 'output window, operand 0']
    #allocation6 [shape = 's32[2]{0}', space=sflag, size = 0x8, scoped, tag = 'scoped memory for prophetnet_ngram_attention_pallas.1']
    #allocation7 [shape = 'u8[32768]{0}', space=vmem, size = 0x8000, scoped, tag = 'output window, operand 1']
    #allocation8 [shape = 's32[2]{0}', space=sflag, size = 0x8, scoped, tag = 'scoped memory for prophetnet_ngram_attention_pallas.1']
    #allocation9 [shape = 'u8[65536]{0}', space=vmem, size = 0x10000, scoped, tag = 'output window, operand 2']
    %19 = vsyncpa [#allocation6], 0
    %s20 = scalar_lea.sflag [#allocation6], 1
    %21 = vsyncpa %s20, 0
    %22 = vsyncpa [#allocation8], 0
    %s23 = scalar_lea.sflag [#allocation8], 1
    %24 = vsyncpa %s23, 0
    loop: start=0, step=1, limit=4
    $region2: #{prophetnet_ngram_attention_pallas.1} parent=1 // loop_pre_header
      _
    $region3: #{prophetnet_ngram_attention_pallas.1} parent=1 // loop_header
      %s26 = sphi 0, %s30
      %p27 = scmp.ge.s32.totalorder %s26, 4
      %s36 = sphi 0, %s38
      %s39 = sphi 0, %s36
      %s40 = sphi 0, %s39
      %s56 = sphi 0, %s40
      %s60 = sphi 0, %s60
      %s62 = sphi 0, %s60
      %s63 = sphi 0, %s62
      %s77 = sphi 0, %s63
      %s81 = sphi 0, %s81
      %s83 = sphi 0, %s81
      %s84 = sphi 0, %s83
      %s98 = sphi 0, %s84
      %s102 = sphi 0, %s102
      %s104 = sphi 0, %s102
      %s105 = sphi 0, %s104
      %s119 = sphi 0, %s105
      %s123 = sphi 0, %s123
      %s125 = sphi 0, %s123
      %s126 = sphi 0, %s125
      %s140 = sphi 0, %s126
      %s146 = sphi 0, %s148
      %s149 = sphi 0, %s146
      %s150 = sphi 0, %s149
      %s166 = sphi 0, %s150
      %s170 = sphi 0, %s170
      %s172 = sphi 0, %s170
      %s173 = sphi 0, %s172
      %s187 = sphi 0, %s173
      %s193 = sphi 0, %s195
      %s196 = sphi 0, %s193
      %s197 = sphi 0, %s196
      %s213 = sphi 0, %s197
      %s219 = sphi 0, %s221
      %s222 = sphi 0, %s219
      %s223 = sphi 0, %s222
      %s239 = sphi 0, %s223
      %s245 = sphi 0, %s247
      %s248 = sphi 0, %s245
      %s249 = sphi 0, %s248
      %s265 = sphi 0, %s249
      %s271 = sphi 0, %s273
      %s274 = sphi 0, %s271
      %s275 = sphi 0, %s274
      %s291 = sphi 0, %s275
      %s297 = sphi 0, %s299
      %s300 = sphi 0, %s297
      %s301 = sphi 0, %s300
      %s317 = sphi 0, %s301
      %s323 = sphi 0, %s325
      %s326 = sphi 0, %s323
      %s327 = sphi 0, %s326
      %s343 = sphi 0, %s327
      %s349 = sphi 0, %s351
      %s352 = sphi 0, %s349
      %s353 = sphi 0, %s352
      %s369 = sphi 0, %s353
    $region4: #{prophetnet_ngram_attention_pallas.1} parent=1 // loop_header_branch
      %29 = sbr.rel (%p27) target = $region8
    $region5: #{prophetnet_ngram_attention_pallas.1} parent=1 // loop_body
      %s31 = ssub.s32 %s26, 1
      %s32 = ssub.s32 %s26, 2
      %s33 = sadd.s32 %s26, 1
      %s34 = ssub.s32 %s26, %s33
      %p35 = scmp.eq.s32.totalorder %s34, 0
      %s37 = sadd.s32 %s36, 1
      %s38 = scalar_select %p35, %s36, %s37
      %p41 = pneg %p35
      %p42 = scmp.eq.s32.totalorder %s26, 1
      %p43 = por %p41, %p42
      %p44 = scmp.ne.s32.totalorder %s36, %s39
      %p45 = scmp.eq.s32.totalorder %s26, 0
      %p46 = por %p44, %p45
      %p47 = scmp.ne.s32.totalorder %s36, %s39
      %p48 = scmp.eq.s32.totalorder %s31, 1
      %p49 = por %p47, %p48
      %p50 = scmp.ne.s32.totalorder %s39, %s40
      %p51 = scmp.eq.s32.totalorder %s31, 0
      %p52 = por %p50, %p51
      %p53 = scmp.ne.s32.totalorder %s39, %s40
      %p54 = scmp.eq.s32.totalorder %s32, 1
      %p55 = por %p53, %p54
      %p57 = scmp.ne.s32.totalorder %s40, %s56
      %p58 = scmp.eq.s32.totalorder %s32, 0
      %p59 = por %p57, %p58
      %s61 = sadd.s32 %s60, 1
      %p64 = scmp.eq.s32.totalorder %s26, 1
      %p65 = scmp.ne.s32.totalorder %s60, %s62
      %p66 = scmp.eq.s32.totalorder %s26, 0
      %p67 = por %p65, %p66
      %p68 = scmp.ne.s32.totalorder %s60, %s62
      %p69 = scmp.eq.s32.totalorder %s31, 1
      %p70 = por %p68, %p69
      %p71 = scmp.ne.s32.totalorder %s62, %s63
      %p72 = scmp.eq.s32.totalorder %s31, 0
      %p73 = por %p71, %p72
      %p74 = scmp.ne.s32.totalorder %s62, %s63
      %p75 = scmp.eq.s32.totalorder %s32, 1
      %p76 = por %p74, %p75
      %p78 = scmp.ne.s32.totalorder %s63, %s77
      %p79 = scmp.eq.s32.totalorder %s32, 0
      %p80 = por %p78, %p79
      %s82 = sadd.s32 %s81, 1
      %p85 = scmp.eq.s32.totalorder %s26, 1
      %p86 = scmp.ne.s32.totalorder %s81, %s83
      %p87 = scmp.eq.s32.totalorder %s26, 0
      %p88 = por %p86, %p87
      %p89 = scmp.ne.s32.totalorder %s81, %s83
      %p90 = scmp.eq.s32.totalorder %s31, 1
      %p91 = por %p89, %p90
      %p92 = scmp.ne.s32.totalorder %s83, %s84
      %p93 = scmp.eq.s32.totalorder %s31, 0
      %p94 = por %p92, %p93
      %p95 = scmp.ne.s32.totalorder %s83, %s84
      %p96 = scmp.eq.s32.totalorder %s32, 1
      %p97 = por %p95, %p96
      %p99 = scmp.ne.s32.totalorder %s84, %s98
      %p100 = scmp.eq.s32.totalorder %s32, 0
      %p101 = por %p99, %p100
      %s103 = sadd.s32 %s102, 1
      %p106 = scmp.eq.s32.totalorder %s26, 1
      %p107 = scmp.ne.s32.totalorder %s102, %s104
      %p108 = scmp.eq.s32.totalorder %s26, 0
      %p109 = por %p107, %p108
      %p110 = scmp.ne.s32.totalorder %s102, %s104
      %p111 = scmp.eq.s32.totalorder %s31, 1
      %p112 = por %p110, %p111
      %p113 = scmp.ne.s32.totalorder %s104, %s105
      %p114 = scmp.eq.s32.totalorder %s31, 0
      %p115 = por %p113, %p114
      %p116 = scmp.ne.s32.totalorder %s104, %s105
      %p117 = scmp.eq.s32.totalorder %s32, 1
      %p118 = por %p116, %p117
      %p120 = scmp.ne.s32.totalorder %s105, %s119
      %p121 = scmp.eq.s32.totalorder %s32, 0
      %p122 = por %p120, %p121
      %s124 = sadd.s32 %s123, 1
      %p127 = scmp.eq.s32.totalorder %s26, 1
      %p128 = scmp.ne.s32.totalorder %s123, %s125
      %p129 = scmp.eq.s32.totalorder %s26, 0
      %p130 = por %p128, %p129
      %p131 = scmp.ne.s32.totalorder %s123, %s125
      %p132 = scmp.eq.s32.totalorder %s31, 1
      %p133 = por %p131, %p132
      %p134 = scmp.ne.s32.totalorder %s125, %s126
      %p135 = scmp.eq.s32.totalorder %s31, 0
      %p136 = por %p134, %p135
      %p137 = scmp.ne.s32.totalorder %s125, %s126
      %p138 = scmp.eq.s32.totalorder %s32, 1
      %p139 = por %p137, %p138
      %p141 = scmp.ne.s32.totalorder %s126, %s140
      %p142 = scmp.eq.s32.totalorder %s32, 0
      %p143 = por %p141, %p142
      %s144 = ssub.s32 %s26, %s33
      %p145 = scmp.eq.s32.totalorder %s144, 0
      %s147 = sadd.s32 %s146, 1
      %s148 = scalar_select %p145, %s146, %s147
      %p151 = pneg %p145
      %p152 = scmp.eq.s32.totalorder %s26, 1
      %p153 = por %p151, %p152
      %p154 = scmp.ne.s32.totalorder %s146, %s149
      %p155 = scmp.eq.s32.totalorder %s26, 0
      %p156 = por %p154, %p155
      %p157 = scmp.ne.s32.totalorder %s146, %s149
      %p158 = scmp.eq.s32.totalorder %s31, 1
      %p159 = por %p157, %p158
      %p160 = scmp.ne.s32.totalorder %s149, %s150
      %p161 = scmp.eq.s32.totalorder %s31, 0
      %p162 = por %p160, %p161
      %p163 = scmp.ne.s32.totalorder %s149, %s150
      %p164 = scmp.eq.s32.totalorder %s32, 1
      %p165 = por %p163, %p164
      %p167 = scmp.ne.s32.totalorder %s150, %s166
      %p168 = scmp.eq.s32.totalorder %s32, 0
      %p169 = por %p167, %p168
      %s171 = sadd.s32 %s170, 1
      %p174 = scmp.eq.s32.totalorder %s26, 1
      %p175 = scmp.ne.s32.totalorder %s170, %s172
      %p176 = scmp.eq.s32.totalorder %s26, 0
      %p177 = por %p175, %p176
      %p178 = scmp.ne.s32.totalorder %s170, %s172
      %p179 = scmp.eq.s32.totalorder %s31, 1
      %p180 = por %p178, %p179
      %p181 = scmp.ne.s32.totalorder %s172, %s173
      %p182 = scmp.eq.s32.totalorder %s31, 0
      %p183 = por %p181, %p182
      %p184 = scmp.ne.s32.totalorder %s172, %s173
      %p185 = scmp.eq.s32.totalorder %s32, 1
      %p186 = por %p184, %p185
      %p188 = scmp.ne.s32.totalorder %s173, %s187
      %p189 = scmp.eq.s32.totalorder %s32, 0
      %p190 = por %p188, %p189
      %s191 = ssub.s32 %s26, %s33
      %p192 = scmp.eq.s32.totalorder %s191, 0
      %s194 = sadd.s32 %s193, 1
      %s195 = scalar_select %p192, %s193, %s194
      %p198 = pneg %p192
      %p199 = scmp.eq.s32.totalorder %s26, 1
      %p200 = por %p198, %p199
      %p201 = scmp.ne.s32.totalorder %s193, %s196
      %p202 = scmp.eq.s32.totalorder %s26, 0
      %p203 = por %p201, %p202
      %p204 = scmp.ne.s32.totalorder %s193, %s196
      %p205 = scmp.eq.s32.totalorder %s31, 1
      %p206 = por %p204, %p205
      %p207 = scmp.ne.s32.totalorder %s196, %s197
      %p208 = scmp.eq.s32.totalorder %s31, 0
      %p209 = por %p207, %p208
      %p210 = scmp.ne.s32.totalorder %s196, %s197
      %p211 = scmp.eq.s32.totalorder %s32, 1
      %p212 = por %p210, %p211
      %p214 = scmp.ne.s32.totalorder %s197, %s213
      %p215 = scmp.eq.s32.totalorder %s32, 0
      %p216 = por %p214, %p215
      %s217 = ssub.s32 %s26, %s33
      %p218 = scmp.eq.s32.totalorder %s217, 0
      %s220 = sadd.s32 %s219, 1
      %s221 = scalar_select %p218, %s219, %s220
      %p224 = pneg %p218
      %p225 = scmp.eq.s32.totalorder %s26, 1
      %p226 = por %p224, %p225
      %p227 = scmp.ne.s32.totalorder %s219, %s222
      %p228 = scmp.eq.s32.totalorder %s26, 0
      %p229 = por %p227, %p228
      %p230 = scmp.ne.s32.totalorder %s219, %s222
      %p231 = scmp.eq.s32.totalorder %s31, 1
      %p232 = por %p230, %p231
      %p233 = scmp.ne.s32.totalorder %s222, %s223
      %p234 = scmp.eq.s32.totalorder %s31, 0
      %p235 = por %p233, %p234
      %p236 = scmp.ne.s32.totalorder %s222, %s223
      %p237 = scmp.eq.s32.totalorder %s32, 1
      %p238 = por %p236, %p237
      %p240 = scmp.ne.s32.totalorder %s223, %s239
      %p241 = scmp.eq.s32.totalorder %s32, 0
      %p242 = por %p240, %p241
      %s243 = ssub.s32 %s26, %s33
      %p244 = scmp.eq.s32.totalorder %s243, 0
      %s246 = sadd.s32 %s245, 1
      %s247 = scalar_select %p244, %s245, %s246
      %p250 = pneg %p244
      %p251 = scmp.eq.s32.totalorder %s26, 1
      %p252 = por %p250, %p251
      %p253 = scmp.ne.s32.totalorder %s245, %s248
      %p254 = scmp.eq.s32.totalorder %s26, 0
      %p255 = por %p253, %p254
      %p256 = scmp.ne.s32.totalorder %s245, %s248
      %p257 = scmp.eq.s32.totalorder %s31, 1
      %p258 = por %p256, %p257
      %p259 = scmp.ne.s32.totalorder %s248, %s249
      %p260 = scmp.eq.s32.totalorder %s31, 0
      %p261 = por %p259, %p260
      %p262 = scmp.ne.s32.totalorder %s248, %s249
      %p263 = scmp.eq.s32.totalorder %s32, 1
      %p264 = por %p262, %p263
      %p266 = scmp.ne.s32.totalorder %s249, %s265
      %p267 = scmp.eq.s32.totalorder %s32, 0
      %p268 = por %p266, %p267
      %s269 = ssub.s32 %s26, %s33
      %p270 = scmp.eq.s32.totalorder %s269, 0
      %s272 = sadd.s32 %s271, 1
      %s273 = scalar_select %p270, %s271, %s272
      %p276 = pneg %p270
      %p277 = scmp.eq.s32.totalorder %s26, 1
      %p278 = por %p276, %p277
      %p279 = scmp.ne.s32.totalorder %s271, %s274
      %p280 = scmp.eq.s32.totalorder %s26, 0
      %p281 = por %p279, %p280
      %p282 = scmp.ne.s32.totalorder %s271, %s274
      %p283 = scmp.eq.s32.totalorder %s31, 1
      %p284 = por %p282, %p283
      %p285 = scmp.ne.s32.totalorder %s274, %s275
      %p286 = scmp.eq.s32.totalorder %s31, 0
      %p287 = por %p285, %p286
      %p288 = scmp.ne.s32.totalorder %s274, %s275
      %p289 = scmp.eq.s32.totalorder %s32, 1
      %p290 = por %p288, %p289
      %p292 = scmp.ne.s32.totalorder %s275, %s291
      %p293 = scmp.eq.s32.totalorder %s32, 0
      %p294 = por %p292, %p293
      %s295 = ssub.s32 %s26, %s33
      %p296 = scmp.eq.s32.totalorder %s295, 0
      %s298 = sadd.s32 %s297, 1
      %s299 = scalar_select %p296, %s297, %s298
      %p302 = pneg %p296
      %p303 = scmp.eq.s32.totalorder %s26, 1
      %p304 = por %p302, %p303
      %p305 = scmp.ne.s32.totalorder %s297, %s300
      %p306 = scmp.eq.s32.totalorder %s26, 0
      %p307 = por %p305, %p306
      %p308 = scmp.ne.s32.totalorder %s297, %s300
      %p309 = scmp.eq.s32.totalorder %s31, 1
      %p310 = por %p308, %p309
      %p311 = scmp.ne.s32.totalorder %s300, %s301
      %p312 = scmp.eq.s32.totalorder %s31, 0
      %p313 = por %p311, %p312
      %p314 = scmp.ne.s32.totalorder %s300, %s301
      %p315 = scmp.eq.s32.totalorder %s32, 1
      %p316 = por %p314, %p315
      %p318 = scmp.ne.s32.totalorder %s301, %s317
      %p319 = scmp.eq.s32.totalorder %s32, 0
      %p320 = por %p318, %p319
      %s321 = ssub.s32 %s26, %s33
      %p322 = scmp.eq.s32.totalorder %s321, 0
      %s324 = sadd.s32 %s323, 1
      %s325 = scalar_select %p322, %s323, %s324
      %p328 = pneg %p322
      %p329 = scmp.eq.s32.totalorder %s26, 1
      %p330 = por %p328, %p329
      %p331 = scmp.ne.s32.totalorder %s323, %s326
      %p332 = scmp.eq.s32.totalorder %s26, 0
      %p333 = por %p331, %p332
      %p334 = scmp.ne.s32.totalorder %s323, %s326
      %p335 = scmp.eq.s32.totalorder %s31, 1
      %p336 = por %p334, %p335
      %p337 = scmp.ne.s32.totalorder %s326, %s327
      %p338 = scmp.eq.s32.totalorder %s31, 0
      %p339 = por %p337, %p338
      %p340 = scmp.ne.s32.totalorder %s326, %s327
      %p341 = scmp.eq.s32.totalorder %s32, 1
      %p342 = por %p340, %p341
      %p344 = scmp.ne.s32.totalorder %s327, %s343
      %p345 = scmp.eq.s32.totalorder %s32, 0
      %p346 = por %p344, %p345
      %s347 = ssub.s32 %s26, %s33
      %p348 = scmp.eq.s32.totalorder %s347, 0
      %s350 = sadd.s32 %s349, 1
      %s351 = scalar_select %p348, %s349, %s350
      %p354 = pneg %p348
      %p355 = scmp.eq.s32.totalorder %s26, 1
      %p356 = por %p354, %p355
      %p357 = scmp.ne.s32.totalorder %s349, %s352
      %p358 = scmp.eq.s32.totalorder %s26, 0
      %p359 = por %p357, %p358
      %p360 = scmp.ne.s32.totalorder %s349, %s352
      %p361 = scmp.eq.s32.totalorder %s31, 1
      %p362 = por %p360, %p361
      %p363 = scmp.ne.s32.totalorder %s352, %s353
      %p364 = scmp.eq.s32.totalorder %s31, 0
      %p365 = por %p363, %p364
      %p366 = scmp.ne.s32.totalorder %s352, %s353
      %p367 = scmp.eq.s32.totalorder %s32, 1
      %p368 = por %p366, %p367
      %p370 = scmp.ne.s32.totalorder %s353, %s369
      %p371 = scmp.eq.s32.totalorder %s32, 0
      %p372 = por %p370, %p371
      %p373 = scmp.le.s32.totalorder 1, %s26
      %p374 = scmp.lt.s32.totalorder %s26, 3
      %p375 = pnand %p373, %p374
      %p376 = pneg %p375
      // Predicated region
      $region9: #{prophetnet_ngram_attention_pallas.1} parent=5 // pred_check
        _
      $region10: #{prophetnet_ngram_attention_pallas.1} parent=5 // pred_check_branch
        %378 = sbr.rel (%p375) target = $region12
      $region11: #{prophetnet_ngram_attention_pallas.1} parent=5 // pred_region
        %s379 = ssub.s32 %s26, 1
        // Predicated region
        $region13: #{prophetnet_ngram_attention_pallas.1} parent=11 // pred_check
          %p380 = pneg %p73
        $region14: #{prophetnet_ngram_attention_pallas.1} parent=11 // pred_check_branch
          %382 = sbr.rel (%p380) target = $region16
        $region15: #{prophetnet_ngram_attention_pallas.1} parent=11 // pred_region
          _
        $region16: #{prophetnet_ngram_attention_pallas.1} parent=11 // pred_fallthru
          _
        // Predicated region
        $region17: #{prophetnet_ngram_attention_pallas.1} parent=11 // pred_check
          %p383 = pneg %p94
        $region18: #{prophetnet_ngram_attention_pallas.1} parent=11 // pred_check_branch
          %385 = sbr.rel (%p383) target = $region20
        $region19: #{prophetnet_ngram_attention_pallas.1} parent=11 // pred_region
          _
        $region20: #{prophetnet_ngram_attention_pallas.1} parent=11 // pred_fallthru
          _
        // Predicated region
        $region21: #{prophetnet_ngram_attention_pallas.1} parent=11 // pred_check
          %p386 = pneg %p115
        $region22: #{prophetnet_ngram_attention_pallas.1} parent=11 // pred_check_branch
          %388 = sbr.rel (%p386) target = $region24
        $region23: #{prophetnet_ngram_attention_pallas.1} parent=11 // pred_region
          _
        $region24: #{prophetnet_ngram_attention_pallas.1} parent=11 // pred_fallthru
          _
        // Predicated region
        $region25: #{prophetnet_ngram_attention_pallas.1} parent=11 // pred_check
          %p389 = pneg %p136
        $region26: #{prophetnet_ngram_attention_pallas.1} parent=11 // pred_check_branch
          %391 = sbr.rel (%p389) target = $region28
        $region27: #{prophetnet_ngram_attention_pallas.1} parent=11 // pred_region
          _
        $region28: #{prophetnet_ngram_attention_pallas.1} parent=11 // pred_fallthru
          _
        // Predicated region
        $region29: #{prophetnet_ngram_attention_pallas.1} parent=11 // pred_check
          %p392 = pneg %p183
        $region30: #{prophetnet_ngram_attention_pallas.1} parent=11 // pred_check_branch
          %394 = sbr.rel (%p392) target = $region32
        $region31: #{prophetnet_ngram_attention_pallas.1} parent=11 // pred_region
          _
        $region32: #{prophetnet_ngram_attention_pallas.1} parent=11 // pred_fallthru
          _
      $region12: #{prophetnet_ngram_attention_pallas.1} parent=5 // pred_fallthru
        _
      %p395 = scmp.lt.s32.totalorder %s26, 2
      // Predicated region
      $region33: #{prophetnet_ngram_attention_pallas.1} parent=5 // pred_check
        %p396 = pneg %p395
      $region34: #{prophetnet_ngram_attention_pallas.1} parent=5 // pred_check_branch
        %398 = sbr.rel (%p396) target = $region36
      $region35: #{prophetnet_ngram_attention_pallas.1} parent=5 // pred_region
        // Predicated region
        $region37: #{prophetnet_ngram_attention_pallas.1} parent=35 // pred_check
          %p399 = pneg %p46
        $region38: #{prophetnet_ngram_attention_pallas.1} parent=35 // pred_check_branch
          %401 = sbr.rel (%p399) target = $region40
        $region39: #{prophetnet_ngram_attention_pallas.1} parent=35 // pred_region
          %s402 = smul.u32 3, %s26
          %p403 = scmp.lt.s32.totalorder %s402, 5
          %s404 = scalar_select %p403, %s402, 5
          %s405 = smul.addr %s404, 8
          %s406 = scalar_lea.vmem %s0, %s405
          %s407 = smul.u32 3, %s26
        $region40: #{prophetnet_ngram_attention_pallas.1} parent=35 // pred_fallthru
          _
        // Predicated region
        $region41: #{prophetnet_ngram_attention_pallas.1} parent=35 // pred_check
          %p408 = pneg %p156
        $region42: #{prophetnet_ngram_attention_pallas.1} parent=35 // pred_check_branch
          %410 = sbr.rel (%p408) target = $region44
        $region43: #{prophetnet_ngram_attention_pallas.1} parent=35 // pred_region
          %s411 = smul.u32 8, %s26
          %p412 = scmp.lt.s32.totalorder %s411, 15
          %s413 = scalar_select %p412, %s411, 15
          %s414 = smul.addr %s413, 4
          %s415 = scalar_lea.vmem %s5, %s414
          %s416 = smul.u32 8, %s26
        $region44: #{prophetnet_ngram_attention_pallas.1} parent=35 // pred_fallthru
          _
        // Predicated region
        $region45: #{prophetnet_ngram_attention_pallas.1} parent=35 // pred_check
          %p417 = pneg %p203
        $region46: #{prophetnet_ngram_attention_pallas.1} parent=35 // pred_check_branch
          %419 = sbr.rel (%p417) target = $region48
        $region47: #{prophetnet_ngram_attention_pallas.1} parent=35 // pred_region
          %s420 = smul.u32 4, %s26
          %p421 = scmp.lt.s32.totalorder %s420, 7
          %s422 = scalar_select %p421, %s420, 7
          %s423 = smul.addr %s422, 8
          %s424 = scalar_lea.vmem %s7, %s423
          %s425 = smul.u32 4, %s26
        $region48: #{prophetnet_ngram_attention_pallas.1} parent=35 // pred_fallthru
          _
        // Predicated region
        $region49: #{prophetnet_ngram_attention_pallas.1} parent=35 // pred_check
          %p426 = pneg %p229
        $region50: #{prophetnet_ngram_attention_pallas.1} parent=35 // pred_check_branch
          %428 = sbr.rel (%p426) target = $region52
        $region51: #{prophetnet_ngram_attention_pallas.1} parent=35 // pred_region
          %s429 = smul.u32 8, %s26
          %p430 = scmp.lt.s32.totalorder %s429, 15
          %s431 = scalar_select %p430, %s429, 15
          %s432 = smul.addr %s431, 8
          %s433 = scalar_lea.vmem %s8, %s432
          %s434 = smul.u32 8, %s26
        $region52: #{prophetnet_ngram_attention_pallas.1} parent=35 // pred_fallthru
          _
      $region36: #{prophetnet_ngram_attention_pallas.1} parent=5 // pred_fallthru
        _
      %p435 = scmp.le.s32.totalorder 1, %s26
      %p436 = scmp.lt.s32.totalorder %s26, 3
      %p437 = pnand %p435, %p436
      %p438 = pneg %p437
      // Predicated region
      $region53: #{prophetnet_ngram_attention_pallas.1} parent=5 // pred_check
        _
      $region54: #{prophetnet_ngram_attention_pallas.1} parent=5 // pred_check_branch
        %440 = sbr.rel (%p437) target = $region56
      $region55: #{prophetnet_ngram_attention_pallas.1} parent=5 // pred_region
        %s441 = ssub.s32 %s26, 1
        %s442 = smul.u32 3, %s31
        %p443 = scmp.lt.s32.totalorder %s442, 5
        %s444 = scalar_select %p443, %s442, 5
        %s445 = smul.addr %s444, 8
        %s446 = scalar_lea.vmem %s0, %s445
        %p447 = pneg %p52
        %p448 = pneg %p49
        %p449 = pneg %p73
        %p450 = pneg %p70
        %p451 = pneg %p94
        %p452 = pneg %p91
        %p453 = pneg %p115
        %p454 = pneg %p112
        %p455 = pneg %p136
        %p456 = pneg %p133
        %s457 = smul.u32 8, %s31
        %p458 = scmp.lt.s32.totalorder %s457, 15
        %s459 = scalar_select %p458, %s457, 15
        %s460 = smul.addr %s459, 4
        %s461 = scalar_lea.vmem %s5, %s460
        %p462 = pneg %p162
        %p463 = pneg %p159
        %p464 = pneg %p183
        %p465 = pneg %p180
        %s466 = smul.u32 4, %s31
        %p467 = scmp.lt.s32.totalorder %s466, 7
        %s468 = scalar_select %p467, %s466, 7
        %s469 = smul.addr %s468, 8
        %s470 = scalar_lea.vmem %s7, %s469
        %p471 = pneg %p209
        %p472 = pneg %p206
        %s473 = smul.u32 8, %s31
        %p474 = scmp.lt.s32.totalorder %s473, 15
        %s475 = scalar_select %p474, %s473, 15
        %s476 = smul.addr %s475, 8
        %s477 = scalar_lea.vmem %s8, %s476
        %p478 = pneg %p235
        %p479 = pneg %p232
        %p480 = pneg %p261
        %p481 = pneg %p258
        %s482 = sand.u32 %s248, 1
        %s483 = scalar_lea.sflag [#allocation6], %s482
        %s484 = sand.u32 %s248, 1
        %s485 = smul.addr %s484, 24
        %s486 = scalar_lea.vmem [#allocation5], %s485
        %p487 = pneg %p287
        %p488 = pneg %p284
        %s489 = sand.u32 %s31, 1
        %s490 = scalar_lea.sflag [#allocation8], %s489
        %s491 = sand.u32 %s274, 1
        %s492 = smul.addr %s491, 32
        %s493 = scalar_lea.vmem [#allocation7], %s492
        %p494 = pneg %p313
        %p495 = pneg %p310
        %s496 = sand.u32 %s31, 1
        %s497 = scalar_lea.sflag [#allocation8], %s496
        %s498 = sand.u32 %s300, 1
        %s499 = smul.addr %s498, 64
        %s500 = scalar_lea.vmem [#allocation9], %s499
        %p501 = pneg %p339
        %p502 = pneg %p336
        %p503 = scmp.lt.s32.totalorder %s31, 1
        %s504 = scalar_select %p503, %s31, 1
        %s505 = smul.addr %s504, 8
        %s506 = scalar_lea.vmem %s12, %s505
        %p507 = pneg %p365
        %p508 = pneg %p362
        %p509 = scmp.lt.s32.totalorder %s31, 1
        %s510 = scalar_select %p509, %s31, 1
        %s511 = smul.addr %s510, 8
        %s512 = scalar_lea.vmem %s13, %s511
        %s513 = smul.u32 3, %s31
        %p514 = scmp.lt.s32.totalorder %s513, 5
        %s515 = scalar_select %p514, %s513, 5
        %s516 = smul.addr %s515, 8
        %s517 = scalar_lea.vmem %s0, %s516
        %s518 = smul.u32 3, %s31
        %s519 = smul.u32 8, %s31
        %p520 = scmp.lt.s32.totalorder %s519, 15
        %s521 = scalar_select %p520, %s519, 15
        %s522 = smul.addr %s521, 4
        %s523 = scalar_lea.vmem %s5, %s522
        %s524 = smul.u32 8, %s31
        %s525 = smul.u32 4, %s31
        %p526 = scmp.lt.s32.totalorder %s525, 7
        %s527 = scalar_select %p526, %s525, 7
        %s528 = smul.addr %s527, 8
        %s529 = scalar_lea.vmem %s7, %s528
        %s530 = smul.u32 4, %s31
        %s531 = smul.u32 8, %s31
        %p532 = scmp.lt.s32.totalorder %s531, 15
        %s533 = scalar_select %p532, %s531, 15
        %s534 = smul.addr %s533, 8
        %s535 = scalar_lea.vmem %s8, %s534
        %s536 = smul.u32 8, %s31
        %s537 = smul.u32 3, %s31
        %s538 = smul.u32 4, %s31
        %s539 = smul.u32 8, %s31
        %p540 = scmp.lt.s32.totalorder %s31, 1
        %s541 = scalar_select %p540, %s31, 1
        %s542 = smul.addr %s541, 8
        %s543 = scalar_lea.vmem %s12, %s542
        %p544 = scmp.lt.s32.totalorder %s31, 1
        %s545 = scalar_select %p544, %s31, 1
        %s546 = smul.addr %s545, 8
        %s547 = scalar_lea.vmem %s13, %s546
        %v549 = vld [vmem:[%s517] sm:$0xff]
        %v550 = vld [vmem:[%s517 + $0x8] sm:$0xff]
        %v551 = vld [vmem:[%s517 + $0x10] sm:$0xff]
        %v552 = vpack.c.bf16 %v550, %v549
        %v553 = vpack.c.bf16 %v551, %v551
        %v554 = vld [vmem:[%s1] sm:$0xff]
        %v555 = vld [vmem:[%s1 + $0x8] sm:$0xff]
        %v556 = vld [vmem:[%s1 + $0x10] sm:$0xff]
        %v557 = vld [vmem:[%s1 + $0x18] sm:$0xff]
        %v558 = vld [vmem:[%s2] sm:$0x3]
        %v560 = vlaneseq
        %v561 = vshrl.u32 %v560, 7
        %v562 = vsub.s32 0, %v561
        %v563 = vrot.slane %v558, %v562
        %v564 = vlaneseq
        %v565 = vshrl.u32 %v564, 7
        %v566 = vsub.s32 1, %v565
        %v567 = vrot.slane %v558, %v566
        %v574 = vunpack.c.l.b16 %v554
        %v575 = vunpack.c.h.b16 %v554
        %v576 = vunpack.c.l.b16 %v555
        %v577 = vunpack.c.h.b16 %v555
        %v578 = vunpack.c.l.b16 %v556
        %v579 = vunpack.c.h.b16 %v556
        %v580 = vunpack.c.l.b16 %v557
        %v581 = vunpack.c.h.b16 %v557
        %v582 = vpack.c.b16 %v576, %v574
        %v583 = vpack.c.b16 %v577, %v575
        %v584 = vpack.c.b16 %v580, %v578
        %v585 = vpack.c.b16 %v581, %v579
        %vm590 = vcmask 261120
        %v592 = vsel %vm590, %v552, 0
        %v595 = vsel %vm590, %v553, 0
        %597 = vmatprep.subr.bf16.mxu0 0
        %598 = vmatpush1.bf16.msra.mxu0 0
        %599 = vmatprep.subr.bf16.mxu0 0
        %600 = vmatpush1.bf16.msra.mxu0 0
        %601 = vmatprep.subr.bf16.mxu0 0
        %602 = vmatpush1.bf16.msra.mxu0 0
        %603 = vmatprep.subr.bf16.mxu0 0
        %604 = vmatpush1.bf16.msra.mxu0 0
        %605 = vmatprep.subr.bf16.mxu0 0
        %606 = vmatpush1.bf16.msra.mxu0 0
        %607 = vmatprep.subr.bf16.mxu0 0
        %608 = vmatpush1.bf16.msra.mxu0 0
        %609 = vmatprep.subr.bf16.mxu0 %v585
        %610 = vmatpush1.bf16.msra.mxu0 %v584
        %611 = vmatprep.subr.bf16.mxu0 %v583
        %612 = vmatpush1.bf16.msra.mxu0 %v582
        %613 = vmatprep.subr.bf16.mxu0 0
        %614 = vmatpush2.bf16.msra.mxu0 0
        %615 = vmatprep.subr.bf16.mxu0 0
        %616 = vmatpush2.bf16.msra.mxu0 0
        %617 = vmatprep.subr.bf16.mxu0 0
        %618 = vmatpush2.bf16.msra.mxu0 0
        %619 = vmatprep.subr.bf16.mxu0 0
        %620 = vmatpush2.bf16.msra.mxu0 0
        %621 = vmatprep.subr.bf16.mxu0 0
        %622 = vmatpush2.bf16.msra.mxu0 0
        %623 = vmatprep.subr.bf16.mxu0 0
        %624 = vmatpush2.bf16.msra.mxu0 0
        %625 = vmatprep.subr.bf16.mxu0 0
        %626 = vmatpush2.bf16.msra.mxu0 0
        %627 = vmatprep.subr.bf16.mxu0 0
        %628 = vmatpush2.bf16.msra.mxu0 0
        %629 = vmatprep.mubr.bf16.mxu0 0
        %630 = vmatmul.mubr.bf16.gmra.mxu0 %v592
        %v631 = vpop.f32.mrf.mxu0
        %v632 = vadd.f32 %v563, %v631
        %v633 = vpop.f32.mrf.mxu0
        %v634 = vadd.f32 %v567, %v633
        %v635 = vpop.f32.mrf.mxu0
        %v636 = vadd.f32 %v563, %v635
        %v637 = vpop.f32.mrf.mxu0
        %v638 = vadd.f32 %v567, %v637
        %639 = vmatprep.mubr.bf16.mxu0 0
        %640 = vmatmul.mubr.bf16.gmra.mxu0 %v595
        %v641 = vpop.f32.mrf.mxu0
        %v642 = vadd.f32 %v563, %v641
        %v643 = vpop.f32.mrf.mxu0
        %v644 = vadd.f32 %v567, %v643
        %v645 = vpop.f32.mrf.mxu0
        %v646 = vpop.f32.mrf.mxu0
        %647 = vdwg.mxu0
        %648 = vst [vmem:[#allocation2] sm:$0xff] %v632
        %vm649 = vcmask 785408
        %650 = vst.msk [vmem:[#allocation2 + $0x8] sm:$0xff] %vm649, %v634
        %651 = vst [vmem:[#allocation2 + $0x10] sm:$0xff] %v636
        %652 = vst.msk [vmem:[#allocation2 + $0x18] sm:$0xff] %vm649, %v638
        %653 = vst [vmem:[#allocation2 + $0x20] sm:$0xff] %v642
        %654 = vst.msk [vmem:[#allocation2 + $0x28] sm:$0xff] %vm649, %v644
        %v655 = vld [vmem:[#allocation2] sm:$0xff]
        %657 = vrot.lane.b32.xlu0 %v655, 96
        %v658 = vpop.permute.xlu0 %657
        %660 = vst.msk [vmem:[%s543] sm:$0xff] %vm590, %v658
        %v661 = vld [vmem:[#allocation2] sm:$0xff]
        %663 = vrot.lane.b32.xlu0 %v661, 64
        %v664 = vpop.permute.xlu0 %663
        %666 = vst.msk [vmem:[%s547] sm:$0xff] %vm590, %v664
        %v667 = vld [vmem:[%s523] sm:$0xf]
        %v668 = vld [vmem:[%s523 + $0x4] sm:$0xf]
        %v669 = vld [vmem:[%s523 + $0x8] sm:$0xf]
        %v670 = vld [vmem:[%s523 + $0xc] sm:$0xf]
        %v671 = vld [vmem:[%s523 + $0x10] sm:$0xf]
        %v672 = vld [vmem:[%s523 + $0x14] sm:$0xf]
        %v673 = vld [vmem:[%s523 + $0x18] sm:$0xf]
        %v674 = vld [vmem:[%s523 + $0x1c] sm:$0xf]
        %v675 = vunpack.c.l.bf16 %v667
        %v676 = vunpack.c.l.bf16 %v668
        %v677 = vunpack.c.l.bf16 %v669
        %v678 = vunpack.c.l.bf16 %v670
        %v679 = vunpack.c.l.bf16 %v671
        %v680 = vunpack.c.l.bf16 %v672
        %v681 = vunpack.c.l.bf16 %v673
        %v682 = vunpack.c.l.bf16 %v674
        %v683 = vld [vmem:[#allocation2] sm:$0xff]
        %v685 = vcombine.high %v683, %v683
        %v687 = vunpack.c.l.s4 1966171168
        %v688 = vunpack.c.0.s8 %v687
        %v689 = vlaneseq
        %v690 = vshrl.u32 %v689, 7
        %v691 = vsub.s32 %v688, %v690
        %v692 = vrot.slane %v683, %v691
        %v694 = vunpack.c.l.s4 1966171168
        %v695 = vunpack.c.0.s8 %v694
        %v696 = vlaneseq
        %v697 = vshrl.u32 %v696, 7
        %v698 = vsub.s32 %v695, %v697
        %v699 = vrot.slane %v685, %v698
        %v700 = vcombine.high %v692, %v692
        %v701 = vcombine.high %v699, %v699
        %v703 = vunpack.c.l.s4 1966171168
        %v704 = vunpack.c.0.s8 %v703
        %v705 = vlaneseq
        %v706 = vshrl.u32 %v705, 7
        %v707 = vsub.s32 %v704, %v706
        %v708 = vrot.slane %v692, %v707
        %v710 = vunpack.c.l.s4 1966171168
        %v711 = vunpack.c.0.s8 %v710
        %v712 = vlaneseq
        %v713 = vshrl.u32 %v712, 7
        %v714 = vsub.s32 %v711, %v713
        %v715 = vrot.slane %v699, %v714
        %v717 = vunpack.c.l.s4 1966171168
        %v718 = vunpack.c.0.s8 %v717
        %v719 = vlaneseq
        %v720 = vshrl.u32 %v719, 7
        %v721 = vsub.s32 %v718, %v720
        %v722 = vrot.slane %v700, %v721
        %v724 = vunpack.c.l.s4 1966171168
        %v725 = vunpack.c.0.s8 %v724
        %v726 = vlaneseq
        %v727 = vshrl.u32 %v726, 7
        %v728 = vsub.s32 %v725, %v727
        %v729 = vrot.slane %v701, %v728
        %v730 = vcombine.high %v708, %v708
        %v731 = vcombine.high %v715, %v715
        %v732 = vcombine.high %v722, %v722
        %v733 = vcombine.high %v729, %v729
        %v734 = vlaneseq
        %v735 = vshrl.u32 %v734, 7
        %v736 = vsub.s32 0, %v735
        %v737 = vrot.slane %v708, %v736
        %v738 = vlaneseq
        %v739 = vshrl.u32 %v738, 7
        %v740 = vsub.s32 0, %v739
        %v741 = vrot.slane %v722, %v740
        %v742 = vlaneseq
        %v743 = vshrl.u32 %v742, 7
        %v744 = vsub.s32 0, %v743
        %v745 = vrot.slane %v730, %v744
        %v746 = vlaneseq
        %v747 = vshrl.u32 %v746, 7
        %v748 = vsub.s32 0, %v747
        %v749 = vrot.slane %v732, %v748
        %v750 = vlaneseq
        %v751 = vshrl.u32 %v750, 7
        %v752 = vsub.s32 0, %v751
        %v753 = vrot.slane %v715, %v752
        %v754 = vlaneseq
        %v755 = vshrl.u32 %v754, 7
        %v756 = vsub.s32 0, %v755
        %v757 = vrot.slane %v729, %v756
        %v758 = vlaneseq
        %v759 = vshrl.u32 %v758, 7
        %v760 = vsub.s32 0, %v759
        %v761 = vrot.slane %v731, %v760
        %v762 = vlaneseq
        %v763 = vshrl.u32 %v762, 7
        %v764 = vsub.s32 0, %v763
        %v765 = vrot.slane %v733, %v764
        %782 = vrot.lane.b32.xlu0 %v675, 96
        %v783 = vpop.permute.xlu0 %782
        %784 = vrot.lane.b32.xlu0 %v676, 96
        %v785 = vpop.permute.xlu0 %784
        %786 = vrot.lane.b32.xlu0 %v677, 96
        %v787 = vpop.permute.xlu0 %786
        %788 = vrot.lane.b32.xlu0 %v678, 96
        %v789 = vpop.permute.xlu0 %788
        %790 = vrot.lane.b32.xlu0 %v679, 96
        %v791 = vpop.permute.xlu0 %790
        %792 = vrot.lane.b32.xlu0 %v680, 96
        %v793 = vpop.permute.xlu0 %792
        %794 = vrot.lane.b32.xlu0 %v681, 96
        %v795 = vpop.permute.xlu0 %794
        %796 = vrot.lane.b32.xlu0 %v682, 96
        %v797 = vpop.permute.xlu0 %796
        %v806 = vmul.f32 %v737, %v783
        %v807 = vmul.f32 %v741, %v785
        %v808 = vmul.f32 %v745, %v787
        %v809 = vmul.f32 %v749, %v789
        %v810 = vmul.f32 %v753, %v791
        %v811 = vmul.f32 %v757, %v793
        %v812 = vmul.f32 %v761, %v795
        %v813 = vmul.f32 %v765, %v797
        %822 = vrot.lane.b32.xlu0 %v806, 32
        %v823 = vpop.permute.xlu0 %822
        %824 = vrot.lane.b32.xlu0 %v807, 32
        %v825 = vpop.permute.xlu0 %824
        %826 = vrot.lane.b32.xlu0 %v808, 32
        %v827 = vpop.permute.xlu0 %826
        %828 = vrot.lane.b32.xlu0 %v809, 32
        %v829 = vpop.permute.xlu0 %828
        %830 = vrot.lane.b32.xlu0 %v810, 32
        %v831 = vpop.permute.xlu0 %830
        %832 = vrot.lane.b32.xlu0 %v811, 32
        %v833 = vpop.permute.xlu0 %832
        %834 = vrot.lane.b32.xlu0 %v812, 32
        %v835 = vpop.permute.xlu0 %834
        %836 = vrot.lane.b32.xlu0 %v813, 32
        %v837 = vpop.permute.xlu0 %836
        %v846 = vsel %vm590, %v823, 0.0
        %847 = vadd.xlane.f32.xlu0 %v846
        %v848 = vpop.xlane.xlu0 %847
        %v849 = vsel %vm590, %v825, 0.0
        %850 = vadd.xlane.f32.xlu0 %v849
        %v851 = vpop.xlane.xlu0 %850
        %v852 = vsel %vm590, %v827, 0.0
        %853 = vadd.xlane.f32.xlu0 %v852
        %v854 = vpop.xlane.xlu0 %853
        %v855 = vsel %vm590, %v829, 0.0
        %856 = vadd.xlane.f32.xlu0 %v855
        %v857 = vpop.xlane.xlu0 %856
        %v858 = vsel %vm590, %v831, 0.0
        %859 = vadd.xlane.f32.xlu0 %v858
        %v860 = vpop.xlane.xlu0 %859
        %v861 = vsel %vm590, %v833, 0.0
        %862 = vadd.xlane.f32.xlu0 %v861
        %v863 = vpop.xlane.xlu0 %862
        %v864 = vsel %vm590, %v835, 0.0
        %865 = vadd.xlane.f32.xlu0 %v864
        %v866 = vpop.xlane.xlu0 %865
        %v867 = vsel %vm590, %v837, 0.0
        %868 = vadd.xlane.f32.xlu0 %v867
        %v869 = vpop.xlane.xlu0 %868
        %v870 = vld [vmem:[%s529] sm:$0xff]
        %v872 = vlaneseq
        %v873 = vshrl.u32 %v872, 7
        %v874 = vsub.s32 0, %v873
        %v875 = vrot.slane %v870, %v874
        %877 = vbcast.lane.b32.xlu0 %v875, 256
        %v878 = vpop.permute.xlu0 %877
        %v879 = vlaneseq
        %v880 = vshrl.u32 %v879, 7
        %v881 = vsub.s32 1, %v880
        %v882 = vrot.slane %v870, %v881
        %884 = vbcast.lane.b32.xlu0 %v882, 256
        %v885 = vpop.permute.xlu0 %884
        %v886 = vlaneseq
        %v887 = vshrl.u32 %v886, 7
        %v888 = vsub.s32 2, %v887
        %v889 = vrot.slane %v870, %v888
        %891 = vbcast.lane.b32.xlu0 %v889, 256
        %v892 = vpop.permute.xlu0 %891
        %v893 = vlaneseq
        %v894 = vshrl.u32 %v893, 7
        %v895 = vsub.s32 3, %v894
        %v896 = vrot.slane %v870, %v895
        %898 = vbcast.lane.b32.xlu0 %v896, 256
        %v899 = vpop.permute.xlu0 %898
        %v900 = vlaneseq
        %v901 = vshrl.u32 %v900, 7
        %v902 = vsub.s32 4, %v901
        %v903 = vrot.slane %v870, %v902
        %905 = vbcast.lane.b32.xlu0 %v903, 256
        %v906 = vpop.permute.xlu0 %905
        %v907 = vlaneseq
        %v908 = vshrl.u32 %v907, 7
        %v909 = vsub.s32 5, %v908
        %v910 = vrot.slane %v870, %v909
        %912 = vbcast.lane.b32.xlu0 %v910, 256
        %v913 = vpop.permute.xlu0 %912
        %v914 = vlaneseq
        %v915 = vshrl.u32 %v914, 7
        %v916 = vsub.s32 6, %v915
        %v917 = vrot.slane %v870, %v916
        %919 = vbcast.lane.b32.xlu0 %v917, 256
        %v920 = vpop.permute.xlu0 %919
        %v921 = vlaneseq
        %v922 = vshrl.u32 %v921, 7
        %v923 = vsub.s32 7, %v922
        %v924 = vrot.slane %v870, %v923
        %926 = vbcast.lane.b32.xlu0 %v924, 256
        %v927 = vpop.permute.xlu0 %926
        %v936 = vadd.f32 %v848, %v878
        %v937 = vadd.f32 %v851, %v885
        %v938 = vadd.f32 %v854, %v892
        %v939 = vadd.f32 %v857, %v899
        %v940 = vadd.f32 %v860, %v906
        %v941 = vadd.f32 %v863, %v913
        %v942 = vadd.f32 %v866, %v920
        %v943 = vadd.f32 %v869, %v927
        %944 = vrot.lane.b32.xlu0 %v683, 96
        %v945 = vpop.permute.xlu0 %944
        %954 = vset.pattern.permute.xlu0 0
        %955 = vperm.xlu0 %954, %v936
        %v956 = vpop.permute.xlu0 %955
        %957 = vset.pattern.permute.xlu0 0
        %958 = vperm.xlu0 %957, %v937
        %v959 = vpop.permute.xlu0 %958
        %960 = vset.pattern.permute.xlu0 0
        %961 = vperm.xlu0 %960, %v938
        %v962 = vpop.permute.xlu0 %961
        %963 = vset.pattern.permute.xlu0 0
        %964 = vperm.xlu0 %963, %v939
        %v965 = vpop.permute.xlu0 %964
        %966 = vset.pattern.permute.xlu0 0
        %967 = vperm.xlu0 %966, %v940
        %v968 = vpop.permute.xlu0 %967
        %969 = vset.pattern.permute.xlu0 0
        %970 = vperm.xlu0 %969, %v941
        %v971 = vpop.permute.xlu0 %970
        %972 = vset.pattern.permute.xlu0 0
        %973 = vperm.xlu0 %972, %v942
        %v974 = vpop.permute.xlu0 %973
        %975 = vset.pattern.permute.xlu0 0
        %976 = vperm.xlu0 %975, %v943
        %v977 = vpop.permute.xlu0 %976
        %v978 = vlaneseq
        %v979 = vand.u32 %v978, 127
        %v980 = vlaneseq
        %v981 = vshrl.u32 %v980, 7
        %v982 = vsub.s32 %v979, %v981
        %v983 = vrot.slane %v956, %v982
        %v984 = vlaneseq
        %v985 = vshrl.u32 %v984, 7
        %v986 = vsub.s32 %v979, %v985
        %v987 = vrot.slane %v959, %v986
        %v988 = vlaneseq
        %v989 = vshrl.u32 %v988, 7
        %v990 = vsub.s32 %v979, %v989
        %v991 = vrot.slane %v962, %v990
        %v992 = vlaneseq
        %v993 = vshrl.u32 %v992, 7
        %v994 = vsub.s32 %v979, %v993
        %v995 = vrot.slane %v965, %v994
        %v996 = vlaneseq
        %v997 = vshrl.u32 %v996, 7
        %v998 = vsub.s32 %v979, %v997
        %v999 = vrot.slane %v968, %v998
        %v1000 = vlaneseq
        %v1001 = vshrl.u32 %v1000, 7
        %v1002 = vsub.s32 %v979, %v1001
        %v1003 = vrot.slane %v971, %v1002
        %v1004 = vlaneseq
        %v1005 = vshrl.u32 %v1004, 7
        %v1006 = vsub.s32 %v979, %v1005
        %v1007 = vrot.slane %v974, %v1006
        %v1008 = vlaneseq
        %v1009 = vshrl.u32 %v1008, 7
        %v1010 = vsub.s32 %v979, %v1009
        %v1011 = vrot.slane %v977, %v1010
        %vm1012 = vcmask 1041409
        %v1013 = vsel %vm1012, %v987, %v983
        %vm1014 = vcmask 1042434
        %v1015 = vsel %vm1014, %v991, %v1013
        %vm1016 = vcmask 1043459
        %v1017 = vsel %vm1016, %v995, %v1015
        %vm1018 = vcmask 1044484
        %v1019 = vsel %vm1018, %v999, %v1017
        %vm1020 = vcmask 1045509
        %v1021 = vsel %vm1020, %v1003, %v1019
        %vm1022 = vcmask 1046534
        %v1023 = vsel %vm1022, %v1007, %v1021
        %vm1024 = vcmask 1047559
        %v1025 = vsel %vm1024, %v1011, %v1023
        %vm1027 = vcmask 64512
        %v1028 = vsel %vm1027, %v683, 0
        %v1030 = vsel %vm1027, %v945, 0
        %1032 = vmatprep.subr.mxu0 0.0
        %1033 = vmatpush1.xpose.msra.mxu0 0.0
        %1034 = vmatprep.subr.mxu0 0.0
        %1035 = vmatpush1.xpose.msra.mxu0 0.0
        %1036 = vmatprep.subr.mxu0 0.0
        %1037 = vmatpush1.xpose.msra.mxu0 0.0
        %1038 = vmatprep.subr.mxu0 0.0
        %1039 = vmatpush1.xpose.msra.mxu0 0.0
        %1040 = vmatprep.subr.mxu0 0.0
        %1041 = vmatpush1.xpose.msra.mxu0 0.0
        %1042 = vmatprep.subr.mxu0 0.0
        %1043 = vmatpush1.xpose.msra.mxu0 0.0
        %1044 = vmatprep.subr.mxu0 0.0
        %1045 = vmatpush1.xpose.msra.mxu0 0.0
        %1046 = vmatprep.subr.mxu0 0.0
        %1047 = vmatpush1.xpose.msra.mxu0 0.0
        %1048 = vmatprep.subr.mxu0 0.0
        %1049 = vmatpush1.xpose.msra.mxu0 0.0
        %1050 = vmatprep.subr.mxu0 0.0
        %1051 = vmatpush1.xpose.msra.mxu0 0.0
        %1052 = vmatprep.subr.mxu0 0.0
        %1053 = vmatpush1.xpose.msra.mxu0 0.0
        %1054 = vmatprep.subr.mxu0 0.0
        %1055 = vmatpush1.xpose.msra.mxu0 0.0
        %1056 = vmatprep.subr.mxu0 0.0
        %1057 = vmatpush1.xpose.msra.mxu0 0.0
        %1058 = vmatprep.subr.mxu0 0.0
        %1059 = vmatpush1.xpose.msra.mxu0 0.0
        %1060 = vmatprep.subr.mxu0 0.0
        %1061 = vmatpush1.xpose.msra.mxu0 0.0
        %1062 = vmatprep.subr.mxu0 0.0
        %1063 = vmatpush1.xpose.msra.mxu0 %v1030
        %1064 = vmatprep.subr.mxu0 0.0
        %1065 = vmatpush2.xpose.msra.mxu0 0.0
        %1066 = vmatprep.subr.mxu0 0.0
        %1067 = vmatpush2.xpose.msra.mxu0 0.0
        %1068 = vmatprep.subr.mxu0 0.0
        %1069 = vmatpush2.xpose.msra.mxu0 0.0
        %1070 = vmatprep.subr.mxu0 0.0
        %1071 = vmatpush2.xpose.msra.mxu0 0.0
        %1072 = vmatprep.subr.mxu0 0.0
        %1073 = vmatpush2.xpose.msra.mxu0 0.0
        %1074 = vmatprep.subr.mxu0 0.0
        %1075 = vmatpush2.xpose.msra.mxu0 0.0
        %1076 = vmatprep.subr.mxu0 0.0
        %1077 = vmatpush2.xpose.msra.mxu0 0.0
        %1078 = vmatprep.subr.mxu0 0.0
        %1079 = vmatpush2.xpose.msra.mxu0 0.0
        %1080 = vmatprep.subr.mxu0 0.0
        %1081 = vmatpush2.xpose.msra.mxu0 0.0
        %1082 = vmatprep.subr.mxu0 0.0
        %1083 = vmatpush2.xpose.msra.mxu0 0.0
        %1084 = vmatprep.subr.mxu0 0.0
        %1085 = vmatpush2.xpose.msra.mxu0 0.0
        %1086 = vmatprep.subr.mxu0 0.0
        %1087 = vmatpush2.xpose.msra.mxu0 0.0
        %1088 = vmatprep.subr.mxu0 0.0
        %1089 = vmatpush2.xpose.msra.mxu0 0.0
        %1090 = vmatprep.subr.mxu0 0.0
        %1091 = vmatpush2.xpose.msra.mxu0 0.0
        %1092 = vmatprep.subr.mxu0 0.0
        %1093 = vmatpush2.xpose.msra.mxu0 0.0
        %1094 = vmatprep.subr.mxu0 0.0
        %1095 = vmatpush2.xpose.msra.mxu0 0.0
        %1096 = vmatprep.mubr.f32.mxu0 0.0
        %1097 = vmatmul.mubr.f32.gmra.mxu0 %v1028
        %v1098 = vpop.f32.mrf.mxu0
        %v1099 = vadd.f32 %v1025, %v1098
        %v1100 = vpop.f32.mrf.mxu0
        %1101 = vdwg.mxu0
        %v1102 = vsel %vm1027, %v1099, -inf
        %1103 = vmax.xlane.f32.xlu0 %v1102
        %v1104 = vpop.xlane.xlu0 %1103
        %v1105 = vsub.f32 %v1099, %v1104
        %v1106 = vmul.f32 %v1105, 1.442695
        %v1107 = vpow.pop %v1106
        %v1108 = vsel %vm1027, %v1107, 0.0
        %1109 = vadd.xlane.f32.xlu0 %v1108
        %v1110 = vpop.xlane.xlu0 %1109
        %v1111 = vrcp.pop %v1110
        %v1112 = vmul.f32 %v1107, %v1111
        %1113 = vst.msk [vmem:[%s493] sm:$0xff] %vm1027, %v1112
        %1114 = vrot.lane.b32.xlu0 %v683, 64
        %v1115 = vpop.permute.xlu0 %1114
        %v1118 = vsel %vm1027, %v1112, 0
        %1120 = vmatprep.subr.mxu0 0.0
        %1121 = vmatpush1.msra.mxu0 0.0
        %1122 = vmatprep.subr.mxu0 0.0
        %1123 = vmatpush1.msra.mxu0 0.0
        %1124 = vmatprep.subr.mxu0 0.0
        %1125 = vmatpush1.msra.mxu0 0.0
        %1126 = vmatprep.subr.mxu0 0.0
        %1127 = vmatpush1.msra.mxu0 0.0
        %1128 = vmatprep.subr.mxu0 0.0
        %1129 = vmatpush1.msra.mxu0 0.0
        %1130 = vmatprep.subr.mxu0 0.0
        %1131 = vmatpush1.msra.mxu0 0.0
        %1132 = vmatprep.subr.mxu0 0.0
        %1133 = vmatpush1.msra.mxu0 0.0
        %1134 = vmatprep.subr.mxu0 0.0
        %1135 = vmatpush1.msra.mxu0 0.0
        %1136 = vmatprep.subr.mxu0 0.0
        %1137 = vmatpush1.msra.mxu0 0.0
        %1138 = vmatprep.subr.mxu0 0.0
        %1139 = vmatpush1.msra.mxu0 0.0
        %1140 = vmatprep.subr.mxu0 0.0
        %1141 = vmatpush1.msra.mxu0 0.0
        %1142 = vmatprep.subr.mxu0 0.0
        %1143 = vmatpush1.msra.mxu0 0.0
        %1144 = vmatprep.subr.mxu0 0.0
        %1145 = vmatpush1.msra.mxu0 0.0
        %1146 = vmatprep.subr.mxu0 0.0
        %1147 = vmatpush1.msra.mxu0 0.0
        %1148 = vmatprep.subr.mxu0 0.0
        %1149 = vmatpush1.msra.mxu0 0.0
        %1150 = vmatprep.subr.mxu0 0.0
        %1151 = vmatpush1.msra.mxu0 %v1115
        %1152 = vmatprep.subr.mxu0 0.0
        %1153 = vmatpush2.msra.mxu0 0.0
        %1154 = vmatprep.subr.mxu0 0.0
        %1155 = vmatpush2.msra.mxu0 0.0
        %1156 = vmatprep.subr.mxu0 0.0
        %1157 = vmatpush2.msra.mxu0 0.0
        %1158 = vmatprep.subr.mxu0 0.0
        %1159 = vmatpush2.msra.mxu0 0.0
        %1160 = vmatprep.subr.mxu0 0.0
        %1161 = vmatpush2.msra.mxu0 0.0
        %1162 = vmatprep.subr.mxu0 0.0
        %1163 = vmatpush2.msra.mxu0 0.0
        %1164 = vmatprep.subr.mxu0 0.0
        %1165 = vmatpush2.msra.mxu0 0.0
        %1166 = vmatprep.subr.mxu0 0.0
        %1167 = vmatpush2.msra.mxu0 0.0
        %1168 = vmatprep.subr.mxu0 0.0
        %1169 = vmatpush2.msra.mxu0 0.0
        %1170 = vmatprep.subr.mxu0 0.0
        %1171 = vmatpush2.msra.mxu0 0.0
        %1172 = vmatprep.subr.mxu0 0.0
        %1173 = vmatpush2.msra.mxu0 0.0
        %1174 = vmatprep.subr.mxu0 0.0
        %1175 = vmatpush2.msra.mxu0 0.0
        %1176 = vmatprep.subr.mxu0 0.0
        %1177 = vmatpush2.msra.mxu0 0.0
        %1178 = vmatprep.subr.mxu0 0.0
        %1179 = vmatpush2.msra.mxu0 0.0
        %1180 = vmatprep.subr.mxu0 0.0
        %1181 = vmatpush2.msra.mxu0 0.0
        %1182 = vmatprep.subr.mxu0 0.0
        %1183 = vmatpush2.msra.mxu0 0.0
        %1184 = vmatprep.mubr.f32.mxu0 0.0
        %1185 = vmatmul.mubr.f32.gmra.mxu0 %v1118
        %v1186 = vpop.f32.mrf.mxu0
        %v1187 = vadd.f32 0.0, %v1186
        %v1188 = vpop.f32.mrf.mxu0
        %1189 = vdwg.mxu0
        %1190 = vst.msk [vmem:[#allocation3] sm:$0xff] %vm1027, %v1187
        %v1191 = vld [vmem:[#allocation2] sm:$0xff]
        %v1192 = vld [vmem:[#allocation2 + $0x8] sm:$0xff]
        %v1194 = vcombine.high %v1192, %v1192
        %v1196 = vunpack.c.l.s4 1966171168
        %v1197 = vunpack.c.0.s8 %v1196
        %v1198 = vlaneseq
        %v1199 = vshrl.u32 %v1198, 7
        %v1200 = vsub.s32 %v1197, %v1199
        %v1201 = vrot.slane %v1192, %v1200
        %v1203 = vunpack.c.l.s4 1966171168
        %v1204 = vunpack.c.0.s8 %v1203
        %v1205 = vlaneseq
        %v1206 = vshrl.u32 %v1205, 7
        %v1207 = vsub.s32 %v1204, %v1206
        %v1208 = vrot.slane %v1194, %v1207
        %v1209 = vcombine.high %v1201, %v1201
        %v1210 = vcombine.high %v1208, %v1208
        %v1212 = vunpack.c.l.s4 1966171168
        %v1213 = vunpack.c.0.s8 %v1212
        %v1214 = vlaneseq
        %v1215 = vshrl.u32 %v1214, 7
        %v1216 = vsub.s32 %v1213, %v1215
        %v1217 = vrot.slane %v1201, %v1216
        %v1219 = vunpack.c.l.s4 1966171168
        %v1220 = vunpack.c.0.s8 %v1219
        %v1221 = vlaneseq
        %v1222 = vshrl.u32 %v1221, 7
        %v1223 = vsub.s32 %v1220, %v1222
        %v1224 = vrot.slane %v1208, %v1223
        %v1226 = vunpack.c.l.s4 1966171168
        %v1227 = vunpack.c.0.s8 %v1226
        %v1228 = vlaneseq
        %v1229 = vshrl.u32 %v1228, 7
        %v1230 = vsub.s32 %v1227, %v1229
        %v1231 = vrot.slane %v1209, %v1230
        %v1233 = vunpack.c.l.s4 1966171168
        %v1234 = vunpack.c.0.s8 %v1233
        %v1235 = vlaneseq
        %v1236 = vshrl.u32 %v1235, 7
        %v1237 = vsub.s32 %v1234, %v1236
        %v1238 = vrot.slane %v1210, %v1237
        %v1239 = vcombine.high %v1217, %v1217
        %v1240 = vcombine.high %v1224, %v1224
        %v1241 = vcombine.high %v1231, %v1231
        %v1242 = vcombine.high %v1238, %v1238
        %v1243 = vlaneseq
        %v1244 = vshrl.u32 %v1243, 7
        %v1245 = vsub.s32 0, %v1244
        %v1246 = vrot.slane %v1217, %v1245
        %v1247 = vlaneseq
        %v1248 = vshrl.u32 %v1247, 7
        %v1249 = vsub.s32 0, %v1248
        %v1250 = vrot.slane %v1231, %v1249
        %v1251 = vlaneseq
        %v1252 = vshrl.u32 %v1251, 7
        %v1253 = vsub.s32 0, %v1252
        %v1254 = vrot.slane %v1239, %v1253
        %v1255 = vlaneseq
        %v1256 = vshrl.u32 %v1255, 7
        %v1257 = vsub.s32 0, %v1256
        %v1258 = vrot.slane %v1241, %v1257
        %v1259 = vlaneseq
        %v1260 = vshrl.u32 %v1259, 7
        %v1261 = vsub.s32 0, %v1260
        %v1262 = vrot.slane %v1224, %v1261
        %v1263 = vlaneseq
        %v1264 = vshrl.u32 %v1263, 7
        %v1265 = vsub.s32 0, %v1264
        %v1266 = vrot.slane %v1238, %v1265
        %v1267 = vlaneseq
        %v1268 = vshrl.u32 %v1267, 7
        %v1269 = vsub.s32 0, %v1268
        %v1270 = vrot.slane %v1240, %v1269
        %v1271 = vlaneseq
        %v1272 = vshrl.u32 %v1271, 7
        %v1273 = vsub.s32 0, %v1272
        %v1274 = vrot.slane %v1242, %v1273
        %v1283 = vmul.f32 %v1246, %v675
        %v1284 = vmul.f32 %v1250, %v676
        %v1285 = vmul.f32 %v1254, %v677
        %v1286 = vmul.f32 %v1258, %v678
        %v1287 = vmul.f32 %v1262, %v679
        %v1288 = vmul.f32 %v1266, %v680
        %v1289 = vmul.f32 %v1270, %v681
        %v1290 = vmul.f32 %v1274, %v682
        %v1291 = vsel %vm590, %v1283, 0.0
        %1292 = vadd.xlane.f32.xlu0 %v1291
        %v1293 = vpop.xlane.xlu0 %1292
        %v1294 = vsel %vm590, %v1284, 0.0
        %1295 = vadd.xlane.f32.xlu0 %v1294
        %v1296 = vpop.xlane.xlu0 %1295
        %v1297 = vsel %vm590, %v1285, 0.0
        %1298 = vadd.xlane.f32.xlu0 %v1297
        %v1299 = vpop.xlane.xlu0 %1298
        %v1300 = vsel %vm590, %v1286, 0.0
        %1301 = vadd.xlane.f32.xlu0 %v1300
        %v1302 = vpop.xlane.xlu0 %1301
        %v1303 = vsel %vm590, %v1287, 0.0
        %1304 = vadd.xlane.f32.xlu0 %v1303
        %v1305 = vpop.xlane.xlu0 %1304
        %v1306 = vsel %vm590, %v1288, 0.0
        %1307 = vadd.xlane.f32.xlu0 %v1306
        %v1308 = vpop.xlane.xlu0 %1307
        %v1309 = vsel %vm590, %v1289, 0.0
        %1310 = vadd.xlane.f32.xlu0 %v1309
        %v1311 = vpop.xlane.xlu0 %1310
        %v1312 = vsel %vm590, %v1290, 0.0
        %1313 = vadd.xlane.f32.xlu0 %v1312
        %v1314 = vpop.xlane.xlu0 %1313
        %v1315 = vld [vmem:[%s529 + $0x8] sm:$0xff]
        %v1317 = vlaneseq
        %v1318 = vshrl.u32 %v1317, 7
        %v1319 = vsub.s32 0, %v1318
        %v1320 = vrot.slane %v1315, %v1319
        %1322 = vbcast.lane.b32.xlu0 %v1320, 256
        %v1323 = vpop.permute.xlu0 %1322
        %v1324 = vlaneseq
        %v1325 = vshrl.u32 %v1324, 7
        %v1326 = vsub.s32 1, %v1325
        %v1327 = vrot.slane %v1315, %v1326
        %1329 = vbcast.lane.b32.xlu0 %v1327, 256
        %v1330 = vpop.permute.xlu0 %1329
        %v1331 = vlaneseq
        %v1332 = vshrl.u32 %v1331, 7
        %v1333 = vsub.s32 2, %v1332
        %v1334 = vrot.slane %v1315, %v1333
        %1336 = vbcast.lane.b32.xlu0 %v1334, 256
        %v1337 = vpop.permute.xlu0 %1336
        %v1338 = vlaneseq
        %v1339 = vshrl.u32 %v1338, 7
        %v1340 = vsub.s32 3, %v1339
        %v1341 = vrot.slane %v1315, %v1340
        %1343 = vbcast.lane.b32.xlu0 %v1341, 256
        %v1344 = vpop.permute.xlu0 %1343
        %v1345 = vlaneseq
        %v1346 = vshrl.u32 %v1345, 7
        %v1347 = vsub.s32 4, %v1346
        %v1348 = vrot.slane %v1315, %v1347
        %1350 = vbcast.lane.b32.xlu0 %v1348, 256
        %v1351 = vpop.permute.xlu0 %1350
        %v1352 = vlaneseq
        %v1353 = vshrl.u32 %v1352, 7
        %v1354 = vsub.s32 5, %v1353
        %v1355 = vrot.slane %v1315, %v1354
        %1357 = vbcast.lane.b32.xlu0 %v1355, 256
        %v1358 = vpop.permute.xlu0 %1357
        %v1359 = vlaneseq
        %v1360 = vshrl.u32 %v1359, 7
        %v1361 = vsub.s32 6, %v1360
        %v1362 = vrot.slane %v1315, %v1361
        %1364 = vbcast.lane.b32.xlu0 %v1362, 256
        %v1365 = vpop.permute.xlu0 %1364
        %v1366 = vlaneseq
        %v1367 = vshrl.u32 %v1366, 7
        %v1368 = vsub.s32 7, %v1367
        %v1369 = vrot.slane %v1315, %v1368
        %1371 = vbcast.lane.b32.xlu0 %v1369, 256
        %v1372 = vpop.permute.xlu0 %1371
        %v1381 = vadd.f32 %v1293, %v1323
        %v1382 = vadd.f32 %v1296, %v1330
        %v1383 = vadd.f32 %v1299, %v1337
        %v1384 = vadd.f32 %v1302, %v1344
        %v1385 = vadd.f32 %v1305, %v1351
        %v1386 = vadd.f32 %v1308, %v1358
        %v1387 = vadd.f32 %v1311, %v1365
        %v1388 = vadd.f32 %v1314, %v1372
        %1390 = vrot.lane.b32.xlu0 %v1191, 120
        %v1391 = vpop.permute.xlu0 %1390
        %1392 = vrot.lane.b32.xlu0 %v1191, 88
        %v1393 = vpop.permute.xlu0 %1392
        %1402 = vset.pattern.permute.xlu0 0
        %1403 = vperm.xlu0 %1402, %v1381
        %v1404 = vpop.permute.xlu0 %1403
        %1405 = vset.pattern.permute.xlu0 0
        %1406 = vperm.xlu0 %1405, %v1382
        %v1407 = vpop.permute.xlu0 %1406
        %1408 = vset.pattern.permute.xlu0 0
        %1409 = vperm.xlu0 %1408, %v1383
        %v1410 = vpop.permute.xlu0 %1409
        %1411 = vset.pattern.permute.xlu0 0
        %1412 = vperm.xlu0 %1411, %v1384
        %v1413 = vpop.permute.xlu0 %1412
        %1414 = vset.pattern.permute.xlu0 0
        %1415 = vperm.xlu0 %1414, %v1385
        %v1416 = vpop.permute.xlu0 %1415
        %1417 = vset.pattern.permute.xlu0 0
        %1418 = vperm.xlu0 %1417, %v1386
        %v1419 = vpop.permute.xlu0 %1418
        %1420 = vset.pattern.permute.xlu0 0
        %1421 = vperm.xlu0 %1420, %v1387
        %v1422 = vpop.permute.xlu0 %1421
        %1423 = vset.pattern.permute.xlu0 0
        %1424 = vperm.xlu0 %1423, %v1388
        %v1425 = vpop.permute.xlu0 %1424
        %v1426 = vlaneseq
        %v1427 = vshrl.u32 %v1426, 7
        %v1428 = vsub.s32 %v979, %v1427
        %v1429 = vrot.slane %v1404, %v1428
        %v1430 = vlaneseq
        %v1431 = vshrl.u32 %v1430, 7
        %v1432 = vsub.s32 %v979, %v1431
        %v1433 = vrot.slane %v1407, %v1432
        %v1434 = vlaneseq
        %v1435 = vshrl.u32 %v1434, 7
        %v1436 = vsub.s32 %v979, %v1435
        %v1437 = vrot.slane %v1410, %v1436
        %v1438 = vlaneseq
        %v1439 = vshrl.u32 %v1438, 7
        %v1440 = vsub.s32 %v979, %v1439
        %v1441 = vrot.slane %v1413, %v1440
        %v1442 = vlaneseq
        %v1443 = vshrl.u32 %v1442, 7
        %v1444 = vsub.s32 %v979, %v1443
        %v1445 = vrot.slane %v1416, %v1444
        %v1446 = vlaneseq
        %v1447 = vshrl.u32 %v1446, 7
        %v1448 = vsub.s32 %v979, %v1447
        %v1449 = vrot.slane %v1419, %v1448
        %v1450 = vlaneseq
        %v1451 = vshrl.u32 %v1450, 7
        %v1452 = vsub.s32 %v979, %v1451
        %v1453 = vrot.slane %v1422, %v1452
        %v1454 = vlaneseq
        %v1455 = vshrl.u32 %v1454, 7
        %v1456 = vsub.s32 %v979, %v1455
        %v1457 = vrot.slane %v1425, %v1456
        %v1458 = vsel %vm1012, %v1433, %v1429
        %v1459 = vsel %vm1014, %v1437, %v1458
        %v1460 = vsel %vm1016, %v1441, %v1459
        %v1461 = vsel %vm1018, %v1445, %v1460
        %v1462 = vsel %vm1020, %v1449, %v1461
        %v1463 = vsel %vm1022, %v1453, %v1462
        %v1464 = vsel %vm1024, %v1457, %v1463
        %v1466 = vsel %vm1027, %v1391, 0
        %v1468 = vsel %vm1027, %v1393, 0
        %1470 = vmatprep.subr.mxu0 0.0
        %1471 = vmatpush1.xpose.msra.mxu0 0.0
        %1472 = vmatprep.subr.mxu0 0.0
        %1473 = vmatpush1.xpose.msra.mxu0 0.0
        %1474 = vmatprep.subr.mxu0 0.0
        %1475 = vmatpush1.xpose.msra.mxu0 0.0
        %1476 = vmatprep.subr.mxu0 0.0
        %1477 = vmatpush1.xpose.msra.mxu0 0.0
        %1478 = vmatprep.subr.mxu0 0.0
        %1479 = vmatpush1.xpose.msra.mxu0 0.0
        %1480 = vmatprep.subr.mxu0 0.0
        %1481 = vmatpush1.xpose.msra.mxu0 0.0
        %1482 = vmatprep.subr.mxu0 0.0
        %1483 = vmatpush1.xpose.msra.mxu0 0.0
        %1484 = vmatprep.subr.mxu0 0.0
        %1485 = vmatpush1.xpose.msra.mxu0 0.0
        %1486 = vmatprep.subr.mxu0 0.0
        %1487 = vmatpush1.xpose.msra.mxu0 0.0
        %1488 = vmatprep.subr.mxu0 0.0
        %1489 = vmatpush1.xpose.msra.mxu0 0.0
        %1490 = vmatprep.subr.mxu0 0.0
        %1491 = vmatpush1.xpose.msra.mxu0 0.0
        %1492 = vmatprep.subr.mxu0 0.0
        %1493 = vmatpush1.xpose.msra.mxu0 0.0
        %1494 = vmatprep.subr.mxu0 0.0
        %1495 = vmatpush1.xpose.msra.mxu0 0.0
        %1496 = vmatprep.subr.mxu0 0.0
        %1497 = vmatpush1.xpose.msra.mxu0 0.0
        %1498 = vmatprep.subr.mxu0 0.0
        %1499 = vmatpush1.xpose.msra.mxu0 0.0
        %1500 = vmatprep.subr.mxu0 0.0
        %1501 = vmatpush1.xpose.msra.mxu0 %v1468
        %1502 = vmatprep.subr.mxu0 0.0
        %1503 = vmatpush2.xpose.msra.mxu0 0.0
        %1504 = vmatprep.subr.mxu0 0.0
        %1505 = vmatpush2.xpose.msra.mxu0 0.0
        %1506 = vmatprep.subr.mxu0 0.0
        %1507 = vmatpush2.xpose.msra.mxu0 0.0
        %1508 = vmatprep.subr.mxu0 0.0
        %1509 = vmatpush2.xpose.msra.mxu0 0.0
        %1510 = vmatprep.subr.mxu0 0.0
        %1511 = vmatpush2.xpose.msra.mxu0 0.0
        %1512 = vmatprep.subr.mxu0 0.0
        %1513 = vmatpush2.xpose.msra.mxu0 0.0
        %1514 = vmatprep.subr.mxu0 0.0
        %1515 = vmatpush2.xpose.msra.mxu0 0.0
        %1516 = vmatprep.subr.mxu0 0.0
        %1517 = vmatpush2.xpose.msra.mxu0 0.0
        %1518 = vmatprep.subr.mxu0 0.0
        %1519 = vmatpush2.xpose.msra.mxu0 0.0
        %1520 = vmatprep.subr.mxu0 0.0
        %1521 = vmatpush2.xpose.msra.mxu0 0.0
        %1522 = vmatprep.subr.mxu0 0.0
        %1523 = vmatpush2.xpose.msra.mxu0 0.0
        %1524 = vmatprep.subr.mxu0 0.0
        %1525 = vmatpush2.xpose.msra.mxu0 0.0
        %1526 = vmatprep.subr.mxu0 0.0
        %1527 = vmatpush2.xpose.msra.mxu0 0.0
        %1528 = vmatprep.subr.mxu0 0.0
        %1529 = vmatpush2.xpose.msra.mxu0 0.0
        %1530 = vmatprep.subr.mxu0 0.0
        %1531 = vmatpush2.xpose.msra.mxu0 0.0
        %1532 = vmatprep.subr.mxu0 0.0
        %1533 = vmatpush2.xpose.msra.mxu0 0.0
        %1534 = vmatprep.mubr.f32.mxu0 0.0
        %1535 = vmatmul.mubr.f32.gmra.mxu0 %v1466
        %v1536 = vpop.f32.mrf.mxu0
        %v1537 = vadd.f32 %v1464, %v1536
        %v1538 = vpop.f32.mrf.mxu0
        %1539 = vdwg.mxu0
        %v1540 = vsel %vm1027, %v1537, -inf
        %1541 = vmax.xlane.f32.xlu0 %v1540
        %v1542 = vpop.xlane.xlu0 %1541
        %v1543 = vsub.f32 %v1537, %v1542
        %v1544 = vmul.f32 %v1543, 1.442695
        %v1545 = vpow.pop %v1544
        %v1546 = vsel %vm1027, %v1545, 0.0
        %1547 = vadd.xlane.f32.xlu0 %v1546
        %v1548 = vpop.xlane.xlu0 %1547
        %v1549 = vrcp.pop %v1548
        %v1550 = vmul.f32 %v1545, %v1549
        %1551 = vst.msk [vmem:[%s493 + $0x8] sm:$0xff] %vm1027, %v1550
        %1552 = vrot.lane.b32.xlu0 %v1191, 56
        %v1553 = vpop.permute.xlu0 %1552
        %v1556 = vsel %vm1027, %v1550, 0
        %1558 = vmatprep.subr.mxu0 0.0
        %1559 = vmatpush1.msra.mxu0 0.0
        %1560 = vmatprep.subr.mxu0 0.0
        %1561 = vmatpush1.msra.mxu0 0.0
        %1562 = vmatprep.subr.mxu0 0.0
        %1563 = vmatpush1.msra.mxu0 0.0
        %1564 = vmatprep.subr.mxu0 0.0
        %1565 = vmatpush1.msra.mxu0 0.0
        %1566 = vmatprep.subr.mxu0 0.0
        %1567 = vmatpush1.msra.mxu0 0.0
        %1568 = vmatprep.subr.mxu0 0.0
        %1569 = vmatpush1.msra.mxu0 0.0
        %1570 = vmatprep.subr.mxu0 0.0
        %1571 = vmatpush1.msra.mxu0 0.0
        %1572 = vmatprep.subr.mxu0 0.0
        %1573 = vmatpush1.msra.mxu0 0.0
        %1574 = vmatprep.subr.mxu0 0.0
        %1575 = vmatpush1.msra.mxu0 0.0
        %1576 = vmatprep.subr.mxu0 0.0
        %1577 = vmatpush1.msra.mxu0 0.0
        %1578 = vmatprep.subr.mxu0 0.0
        %1579 = vmatpush1.msra.mxu0 0.0
        %1580 = vmatprep.subr.mxu0 0.0
        %1581 = vmatpush1.msra.mxu0 0.0
        %1582 = vmatprep.subr.mxu0 0.0
        %1583 = vmatpush1.msra.mxu0 0.0
        %1584 = vmatprep.subr.mxu0 0.0
        %1585 = vmatpush1.msra.mxu0 0.0
        %1586 = vmatprep.subr.mxu0 0.0
        %1587 = vmatpush1.msra.mxu0 0.0
        %1588 = vmatprep.subr.mxu0 0.0
        %1589 = vmatpush1.msra.mxu0 %v1553
        %1590 = vmatprep.subr.mxu0 0.0
        %1591 = vmatpush2.msra.mxu0 0.0
        %1592 = vmatprep.subr.mxu0 0.0
        %1593 = vmatpush2.msra.mxu0 0.0
        %1594 = vmatprep.subr.mxu0 0.0
        %1595 = vmatpush2.msra.mxu0 0.0
        %1596 = vmatprep.subr.mxu0 0.0
        %1597 = vmatpush2.msra.mxu0 0.0
        %1598 = vmatprep.subr.mxu0 0.0
        %1599 = vmatpush2.msra.mxu0 0.0
        %1600 = vmatprep.subr.mxu0 0.0
        %1601 = vmatpush2.msra.mxu0 0.0
        %1602 = vmatprep.subr.mxu0 0.0
        %1603 = vmatpush2.msra.mxu0 0.0
        %1604 = vmatprep.subr.mxu0 0.0
        %1605 = vmatpush2.msra.mxu0 0.0
        %1606 = vmatprep.subr.mxu0 0.0
        %1607 = vmatpush2.msra.mxu0 0.0
        %1608 = vmatprep.subr.mxu0 0.0
        %1609 = vmatpush2.msra.mxu0 0.0
        %1610 = vmatprep.subr.mxu0 0.0
        %1611 = vmatpush2.msra.mxu0 0.0
        %1612 = vmatprep.subr.mxu0 0.0
        %1613 = vmatpush2.msra.mxu0 0.0
        %1614 = vmatprep.subr.mxu0 0.0
        %1615 = vmatpush2.msra.mxu0 0.0
        %1616 = vmatprep.subr.mxu0 0.0
        %1617 = vmatpush2.msra.mxu0 0.0
        %1618 = vmatprep.subr.mxu0 0.0
        %1619 = vmatpush2.msra.mxu0 0.0
        %1620 = vmatprep.subr.mxu0 0.0
        %1621 = vmatpush2.msra.mxu0 0.0
        %1622 = vmatprep.mubr.f32.mxu0 0.0
        %1623 = vmatmul.mubr.f32.gmra.mxu0 %v1556
        %v1624 = vpop.f32.mrf.mxu0
        %v1625 = vadd.f32 0.0, %v1624
        %v1626 = vpop.f32.mrf.mxu0
        %1627 = vdwg.mxu0
        %1629 = vrot.lane.b32.xlu0 %v1625, 8
        %v1630 = vpop.permute.xlu0 %1629
        %vm1632 = vcmask 130112
        %1633 = vst.msk [vmem:[#allocation3] sm:$0xff] %vm1632, %v1630
        %v1634 = vld [vmem:[#allocation2] sm:$0xff]
        %v1635 = vld [vmem:[#allocation2 + $0x8] sm:$0xff]
        %v1637 = vcombine.high %v1635, %v1635
        %v1639 = vunpack.c.l.s4 1966171168
        %v1640 = vunpack.c.0.s8 %v1639
        %v1641 = vlaneseq
        %v1642 = vshrl.u32 %v1641, 7
        %v1643 = vsub.s32 %v1640, %v1642
        %v1644 = vrot.slane %v1635, %v1643
        %v1646 = vunpack.c.l.s4 1966171168
        %v1647 = vunpack.c.0.s8 %v1646
        %v1648 = vlaneseq
        %v1649 = vshrl.u32 %v1648, 7
        %v1650 = vsub.s32 %v1647, %v1649
        %v1651 = vrot.slane %v1637, %v1650
        %v1652 = vcombine.high %v1644, %v1644
        %v1653 = vcombine.high %v1651, %v1651
        %v1655 = vunpack.c.l.s4 1966171168
        %v1656 = vunpack.c.0.s8 %v1655
        %v1657 = vlaneseq
        %v1658 = vshrl.u32 %v1657, 7
        %v1659 = vsub.s32 %v1656, %v1658
        %v1660 = vrot.slane %v1644, %v1659
        %v1662 = vunpack.c.l.s4 1966171168
        %v1663 = vunpack.c.0.s8 %v1662
        %v1664 = vlaneseq
        %v1665 = vshrl.u32 %v1664, 7
        %v1666 = vsub.s32 %v1663, %v1665
        %v1667 = vrot.slane %v1651, %v1666
        %v1669 = vunpack.c.l.s4 1966171168
        %v1670 = vunpack.c.0.s8 %v1669
        %v1671 = vlaneseq
        %v1672 = vshrl.u32 %v1671, 7
        %v1673 = vsub.s32 %v1670, %v1672
        %v1674 = vrot.slane %v1652, %v1673
        %v1676 = vunpack.c.l.s4 1966171168
        %v1677 = vunpack.c.0.s8 %v1676
        %v1678 = vlaneseq
        %v1679 = vshrl.u32 %v1678, 7
        %v1680 = vsub.s32 %v1677, %v1679
        %v1681 = vrot.slane %v1653, %v1680
        %v1682 = vcombine.high %v1660, %v1660
        %v1683 = vcombine.high %v1667, %v1667
        %v1684 = vcombine.high %v1674, %v1674
        %v1685 = vcombine.high %v1681, %v1681
        %v1686 = vlaneseq
        %v1687 = vshrl.u32 %v1686, 7
        %v1688 = vsub.s32 0, %v1687
        %v1689 = vrot.slane %v1660, %v1688
        %v1690 = vlaneseq
        %v1691 = vshrl.u32 %v1690, 7
        %v1692 = vsub.s32 0, %v1691
        %v1693 = vrot.slane %v1674, %v1692
        %v1694 = vlaneseq
        %v1695 = vshrl.u32 %v1694, 7
        %v1696 = vsub.s32 0, %v1695
        %v1697 = vrot.slane %v1682, %v1696
        %v1698 = vlaneseq
        %v1699 = vshrl.u32 %v1698, 7
        %v1700 = vsub.s32 0, %v1699
        %v1701 = vrot.slane %v1684, %v1700
        %v1702 = vlaneseq
        %v1703 = vshrl.u32 %v1702, 7
        %v1704 = vsub.s32 0, %v1703
        %v1705 = vrot.slane %v1667, %v1704
        %v1706 = vlaneseq
        %v1707 = vshrl.u32 %v1706, 7
        %v1708 = vsub.s32 0, %v1707
        %v1709 = vrot.slane %v1681, %v1708
        %v1710 = vlaneseq
        %v1711 = vshrl.u32 %v1710, 7
        %v1712 = vsub.s32 0, %v1711
        %v1713 = vrot.slane %v1683, %v1712
        %v1714 = vlaneseq
        %v1715 = vshrl.u32 %v1714, 7
        %v1716 = vsub.s32 0, %v1715
        %v1717 = vrot.slane %v1685, %v1716
        %1726 = vrot.lane.b32.xlu0 %v675, 32
        %v1727 = vpop.permute.xlu0 %1726
        %1728 = vrot.lane.b32.xlu0 %v676, 32
        %v1729 = vpop.permute.xlu0 %1728
        %1730 = vrot.lane.b32.xlu0 %v677, 32
        %v1731 = vpop.permute.xlu0 %1730
        %1732 = vrot.lane.b32.xlu0 %v678, 32
        %v1733 = vpop.permute.xlu0 %1732
        %1734 = vrot.lane.b32.xlu0 %v679, 32
        %v1735 = vpop.permute.xlu0 %1734
        %1736 = vrot.lane.b32.xlu0 %v680, 32
        %v1737 = vpop.permute.xlu0 %1736
        %1738 = vrot.lane.b32.xlu0 %v681, 32
        %v1739 = vpop.permute.xlu0 %1738
        %1740 = vrot.lane.b32.xlu0 %v682, 32
        %v1741 = vpop.permute.xlu0 %1740
        %v1750 = vmul.f32 %v1689, %v1727
        %v1751 = vmul.f32 %v1693, %v1729
        %v1752 = vmul.f32 %v1697, %v1731
        %v1753 = vmul.f32 %v1701, %v1733
        %v1754 = vmul.f32 %v1705, %v1735
        %v1755 = vmul.f32 %v1709, %v1737
        %v1756 = vmul.f32 %v1713, %v1739
        %v1757 = vmul.f32 %v1717, %v1741
        %1766 = vrot.lane.b32.xlu0 %v1750, 96
        %v1767 = vpop.permute.xlu0 %1766
        %1768 = vrot.lane.b32.xlu0 %v1751, 96
        %v1769 = vpop.permute.xlu0 %1768
        %1770 = vrot.lane.b32.xlu0 %v1752, 96
        %v1771 = vpop.permute.xlu0 %1770
        %1772 = vrot.lane.b32.xlu0 %v1753, 96
        %v1773 = vpop.permute.xlu0 %1772
        %1774 = vrot.lane.b32.xlu0 %v1754, 96
        %v1775 = vpop.permute.xlu0 %1774
        %1776 = vrot.lane.b32.xlu0 %v1755, 96
        %v1777 = vpop.permute.xlu0 %1776
        %1778 = vrot.lane.b32.xlu0 %v1756, 96
        %v1779 = vpop.permute.xlu0 %1778
        %1780 = vrot.lane.b32.xlu0 %v1757, 96
        %v1781 = vpop.permute.xlu0 %1780
        %v1790 = vsel %vm590, %v1767, 0.0
        %1791 = vadd.xlane.f32.xlu0 %v1790
        %v1792 = vpop.xlane.xlu0 %1791
        %v1793 = vsel %vm590, %v1769, 0.0
        %1794 = vadd.xlane.f32.xlu0 %v1793
        %v1795 = vpop.xlane.xlu0 %1794
        %v1796 = vsel %vm590, %v1771, 0.0
        %1797 = vadd.xlane.f32.xlu0 %v1796
        %v1798 = vpop.xlane.xlu0 %1797
        %v1799 = vsel %vm590, %v1773, 0.0
        %1800 = vadd.xlane.f32.xlu0 %v1799
        %v1801 = vpop.xlane.xlu0 %1800
        %v1802 = vsel %vm590, %v1775, 0.0
        %1803 = vadd.xlane.f32.xlu0 %v1802
        %v1804 = vpop.xlane.xlu0 %1803
        %v1805 = vsel %vm590, %v1777, 0.0
        %1806 = vadd.xlane.f32.xlu0 %v1805
        %v1807 = vpop.xlane.xlu0 %1806
        %v1808 = vsel %vm590, %v1779, 0.0
        %1809 = vadd.xlane.f32.xlu0 %v1808
        %v1810 = vpop.xlane.xlu0 %1809
        %v1811 = vsel %vm590, %v1781, 0.0
        %1812 = vadd.xlane.f32.xlu0 %v1811
        %v1813 = vpop.xlane.xlu0 %1812
        %v1814 = vld [vmem:[%s529 + $0x10] sm:$0xff]
        %v1816 = vlaneseq
        %v1817 = vshrl.u32 %v1816, 7
        %v1818 = vsub.s32 0, %v1817
        %v1819 = vrot.slane %v1814, %v1818
        %1821 = vbcast.lane.b32.xlu0 %v1819, 256
        %v1822 = vpop.permute.xlu0 %1821
        %v1823 = vlaneseq
        %v1824 = vshrl.u32 %v1823, 7
        %v1825 = vsub.s32 1, %v1824
        %v1826 = vrot.slane %v1814, %v1825
        %1828 = vbcast.lane.b32.xlu0 %v1826, 256
        %v1829 = vpop.permute.xlu0 %1828
        %v1830 = vlaneseq
        %v1831 = vshrl.u32 %v1830, 7
        %v1832 = vsub.s32 2, %v1831
        %v1833 = vrot.slane %v1814, %v1832
        %1835 = vbcast.lane.b32.xlu0 %v1833, 256
        %v1836 = vpop.permute.xlu0 %1835
        %v1837 = vlaneseq
        %v1838 = vshrl.u32 %v1837, 7
        %v1839 = vsub.s32 3, %v1838
        %v1840 = vrot.slane %v1814, %v1839
        %1842 = vbcast.lane.b32.xlu0 %v1840, 256
        %v1843 = vpop.permute.xlu0 %1842
        %v1844 = vlaneseq
        %v1845 = vshrl.u32 %v1844, 7
        %v1846 = vsub.s32 4, %v1845
        %v1847 = vrot.slane %v1814, %v1846
        %1849 = vbcast.lane.b32.xlu0 %v1847, 256
        %v1850 = vpop.permute.xlu0 %1849
        %v1851 = vlaneseq
        %v1852 = vshrl.u32 %v1851, 7
        %v1853 = vsub.s32 5, %v1852
        %v1854 = vrot.slane %v1814, %v1853
        %1856 = vbcast.lane.b32.xlu0 %v1854, 256
        %v1857 = vpop.permute.xlu0 %1856
        %v1858 = vlaneseq
        %v1859 = vshrl.u32 %v1858, 7
        %v1860 = vsub.s32 6, %v1859
        %v1861 = vrot.slane %v1814, %v1860
        %1863 = vbcast.lane.b32.xlu0 %v1861, 256
        %v1864 = vpop.permute.xlu0 %1863
        %v1865 = vlaneseq
        %v1866 = vshrl.u32 %v1865, 7
        %v1867 = vsub.s32 7, %v1866
        %v1868 = vrot.slane %v1814, %v1867
        %1870 = vbcast.lane.b32.xlu0 %v1868, 256
        %v1871 = vpop.permute.xlu0 %1870
        %v1880 = vadd.f32 %v1792, %v1822
        %v1881 = vadd.f32 %v1795, %v1829
        %v1882 = vadd.f32 %v1798, %v1836
        %v1883 = vadd.f32 %v1801, %v1843
        %v1884 = vadd.f32 %v1804, %v1850
        %v1885 = vadd.f32 %v1807, %v1857
        %v1886 = vadd.f32 %v1810, %v1864
        %v1887 = vadd.f32 %v1813, %v1871
        %1889 = vrot.lane.b32.xlu0 %v1634, 112
        %v1890 = vpop.permute.xlu0 %1889
        %1891 = vrot.lane.b32.xlu0 %v1634, 80
        %v1892 = vpop.permute.xlu0 %1891
        %1901 = vset.pattern.permute.xlu0 0
        %1902 = vperm.xlu0 %1901, %v1880
        %v1903 = vpop.permute.xlu0 %1902
        %1904 = vset.pattern.permute.xlu0 0
        %1905 = vperm.xlu0 %1904, %v1881
        %v1906 = vpop.permute.xlu0 %1905
        %1907 = vset.pattern.permute.xlu0 0
        %1908 = vperm.xlu0 %1907, %v1882
        %v1909 = vpop.permute.xlu0 %1908
        %1910 = vset.pattern.permute.xlu0 0
        %1911 = vperm.xlu0 %1910, %v1883
        %v1912 = vpop.permute.xlu0 %1911
        %1913 = vset.pattern.permute.xlu0 0
        %1914 = vperm.xlu0 %1913, %v1884
        %v1915 = vpop.permute.xlu0 %1914
        %1916 = vset.pattern.permute.xlu0 0
        %1917 = vperm.xlu0 %1916, %v1885
        %v1918 = vpop.permute.xlu0 %1917
        %1919 = vset.pattern.permute.xlu0 0
        %1920 = vperm.xlu0 %1919, %v1886
        %v1921 = vpop.permute.xlu0 %1920
        %1922 = vset.pattern.permute.xlu0 0
        %1923 = vperm.xlu0 %1922, %v1887
        %v1924 = vpop.permute.xlu0 %1923
        %v1925 = vlaneseq
        %v1926 = vshrl.u32 %v1925, 7
        %v1927 = vsub.s32 %v979, %v1926
        %v1928 = vrot.slane %v1903, %v1927
        %v1929 = vlaneseq
        %v1930 = vshrl.u32 %v1929, 7
        %v1931 = vsub.s32 %v979, %v1930
        %v1932 = vrot.slane %v1906, %v1931
        %v1933 = vlaneseq
        %v1934 = vshrl.u32 %v1933, 7
        %v1935 = vsub.s32 %v979, %v1934
        %v1936 = vrot.slane %v1909, %v1935
        %v1937 = vlaneseq
        %v1938 = vshrl.u32 %v1937, 7
        %v1939 = vsub.s32 %v979, %v1938
        %v1940 = vrot.slane %v1912, %v1939
        %v1941 = vlaneseq
        %v1942 = vshrl.u32 %v1941, 7
        %v1943 = vsub.s32 %v979, %v1942
        %v1944 = vrot.slane %v1915, %v1943
        %v1945 = vlaneseq
        %v1946 = vshrl.u32 %v1945, 7
        %v1947 = vsub.s32 %v979, %v1946
        %v1948 = vrot.slane %v1918, %v1947
        %v1949 = vlaneseq
        %v1950 = vshrl.u32 %v1949, 7
        %v1951 = vsub.s32 %v979, %v1950
        %v1952 = vrot.slane %v1921, %v1951
        %v1953 = vlaneseq
        %v1954 = vshrl.u32 %v1953, 7
        %v1955 = vsub.s32 %v979, %v1954
        %v1956 = vrot.slane %v1924, %v1955
        %v1957 = vsel %vm1012, %v1932, %v1928
        %v1958 = vsel %vm1014, %v1936, %v1957
        %v1959 = vsel %vm1016, %v1940, %v1958
        %v1960 = vsel %vm1018, %v1944, %v1959
        %v1961 = vsel %vm1020, %v1948, %v1960
        %v1962 = vsel %vm1022, %v1952, %v1961
        %v1963 = vsel %vm1024, %v1956, %v1962
        %v1965 = vsel %vm1027, %v1890, 0
        %v1967 = vsel %vm1027, %v1892, 0
        %1969 = vmatprep.subr.mxu0 0.0
        %1970 = vmatpush1.xpose.msra.mxu0 0.0
        %1971 = vmatprep.subr.mxu0 0.0
        %1972 = vmatpush1.xpose.msra.mxu0 0.0
        %1973 = vmatprep.subr.mxu0 0.0
        %1974 = vmatpush1.xpose.msra.mxu0 0.0
        %1975 = vmatprep.subr.mxu0 0.0
        %1976 = vmatpush1.xpose.msra.mxu0 0.0
        %1977 = vmatprep.subr.mxu0 0.0
        %1978 = vmatpush1.xpose.msra.mxu0 0.0
        %1979 = vmatprep.subr.mxu0 0.0
        %1980 = vmatpush1.xpose.msra.mxu0 0.0
        %1981 = vmatprep.subr.mxu0 0.0
        %1982 = vmatpush1.xpose.msra.mxu0 0.0
        %1983 = vmatprep.subr.mxu0 0.0
        %1984 = vmatpush1.xpose.msra.mxu0 0.0
        %1985 = vmatprep.subr.mxu0 0.0
        %1986 = vmatpush1.xpose.msra.mxu0 0.0
        %1987 = vmatprep.subr.mxu0 0.0
        %1988 = vmatpush1.xpose.msra.mxu0 0.0
        %1989 = vmatprep.subr.mxu0 0.0
        %1990 = vmatpush1.xpose.msra.mxu0 0.0
        %1991 = vmatprep.subr.mxu0 0.0
        %1992 = vmatpush1.xpose.msra.mxu0 0.0
        %1993 = vmatprep.subr.mxu0 0.0
        %1994 = vmatpush1.xpose.msra.mxu0 0.0
        %1995 = vmatprep.subr.mxu0 0.0
        %1996 = vmatpush1.xpose.msra.mxu0 0.0
        %1997 = vmatprep.subr.mxu0 0.0
        %1998 = vmatpush1.xpose.msra.mxu0 0.0
        %1999 = vmatprep.subr.mxu0 0.0
        %2000 = vmatpush1.xpose.msra.mxu0 %v1967
        %2001 = vmatprep.subr.mxu0 0.0
        %2002 = vmatpush2.xpose.msra.mxu0 0.0
        %2003 = vmatprep.subr.mxu0 0.0
        %2004 = vmatpush2.xpose.msra.mxu0 0.0
        %2005 = vmatprep.subr.mxu0 0.0
        %2006 = vmatpush2.xpose.msra.mxu0 0.0
        %2007 = vmatprep.subr.mxu0 0.0
        %2008 = vmatpush2.xpose.msra.mxu0 0.0
        %2009 = vmatprep.subr.mxu0 0.0
        %2010 = vmatpush2.xpose.msra.mxu0 0.0
        %2011 = vmatprep.subr.mxu0 0.0
        %2012 = vmatpush2.xpose.msra.mxu0 0.0
        %2013 = vmatprep.subr.mxu0 0.0
        %2014 = vmatpush2.xpose.msra.mxu0 0.0
        %2015 = vmatprep.subr.mxu0 0.0
        %2016 = vmatpush2.xpose.msra.mxu0 0.0
        %2017 = vmatprep.subr.mxu0 0.0
        %2018 = vmatpush2.xpose.msra.mxu0 0.0
        %2019 = vmatprep.subr.mxu0 0.0
        %2020 = vmatpush2.xpose.msra.mxu0 0.0
        %2021 = vmatprep.subr.mxu0 0.0
        %2022 = vmatpush2.xpose.msra.mxu0 0.0
        %2023 = vmatprep.subr.mxu0 0.0
        %2024 = vmatpush2.xpose.msra.mxu0 0.0
        %2025 = vmatprep.subr.mxu0 0.0
        %2026 = vmatpush2.xpose.msra.mxu0 0.0
        %2027 = vmatprep.subr.mxu0 0.0
        %2028 = vmatpush2.xpose.msra.mxu0 0.0
        %2029 = vmatprep.subr.mxu0 0.0
        %2030 = vmatpush2.xpose.msra.mxu0 0.0
        %2031 = vmatprep.subr.mxu0 0.0
        %2032 = vmatpush2.xpose.msra.mxu0 0.0
        %2033 = vmatprep.mubr.f32.mxu0 0.0
        %2034 = vmatmul.mubr.f32.gmra.mxu0 %v1965
        %v2035 = vpop.f32.mrf.mxu0
        %v2036 = vadd.f32 %v1963, %v2035
        %v2037 = vpop.f32.mrf.mxu0
        %2038 = vdwg.mxu0
        %v2039 = vsel %vm1027, %v2036, -inf
        %2040 = vmax.xlane.f32.xlu0 %v2039
        %v2041 = vpop.xlane.xlu0 %2040
        %v2042 = vsub.f32 %v2036, %v2041
        %v2043 = vmul.f32 %v2042, 1.442695
        %v2044 = vpow.pop %v2043
        %v2045 = vsel %vm1027, %v2044, 0.0
        %2046 = vadd.xlane.f32.xlu0 %v2045
        %v2047 = vpop.xlane.xlu0 %2046
        %v2048 = vrcp.pop %v2047
        %v2049 = vmul.f32 %v2044, %v2048
        %2050 = vst.msk [vmem:[%s493 + $0x10] sm:$0xff] %vm1027, %v2049
        %2051 = vrot.lane.b32.xlu0 %v1634, 48
        %v2052 = vpop.permute.xlu0 %2051
        %v2055 = vsel %vm1027, %v2049, 0
        %2057 = vmatprep.subr.mxu0 0.0
        %2058 = vmatpush1.msra.mxu0 0.0
        %2059 = vmatprep.subr.mxu0 0.0
        %2060 = vmatpush1.msra.mxu0 0.0
        %2061 = vmatprep.subr.mxu0 0.0
        %2062 = vmatpush1.msra.mxu0 0.0
        %2063 = vmatprep.subr.mxu0 0.0
        %2064 = vmatpush1.msra.mxu0 0.0
        %2065 = vmatprep.subr.mxu0 0.0
        %2066 = vmatpush1.msra.mxu0 0.0
        %2067 = vmatprep.subr.mxu0 0.0
        %2068 = vmatpush1.msra.mxu0 0.0
        %2069 = vmatprep.subr.mxu0 0.0
        %2070 = vmatpush1.msra.mxu0 0.0
        %2071 = vmatprep.subr.mxu0 0.0
        %2072 = vmatpush1.msra.mxu0 0.0
        %2073 = vmatprep.subr.mxu0 0.0
        %2074 = vmatpush1.msra.mxu0 0.0
        %2075 = vmatprep.subr.mxu0 0.0
        %2076 = vmatpush1.msra.mxu0 0.0
        %2077 = vmatprep.subr.mxu0 0.0
        %2078 = vmatpush1.msra.mxu0 0.0
        %2079 = vmatprep.subr.mxu0 0.0
        %2080 = vmatpush1.msra.mxu0 0.0
        %2081 = vmatprep.subr.mxu0 0.0
        %2082 = vmatpush1.msra.mxu0 0.0
        %2083 = vmatprep.subr.mxu0 0.0
        %2084 = vmatpush1.msra.mxu0 0.0
        %2085 = vmatprep.subr.mxu0 0.0
        %2086 = vmatpush1.msra.mxu0 0.0
        %2087 = vmatprep.subr.mxu0 0.0
        %2088 = vmatpush1.msra.mxu0 %v2052
        %2089 = vmatprep.subr.mxu0 0.0
        %2090 = vmatpush2.msra.mxu0 0.0
        %2091 = vmatprep.subr.mxu0 0.0
        %2092 = vmatpush2.msra.mxu0 0.0
        %2093 = vmatprep.subr.mxu0 0.0
        %2094 = vmatpush2.msra.mxu0 0.0
        %2095 = vmatprep.subr.mxu0 0.0
        %2096 = vmatpush2.msra.mxu0 0.0
        %2097 = vmatprep.subr.mxu0 0.0
        %2098 = vmatpush2.msra.mxu0 0.0
        %2099 = vmatprep.subr.mxu0 0.0
        %2100 = vmatpush2.msra.mxu0 0.0
        %2101 = vmatprep.subr.mxu0 0.0
        %2102 = vmatpush2.msra.mxu0 0.0
        %2103 = vmatprep.subr.mxu0 0.0
        %2104 = vmatpush2.msra.mxu0 0.0
        %2105 = vmatprep.subr.mxu0 0.0
        %2106 = vmatpush2.msra.mxu0 0.0
        %2107 = vmatprep.subr.mxu0 0.0
        %2108 = vmatpush2.msra.mxu0 0.0
        %2109 = vmatprep.subr.mxu0 0.0
        %2110 = vmatpush2.msra.mxu0 0.0
        %2111 = vmatprep.subr.mxu0 0.0
        %2112 = vmatpush2.msra.mxu0 0.0
        %2113 = vmatprep.subr.mxu0 0.0
        %2114 = vmatpush2.msra.mxu0 0.0
        %2115 = vmatprep.subr.mxu0 0.0
        %2116 = vmatpush2.msra.mxu0 0.0
        %2117 = vmatprep.subr.mxu0 0.0
        %2118 = vmatpush2.msra.mxu0 0.0
        %2119 = vmatprep.subr.mxu0 0.0
        %2120 = vmatpush2.msra.mxu0 0.0
        %2121 = vmatprep.mubr.f32.mxu0 0.0
        %2122 = vmatmul.mubr.f32.gmra.mxu0 %v2055
        %v2123 = vpop.f32.mrf.mxu0
        %v2124 = vadd.f32 0.0, %v2123
        %v2125 = vpop.f32.mrf.mxu0
        %2126 = vdwg.mxu0
        %2128 = vrot.lane.b32.xlu0 %v2124, 16
        %v2129 = vpop.permute.xlu0 %2128
        %vm2131 = vcmask 195712
        %2132 = vst.msk [vmem:[#allocation3] sm:$0xff] %vm2131, %v2129
        %v2133 = vld [vmem:[#allocation2] sm:$0xff]
        %v2134 = vld [vmem:[#allocation2 + $0x8] sm:$0xff]
        %v2136 = vcombine.high %v2134, %v2134
        %v2138 = vunpack.c.l.s4 1966171168
        %v2139 = vunpack.c.0.s8 %v2138
        %v2140 = vlaneseq
        %v2141 = vshrl.u32 %v2140, 7
        %v2142 = vsub.s32 %v2139, %v2141
        %v2143 = vrot.slane %v2134, %v2142
        %v2145 = vunpack.c.l.s4 1966171168
        %v2146 = vunpack.c.0.s8 %v2145
        %v2147 = vlaneseq
        %v2148 = vshrl.u32 %v2147, 7
        %v2149 = vsub.s32 %v2146, %v2148
        %v2150 = vrot.slane %v2136, %v2149
        %v2151 = vcombine.high %v2143, %v2143
        %v2152 = vcombine.high %v2150, %v2150
        %v2154 = vunpack.c.l.s4 1966171168
        %v2155 = vunpack.c.0.s8 %v2154
        %v2156 = vlaneseq
        %v2157 = vshrl.u32 %v2156, 7
        %v2158 = vsub.s32 %v2155, %v2157
        %v2159 = vrot.slane %v2143, %v2158
        %v2161 = vunpack.c.l.s4 1966171168
        %v2162 = vunpack.c.0.s8 %v2161
        %v2163 = vlaneseq
        %v2164 = vshrl.u32 %v2163, 7
        %v2165 = vsub.s32 %v2162, %v2164
        %v2166 = vrot.slane %v2150, %v2165
        %v2168 = vunpack.c.l.s4 1966171168
        %v2169 = vunpack.c.0.s8 %v2168
        %v2170 = vlaneseq
        %v2171 = vshrl.u32 %v2170, 7
        %v2172 = vsub.s32 %v2169, %v2171
        %v2173 = vrot.slane %v2151, %v2172
        %v2175 = vunpack.c.l.s4 1966171168
        %v2176 = vunpack.c.0.s8 %v2175
        %v2177 = vlaneseq
        %v2178 = vshrl.u32 %v2177, 7
        %v2179 = vsub.s32 %v2176, %v2178
        %v2180 = vrot.slane %v2152, %v2179
        %v2181 = vcombine.high %v2159, %v2159
        %v2182 = vcombine.high %v2166, %v2166
        %v2183 = vcombine.high %v2173, %v2173
        %v2184 = vcombine.high %v2180, %v2180
        %v2185 = vlaneseq
        %v2186 = vshrl.u32 %v2185, 7
        %v2187 = vsub.s32 0, %v2186
        %v2188 = vrot.slane %v2159, %v2187
        %v2189 = vlaneseq
        %v2190 = vshrl.u32 %v2189, 7
        %v2191 = vsub.s32 0, %v2190
        %v2192 = vrot.slane %v2173, %v2191
        %v2193 = vlaneseq
        %v2194 = vshrl.u32 %v2193, 7
        %v2195 = vsub.s32 0, %v2194
        %v2196 = vrot.slane %v2181, %v2195
        %v2197 = vlaneseq
        %v2198 = vshrl.u32 %v2197, 7
        %v2199 = vsub.s32 0, %v2198
        %v2200 = vrot.slane %v2183, %v2199
        %v2201 = vlaneseq
        %v2202 = vshrl.u32 %v2201, 7
        %v2203 = vsub.s32 0, %v2202
        %v2204 = vrot.slane %v2166, %v2203
        %v2205 = vlaneseq
        %v2206 = vshrl.u32 %v2205, 7
        %v2207 = vsub.s32 0, %v2206
        %v2208 = vrot.slane %v2180, %v2207
        %v2209 = vlaneseq
        %v2210 = vshrl.u32 %v2209, 7
        %v2211 = vsub.s32 0, %v2210
        %v2212 = vrot.slane %v2182, %v2211
        %v2213 = vlaneseq
        %v2214 = vshrl.u32 %v2213, 7
        %v2215 = vsub.s32 0, %v2214
        %v2216 = vrot.slane %v2184, %v2215
        %2225 = vrot.lane.b32.xlu0 %v675, 64
        %v2226 = vpop.permute.xlu0 %2225
        %2227 = vrot.lane.b32.xlu0 %v676, 64
        %v2228 = vpop.permute.xlu0 %2227
        %2229 = vrot.lane.b32.xlu0 %v677, 64
        %v2230 = vpop.permute.xlu0 %2229
        %2231 = vrot.lane.b32.xlu0 %v678, 64
        %v2232 = vpop.permute.xlu0 %2231
        %2233 = vrot.lane.b32.xlu0 %v679, 64
        %v2234 = vpop.permute.xlu0 %2233
        %2235 = vrot.lane.b32.xlu0 %v680, 64
        %v2236 = vpop.permute.xlu0 %2235
        %2237 = vrot.lane.b32.xlu0 %v681, 64
        %v2238 = vpop.permute.xlu0 %2237
        %2239 = vrot.lane.b32.xlu0 %v682, 64
        %v2240 = vpop.permute.xlu0 %2239
        %v2249 = vmul.f32 %v2188, %v2226
        %v2250 = vmul.f32 %v2192, %v2228
        %v2251 = vmul.f32 %v2196, %v2230
        %v2252 = vmul.f32 %v2200, %v2232
        %v2253 = vmul.f32 %v2204, %v2234
        %v2254 = vmul.f32 %v2208, %v2236
        %v2255 = vmul.f32 %v2212, %v2238
        %v2256 = vmul.f32 %v2216, %v2240
        %2265 = vrot.lane.b32.xlu0 %v2249, 64
        %v2266 = vpop.permute.xlu0 %2265
        %2267 = vrot.lane.b32.xlu0 %v2250, 64
        %v2268 = vpop.permute.xlu0 %2267
        %2269 = vrot.lane.b32.xlu0 %v2251, 64
        %v2270 = vpop.permute.xlu0 %2269
        %2271 = vrot.lane.b32.xlu0 %v2252, 64
        %v2272 = vpop.permute.xlu0 %2271
        %2273 = vrot.lane.b32.xlu0 %v2253, 64
        %v2274 = vpop.permute.xlu0 %2273
        %2275 = vrot.lane.b32.xlu0 %v2254, 64
        %v2276 = vpop.permute.xlu0 %2275
        %2277 = vrot.lane.b32.xlu0 %v2255, 64
        %v2278 = vpop.permute.xlu0 %2277
        %2279 = vrot.lane.b32.xlu0 %v2256, 64
        %v2280 = vpop.permute.xlu0 %2279
        %v2289 = vsel %vm590, %v2266, 0.0
        %2290 = vadd.xlane.f32.xlu0 %v2289
        %v2291 = vpop.xlane.xlu0 %2290
        %v2292 = vsel %vm590, %v2268, 0.0
        %2293 = vadd.xlane.f32.xlu0 %v2292
        %v2294 = vpop.xlane.xlu0 %2293
        %v2295 = vsel %vm590, %v2270, 0.0
        %2296 = vadd.xlane.f32.xlu0 %v2295
        %v2297 = vpop.xlane.xlu0 %2296
        %v2298 = vsel %vm590, %v2272, 0.0
        %2299 = vadd.xlane.f32.xlu0 %v2298
        %v2300 = vpop.xlane.xlu0 %2299
        %v2301 = vsel %vm590, %v2274, 0.0
        %2302 = vadd.xlane.f32.xlu0 %v2301
        %v2303 = vpop.xlane.xlu0 %2302
        %v2304 = vsel %vm590, %v2276, 0.0
        %2305 = vadd.xlane.f32.xlu0 %v2304
        %v2306 = vpop.xlane.xlu0 %2305
        %v2307 = vsel %vm590, %v2278, 0.0
        %2308 = vadd.xlane.f32.xlu0 %v2307
        %v2309 = vpop.xlane.xlu0 %2308
        %v2310 = vsel %vm590, %v2280, 0.0
        %2311 = vadd.xlane.f32.xlu0 %v2310
        %v2312 = vpop.xlane.xlu0 %2311
        %v2313 = vld [vmem:[%s529 + $0x18] sm:$0xff]
        %v2315 = vlaneseq
        %v2316 = vshrl.u32 %v2315, 7
        %v2317 = vsub.s32 0, %v2316
        %v2318 = vrot.slane %v2313, %v2317
        %2320 = vbcast.lane.b32.xlu0 %v2318, 256
        %v2321 = vpop.permute.xlu0 %2320
        %v2322 = vlaneseq
        %v2323 = vshrl.u32 %v2322, 7
        %v2324 = vsub.s32 1, %v2323
        %v2325 = vrot.slane %v2313, %v2324
        %2327 = vbcast.lane.b32.xlu0 %v2325, 256
        %v2328 = vpop.permute.xlu0 %2327
        %v2329 = vlaneseq
        %v2330 = vshrl.u32 %v2329, 7
        %v2331 = vsub.s32 2, %v2330
        %v2332 = vrot.slane %v2313, %v2331
        %2334 = vbcast.lane.b32.xlu0 %v2332, 256
        %v2335 = vpop.permute.xlu0 %2334
        %v2336 = vlaneseq
        %v2337 = vshrl.u32 %v2336, 7
        %v2338 = vsub.s32 3, %v2337
        %v2339 = vrot.slane %v2313, %v2338
        %2341 = vbcast.lane.b32.xlu0 %v2339, 256
        %v2342 = vpop.permute.xlu0 %2341
        %v2343 = vlaneseq
        %v2344 = vshrl.u32 %v2343, 7
        %v2345 = vsub.s32 4, %v2344
        %v2346 = vrot.slane %v2313, %v2345
        %2348 = vbcast.lane.b32.xlu0 %v2346, 256
        %v2349 = vpop.permute.xlu0 %2348
        %v2350 = vlaneseq
        %v2351 = vshrl.u32 %v2350, 7
        %v2352 = vsub.s32 5, %v2351
        %v2353 = vrot.slane %v2313, %v2352
        %2355 = vbcast.lane.b32.xlu0 %v2353, 256
        %v2356 = vpop.permute.xlu0 %2355
        %v2357 = vlaneseq
        %v2358 = vshrl.u32 %v2357, 7
        %v2359 = vsub.s32 6, %v2358
        %v2360 = vrot.slane %v2313, %v2359
        %2362 = vbcast.lane.b32.xlu0 %v2360, 256
        %v2363 = vpop.permute.xlu0 %2362
        %v2364 = vlaneseq
        %v2365 = vshrl.u32 %v2364, 7
        %v2366 = vsub.s32 7, %v2365
        %v2367 = vrot.slane %v2313, %v2366
        %2369 = vbcast.lane.b32.xlu0 %v2367, 256
        %v2370 = vpop.permute.xlu0 %2369
        %v2379 = vadd.f32 %v2291, %v2321
        %v2380 = vadd.f32 %v2294, %v2328
        %v2381 = vadd.f32 %v2297, %v2335
        %v2382 = vadd.f32 %v2300, %v2342
        %v2383 = vadd.f32 %v2303, %v2349
        %v2384 = vadd.f32 %v2306, %v2356
        %v2385 = vadd.f32 %v2309, %v2363
        %v2386 = vadd.f32 %v2312, %v2370
        %2388 = vrot.lane.b32.xlu0 %v2133, 104
        %v2389 = vpop.permute.xlu0 %2388
        %2390 = vrot.lane.b32.xlu0 %v2133, 72
        %v2391 = vpop.permute.xlu0 %2390
        %2400 = vset.pattern.permute.xlu0 0
        %2401 = vperm.xlu0 %2400, %v2379
        %v2402 = vpop.permute.xlu0 %2401
        %2403 = vset.pattern.permute.xlu0 0
        %2404 = vperm.xlu0 %2403, %v2380
        %v2405 = vpop.permute.xlu0 %2404
        %2406 = vset.pattern.permute.xlu0 0
        %2407 = vperm.xlu0 %2406, %v2381
        %v2408 = vpop.permute.xlu0 %2407
        %2409 = vset.pattern.permute.xlu0 0
        %2410 = vperm.xlu0 %2409, %v2382
        %v2411 = vpop.permute.xlu0 %2410
        %2412 = vset.pattern.permute.xlu0 0
        %2413 = vperm.xlu0 %2412, %v2383
        %v2414 = vpop.permute.xlu0 %2413
        %2415 = vset.pattern.permute.xlu0 0
        %2416 = vperm.xlu0 %2415, %v2384
        %v2417 = vpop.permute.xlu0 %2416
        %2418 = vset.pattern.permute.xlu0 0
        %2419 = vperm.xlu0 %2418, %v2385
        %v2420 = vpop.permute.xlu0 %2419
        %2421 = vset.pattern.permute.xlu0 0
        %2422 = vperm.xlu0 %2421, %v2386
        %v2423 = vpop.permute.xlu0 %2422
        %v2424 = vlaneseq
        %v2425 = vshrl.u32 %v2424, 7
        %v2426 = vsub.s32 %v979, %v2425
        %v2427 = vrot.slane %v2402, %v2426
        %v2428 = vlaneseq
        %v2429 = vshrl.u32 %v2428, 7
        %v2430 = vsub.s32 %v979, %v2429
        %v2431 = vrot.slane %v2405, %v2430
        %v2432 = vlaneseq
        %v2433 = vshrl.u32 %v2432, 7
        %v2434 = vsub.s32 %v979, %v2433
        %v2435 = vrot.slane %v2408, %v2434
        %v2436 = vlaneseq
        %v2437 = vshrl.u32 %v2436, 7
        %v2438 = vsub.s32 %v979, %v2437
        %v2439 = vrot.slane %v2411, %v2438
        %v2440 = vlaneseq
        %v2441 = vshrl.u32 %v2440, 7
        %v2442 = vsub.s32 %v979, %v2441
        %v2443 = vrot.slane %v2414, %v2442
        %v2444 = vlaneseq
        %v2445 = vshrl.u32 %v2444, 7
        %v2446 = vsub.s32 %v979, %v2445
        %v2447 = vrot.slane %v2417, %v2446
        %v2448 = vlaneseq
        %v2449 = vshrl.u32 %v2448, 7
        %v2450 = vsub.s32 %v979, %v2449
        %v2451 = vrot.slane %v2420, %v2450
        %v2452 = vlaneseq
        %v2453 = vshrl.u32 %v2452, 7
        %v2454 = vsub.s32 %v979, %v2453
        %v2455 = vrot.slane %v2423, %v2454
        %v2456 = vsel %vm1012, %v2431, %v2427
        %v2457 = vsel %vm1014, %v2435, %v2456
        %v2458 = vsel %vm1016, %v2439, %v2457
        %v2459 = vsel %vm1018, %v2443, %v2458
        %v2460 = vsel %vm1020, %v2447, %v2459
        %v2461 = vsel %vm1022, %v2451, %v2460
        %v2462 = vsel %vm1024, %v2455, %v2461
        %v2464 = vsel %vm1027, %v2389, 0
        %v2466 = vsel %vm1027, %v2391, 0
        %2468 = vmatprep.subr.mxu0 0.0
        %2469 = vmatpush1.xpose.msra.mxu0 0.0
        %2470 = vmatprep.subr.mxu0 0.0
        %2471 = vmatpush1.xpose.msra.mxu0 0.0
        %2472 = vmatprep.subr.mxu0 0.0
        %2473 = vmatpush1.xpose.msra.mxu0 0.0
        %2474 = vmatprep.subr.mxu0 0.0
        %2475 = vmatpush1.xpose.msra.mxu0 0.0
        %2476 = vmatprep.subr.mxu0 0.0
        %2477 = vmatpush1.xpose.msra.mxu0 0.0
        %2478 = vmatprep.subr.mxu0 0.0
        %2479 = vmatpush1.xpose.msra.mxu0 0.0
        %2480 = vmatprep.subr.mxu0 0.0
        %2481 = vmatpush1.xpose.msra.mxu0 0.0
        %2482 = vmatprep.subr.mxu0 0.0
        %2483 = vmatpush1.xpose.msra.mxu0 0.0
        %2484 = vmatprep.subr.mxu0 0.0
        %2485 = vmatpush1.xpose.msra.mxu0 0.0
        %2486 = vmatprep.subr.mxu0 0.0
        %2487 = vmatpush1.xpose.msra.mxu0 0.0
        %2488 = vmatprep.subr.mxu0 0.0
        %2489 = vmatpush1.xpose.msra.mxu0 0.0
        %2490 = vmatprep.subr.mxu0 0.0
        %2491 = vmatpush1.xpose.msra.mxu0 0.0
        %2492 = vmatprep.subr.mxu0 0.0
        %2493 = vmatpush1.xpose.msra.mxu0 0.0
        %2494 = vmatprep.subr.mxu0 0.0
        %2495 = vmatpush1.xpose.msra.mxu0 0.0
        %2496 = vmatprep.subr.mxu0 0.0
        %2497 = vmatpush1.xpose.msra.mxu0 0.0
        %2498 = vmatprep.subr.mxu0 0.0
        %2499 = vmatpush1.xpose.msra.mxu0 %v2466
        %2500 = vmatprep.subr.mxu0 0.0
        %2501 = vmatpush2.xpose.msra.mxu0 0.0
        %2502 = vmatprep.subr.mxu0 0.0
        %2503 = vmatpush2.xpose.msra.mxu0 0.0
        %2504 = vmatprep.subr.mxu0 0.0
        %2505 = vmatpush2.xpose.msra.mxu0 0.0
        %2506 = vmatprep.subr.mxu0 0.0
        %2507 = vmatpush2.xpose.msra.mxu0 0.0
        %2508 = vmatprep.subr.mxu0 0.0
        %2509 = vmatpush2.xpose.msra.mxu0 0.0
        %2510 = vmatprep.subr.mxu0 0.0
        %2511 = vmatpush2.xpose.msra.mxu0 0.0
        %2512 = vmatprep.subr.mxu0 0.0
        %2513 = vmatpush2.xpose.msra.mxu0 0.0
        %2514 = vmatprep.subr.mxu0 0.0
        %2515 = vmatpush2.xpose.msra.mxu0 0.0
        %2516 = vmatprep.subr.mxu0 0.0
        %2517 = vmatpush2.xpose.msra.mxu0 0.0
        %2518 = vmatprep.subr.mxu0 0.0
        %2519 = vmatpush2.xpose.msra.mxu0 0.0
        %2520 = vmatprep.subr.mxu0 0.0
        %2521 = vmatpush2.xpose.msra.mxu0 0.0
        %2522 = vmatprep.subr.mxu0 0.0
        %2523 = vmatpush2.xpose.msra.mxu0 0.0
        %2524 = vmatprep.subr.mxu0 0.0
        %2525 = vmatpush2.xpose.msra.mxu0 0.0
        %2526 = vmatprep.subr.mxu0 0.0
        %2527 = vmatpush2.xpose.msra.mxu0 0.0
        %2528 = vmatprep.subr.mxu0 0.0
        %2529 = vmatpush2.xpose.msra.mxu0 0.0
        %2530 = vmatprep.subr.mxu0 0.0
        %2531 = vmatpush2.xpose.msra.mxu0 0.0
        %2532 = vmatprep.mubr.f32.mxu0 0.0
        %2533 = vmatmul.mubr.f32.gmra.mxu0 %v2464
        %v2534 = vpop.f32.mrf.mxu0
        %v2535 = vadd.f32 %v2462, %v2534
        %v2536 = vpop.f32.mrf.mxu0
        %2537 = vdwg.mxu0
        %v2538 = vsel %vm1027, %v2535, -inf
        %2539 = vmax.xlane.f32.xlu0 %v2538
        %v2540 = vpop.xlane.xlu0 %2539
        %v2541 = vsub.f32 %v2535, %v2540
        %v2542 = vmul.f32 %v2541, 1.442695
        %v2543 = vpow.pop %v2542
        %v2544 = vsel %vm1027, %v2543, 0.0
        %2545 = vadd.xlane.f32.xlu0 %v2544
        %v2546 = vpop.xlane.xlu0 %2545
        %v2547 = vrcp.pop %v2546
        %v2548 = vmul.f32 %v2543, %v2547
        %2549 = vst.msk [vmem:[%s493 + $0x18] sm:$0xff] %vm1027, %v2548
        %2550 = vrot.lane.b32.xlu0 %v2133, 40
        %v2551 = vpop.permute.xlu0 %2550
        %v2554 = vsel %vm1027, %v2548, 0
        %2556 = vmatprep.subr.mxu0 0.0
        %2557 = vmatpush1.msra.mxu0 0.0
        %2558 = vmatprep.subr.mxu0 0.0
        %2559 = vmatpush1.msra.mxu0 0.0
        %2560 = vmatprep.subr.mxu0 0.0
        %2561 = vmatpush1.msra.mxu0 0.0
        %2562 = vmatprep.subr.mxu0 0.0
        %2563 = vmatpush1.msra.mxu0 0.0
        %2564 = vmatprep.subr.mxu0 0.0
        %2565 = vmatpush1.msra.mxu0 0.0
        %2566 = vmatprep.subr.mxu0 0.0
        %2567 = vmatpush1.msra.mxu0 0.0
        %2568 = vmatprep.subr.mxu0 0.0
        %2569 = vmatpush1.msra.mxu0 0.0
        %2570 = vmatprep.subr.mxu0 0.0
        %2571 = vmatpush1.msra.mxu0 0.0
        %2572 = vmatprep.subr.mxu0 0.0
        %2573 = vmatpush1.msra.mxu0 0.0
        %2574 = vmatprep.subr.mxu0 0.0
        %2575 = vmatpush1.msra.mxu0 0.0
        %2576 = vmatprep.subr.mxu0 0.0
        %2577 = vmatpush1.msra.mxu0 0.0
        %2578 = vmatprep.subr.mxu0 0.0
        %2579 = vmatpush1.msra.mxu0 0.0
        %2580 = vmatprep.subr.mxu0 0.0
        %2581 = vmatpush1.msra.mxu0 0.0
        %2582 = vmatprep.subr.mxu0 0.0
        %2583 = vmatpush1.msra.mxu0 0.0
        %2584 = vmatprep.subr.mxu0 0.0
        %2585 = vmatpush1.msra.mxu0 0.0
        %2586 = vmatprep.subr.mxu0 0.0
        %2587 = vmatpush1.msra.mxu0 %v2551
        %2588 = vmatprep.subr.mxu0 0.0
        %2589 = vmatpush2.msra.mxu0 0.0
        %2590 = vmatprep.subr.mxu0 0.0
        %2591 = vmatpush2.msra.mxu0 0.0
        %2592 = vmatprep.subr.mxu0 0.0
        %2593 = vmatpush2.msra.mxu0 0.0
        %2594 = vmatprep.subr.mxu0 0.0
        %2595 = vmatpush2.msra.mxu0 0.0
        %2596 = vmatprep.subr.mxu0 0.0
        %2597 = vmatpush2.msra.mxu0 0.0
        %2598 = vmatprep.subr.mxu0 0.0
        %2599 = vmatpush2.msra.mxu0 0.0
        %2600 = vmatprep.subr.mxu0 0.0
        %2601 = vmatpush2.msra.mxu0 0.0
        %2602 = vmatprep.subr.mxu0 0.0
        %2603 = vmatpush2.msra.mxu0 0.0
        %2604 = vmatprep.subr.mxu0 0.0
        %2605 = vmatpush2.msra.mxu0 0.0
        %2606 = vmatprep.subr.mxu0 0.0
        %2607 = vmatpush2.msra.mxu0 0.0
        %2608 = vmatprep.subr.mxu0 0.0
        %2609 = vmatpush2.msra.mxu0 0.0
        %2610 = vmatprep.subr.mxu0 0.0
        %2611 = vmatpush2.msra.mxu0 0.0
        %2612 = vmatprep.subr.mxu0 0.0
        %2613 = vmatpush2.msra.mxu0 0.0
        %2614 = vmatprep.subr.mxu0 0.0
        %2615 = vmatpush2.msra.mxu0 0.0
        %2616 = vmatprep.subr.mxu0 0.0
        %2617 = vmatpush2.msra.mxu0 0.0
        %2618 = vmatprep.subr.mxu0 0.0
        %2619 = vmatpush2.msra.mxu0 0.0
        %2620 = vmatprep.mubr.f32.mxu0 0.0
        %2621 = vmatmul.mubr.f32.gmra.mxu0 %v2554
        %v2622 = vpop.f32.mrf.mxu0
        %v2623 = vadd.f32 0.0, %v2622
        %v2624 = vpop.f32.mrf.mxu0
        %2625 = vdwg.mxu0
        %2627 = vrot.lane.b32.xlu0 %v2623, 24
        %v2628 = vpop.permute.xlu0 %2627
        %vm2630 = vcmask 261312
        %2631 = vst.msk [vmem:[#allocation3] sm:$0xff] %vm2630, %v2628
        %v2632 = vld [vmem:[%s6] sm:$0xf]
        %v2633 = vld [vmem:[%s6 + $0x4] sm:$0xf]
        %v2634 = vld [vmem:[%s6 + $0x8] sm:$0xf]
        %v2635 = vld [vmem:[%s6 + $0xc] sm:$0xf]
        %v2636 = vld [vmem:[%s6 + $0x10] sm:$0xf]
        %v2637 = vld [vmem:[%s6 + $0x14] sm:$0xf]
        %v2638 = vld [vmem:[%s6 + $0x18] sm:$0xf]
        %v2639 = vld [vmem:[%s6 + $0x1c] sm:$0xf]
        %v2640 = vld [vmem:[%s6 + $0x20] sm:$0xf]
        %v2641 = vld [vmem:[%s6 + $0x24] sm:$0xf]
        %v2642 = vld [vmem:[%s6 + $0x28] sm:$0xf]
        %v2643 = vld [vmem:[%s6 + $0x2c] sm:$0xf]
        %v2644 = vld [vmem:[%s6 + $0x30] sm:$0xf]
        %v2645 = vld [vmem:[%s6 + $0x34] sm:$0xf]
        %v2646 = vld [vmem:[%s6 + $0x38] sm:$0xf]
        %v2647 = vld [vmem:[%s6 + $0x3c] sm:$0xf]
        %v2648 = vunpack.c.l.bf16 %v2632
        %v2649 = vunpack.c.l.bf16 %v2633
        %v2650 = vunpack.c.l.bf16 %v2634
        %v2651 = vunpack.c.l.bf16 %v2635
        %v2652 = vunpack.c.l.bf16 %v2636
        %v2653 = vunpack.c.l.bf16 %v2637
        %v2654 = vunpack.c.l.bf16 %v2638
        %v2655 = vunpack.c.l.bf16 %v2639
        %v2656 = vunpack.c.l.bf16 %v2640
        %v2657 = vunpack.c.l.bf16 %v2641
        %v2658 = vunpack.c.l.bf16 %v2642
        %v2659 = vunpack.c.l.bf16 %v2643
        %v2660 = vunpack.c.l.bf16 %v2644
        %v2661 = vunpack.c.l.bf16 %v2645
        %v2662 = vunpack.c.l.bf16 %v2646
        %v2663 = vunpack.c.l.bf16 %v2647
        %v2664 = vld [vmem:[#allocation2 + $0x10] sm:$0xff]
        %v2665 = vld [vmem:[#allocation2] sm:$0xff]
        %v2666 = vld [vmem:[#allocation2 + $0x10] ss:$0 sm:$0xff]
        %2668 = vrot.lane.b32.xlu0 %v2666, 32
        %v2669 = vpop.permute.xlu0 %2668
        %vm2671 = vcmask 253952
        %2672 = vst.msk [vmem:[#allocation4] sm:$0x1] %vm2671, %v2669
        %v2673 = vld [vmem:[#allocation2 + $0x20] ss:$0 sm:$0xff]
        %2675 = vrot.lane.b32.xlu0 %v2673, 32
        %v2676 = vpop.permute.xlu0 %2675
        %2678 = vst.msk [vmem:[#allocation4 + $0x4] sm:$0x1] %vm2671, %v2676
        %v2679 = vld [vmem:[#allocation2 + $0x18] ss:$0 sm:$0xff]
        %2680 = vst.msk [vmem:[#allocation4 + $0x1] sm:$0x1] %vm2671, %v2679
        %v2681 = vld [vmem:[#allocation2 + $0x28] ss:$0 sm:$0xff]
        %2682 = vst.msk [vmem:[#allocation4 + $0x5] sm:$0x1] %vm2671, %v2681
        %v2683 = vld [vmem:[#allocation2 + $0x18] ss:$0 sm:$0xff]
        %2685 = vrot.lane.b32.xlu0 %v2683, 96
        %v2686 = vpop.permute.xlu0 %2685
        %2688 = vst.msk [vmem:[#allocation4 + $0x2] sm:$0x1] %vm2671, %v2686
        %v2689 = vld [vmem:[#allocation2 + $0x28] ss:$0 sm:$0xff]
        %2691 = vrot.lane.b32.xlu0 %v2689, 96
        %v2692 = vpop.permute.xlu0 %2691
        %2694 = vst.msk [vmem:[#allocation4 + $0x6] sm:$0x1] %vm2671, %v2692
        %v2695 = vld [vmem:[#allocation2 + $0x18] ss:$0 sm:$0xff]
        %2697 = vrot.lane.b32.xlu0 %v2695, 64
        %v2698 = vpop.permute.xlu0 %2697
        %2700 = vst.msk [vmem:[#allocation4 + $0x3] sm:$0x1] %vm2671, %v2698
        %v2701 = vld [vmem:[#allocation2 + $0x28] ss:$0 sm:$0xff]
        %2703 = vrot.lane.b32.xlu0 %v2701, 64
        %v2704 = vpop.permute.xlu0 %2703
        %2706 = vst.msk [vmem:[#allocation4 + $0x7] sm:$0x1] %vm2671, %v2704
        %v2707 = vld [vmem:[#allocation4] sm:$0xff]
        %v2709 = vcombine.high %v2707, %v2707
        %v2711 = vunpack.c.l.s4 1966171168
        %v2712 = vunpack.c.0.s8 %v2711
        %v2713 = vlaneseq
        %v2714 = vshrl.u32 %v2713, 7
        %v2715 = vsub.s32 %v2712, %v2714
        %v2716 = vrot.slane %v2707, %v2715
        %v2718 = vunpack.c.l.s4 1966171168
        %v2719 = vunpack.c.0.s8 %v2718
        %v2720 = vlaneseq
        %v2721 = vshrl.u32 %v2720, 7
        %v2722 = vsub.s32 %v2719, %v2721
        %v2723 = vrot.slane %v2709, %v2722
        %v2724 = vcombine.high %v2716, %v2716
        %v2725 = vcombine.high %v2723, %v2723
        %v2727 = vunpack.c.l.s4 1966171168
        %v2728 = vunpack.c.0.s8 %v2727
        %v2729 = vlaneseq
        %v2730 = vshrl.u32 %v2729, 7
        %v2731 = vsub.s32 %v2728, %v2730
        %v2732 = vrot.slane %v2716, %v2731
        %v2734 = vunpack.c.l.s4 1966171168
        %v2735 = vunpack.c.0.s8 %v2734
        %v2736 = vlaneseq
        %v2737 = vshrl.u32 %v2736, 7
        %v2738 = vsub.s32 %v2735, %v2737
        %v2739 = vrot.slane %v2723, %v2738
        %v2741 = vunpack.c.l.s4 1966171168
        %v2742 = vunpack.c.0.s8 %v2741
        %v2743 = vlaneseq
        %v2744 = vshrl.u32 %v2743, 7
        %v2745 = vsub.s32 %v2742, %v2744
        %v2746 = vrot.slane %v2724, %v2745
        %v2748 = vunpack.c.l.s4 1966171168
        %v2749 = vunpack.c.0.s8 %v2748
        %v2750 = vlaneseq
        %v2751 = vshrl.u32 %v2750, 7
        %v2752 = vsub.s32 %v2749, %v2751
        %v2753 = vrot.slane %v2725, %v2752
        %v2754 = vcombine.high %v2732, %v2732
        %v2755 = vcombine.high %v2739, %v2739
        %v2756 = vcombine.high %v2746, %v2746
        %v2757 = vcombine.high %v2753, %v2753
        %v2758 = vlaneseq
        %v2759 = vshrl.u32 %v2758, 7
        %v2760 = vsub.s32 0, %v2759
        %v2761 = vrot.slane %v2732, %v2760
        %v2762 = vlaneseq
        %v2763 = vshrl.u32 %v2762, 7
        %v2764 = vsub.s32 0, %v2763
        %v2765 = vrot.slane %v2746, %v2764
        %v2766 = vlaneseq
        %v2767 = vshrl.u32 %v2766, 7
        %v2768 = vsub.s32 0, %v2767
        %v2769 = vrot.slane %v2754, %v2768
        %v2770 = vlaneseq
        %v2771 = vshrl.u32 %v2770, 7
        %v2772 = vsub.s32 0, %v2771
        %v2773 = vrot.slane %v2756, %v2772
        %v2774 = vlaneseq
        %v2775 = vshrl.u32 %v2774, 7
        %v2776 = vsub.s32 0, %v2775
        %v2777 = vrot.slane %v2739, %v2776
        %v2778 = vlaneseq
        %v2779 = vshrl.u32 %v2778, 7
        %v2780 = vsub.s32 0, %v2779
        %v2781 = vrot.slane %v2753, %v2780
        %v2782 = vlaneseq
        %v2783 = vshrl.u32 %v2782, 7
        %v2784 = vsub.s32 0, %v2783
        %v2785 = vrot.slane %v2755, %v2784
        %v2786 = vlaneseq
        %v2787 = vshrl.u32 %v2786, 7
        %v2788 = vsub.s32 0, %v2787
        %v2789 = vrot.slane %v2757, %v2788
        %v2798 = vmul.f32 %v2761, %v2648
        %v2799 = vmul.f32 %v2761, %v2649
        %v2800 = vmul.f32 %v2765, %v2650
        %v2801 = vmul.f32 %v2765, %v2651
        %v2802 = vmul.f32 %v2769, %v2652
        %v2803 = vmul.f32 %v2769, %v2653
        %v2804 = vmul.f32 %v2773, %v2654
        %v2805 = vmul.f32 %v2773, %v2655
        %v2806 = vmul.f32 %v2777, %v2656
        %v2807 = vmul.f32 %v2777, %v2657
        %v2808 = vmul.f32 %v2781, %v2658
        %v2809 = vmul.f32 %v2781, %v2659
        %v2810 = vmul.f32 %v2785, %v2660
        %v2811 = vmul.f32 %v2785, %v2661
        %v2812 = vmul.f32 %v2789, %v2662
        %v2813 = vmul.f32 %v2789, %v2663
        %v2814 = vsel %vm590, %v2798, 0.0
        %2815 = vadd.xlane.f32.xlu0 %v2814
        %v2816 = vpop.xlane.xlu0 %2815
        %v2817 = vsel %vm590, %v2799, 0.0
        %2818 = vadd.xlane.f32.xlu0 %v2817
        %v2819 = vpop.xlane.xlu0 %2818
        %v2820 = vsel %vm590, %v2800, 0.0
        %2821 = vadd.xlane.f32.xlu0 %v2820
        %v2822 = vpop.xlane.xlu0 %2821
        %v2823 = vsel %vm590, %v2801, 0.0
        %2824 = vadd.xlane.f32.xlu0 %v2823
        %v2825 = vpop.xlane.xlu0 %2824
        %v2826 = vsel %vm590, %v2802, 0.0
        %2827 = vadd.xlane.f32.xlu0 %v2826
        %v2828 = vpop.xlane.xlu0 %2827
        %v2829 = vsel %vm590, %v2803, 0.0
        %2830 = vadd.xlane.f32.xlu0 %v2829
        %v2831 = vpop.xlane.xlu0 %2830
        %v2832 = vsel %vm590, %v2804, 0.0
        %2833 = vadd.xlane.f32.xlu0 %v2832
        %v2834 = vpop.xlane.xlu0 %2833
        %v2835 = vsel %vm590, %v2805, 0.0
        %2836 = vadd.xlane.f32.xlu0 %v2835
        %v2837 = vpop.xlane.xlu0 %2836
        %v2838 = vsel %vm590, %v2806, 0.0
        %2839 = vadd.xlane.f32.xlu0 %v2838
        %v2840 = vpop.xlane.xlu0 %2839
        %v2841 = vsel %vm590, %v2807, 0.0
        %2842 = vadd.xlane.f32.xlu0 %v2841
        %v2843 = vpop.xlane.xlu0 %2842
        %v2844 = vsel %vm590, %v2808, 0.0
        %2845 = vadd.xlane.f32.xlu0 %v2844
        %v2846 = vpop.xlane.xlu0 %2845
        %v2847 = vsel %vm590, %v2809, 0.0
        %2848 = vadd.xlane.f32.xlu0 %v2847
        %v2849 = vpop.xlane.xlu0 %2848
        %v2850 = vsel %vm590, %v2810, 0.0
        %2851 = vadd.xlane.f32.xlu0 %v2850
        %v2852 = vpop.xlane.xlu0 %2851
        %v2853 = vsel %vm590, %v2811, 0.0
        %2854 = vadd.xlane.f32.xlu0 %v2853
        %v2855 = vpop.xlane.xlu0 %2854
        %v2856 = vsel %vm590, %v2812, 0.0
        %2857 = vadd.xlane.f32.xlu0 %v2856
        %v2858 = vpop.xlane.xlu0 %2857
        %v2859 = vsel %vm590, %v2813, 0.0
        %2860 = vadd.xlane.f32.xlu0 %v2859
        %v2861 = vpop.xlane.xlu0 %2860
        %v2862 = vld [vmem:[%s535] sm:$0xff]
        %v2864 = vlaneseq
        %v2865 = vshrl.u32 %v2864, 7
        %v2866 = vsub.s32 0, %v2865
        %v2867 = vrot.slane %v2862, %v2866
        %2869 = vbcast.lane.b32.xlu0 %v2867, 256
        %v2870 = vpop.permute.xlu0 %2869
        %s2872 = sor.u32 256, 8
        %2873 = vbcast.lane.b32.xlu0 %v2867, %s2872
        %v2874 = vpop.permute.xlu0 %2873
        %v2875 = vlaneseq
        %v2876 = vshrl.u32 %v2875, 7
        %v2877 = vsub.s32 1, %v2876
        %v2878 = vrot.slane %v2862, %v2877
        %2880 = vbcast.lane.b32.xlu0 %v2878, 256
        %v2881 = vpop.permute.xlu0 %2880
        %s2883 = sor.u32 256, 8
        %2884 = vbcast.lane.b32.xlu0 %v2878, %s2883
        %v2885 = vpop.permute.xlu0 %2884
        %v2886 = vlaneseq
        %v2887 = vshrl.u32 %v2886, 7
        %v2888 = vsub.s32 2, %v2887
        %v2889 = vrot.slane %v2862, %v2888
        %2891 = vbcast.lane.b32.xlu0 %v2889, 256
        %v2892 = vpop.permute.xlu0 %2891
        %s2894 = sor.u32 256, 8
        %2895 = vbcast.lane.b32.xlu0 %v2889, %s2894
        %v2896 = vpop.permute.xlu0 %2895
        %v2897 = vlaneseq
        %v2898 = vshrl.u32 %v2897, 7
        %v2899 = vsub.s32 3, %v2898
        %v2900 = vrot.slane %v2862, %v2899
        %2902 = vbcast.lane.b32.xlu0 %v2900, 256
        %v2903 = vpop.permute.xlu0 %2902
        %s2905 = sor.u32 256, 8
        %2906 = vbcast.lane.b32.xlu0 %v2900, %s2905
        %v2907 = vpop.permute.xlu0 %2906
        %v2908 = vlaneseq
        %v2909 = vshrl.u32 %v2908, 7
        %v2910 = vsub.s32 4, %v2909
        %v2911 = vrot.slane %v2862, %v2910
        %2913 = vbcast.lane.b32.xlu0 %v2911, 256
        %v2914 = vpop.permute.xlu0 %2913
        %s2916 = sor.u32 256, 8
        %2917 = vbcast.lane.b32.xlu0 %v2911, %s2916
        %v2918 = vpop.permute.xlu0 %2917
        %v2919 = vlaneseq
        %v2920 = vshrl.u32 %v2919, 7
        %v2921 = vsub.s32 5, %v2920
        %v2922 = vrot.slane %v2862, %v2921
        %2924 = vbcast.lane.b32.xlu0 %v2922, 256
        %v2925 = vpop.permute.xlu0 %2924
        %s2927 = sor.u32 256, 8
        %2928 = vbcast.lane.b32.xlu0 %v2922, %s2927
        %v2929 = vpop.permute.xlu0 %2928
        %v2930 = vlaneseq
        %v2931 = vshrl.u32 %v2930, 7
        %v2932 = vsub.s32 6, %v2931
        %v2933 = vrot.slane %v2862, %v2932
        %2935 = vbcast.lane.b32.xlu0 %v2933, 256
        %v2936 = vpop.permute.xlu0 %2935
        %s2938 = sor.u32 256, 8
        %2939 = vbcast.lane.b32.xlu0 %v2933, %s2938
        %v2940 = vpop.permute.xlu0 %2939
        %v2941 = vlaneseq
        %v2942 = vshrl.u32 %v2941, 7
        %v2943 = vsub.s32 7, %v2942
        %v2944 = vrot.slane %v2862, %v2943
        %2946 = vbcast.lane.b32.xlu0 %v2944, 256
        %v2947 = vpop.permute.xlu0 %2946
        %s2949 = sor.u32 256, 8
        %2950 = vbcast.lane.b32.xlu0 %v2944, %s2949
        %v2951 = vpop.permute.xlu0 %2950
        %v2968 = vadd.f32 %v2816, %v2870
        %v2969 = vadd.f32 %v2819, %v2874
        %v2970 = vadd.f32 %v2822, %v2881
        %v2971 = vadd.f32 %v2825, %v2885
        %v2972 = vadd.f32 %v2828, %v2892
        %v2973 = vadd.f32 %v2831, %v2896
        %v2974 = vadd.f32 %v2834, %v2903
        %v2975 = vadd.f32 %v2837, %v2907
        %v2976 = vadd.f32 %v2840, %v2914
        %v2977 = vadd.f32 %v2843, %v2918
        %v2978 = vadd.f32 %v2846, %v2925
        %v2979 = vadd.f32 %v2849, %v2929
        %v2980 = vadd.f32 %v2852, %v2936
        %v2981 = vadd.f32 %v2855, %v2940
        %v2982 = vadd.f32 %v2858, %v2947
        %v2983 = vadd.f32 %v2861, %v2951
        %2986 = vrot.lane.b32.xlu0 %v2665, 96
        %v2987 = vpop.permute.xlu0 %2986
        %2988 = vrot.lane.b32.xlu0 %v2664, 96
        %v2989 = vpop.permute.xlu0 %2988
        %3006 = vset.pattern.permute.xlu0 0
        %3007 = vperm.xlu0 %3006, %v2968
        %v3008 = vpop.permute.xlu0 %3007
        %3009 = vset.pattern.permute.xlu0 0
        %3010 = vperm.xlu0 %3009, %v2969
        %v3011 = vpop.permute.xlu0 %3010
        %3012 = vset.pattern.permute.xlu0 0
        %3013 = vperm.xlu0 %3012, %v2970
        %v3014 = vpop.permute.xlu0 %3013
        %3015 = vset.pattern.permute.xlu0 0
        %3016 = vperm.xlu0 %3015, %v2971
        %v3017 = vpop.permute.xlu0 %3016
        %3018 = vset.pattern.permute.xlu0 0
        %3019 = vperm.xlu0 %3018, %v2972
        %v3020 = vpop.permute.xlu0 %3019
        %3021 = vset.pattern.permute.xlu0 0
        %3022 = vperm.xlu0 %3021, %v2973
        %v3023 = vpop.permute.xlu0 %3022
        %3024 = vset.pattern.permute.xlu0 0
        %3025 = vperm.xlu0 %3024, %v2974
        %v3026 = vpop.permute.xlu0 %3025
        %3027 = vset.pattern.permute.xlu0 0
        %3028 = vperm.xlu0 %3027, %v2975
        %v3029 = vpop.permute.xlu0 %3028
        %3030 = vset.pattern.permute.xlu0 0
        %3031 = vperm.xlu0 %3030, %v2976
        %v3032 = vpop.permute.xlu0 %3031
        %3033 = vset.pattern.permute.xlu0 0
        %3034 = vperm.xlu0 %3033, %v2977
        %v3035 = vpop.permute.xlu0 %3034
        %3036 = vset.pattern.permute.xlu0 0
        %3037 = vperm.xlu0 %3036, %v2978
        %v3038 = vpop.permute.xlu0 %3037
        %3039 = vset.pattern.permute.xlu0 0
        %3040 = vperm.xlu0 %3039, %v2979
        %v3041 = vpop.permute.xlu0 %3040
        %3042 = vset.pattern.permute.xlu0 0
        %3043 = vperm.xlu0 %3042, %v2980
        %v3044 = vpop.permute.xlu0 %3043
        %3045 = vset.pattern.permute.xlu0 0
        %3046 = vperm.xlu0 %3045, %v2981
        %v3047 = vpop.permute.xlu0 %3046
        %3048 = vset.pattern.permute.xlu0 0
        %3049 = vperm.xlu0 %3048, %v2982
        %v3050 = vpop.permute.xlu0 %3049
        %3051 = vset.pattern.permute.xlu0 0
        %3052 = vperm.xlu0 %3051, %v2983
        %v3053 = vpop.permute.xlu0 %3052
        %v3054 = vlaneseq
        %v3055 = vshrl.u32 %v3054, 7
        %v3056 = vsub.s32 %v979, %v3055
        %v3057 = vrot.slane %v3008, %v3056
        %v3058 = vadd.s32 %v979, 4294967288
        %v3059 = vlaneseq
        %v3060 = vshrl.u32 %v3059, 7
        %v3061 = vsub.s32 %v3058, %v3060
        %v3062 = vrot.slane %v3011, %v3061
        %v3063 = vsel %vm1632, %v3062, %v3057
        %v3064 = vlaneseq
        %v3065 = vshrl.u32 %v3064, 7
        %v3066 = vsub.s32 %v979, %v3065
        %v3067 = vrot.slane %v3014, %v3066
        %v3068 = vlaneseq
        %v3069 = vshrl.u32 %v3068, 7
        %v3070 = vsub.s32 %v3058, %v3069
        %v3071 = vrot.slane %v3017, %v3070
        %v3072 = vsel %vm1632, %v3071, %v3067
        %v3073 = vlaneseq
        %v3074 = vshrl.u32 %v3073, 7
        %v3075 = vsub.s32 %v979, %v3074
        %v3076 = vrot.slane %v3020, %v3075
        %v3077 = vlaneseq
        %v3078 = vshrl.u32 %v3077, 7
        %v3079 = vsub.s32 %v3058, %v3078
        %v3080 = vrot.slane %v3023, %v3079
        %v3081 = vsel %vm1632, %v3080, %v3076
        %v3082 = vlaneseq
        %v3083 = vshrl.u32 %v3082, 7
        %v3084 = vsub.s32 %v979, %v3083
        %v3085 = vrot.slane %v3026, %v3084
        %v3086 = vlaneseq
        %v3087 = vshrl.u32 %v3086, 7
        %v3088 = vsub.s32 %v3058, %v3087
        %v3089 = vrot.slane %v3029, %v3088
        %v3090 = vsel %vm1632, %v3089, %v3085
        %v3091 = vlaneseq
        %v3092 = vshrl.u32 %v3091, 7
        %v3093 = vsub.s32 %v979, %v3092
        %v3094 = vrot.slane %v3032, %v3093
        %v3095 = vlaneseq
        %v3096 = vshrl.u32 %v3095, 7
        %v3097 = vsub.s32 %v3058, %v3096
        %v3098 = vrot.slane %v3035, %v3097
        %v3099 = vsel %vm1632, %v3098, %v3094
        %v3100 = vlaneseq
        %v3101 = vshrl.u32 %v3100, 7
        %v3102 = vsub.s32 %v979, %v3101
        %v3103 = vrot.slane %v3038, %v3102
        %v3104 = vlaneseq
        %v3105 = vshrl.u32 %v3104, 7
        %v3106 = vsub.s32 %v3058, %v3105
        %v3107 = vrot.slane %v3041, %v3106
        %v3108 = vsel %vm1632, %v3107, %v3103
        %v3109 = vlaneseq
        %v3110 = vshrl.u32 %v3109, 7
        %v3111 = vsub.s32 %v979, %v3110
        %v3112 = vrot.slane %v3044, %v3111
        %v3113 = vlaneseq
        %v3114 = vshrl.u32 %v3113, 7
        %v3115 = vsub.s32 %v3058, %v3114
        %v3116 = vrot.slane %v3047, %v3115
        %v3117 = vsel %vm1632, %v3116, %v3112
        %v3118 = vlaneseq
        %v3119 = vshrl.u32 %v3118, 7
        %v3120 = vsub.s32 %v979, %v3119
        %v3121 = vrot.slane %v3050, %v3120
        %v3122 = vlaneseq
        %v3123 = vshrl.u32 %v3122, 7
        %v3124 = vsub.s32 %v3058, %v3123
        %v3125 = vrot.slane %v3053, %v3124
        %v3126 = vsel %vm1632, %v3125, %v3121
        %v3127 = vsel %vm1012, %v3072, %v3063
        %v3128 = vsel %vm1014, %v3081, %v3127
        %v3129 = vsel %vm1016, %v3090, %v3128
        %v3130 = vsel %vm1018, %v3099, %v3129
        %v3131 = vsel %vm1020, %v3108, %v3130
        %v3132 = vsel %vm1022, %v3117, %v3131
        %v3133 = vsel %vm1024, %v3126, %v3132
        %v3135 = vsel %vm1027, %v2664, 0
        %v3137 = vsel %vm1027, %v2987, 0
        %v3139 = vsel %vm1027, %v2989, 0
        %3141 = vmatprep.subr.mxu0 0.0
        %3142 = vmatpush1.xpose.msra.mxu0 0.0
        %3143 = vmatprep.subr.mxu0 0.0
        %3144 = vmatpush1.xpose.msra.mxu0 0.0
        %3145 = vmatprep.subr.mxu0 0.0
        %3146 = vmatpush1.xpose.msra.mxu0 0.0
        %3147 = vmatprep.subr.mxu0 0.0
        %3148 = vmatpush1.xpose.msra.mxu0 0.0
        %3149 = vmatprep.subr.mxu0 0.0
        %3150 = vmatpush1.xpose.msra.mxu0 0.0
        %3151 = vmatprep.subr.mxu0 0.0
        %3152 = vmatpush1.xpose.msra.mxu0 0.0
        %3153 = vmatprep.subr.mxu0 0.0
        %3154 = vmatpush1.xpose.msra.mxu0 0.0
        %3155 = vmatprep.subr.mxu0 0.0
        %3156 = vmatpush1.xpose.msra.mxu0 0.0
        %3157 = vmatprep.subr.mxu0 0.0
        %3158 = vmatpush1.xpose.msra.mxu0 0.0
        %3159 = vmatprep.subr.mxu0 0.0
        %3160 = vmatpush1.xpose.msra.mxu0 0.0
        %3161 = vmatprep.subr.mxu0 0.0
        %3162 = vmatpush1.xpose.msra.mxu0 0.0
        %3163 = vmatprep.subr.mxu0 0.0
        %3164 = vmatpush1.xpose.msra.mxu0 0.0
        %3165 = vmatprep.subr.mxu0 0.0
        %3166 = vmatpush1.xpose.msra.mxu0 0.0
        %3167 = vmatprep.subr.mxu0 0.0
        %3168 = vmatpush1.xpose.msra.mxu0 0.0
        %3169 = vmatprep.subr.mxu0 0.0
        %3170 = vmatpush1.xpose.msra.mxu0 %v3139
        %3171 = vmatprep.subr.mxu0 0.0
        %3172 = vmatpush1.xpose.msra.mxu0 %v3137
        %3173 = vmatprep.subr.mxu0 0.0
        %3174 = vmatpush2.xpose.msra.mxu0 0.0
        %3175 = vmatprep.subr.mxu0 0.0
        %3176 = vmatpush2.xpose.msra.mxu0 0.0
        %3177 = vmatprep.subr.mxu0 0.0
        %3178 = vmatpush2.xpose.msra.mxu0 0.0
        %3179 = vmatprep.subr.mxu0 0.0
        %3180 = vmatpush2.xpose.msra.mxu0 0.0
        %3181 = vmatprep.subr.mxu0 0.0
        %3182 = vmatpush2.xpose.msra.mxu0 0.0
        %3183 = vmatprep.subr.mxu0 0.0
        %3184 = vmatpush2.xpose.msra.mxu0 0.0
        %3185 = vmatprep.subr.mxu0 0.0
        %3186 = vmatpush2.xpose.msra.mxu0 0.0
        %3187 = vmatprep.subr.mxu0 0.0
        %3188 = vmatpush2.xpose.msra.mxu0 0.0
        %3189 = vmatprep.subr.mxu0 0.0
        %3190 = vmatpush2.xpose.msra.mxu0 0.0
        %3191 = vmatprep.subr.mxu0 0.0
        %3192 = vmatpush2.xpose.msra.mxu0 0.0
        %3193 = vmatprep.subr.mxu0 0.0
        %3194 = vmatpush2.xpose.msra.mxu0 0.0
        %3195 = vmatprep.subr.mxu0 0.0
        %3196 = vmatpush2.xpose.msra.mxu0 0.0
        %3197 = vmatprep.subr.mxu0 0.0
        %3198 = vmatpush2.xpose.msra.mxu0 0.0
        %3199 = vmatprep.subr.mxu0 0.0
        %3200 = vmatpush2.xpose.msra.mxu0 0.0
        %3201 = vmatprep.subr.mxu0 0.0
        %3202 = vmatpush2.xpose.msra.mxu0 0.0
        %3203 = vmatprep.subr.mxu0 0.0
        %3204 = vmatpush2.xpose.msra.mxu0 0.0
        %3205 = vmatprep.mubr.f32.mxu0 0.0
        %3206 = vmatmul.mubr.f32.gmra.mxu0 %v3135
        %v3207 = vpop.f32.mrf.mxu0
        %v3208 = vadd.f32 %v3133, %v3207
        %v3209 = vpop.f32.mrf.mxu0
        %3210 = vdwg.mxu0
        %vm3211 = vcmask 130048
        %v3212 = vsel %vm3211, %v3208, -inf
        %3213 = vmax.xlane.f32.xlu0 %v3212
        %v3214 = vpop.xlane.xlu0 %3213
        %v3215 = vsub.f32 %v3208, %v3214
        %v3216 = vmul.f32 %v3215, 1.442695
        %v3217 = vpow.pop %v3216
        %v3218 = vsel %vm3211, %v3217, 0.0
        %3219 = vadd.xlane.f32.xlu0 %v3218
        %v3220 = vpop.xlane.xlu0 %3219
        %v3221 = vrcp.pop %v3220
        %v3222 = vmul.f32 %v3217, %v3221
        %3223 = vst.msk [vmem:[%s500] sm:$0xff] %vm3211, %v3222
        %3224 = vrot.lane.b32.xlu0 %v2665, 64
        %v3225 = vpop.permute.xlu0 %3224
        %3226 = vrot.lane.b32.xlu0 %v2664, 64
        %v3227 = vpop.permute.xlu0 %3226
        %v3231 = vsel %vm3211, %v3222, 0
        %3233 = vmatprep.subr.mxu0 0.0
        %3234 = vmatpush1.msra.mxu0 0.0
        %3235 = vmatprep.subr.mxu0 0.0
        %3236 = vmatpush1.msra.mxu0 0.0
        %3237 = vmatprep.subr.mxu0 0.0
        %3238 = vmatpush1.msra.mxu0 0.0
        %3239 = vmatprep.subr.mxu0 0.0
        %3240 = vmatpush1.msra.mxu0 0.0
        %3241 = vmatprep.subr.mxu0 0.0
        %3242 = vmatpush1.msra.mxu0 0.0
        %3243 = vmatprep.subr.mxu0 0.0
        %3244 = vmatpush1.msra.mxu0 0.0
        %3245 = vmatprep.subr.mxu0 0.0
        %3246 = vmatpush1.msra.mxu0 0.0
        %3247 = vmatprep.subr.mxu0 0.0
        %3248 = vmatpush1.msra.mxu0 0.0
        %3249 = vmatprep.subr.mxu0 0.0
        %3250 = vmatpush1.msra.mxu0 0.0
        %3251 = vmatprep.subr.mxu0 0.0
        %3252 = vmatpush1.msra.mxu0 0.0
        %3253 = vmatprep.subr.mxu0 0.0
        %3254 = vmatpush1.msra.mxu0 0.0
        %3255 = vmatprep.subr.mxu0 0.0
        %3256 = vmatpush1.msra.mxu0 0.0
        %3257 = vmatprep.subr.mxu0 0.0
        %3258 = vmatpush1.msra.mxu0 0.0
        %3259 = vmatprep.subr.mxu0 0.0
        %3260 = vmatpush1.msra.mxu0 0.0
        %3261 = vmatprep.subr.mxu0 0.0
        %3262 = vmatpush1.msra.mxu0 %v3227
        %3263 = vmatprep.subr.mxu0 0.0
        %3264 = vmatpush1.msra.mxu0 %v3225
        %3265 = vmatprep.subr.mxu0 0.0
        %3266 = vmatpush2.msra.mxu0 0.0
        %3267 = vmatprep.subr.mxu0 0.0
        %3268 = vmatpush2.msra.mxu0 0.0
        %3269 = vmatprep.subr.mxu0 0.0
        %3270 = vmatpush2.msra.mxu0 0.0
        %3271 = vmatprep.subr.mxu0 0.0
        %3272 = vmatpush2.msra.mxu0 0.0
        %3273 = vmatprep.subr.mxu0 0.0
        %3274 = vmatpush2.msra.mxu0 0.0
        %3275 = vmatprep.subr.mxu0 0.0
        %3276 = vmatpush2.msra.mxu0 0.0
        %3277 = vmatprep.subr.mxu0 0.0
        %3278 = vmatpush2.msra.mxu0 0.0
        %3279 = vmatprep.subr.mxu0 0.0
        %3280 = vmatpush2.msra.mxu0 0.0
        %3281 = vmatprep.subr.mxu0 0.0
        %3282 = vmatpush2.msra.mxu0 0.0
        %3283 = vmatprep.subr.mxu0 0.0
        %3284 = vmatpush2.msra.mxu0 0.0
        %3285 = vmatprep.subr.mxu0 0.0
        %3286 = vmatpush2.msra.mxu0 0.0
        %3287 = vmatprep.subr.mxu0 0.0
        %3288 = vmatpush2.msra.mxu0 0.0
        %3289 = vmatprep.subr.mxu0 0.0
        %3290 = vmatpush2.msra.mxu0 0.0
        %3291 = vmatprep.subr.mxu0 0.0
        %3292 = vmatpush2.msra.mxu0 0.0
        %3293 = vmatprep.subr.mxu0 0.0
        %3294 = vmatpush2.msra.mxu0 0.0
        %3295 = vmatprep.subr.mxu0 0.0
        %3296 = vmatpush2.msra.mxu0 0.0
        %3297 = vmatprep.mubr.f32.mxu0 0.0
        %3298 = vmatmul.mubr.f32.gmra.mxu0 %v3231
        %v3299 = vpop.f32.mrf.mxu0
        %v3300 = vadd.f32 0.0, %v3299
        %v3301 = vpop.f32.mrf.mxu0
        %3302 = vdwg.mxu0
        %3303 = vst.msk [vmem:[#allocation3 + $0x8] sm:$0xff] %vm1027, %v3300
        %v3304 = vld [vmem:[#allocation2 + $0x10] sm:$0xff]
        %v3305 = vld [vmem:[#allocation2] sm:$0xff]
        %v3306 = vld [vmem:[#allocation2 + $0x11] ss:$0 sm:$0xff]
        %3308 = vrot.lane.b32.xlu0 %v3306, 32
        %v3309 = vpop.permute.xlu0 %3308
        %3311 = vst.msk [vmem:[#allocation4] sm:$0x1] %vm2671, %v3309
        %v3312 = vld [vmem:[#allocation2 + $0x21] ss:$0 sm:$0xff]
        %3314 = vrot.lane.b32.xlu0 %v3312, 32
        %v3315 = vpop.permute.xlu0 %3314
        %3317 = vst.msk [vmem:[#allocation4 + $0x4] sm:$0x1] %vm2671, %v3315
        %v3318 = vld [vmem:[#allocation2 + $0x19] ss:$0 sm:$0xff]
        %3319 = vst.msk [vmem:[#allocation4 + $0x1] sm:$0x1] %vm2671, %v3318
        %v3320 = vld [vmem:[#allocation2 + $0x29] ss:$0 sm:$0xff]
        %3321 = vst.msk [vmem:[#allocation4 + $0x5] sm:$0x1] %vm2671, %v3320
        %v3322 = vld [vmem:[#allocation2 + $0x19] ss:$0 sm:$0xff]
        %3324 = vrot.lane.b32.xlu0 %v3322, 96
        %v3325 = vpop.permute.xlu0 %3324
        %3327 = vst.msk [vmem:[#allocation4 + $0x2] sm:$0x1] %vm2671, %v3325
        %v3328 = vld [vmem:[#allocation2 + $0x29] ss:$0 sm:$0xff]
        %3330 = vrot.lane.b32.xlu0 %v3328, 96
        %v3331 = vpop.permute.xlu0 %3330
        %3333 = vst.msk [vmem:[#allocation4 + $0x6] sm:$0x1] %vm2671, %v3331
        %v3334 = vld [vmem:[#allocation2 + $0x19] ss:$0 sm:$0xff]
        %3336 = vrot.lane.b32.xlu0 %v3334, 64
        %v3337 = vpop.permute.xlu0 %3336
        %3339 = vst.msk [vmem:[#allocation4 + $0x3] sm:$0x1] %vm2671, %v3337
        %v3340 = vld [vmem:[#allocation2 + $0x29] ss:$0 sm:$0xff]
        %3342 = vrot.lane.b32.xlu0 %v3340, 64
        %v3343 = vpop.permute.xlu0 %3342
        %3345 = vst.msk [vmem:[#allocation4 + $0x7] sm:$0x1] %vm2671, %v3343
        %v3346 = vld [vmem:[#allocation4] sm:$0xff]
        %v3348 = vcombine.high %v3346, %v3346
        %v3350 = vunpack.c.l.s4 1966171168
        %v3351 = vunpack.c.0.s8 %v3350
        %v3352 = vlaneseq
        %v3353 = vshrl.u32 %v3352, 7
        %v3354 = vsub.s32 %v3351, %v3353
        %v3355 = vrot.slane %v3346, %v3354
        %v3357 = vunpack.c.l.s4 1966171168
        %v3358 = vunpack.c.0.s8 %v3357
        %v3359 = vlaneseq
        %v3360 = vshrl.u32 %v3359, 7
        %v3361 = vsub.s32 %v3358, %v3360
        %v3362 = vrot.slane %v3348, %v3361
        %v3363 = vcombine.high %v3355, %v3355
        %v3364 = vcombine.high %v3362, %v3362
        %v3366 = vunpack.c.l.s4 1966171168
        %v3367 = vunpack.c.0.s8 %v3366
        %v3368 = vlaneseq
        %v3369 = vshrl.u32 %v3368, 7
        %v3370 = vsub.s32 %v3367, %v3369
        %v3371 = vrot.slane %v3355, %v3370
        %v3373 = vunpack.c.l.s4 1966171168
        %v3374 = vunpack.c.0.s8 %v3373
        %v3375 = vlaneseq
        %v3376 = vshrl.u32 %v3375, 7
        %v3377 = vsub.s32 %v3374, %v3376
        %v3378 = vrot.slane %v3362, %v3377
        %v3380 = vunpack.c.l.s4 1966171168
        %v3381 = vunpack.c.0.s8 %v3380
        %v3382 = vlaneseq
        %v3383 = vshrl.u32 %v3382, 7
        %v3384 = vsub.s32 %v3381, %v3383
        %v3385 = vrot.slane %v3363, %v3384
        %v3387 = vunpack.c.l.s4 1966171168
        %v3388 = vunpack.c.0.s8 %v3387
        %v3389 = vlaneseq
        %v3390 = vshrl.u32 %v3389, 7
        %v3391 = vsub.s32 %v3388, %v3390
        %v3392 = vrot.slane %v3364, %v3391
        %v3393 = vcombine.high %v3371, %v3371
        %v3394 = vcombine.high %v3378, %v3378
        %v3395 = vcombine.high %v3385, %v3385
        %v3396 = vcombine.high %v3392, %v3392
        %v3397 = vlaneseq
        %v3398 = vshrl.u32 %v3397, 7
        %v3399 = vsub.s32 0, %v3398
        %v3400 = vrot.slane %v3371, %v3399
        %v3401 = vlaneseq
        %v3402 = vshrl.u32 %v3401, 7
        %v3403 = vsub.s32 0, %v3402
        %v3404 = vrot.slane %v3385, %v3403
        %v3405 = vlaneseq
        %v3406 = vshrl.u32 %v3405, 7
        %v3407 = vsub.s32 0, %v3406
        %v3408 = vrot.slane %v3393, %v3407
        %v3409 = vlaneseq
        %v3410 = vshrl.u32 %v3409, 7
        %v3411 = vsub.s32 0, %v3410
        %v3412 = vrot.slane %v3395, %v3411
        %v3413 = vlaneseq
        %v3414 = vshrl.u32 %v3413, 7
        %v3415 = vsub.s32 0, %v3414
        %v3416 = vrot.slane %v3378, %v3415
        %v3417 = vlaneseq
        %v3418 = vshrl.u32 %v3417, 7
        %v3419 = vsub.s32 0, %v3418
        %v3420 = vrot.slane %v3392, %v3419
        %v3421 = vlaneseq
        %v3422 = vshrl.u32 %v3421, 7
        %v3423 = vsub.s32 0, %v3422
        %v3424 = vrot.slane %v3394, %v3423
        %v3425 = vlaneseq
        %v3426 = vshrl.u32 %v3425, 7
        %v3427 = vsub.s32 0, %v3426
        %v3428 = vrot.slane %v3396, %v3427
        %v3437 = vmul.f32 %v3400, %v2648
        %v3438 = vmul.f32 %v3400, %v2649
        %v3439 = vmul.f32 %v3404, %v2650
        %v3440 = vmul.f32 %v3404, %v2651
        %v3441 = vmul.f32 %v3408, %v2652
        %v3442 = vmul.f32 %v3408, %v2653
        %v3443 = vmul.f32 %v3412, %v2654
        %v3444 = vmul.f32 %v3412, %v2655
        %v3445 = vmul.f32 %v3416, %v2656
        %v3446 = vmul.f32 %v3416, %v2657
        %v3447 = vmul.f32 %v3420, %v2658
        %v3448 = vmul.f32 %v3420, %v2659
        %v3449 = vmul.f32 %v3424, %v2660
        %v3450 = vmul.f32 %v3424, %v2661
        %v3451 = vmul.f32 %v3428, %v2662
        %v3452 = vmul.f32 %v3428, %v2663
        %v3453 = vsel %vm590, %v3437, 0.0
        %3454 = vadd.xlane.f32.xlu0 %v3453
        %v3455 = vpop.xlane.xlu0 %3454
        %v3456 = vsel %vm590, %v3438, 0.0
        %3457 = vadd.xlane.f32.xlu0 %v3456
        %v3458 = vpop.xlane.xlu0 %3457
        %v3459 = vsel %vm590, %v3439, 0.0
        %3460 = vadd.xlane.f32.xlu0 %v3459
        %v3461 = vpop.xlane.xlu0 %3460
        %v3462 = vsel %vm590, %v3440, 0.0
        %3463 = vadd.xlane.f32.xlu0 %v3462
        %v3464 = vpop.xlane.xlu0 %3463
        %v3465 = vsel %vm590, %v3441, 0.0
        %3466 = vadd.xlane.f32.xlu0 %v3465
        %v3467 = vpop.xlane.xlu0 %3466
        %v3468 = vsel %vm590, %v3442, 0.0
        %3469 = vadd.xlane.f32.xlu0 %v3468
        %v3470 = vpop.xlane.xlu0 %3469
        %v3471 = vsel %vm590, %v3443, 0.0
        %3472 = vadd.xlane.f32.xlu0 %v3471
        %v3473 = vpop.xlane.xlu0 %3472
        %v3474 = vsel %vm590, %v3444, 0.0
        %3475 = vadd.xlane.f32.xlu0 %v3474
        %v3476 = vpop.xlane.xlu0 %3475
        %v3477 = vsel %vm590, %v3445, 0.0
        %3478 = vadd.xlane.f32.xlu0 %v3477
        %v3479 = vpop.xlane.xlu0 %3478
        %v3480 = vsel %vm590, %v3446, 0.0
        %3481 = vadd.xlane.f32.xlu0 %v3480
        %v3482 = vpop.xlane.xlu0 %3481
        %v3483 = vsel %vm590, %v3447, 0.0
        %3484 = vadd.xlane.f32.xlu0 %v3483
        %v3485 = vpop.xlane.xlu0 %3484
        %v3486 = vsel %vm590, %v3448, 0.0
        %3487 = vadd.xlane.f32.xlu0 %v3486
        %v3488 = vpop.xlane.xlu0 %3487
        %v3489 = vsel %vm590, %v3449, 0.0
        %3490 = vadd.xlane.f32.xlu0 %v3489
        %v3491 = vpop.xlane.xlu0 %3490
        %v3492 = vsel %vm590, %v3450, 0.0
        %3493 = vadd.xlane.f32.xlu0 %v3492
        %v3494 = vpop.xlane.xlu0 %3493
        %v3495 = vsel %vm590, %v3451, 0.0
        %3496 = vadd.xlane.f32.xlu0 %v3495
        %v3497 = vpop.xlane.xlu0 %3496
        %v3498 = vsel %vm590, %v3452, 0.0
        %3499 = vadd.xlane.f32.xlu0 %v3498
        %v3500 = vpop.xlane.xlu0 %3499
        %v3501 = vld [vmem:[%s535 + $0x10] sm:$0xff]
        %v3503 = vlaneseq
        %v3504 = vshrl.u32 %v3503, 7
        %v3505 = vsub.s32 0, %v3504
        %v3506 = vrot.slane %v3501, %v3505
        %3508 = vbcast.lane.b32.xlu0 %v3506, 256
        %v3509 = vpop.permute.xlu0 %3508
        %s3511 = sor.u32 256, 8
        %3512 = vbcast.lane.b32.xlu0 %v3506, %s3511
        %v3513 = vpop.permute.xlu0 %3512
        %v3514 = vlaneseq
        %v3515 = vshrl.u32 %v3514, 7
        %v3516 = vsub.s32 1, %v3515
        %v3517 = vrot.slane %v3501, %v3516
        %3519 = vbcast.lane.b32.xlu0 %v3517, 256
        %v3520 = vpop.permute.xlu0 %3519
        %s3522 = sor.u32 256, 8
        %3523 = vbcast.lane.b32.xlu0 %v3517, %s3522
        %v3524 = vpop.permute.xlu0 %3523
        %v3525 = vlaneseq
        %v3526 = vshrl.u32 %v3525, 7
        %v3527 = vsub.s32 2, %v3526
        %v3528 = vrot.slane %v3501, %v3527
        %3530 = vbcast.lane.b32.xlu0 %v3528, 256
        %v3531 = vpop.permute.xlu0 %3530
        %s3533 = sor.u32 256, 8
        %3534 = vbcast.lane.b32.xlu0 %v3528, %s3533
        %v3535 = vpop.permute.xlu0 %3534
        %v3536 = vlaneseq
        %v3537 = vshrl.u32 %v3536, 7
        %v3538 = vsub.s32 3, %v3537
        %v3539 = vrot.slane %v3501, %v3538
        %3541 = vbcast.lane.b32.xlu0 %v3539, 256
        %v3542 = vpop.permute.xlu0 %3541
        %s3544 = sor.u32 256, 8
        %3545 = vbcast.lane.b32.xlu0 %v3539, %s3544
        %v3546 = vpop.permute.xlu0 %3545
        %v3547 = vlaneseq
        %v3548 = vshrl.u32 %v3547, 7
        %v3549 = vsub.s32 4, %v3548
        %v3550 = vrot.slane %v3501, %v3549
        %3552 = vbcast.lane.b32.xlu0 %v3550, 256
        %v3553 = vpop.permute.xlu0 %3552
        %s3555 = sor.u32 256, 8
        %3556 = vbcast.lane.b32.xlu0 %v3550, %s3555
        %v3557 = vpop.permute.xlu0 %3556
        %v3558 = vlaneseq
        %v3559 = vshrl.u32 %v3558, 7
        %v3560 = vsub.s32 5, %v3559
        %v3561 = vrot.slane %v3501, %v3560
        %3563 = vbcast.lane.b32.xlu0 %v3561, 256
        %v3564 = vpop.permute.xlu0 %3563
        %s3566 = sor.u32 256, 8
        %3567 = vbcast.lane.b32.xlu0 %v3561, %s3566
        %v3568 = vpop.permute.xlu0 %3567
        %v3569 = vlaneseq
        %v3570 = vshrl.u32 %v3569, 7
        %v3571 = vsub.s32 6, %v3570
        %v3572 = vrot.slane %v3501, %v3571
        %3574 = vbcast.lane.b32.xlu0 %v3572, 256
        %v3575 = vpop.permute.xlu0 %3574
        %s3577 = sor.u32 256, 8
        %3578 = vbcast.lane.b32.xlu0 %v3572, %s3577
        %v3579 = vpop.permute.xlu0 %3578
        %v3580 = vlaneseq
        %v3581 = vshrl.u32 %v3580, 7
        %v3582 = vsub.s32 7, %v3581
        %v3583 = vrot.slane %v3501, %v3582
        %3585 = vbcast.lane.b32.xlu0 %v3583, 256
        %v3586 = vpop.permute.xlu0 %3585
        %s3588 = sor.u32 256, 8
        %3589 = vbcast.lane.b32.xlu0 %v3583, %s3588
        %v3590 = vpop.permute.xlu0 %3589
        %v3607 = vadd.f32 %v3455, %v3509
        %v3608 = vadd.f32 %v3458, %v3513
        %v3609 = vadd.f32 %v3461, %v3520
        %v3610 = vadd.f32 %v3464, %v3524
        %v3611 = vadd.f32 %v3467, %v3531
        %v3612 = vadd.f32 %v3470, %v3535
        %v3613 = vadd.f32 %v3473, %v3542
        %v3614 = vadd.f32 %v3476, %v3546
        %v3615 = vadd.f32 %v3479, %v3553
        %v3616 = vadd.f32 %v3482, %v3557
        %v3617 = vadd.f32 %v3485, %v3564
        %v3618 = vadd.f32 %v3488, %v3568
        %v3619 = vadd.f32 %v3491, %v3575
        %v3620 = vadd.f32 %v3494, %v3579
        %v3621 = vadd.f32 %v3497, %v3586
        %v3622 = vadd.f32 %v3500, %v3590
        %3624 = vrot.lane.b32.xlu0 %v3304, 120
        %v3625 = vpop.permute.xlu0 %3624
        %3627 = vrot.lane.b32.xlu0 %v3305, 88
        %v3628 = vpop.permute.xlu0 %3627
        %3629 = vrot.lane.b32.xlu0 %v3304, 88
        %v3630 = vpop.permute.xlu0 %3629
        %3647 = vset.pattern.permute.xlu0 0
        %3648 = vperm.xlu0 %3647, %v3607
        %v3649 = vpop.permute.xlu0 %3648
        %3650 = vset.pattern.permute.xlu0 0
        %3651 = vperm.xlu0 %3650, %v3608
        %v3652 = vpop.permute.xlu0 %3651
        %3653 = vset.pattern.permute.xlu0 0
        %3654 = vperm.xlu0 %3653, %v3609
        %v3655 = vpop.permute.xlu0 %3654
        %3656 = vset.pattern.permute.xlu0 0
        %3657 = vperm.xlu0 %3656, %v3610
        %v3658 = vpop.permute.xlu0 %3657
        %3659 = vset.pattern.permute.xlu0 0
        %3660 = vperm.xlu0 %3659, %v3611
        %v3661 = vpop.permute.xlu0 %3660
        %3662 = vset.pattern.permute.xlu0 0
        %3663 = vperm.xlu0 %3662, %v3612
        %v3664 = vpop.permute.xlu0 %3663
        %3665 = vset.pattern.permute.xlu0 0
        %3666 = vperm.xlu0 %3665, %v3613
        %v3667 = vpop.permute.xlu0 %3666
        %3668 = vset.pattern.permute.xlu0 0
        %3669 = vperm.xlu0 %3668, %v3614
        %v3670 = vpop.permute.xlu0 %3669
        %3671 = vset.pattern.permute.xlu0 0
        %3672 = vperm.xlu0 %3671, %v3615
        %v3673 = vpop.permute.xlu0 %3672
        %3674 = vset.pattern.permute.xlu0 0
        %3675 = vperm.xlu0 %3674, %v3616
        %v3676 = vpop.permute.xlu0 %3675
        %3677 = vset.pattern.permute.xlu0 0
        %3678 = vperm.xlu0 %3677, %v3617
        %v3679 = vpop.permute.xlu0 %3678
        %3680 = vset.pattern.permute.xlu0 0
        %3681 = vperm.xlu0 %3680, %v3618
        %v3682 = vpop.permute.xlu0 %3681
        %3683 = vset.pattern.permute.xlu0 0
        %3684 = vperm.xlu0 %3683, %v3619
        %v3685 = vpop.permute.xlu0 %3684
        %3686 = vset.pattern.permute.xlu0 0
        %3687 = vperm.xlu0 %3686, %v3620
        %v3688 = vpop.permute.xlu0 %3687
        %3689 = vset.pattern.permute.xlu0 0
        %3690 = vperm.xlu0 %3689, %v3621
        %v3691 = vpop.permute.xlu0 %3690
        %3692 = vset.pattern.permute.xlu0 0
        %3693 = vperm.xlu0 %3692, %v3622
        %v3694 = vpop.permute.xlu0 %3693
        %v3695 = vlaneseq
        %v3696 = vshrl.u32 %v3695, 7
        %v3697 = vsub.s32 %v979, %v3696
        %v3698 = vrot.slane %v3649, %v3697
        %v3699 = vlaneseq
        %v3700 = vshrl.u32 %v3699, 7
        %v3701 = vsub.s32 %v3058, %v3700
        %v3702 = vrot.slane %v3652, %v3701
        %v3703 = vsel %vm1632, %v3702, %v3698
        %v3704 = vlaneseq
        %v3705 = vshrl.u32 %v3704, 7
        %v3706 = vsub.s32 %v979, %v3705
        %v3707 = vrot.slane %v3655, %v3706
        %v3708 = vlaneseq
        %v3709 = vshrl.u32 %v3708, 7
        %v3710 = vsub.s32 %v3058, %v3709
        %v3711 = vrot.slane %v3658, %v3710
        %v3712 = vsel %vm1632, %v3711, %v3707
        %v3713 = vlaneseq
        %v3714 = vshrl.u32 %v3713, 7
        %v3715 = vsub.s32 %v979, %v3714
        %v3716 = vrot.slane %v3661, %v3715
        %v3717 = vlaneseq
        %v3718 = vshrl.u32 %v3717, 7
        %v3719 = vsub.s32 %v3058, %v3718
        %v3720 = vrot.slane %v3664, %v3719
        %v3721 = vsel %vm1632, %v3720, %v3716
        %v3722 = vlaneseq
        %v3723 = vshrl.u32 %v3722, 7
        %v3724 = vsub.s32 %v979, %v3723
        %v3725 = vrot.slane %v3667, %v3724
        %v3726 = vlaneseq
        %v3727 = vshrl.u32 %v3726, 7
        %v3728 = vsub.s32 %v3058, %v3727
        %v3729 = vrot.slane %v3670, %v3728
        %v3730 = vsel %vm1632, %v3729, %v3725
        %v3731 = vlaneseq
        %v3732 = vshrl.u32 %v3731, 7
        %v3733 = vsub.s32 %v979, %v3732
        %v3734 = vrot.slane %v3673, %v3733
        %v3735 = vlaneseq
        %v3736 = vshrl.u32 %v3735, 7
        %v3737 = vsub.s32 %v3058, %v3736
        %v3738 = vrot.slane %v3676, %v3737
        %v3739 = vsel %vm1632, %v3738, %v3734
        %v3740 = vlaneseq
        %v3741 = vshrl.u32 %v3740, 7
        %v3742 = vsub.s32 %v979, %v3741
        %v3743 = vrot.slane %v3679, %v3742
        %v3744 = vlaneseq
        %v3745 = vshrl.u32 %v3744, 7
        %v3746 = vsub.s32 %v3058, %v3745
        %v3747 = vrot.slane %v3682, %v3746
        %v3748 = vsel %vm1632, %v3747, %v3743
        %v3749 = vlaneseq
        %v3750 = vshrl.u32 %v3749, 7
        %v3751 = vsub.s32 %v979, %v3750
        %v3752 = vrot.slane %v3685, %v3751
        %v3753 = vlaneseq
        %v3754 = vshrl.u32 %v3753, 7
        %v3755 = vsub.s32 %v3058, %v3754
        %v3756 = vrot.slane %v3688, %v3755
        %v3757 = vsel %vm1632, %v3756, %v3752
        %v3758 = vlaneseq
        %v3759 = vshrl.u32 %v3758, 7
        %v3760 = vsub.s32 %v979, %v3759
        %v3761 = vrot.slane %v3691, %v3760
        %v3762 = vlaneseq
        %v3763 = vshrl.u32 %v3762, 7
        %v3764 = vsub.s32 %v3058, %v3763
        %v3765 = vrot.slane %v3694, %v3764
        %v3766 = vsel %vm1632, %v3765, %v3761
        %v3767 = vsel %vm1012, %v3712, %v3703
        %v3768 = vsel %vm1014, %v3721, %v3767
        %v3769 = vsel %vm1016, %v3730, %v3768
        %v3770 = vsel %vm1018, %v3739, %v3769
        %v3771 = vsel %vm1020, %v3748, %v3770
        %v3772 = vsel %vm1022, %v3757, %v3771
        %v3773 = vsel %vm1024, %v3766, %v3772
        %v3775 = vsel %vm1027, %v3625, 0
        %v3777 = vsel %vm1027, %v3628, 0
        %v3779 = vsel %vm1027, %v3630, 0
        %3781 = vmatprep.subr.mxu0 0.0
        %3782 = vmatpush1.xpose.msra.mxu0 0.0
        %3783 = vmatprep.subr.mxu0 0.0
        %3784 = vmatpush1.xpose.msra.mxu0 0.0
        %3785 = vmatprep.subr.mxu0 0.0
        %3786 = vmatpush1.xpose.msra.mxu0 0.0
        %3787 = vmatprep.subr.mxu0 0.0
        %3788 = vmatpush1.xpose.msra.mxu0 0.0
        %3789 = vmatprep.subr.mxu0 0.0
        %3790 = vmatpush1.xpose.msra.mxu0 0.0
        %3791 = vmatprep.subr.mxu0 0.0
        %3792 = vmatpush1.xpose.msra.mxu0 0.0
        %3793 = vmatprep.subr.mxu0 0.0
        %3794 = vmatpush1.xpose.msra.mxu0 0.0
        %3795 = vmatprep.subr.mxu0 0.0
        %3796 = vmatpush1.xpose.msra.mxu0 0.0
        %3797 = vmatprep.subr.mxu0 0.0
        %3798 = vmatpush1.xpose.msra.mxu0 0.0
        %3799 = vmatprep.subr.mxu0 0.0
        %3800 = vmatpush1.xpose.msra.mxu0 0.0
        %3801 = vmatprep.subr.mxu0 0.0
        %3802 = vmatpush1.xpose.msra.mxu0 0.0
        %3803 = vmatprep.subr.mxu0 0.0
        %3804 = vmatpush1.xpose.msra.mxu0 0.0
        %3805 = vmatprep.subr.mxu0 0.0
        %3806 = vmatpush1.xpose.msra.mxu0 0.0
        %3807 = vmatprep.subr.mxu0 0.0
        %3808 = vmatpush1.xpose.msra.mxu0 0.0
        %3809 = vmatprep.subr.mxu0 0.0
        %3810 = vmatpush1.xpose.msra.mxu0 %v3779
        %3811 = vmatprep.subr.mxu0 0.0
        %3812 = vmatpush1.xpose.msra.mxu0 %v3777
        %3813 = vmatprep.subr.mxu0 0.0
        %3814 = vmatpush2.xpose.msra.mxu0 0.0
        %3815 = vmatprep.subr.mxu0 0.0
        %3816 = vmatpush2.xpose.msra.mxu0 0.0
        %3817 = vmatprep.subr.mxu0 0.0
        %3818 = vmatpush2.xpose.msra.mxu0 0.0
        %3819 = vmatprep.subr.mxu0 0.0
        %3820 = vmatpush2.xpose.msra.mxu0 0.0
        %3821 = vmatprep.subr.mxu0 0.0
        %3822 = vmatpush2.xpose.msra.mxu0 0.0
        %3823 = vmatprep.subr.mxu0 0.0
        %3824 = vmatpush2.xpose.msra.mxu0 0.0
        %3825 = vmatprep.subr.mxu0 0.0
        %3826 = vmatpush2.xpose.msra.mxu0 0.0
        %3827 = vmatprep.subr.mxu0 0.0
        %3828 = vmatpush2.xpose.msra.mxu0 0.0
        %3829 = vmatprep.subr.mxu0 0.0
        %3830 = vmatpush2.xpose.msra.mxu0 0.0
        %3831 = vmatprep.subr.mxu0 0.0
        %3832 = vmatpush2.xpose.msra.mxu0 0.0
        %3833 = vmatprep.subr.mxu0 0.0
        %3834 = vmatpush2.xpose.msra.mxu0 0.0
        %3835 = vmatprep.subr.mxu0 0.0
        %3836 = vmatpush2.xpose.msra.mxu0 0.0
        %3837 = vmatprep.subr.mxu0 0.0
        %3838 = vmatpush2.xpose.msra.mxu0 0.0
        %3839 = vmatprep.subr.mxu0 0.0
        %3840 = vmatpush2.xpose.msra.mxu0 0.0
        %3841 = vmatprep.subr.mxu0 0.0
        %3842 = vmatpush2.xpose.msra.mxu0 0.0
        %3843 = vmatprep.subr.mxu0 0.0
        %3844 = vmatpush2.xpose.msra.mxu0 0.0
        %3845 = vmatprep.mubr.f32.mxu0 0.0
        %3846 = vmatmul.mubr.f32.gmra.mxu0 %v3775
        %v3847 = vpop.f32.mrf.mxu0
        %v3848 = vadd.f32 %v3773, %v3847
        %v3849 = vpop.f32.mrf.mxu0
        %3850 = vdwg.mxu0
        %v3851 = vsel %vm3211, %v3848, -inf
        %3852 = vmax.xlane.f32.xlu0 %v3851
        %v3853 = vpop.xlane.xlu0 %3852
        %v3854 = vsub.f32 %v3848, %v3853
        %v3855 = vmul.f32 %v3854, 1.442695
        %v3856 = vpow.pop %v3855
        %v3857 = vsel %vm3211, %v3856, 0.0
        %3858 = vadd.xlane.f32.xlu0 %v3857
        %v3859 = vpop.xlane.xlu0 %3858
        %v3860 = vrcp.pop %v3859
        %v3861 = vmul.f32 %v3856, %v3860
        %3862 = vst.msk [vmem:[%s500 + $0x8] sm:$0xff] %vm3211, %v3861
        %3863 = vrot.lane.b32.xlu0 %v3305, 56
        %v3864 = vpop.permute.xlu0 %3863
        %3865 = vrot.lane.b32.xlu0 %v3304, 56
        %v3866 = vpop.permute.xlu0 %3865
        %v3870 = vsel %vm3211, %v3861, 0
        %3872 = vmatprep.subr.mxu0 0.0
        %3873 = vmatpush1.msra.mxu0 0.0
        %3874 = vmatprep.subr.mxu0 0.0
        %3875 = vmatpush1.msra.mxu0 0.0
        %3876 = vmatprep.subr.mxu0 0.0
        %3877 = vmatpush1.msra.mxu0 0.0
        %3878 = vmatprep.subr.mxu0 0.0
        %3879 = vmatpush1.msra.mxu0 0.0
        %3880 = vmatprep.subr.mxu0 0.0
        %3881 = vmatpush1.msra.mxu0 0.0
        %3882 = vmatprep.subr.mxu0 0.0
        %3883 = vmatpush1.msra.mxu0 0.0
        %3884 = vmatprep.subr.mxu0 0.0
        %3885 = vmatpush1.msra.mxu0 0.0
        %3886 = vmatprep.subr.mxu0 0.0
        %3887 = vmatpush1.msra.mxu0 0.0
        %3888 = vmatprep.subr.mxu0 0.0
        %3889 = vmatpush1.msra.mxu0 0.0
        %3890 = vmatprep.subr.mxu0 0.0
        %3891 = vmatpush1.msra.mxu0 0.0
        %3892 = vmatprep.subr.mxu0 0.0
        %3893 = vmatpush1.msra.mxu0 0.0
        %3894 = vmatprep.subr.mxu0 0.0
        %3895 = vmatpush1.msra.mxu0 0.0
        %3896 = vmatprep.subr.mxu0 0.0
        %3897 = vmatpush1.msra.mxu0 0.0
        %3898 = vmatprep.subr.mxu0 0.0
        %3899 = vmatpush1.msra.mxu0 0.0
        %3900 = vmatprep.subr.mxu0 0.0
        %3901 = vmatpush1.msra.mxu0 %v3866
        %3902 = vmatprep.subr.mxu0 0.0
        %3903 = vmatpush1.msra.mxu0 %v3864
        %3904 = vmatprep.subr.mxu0 0.0
        %3905 = vmatpush2.msra.mxu0 0.0
        %3906 = vmatprep.subr.mxu0 0.0
        %3907 = vmatpush2.msra.mxu0 0.0
        %3908 = vmatprep.subr.mxu0 0.0
        %3909 = vmatpush2.msra.mxu0 0.0
        %3910 = vmatprep.subr.mxu0 0.0
        %3911 = vmatpush2.msra.mxu0 0.0
        %3912 = vmatprep.subr.mxu0 0.0
        %3913 = vmatpush2.msra.mxu0 0.0
        %3914 = vmatprep.subr.mxu0 0.0
        %3915 = vmatpush2.msra.mxu0 0.0
        %3916 = vmatprep.subr.mxu0 0.0
        %3917 = vmatpush2.msra.mxu0 0.0
        %3918 = vmatprep.subr.mxu0 0.0
        %3919 = vmatpush2.msra.mxu0 0.0
        %3920 = vmatprep.subr.mxu0 0.0
        %3921 = vmatpush2.msra.mxu0 0.0
        %3922 = vmatprep.subr.mxu0 0.0
        %3923 = vmatpush2.msra.mxu0 0.0
        %3924 = vmatprep.subr.mxu0 0.0
        %3925 = vmatpush2.msra.mxu0 0.0
        %3926 = vmatprep.subr.mxu0 0.0
        %3927 = vmatpush2.msra.mxu0 0.0
        %3928 = vmatprep.subr.mxu0 0.0
        %3929 = vmatpush2.msra.mxu0 0.0
        %3930 = vmatprep.subr.mxu0 0.0
        %3931 = vmatpush2.msra.mxu0 0.0
        %3932 = vmatprep.subr.mxu0 0.0
        %3933 = vmatpush2.msra.mxu0 0.0
        %3934 = vmatprep.subr.mxu0 0.0
        %3935 = vmatpush2.msra.mxu0 0.0
        %3936 = vmatprep.mubr.f32.mxu0 0.0
        %3937 = vmatmul.mubr.f32.gmra.mxu0 %v3870
        %v3938 = vpop.f32.mrf.mxu0
        %v3939 = vadd.f32 0.0, %v3938
        %v3940 = vpop.f32.mrf.mxu0
        %3941 = vdwg.mxu0
        %3943 = vrot.lane.b32.xlu0 %v3939, 8
        %v3944 = vpop.permute.xlu0 %3943
        %3946 = vst.msk [vmem:[#allocation3 + $0x8] sm:$0xff] %vm1632, %v3944
        %v3947 = vld [vmem:[#allocation2 + $0x10] sm:$0xff]
        %v3948 = vld [vmem:[#allocation2] sm:$0xff]
        %v3949 = vld [vmem:[#allocation2 + $0x12] ss:$0 sm:$0xff]
        %3951 = vrot.lane.b32.xlu0 %v3949, 32
        %v3952 = vpop.permute.xlu0 %3951
        %3954 = vst.msk [vmem:[#allocation4] sm:$0x1] %vm2671, %v3952
        %v3955 = vld [vmem:[#allocation2 + $0x22] ss:$0 sm:$0xff]
        %3957 = vrot.lane.b32.xlu0 %v3955, 32
        %v3958 = vpop.permute.xlu0 %3957
        %3960 = vst.msk [vmem:[#allocation4 + $0x4] sm:$0x1] %vm2671, %v3958
        %v3961 = vld [vmem:[#allocation2 + $0x1a] ss:$0 sm:$0xff]
        %3962 = vst.msk [vmem:[#allocation4 + $0x1] sm:$0x1] %vm2671, %v3961
        %v3963 = vld [vmem:[#allocation2 + $0x2a] ss:$0 sm:$0xff]
        %3964 = vst.msk [vmem:[#allocation4 + $0x5] sm:$0x1] %vm2671, %v3963
        %v3965 = vld [vmem:[#allocation2 + $0x1a] ss:$0 sm:$0xff]
        %3967 = vrot.lane.b32.xlu0 %v3965, 96
        %v3968 = vpop.permute.xlu0 %3967
        %3970 = vst.msk [vmem:[#allocation4 + $0x2] sm:$0x1] %vm2671, %v3968
        %v3971 = vld [vmem:[#allocation2 + $0x2a] ss:$0 sm:$0xff]
        %3973 = vrot.lane.b32.xlu0 %v3971, 96
        %v3974 = vpop.permute.xlu0 %3973
        %3976 = vst.msk [vmem:[#allocation4 + $0x6] sm:$0x1] %vm2671, %v3974
        %v3977 = vld [vmem:[#allocation2 + $0x1a] ss:$0 sm:$0xff]
        %3979 = vrot.lane.b32.xlu0 %v3977, 64
        %v3980 = vpop.permute.xlu0 %3979
        %3982 = vst.msk [vmem:[#allocation4 + $0x3] sm:$0x1] %vm2671, %v3980
        %v3983 = vld [vmem:[#allocation2 + $0x2a] ss:$0 sm:$0xff]
        %3985 = vrot.lane.b32.xlu0 %v3983, 64
        %v3986 = vpop.permute.xlu0 %3985
        %3988 = vst.msk [vmem:[#allocation4 + $0x7] sm:$0x1] %vm2671, %v3986
        %v3989 = vld [vmem:[#allocation4] sm:$0xff]
        %v3991 = vcombine.high %v3989, %v3989
        %v3993 = vunpack.c.l.s4 1966171168
        %v3994 = vunpack.c.0.s8 %v3993
        %v3995 = vlaneseq
        %v3996 = vshrl.u32 %v3995, 7
        %v3997 = vsub.s32 %v3994, %v3996
        %v3998 = vrot.slane %v3989, %v3997
        %v4000 = vunpack.c.l.s4 1966171168
        %v4001 = vunpack.c.0.s8 %v4000
        %v4002 = vlaneseq
        %v4003 = vshrl.u32 %v4002, 7
        %v4004 = vsub.s32 %v4001, %v4003
        %v4005 = vrot.slane %v3991, %v4004
        %v4006 = vcombine.high %v3998, %v3998
        %v4007 = vcombine.high %v4005, %v4005
        %v4009 = vunpack.c.l.s4 1966171168
        %v4010 = vunpack.c.0.s8 %v4009
        %v4011 = vlaneseq
        %v4012 = vshrl.u32 %v4011, 7
        %v4013 = vsub.s32 %v4010, %v4012
        %v4014 = vrot.slane %v3998, %v4013
        %v4016 = vunpack.c.l.s4 1966171168
        %v4017 = vunpack.c.0.s8 %v4016
        %v4018 = vlaneseq
        %v4019 = vshrl.u32 %v4018, 7
        %v4020 = vsub.s32 %v4017, %v4019
        %v4021 = vrot.slane %v4005, %v4020
        %v4023 = vunpack.c.l.s4 1966171168
        %v4024 = vunpack.c.0.s8 %v4023
        %v4025 = vlaneseq
        %v4026 = vshrl.u32 %v4025, 7
        %v4027 = vsub.s32 %v4024, %v4026
        %v4028 = vrot.slane %v4006, %v4027
        %v4030 = vunpack.c.l.s4 1966171168
        %v4031 = vunpack.c.0.s8 %v4030
        %v4032 = vlaneseq
        %v4033 = vshrl.u32 %v4032, 7
        %v4034 = vsub.s32 %v4031, %v4033
        %v4035 = vrot.slane %v4007, %v4034
        %v4036 = vcombine.high %v4014, %v4014
        %v4037 = vcombine.high %v4021, %v4021
        %v4038 = vcombine.high %v4028, %v4028
        %v4039 = vcombine.high %v4035, %v4035
        %v4040 = vlaneseq
        %v4041 = vshrl.u32 %v4040, 7
        %v4042 = vsub.s32 0, %v4041
        %v4043 = vrot.slane %v4014, %v4042
        %v4044 = vlaneseq
        %v4045 = vshrl.u32 %v4044, 7
        %v4046 = vsub.s32 0, %v4045
        %v4047 = vrot.slane %v4028, %v4046
        %v4048 = vlaneseq
        %v4049 = vshrl.u32 %v4048, 7
        %v4050 = vsub.s32 0, %v4049
        %v4051 = vrot.slane %v4036, %v4050
        %v4052 = vlaneseq
        %v4053 = vshrl.u32 %v4052, 7
        %v4054 = vsub.s32 0, %v4053
        %v4055 = vrot.slane %v4038, %v4054
        %v4056 = vlaneseq
        %v4057 = vshrl.u32 %v4056, 7
        %v4058 = vsub.s32 0, %v4057
        %v4059 = vrot.slane %v4021, %v4058
        %v4060 = vlaneseq
        %v4061 = vshrl.u32 %v4060, 7
        %v4062 = vsub.s32 0, %v4061
        %v4063 = vrot.slane %v4035, %v4062
        %v4064 = vlaneseq
        %v4065 = vshrl.u32 %v4064, 7
        %v4066 = vsub.s32 0, %v4065
        %v4067 = vrot.slane %v4037, %v4066
        %v4068 = vlaneseq
        %v4069 = vshrl.u32 %v4068, 7
        %v4070 = vsub.s32 0, %v4069
        %v4071 = vrot.slane %v4039, %v4070
        %v4080 = vmul.f32 %v4043, %v2648
        %v4081 = vmul.f32 %v4043, %v2649
        %v4082 = vmul.f32 %v4047, %v2650
        %v4083 = vmul.f32 %v4047, %v2651
        %v4084 = vmul.f32 %v4051, %v2652
        %v4085 = vmul.f32 %v4051, %v2653
        %v4086 = vmul.f32 %v4055, %v2654
        %v4087 = vmul.f32 %v4055, %v2655
        %v4088 = vmul.f32 %v4059, %v2656
        %v4089 = vmul.f32 %v4059, %v2657
        %v4090 = vmul.f32 %v4063, %v2658
        %v4091 = vmul.f32 %v4063, %v2659
        %v4092 = vmul.f32 %v4067, %v2660
        %v4093 = vmul.f32 %v4067, %v2661
        %v4094 = vmul.f32 %v4071, %v2662
        %v4095 = vmul.f32 %v4071, %v2663
        %v4096 = vsel %vm590, %v4080, 0.0
        %4097 = vadd.xlane.f32.xlu0 %v4096
        %v4098 = vpop.xlane.xlu0 %4097
        %v4099 = vsel %vm590, %v4081, 0.0
        %4100 = vadd.xlane.f32.xlu0 %v4099
        %v4101 = vpop.xlane.xlu0 %4100
        %v4102 = vsel %vm590, %v4082, 0.0
        %4103 = vadd.xlane.f32.xlu0 %v4102
        %v4104 = vpop.xlane.xlu0 %4103
        %v4105 = vsel %vm590, %v4083, 0.0
        %4106 = vadd.xlane.f32.xlu0 %v4105
        %v4107 = vpop.xlane.xlu0 %4106
        %v4108 = vsel %vm590, %v4084, 0.0
        %4109 = vadd.xlane.f32.xlu0 %v4108
        %v4110 = vpop.xlane.xlu0 %4109
        %v4111 = vsel %vm590, %v4085, 0.0
        %4112 = vadd.xlane.f32.xlu0 %v4111
        %v4113 = vpop.xlane.xlu0 %4112
        %v4114 = vsel %vm590, %v4086, 0.0
        %4115 = vadd.xlane.f32.xlu0 %v4114
        %v4116 = vpop.xlane.xlu0 %4115
        %v4117 = vsel %vm590, %v4087, 0.0
        %4118 = vadd.xlane.f32.xlu0 %v4117
        %v4119 = vpop.xlane.xlu0 %4118
        %v4120 = vsel %vm590, %v4088, 0.0
        %4121 = vadd.xlane.f32.xlu0 %v4120
        %v4122 = vpop.xlane.xlu0 %4121
        %v4123 = vsel %vm590, %v4089, 0.0
        %4124 = vadd.xlane.f32.xlu0 %v4123
        %v4125 = vpop.xlane.xlu0 %4124
        %v4126 = vsel %vm590, %v4090, 0.0
        %4127 = vadd.xlane.f32.xlu0 %v4126
        %v4128 = vpop.xlane.xlu0 %4127
        %v4129 = vsel %vm590, %v4091, 0.0
        %4130 = vadd.xlane.f32.xlu0 %v4129
        %v4131 = vpop.xlane.xlu0 %4130
        %v4132 = vsel %vm590, %v4092, 0.0
        %4133 = vadd.xlane.f32.xlu0 %v4132
        %v4134 = vpop.xlane.xlu0 %4133
        %v4135 = vsel %vm590, %v4093, 0.0
        %4136 = vadd.xlane.f32.xlu0 %v4135
        %v4137 = vpop.xlane.xlu0 %4136
        %v4138 = vsel %vm590, %v4094, 0.0
        %4139 = vadd.xlane.f32.xlu0 %v4138
        %v4140 = vpop.xlane.xlu0 %4139
        %v4141 = vsel %vm590, %v4095, 0.0
        %4142 = vadd.xlane.f32.xlu0 %v4141
        %v4143 = vpop.xlane.xlu0 %4142
        %v4144 = vld [vmem:[%s535 + $0x20] sm:$0xff]
        %v4146 = vlaneseq
        %v4147 = vshrl.u32 %v4146, 7
        %v4148 = vsub.s32 0, %v4147
        %v4149 = vrot.slane %v4144, %v4148
        %4151 = vbcast.lane.b32.xlu0 %v4149, 256
        %v4152 = vpop.permute.xlu0 %4151
        %s4154 = sor.u32 256, 8
        %4155 = vbcast.lane.b32.xlu0 %v4149, %s4154
        %v4156 = vpop.permute.xlu0 %4155
        %v4157 = vlaneseq
        %v4158 = vshrl.u32 %v4157, 7
        %v4159 = vsub.s32 1, %v4158
        %v4160 = vrot.slane %v4144, %v4159
        %4162 = vbcast.lane.b32.xlu0 %v4160, 256
        %v4163 = vpop.permute.xlu0 %4162
        %s4165 = sor.u32 256, 8
        %4166 = vbcast.lane.b32.xlu0 %v4160, %s4165
        %v4167 = vpop.permute.xlu0 %4166
        %v4168 = vlaneseq
        %v4169 = vshrl.u32 %v4168, 7
        %v4170 = vsub.s32 2, %v4169
        %v4171 = vrot.slane %v4144, %v4170
        %4173 = vbcast.lane.b32.xlu0 %v4171, 256
        %v4174 = vpop.permute.xlu0 %4173
        %s4176 = sor.u32 256, 8
        %4177 = vbcast.lane.b32.xlu0 %v4171, %s4176
        %v4178 = vpop.permute.xlu0 %4177
        %v4179 = vlaneseq
        %v4180 = vshrl.u32 %v4179, 7
        %v4181 = vsub.s32 3, %v4180
        %v4182 = vrot.slane %v4144, %v4181
        %4184 = vbcast.lane.b32.xlu0 %v4182, 256
        %v4185 = vpop.permute.xlu0 %4184
        %s4187 = sor.u32 256, 8
        %4188 = vbcast.lane.b32.xlu0 %v4182, %s4187
        %v4189 = vpop.permute.xlu0 %4188
        %v4190 = vlaneseq
        %v4191 = vshrl.u32 %v4190, 7
        %v4192 = vsub.s32 4, %v4191
        %v4193 = vrot.slane %v4144, %v4192
        %4195 = vbcast.lane.b32.xlu0 %v4193, 256
        %v4196 = vpop.permute.xlu0 %4195
        %s4198 = sor.u32 256, 8
        %4199 = vbcast.lane.b32.xlu0 %v4193, %s4198
        %v4200 = vpop.permute.xlu0 %4199
        %v4201 = vlaneseq
        %v4202 = vshrl.u32 %v4201, 7
        %v4203 = vsub.s32 5, %v4202
        %v4204 = vrot.slane %v4144, %v4203
        %4206 = vbcast.lane.b32.xlu0 %v4204, 256
        %v4207 = vpop.permute.xlu0 %4206
        %s4209 = sor.u32 256, 8
        %4210 = vbcast.lane.b32.xlu0 %v4204, %s4209
        %v4211 = vpop.permute.xlu0 %4210
        %v4212 = vlaneseq
        %v4213 = vshrl.u32 %v4212, 7
        %v4214 = vsub.s32 6, %v4213
        %v4215 = vrot.slane %v4144, %v4214
        %4217 = vbcast.lane.b32.xlu0 %v4215, 256
        %v4218 = vpop.permute.xlu0 %4217
        %s4220 = sor.u32 256, 8
        %4221 = vbcast.lane.b32.xlu0 %v4215, %s4220
        %v4222 = vpop.permute.xlu0 %4221
        %v4223 = vlaneseq
        %v4224 = vshrl.u32 %v4223, 7
        %v4225 = vsub.s32 7, %v4224
        %v4226 = vrot.slane %v4144, %v4225
        %4228 = vbcast.lane.b32.xlu0 %v4226, 256
        %v4229 = vpop.permute.xlu0 %4228
        %s4231 = sor.u32 256, 8
        %4232 = vbcast.lane.b32.xlu0 %v4226, %s4231
        %v4233 = vpop.permute.xlu0 %4232
        %v4250 = vadd.f32 %v4098, %v4152
        %v4251 = vadd.f32 %v4101, %v4156
        %v4252 = vadd.f32 %v4104, %v4163
        %v4253 = vadd.f32 %v4107, %v4167
        %v4254 = vadd.f32 %v4110, %v4174
        %v4255 = vadd.f32 %v4113, %v4178
        %v4256 = vadd.f32 %v4116, %v4185
        %v4257 = vadd.f32 %v4119, %v4189
        %v4258 = vadd.f32 %v4122, %v4196
        %v4259 = vadd.f32 %v4125, %v4200
        %v4260 = vadd.f32 %v4128, %v4207
        %v4261 = vadd.f32 %v4131, %v4211
        %v4262 = vadd.f32 %v4134, %v4218
        %v4263 = vadd.f32 %v4137, %v4222
        %v4264 = vadd.f32 %v4140, %v4229
        %v4265 = vadd.f32 %v4143, %v4233
        %4267 = vrot.lane.b32.xlu0 %v3947, 112
        %v4268 = vpop.permute.xlu0 %4267
        %4270 = vrot.lane.b32.xlu0 %v3948, 80
        %v4271 = vpop.permute.xlu0 %4270
        %4272 = vrot.lane.b32.xlu0 %v3947, 80
        %v4273 = vpop.permute.xlu0 %4272
        %4290 = vset.pattern.permute.xlu0 0
        %4291 = vperm.xlu0 %4290, %v4250
        %v4292 = vpop.permute.xlu0 %4291
        %4293 = vset.pattern.permute.xlu0 0
        %4294 = vperm.xlu0 %4293, %v4251
        %v4295 = vpop.permute.xlu0 %4294
        %4296 = vset.pattern.permute.xlu0 0
        %4297 = vperm.xlu0 %4296, %v4252
        %v4298 = vpop.permute.xlu0 %4297
        %4299 = vset.pattern.permute.xlu0 0
        %4300 = vperm.xlu0 %4299, %v4253
        %v4301 = vpop.permute.xlu0 %4300
        %4302 = vset.pattern.permute.xlu0 0
        %4303 = vperm.xlu0 %4302, %v4254
        %v4304 = vpop.permute.xlu0 %4303
        %4305 = vset.pattern.permute.xlu0 0
        %4306 = vperm.xlu0 %4305, %v4255
        %v4307 = vpop.permute.xlu0 %4306
        %4308 = vset.pattern.permute.xlu0 0
        %4309 = vperm.xlu0 %4308, %v4256
        %v4310 = vpop.permute.xlu0 %4309
        %4311 = vset.pattern.permute.xlu0 0
        %4312 = vperm.xlu0 %4311, %v4257
        %v4313 = vpop.permute.xlu0 %4312
        %4314 = vset.pattern.permute.xlu0 0
        %4315 = vperm.xlu0 %4314, %v4258
        %v4316 = vpop.permute.xlu0 %4315
        %4317 = vset.pattern.permute.xlu0 0
        %4318 = vperm.xlu0 %4317, %v4259
        %v4319 = vpop.permute.xlu0 %4318
        %4320 = vset.pattern.permute.xlu0 0
        %4321 = vperm.xlu0 %4320, %v4260
        %v4322 = vpop.permute.xlu0 %4321
        %4323 = vset.pattern.permute.xlu0 0
        %4324 = vperm.xlu0 %4323, %v4261
        %v4325 = vpop.permute.xlu0 %4324
        %4326 = vset.pattern.permute.xlu0 0
        %4327 = vperm.xlu0 %4326, %v4262
        %v4328 = vpop.permute.xlu0 %4327
        %4329 = vset.pattern.permute.xlu0 0
        %4330 = vperm.xlu0 %4329, %v4263
        %v4331 = vpop.permute.xlu0 %4330
        %4332 = vset.pattern.permute.xlu0 0
        %4333 = vperm.xlu0 %4332, %v4264
        %v4334 = vpop.permute.xlu0 %4333
        %4335 = vset.pattern.permute.xlu0 0
        %4336 = vperm.xlu0 %4335, %v4265
        %v4337 = vpop.permute.xlu0 %4336
        %v4338 = vlaneseq
        %v4339 = vshrl.u32 %v4338, 7
        %v4340 = vsub.s32 %v979, %v4339
        %v4341 = vrot.slane %v4292, %v4340
        %v4342 = vlaneseq
        %v4343 = vshrl.u32 %v4342, 7
        %v4344 = vsub.s32 %v3058, %v4343
        %v4345 = vrot.slane %v4295, %v4344
        %v4346 = vsel %vm1632, %v4345, %v4341
        %v4347 = vlaneseq
        %v4348 = vshrl.u32 %v4347, 7
        %v4349 = vsub.s32 %v979, %v4348
        %v4350 = vrot.slane %v4298, %v4349
        %v4351 = vlaneseq
        %v4352 = vshrl.u32 %v4351, 7
        %v4353 = vsub.s32 %v3058, %v4352
        %v4354 = vrot.slane %v4301, %v4353
        %v4355 = vsel %vm1632, %v4354, %v4350
        %v4356 = vlaneseq
        %v4357 = vshrl.u32 %v4356, 7
        %v4358 = vsub.s32 %v979, %v4357
        %v4359 = vrot.slane %v4304, %v4358
        %v4360 = vlaneseq
        %v4361 = vshrl.u32 %v4360, 7
        %v4362 = vsub.s32 %v3058, %v4361
        %v4363 = vrot.slane %v4307, %v4362
        %v4364 = vsel %vm1632, %v4363, %v4359
        %v4365 = vlaneseq
        %v4366 = vshrl.u32 %v4365, 7
        %v4367 = vsub.s32 %v979, %v4366
        %v4368 = vrot.slane %v4310, %v4367
        %v4369 = vlaneseq
        %v4370 = vshrl.u32 %v4369, 7
        %v4371 = vsub.s32 %v3058, %v4370
        %v4372 = vrot.slane %v4313, %v4371
        %v4373 = vsel %vm1632, %v4372, %v4368
        %v4374 = vlaneseq
        %v4375 = vshrl.u32 %v4374, 7
        %v4376 = vsub.s32 %v979, %v4375
        %v4377 = vrot.slane %v4316, %v4376
        %v4378 = vlaneseq
        %v4379 = vshrl.u32 %v4378, 7
        %v4380 = vsub.s32 %v3058, %v4379
        %v4381 = vrot.slane %v4319, %v4380
        %v4382 = vsel %vm1632, %v4381, %v4377
        %v4383 = vlaneseq
        %v4384 = vshrl.u32 %v4383, 7
        %v4385 = vsub.s32 %v979, %v4384
        %v4386 = vrot.slane %v4322, %v4385
        %v4387 = vlaneseq
        %v4388 = vshrl.u32 %v4387, 7
        %v4389 = vsub.s32 %v3058, %v4388
        %v4390 = vrot.slane %v4325, %v4389
        %v4391 = vsel %vm1632, %v4390, %v4386
        %v4392 = vlaneseq
        %v4393 = vshrl.u32 %v4392, 7
        %v4394 = vsub.s32 %v979, %v4393
        %v4395 = vrot.slane %v4328, %v4394
        %v4396 = vlaneseq
        %v4397 = vshrl.u32 %v4396, 7
        %v4398 = vsub.s32 %v3058, %v4397
        %v4399 = vrot.slane %v4331, %v4398
        %v4400 = vsel %vm1632, %v4399, %v4395
        %v4401 = vlaneseq
        %v4402 = vshrl.u32 %v4401, 7
        %v4403 = vsub.s32 %v979, %v4402
        %v4404 = vrot.slane %v4334, %v4403
        %v4405 = vlaneseq
        %v4406 = vshrl.u32 %v4405, 7
        %v4407 = vsub.s32 %v3058, %v4406
        %v4408 = vrot.slane %v4337, %v4407
        %v4409 = vsel %vm1632, %v4408, %v4404
        %v4410 = vsel %vm1012, %v4355, %v4346
        %v4411 = vsel %vm1014, %v4364, %v4410
        %v4412 = vsel %vm1016, %v4373, %v4411
        %v4413 = vsel %vm1018, %v4382, %v4412
        %v4414 = vsel %vm1020, %v4391, %v4413
        %v4415 = vsel %vm1022, %v4400, %v4414
        %v4416 = vsel %vm1024, %v4409, %v4415
        %v4418 = vsel %vm1027, %v4268, 0
        %v4420 = vsel %vm1027, %v4271, 0
        %v4422 = vsel %vm1027, %v4273, 0
        %4424 = vmatprep.subr.mxu0 0.0
        %4425 = vmatpush1.xpose.msra.mxu0 0.0
        %4426 = vmatprep.subr.mxu0 0.0
        %4427 = vmatpush1.xpose.msra.mxu0 0.0
        %4428 = vmatprep.subr.mxu0 0.0
        %4429 = vmatpush1.xpose.msra.mxu0 0.0
        %4430 = vmatprep.subr.mxu0 0.0
        %4431 = vmatpush1.xpose.msra.mxu0 0.0
        %4432 = vmatprep.subr.mxu0 0.0
        %4433 = vmatpush1.xpose.msra.mxu0 0.0
        %4434 = vmatprep.subr.mxu0 0.0
        %4435 = vmatpush1.xpose.msra.mxu0 0.0
        %4436 = vmatprep.subr.mxu0 0.0
        %4437 = vmatpush1.xpose.msra.mxu0 0.0
        %4438 = vmatprep.subr.mxu0 0.0
        %4439 = vmatpush1.xpose.msra.mxu0 0.0
        %4440 = vmatprep.subr.mxu0 0.0
        %4441 = vmatpush1.xpose.msra.mxu0 0.0
        %4442 = vmatprep.subr.mxu0 0.0
        %4443 = vmatpush1.xpose.msra.mxu0 0.0
        %4444 = vmatprep.subr.mxu0 0.0
        %4445 = vmatpush1.xpose.msra.mxu0 0.0
        %4446 = vmatprep.subr.mxu0 0.0
        %4447 = vmatpush1.xpose.msra.mxu0 0.0
        %4448 = vmatprep.subr.mxu0 0.0
        %4449 = vmatpush1.xpose.msra.mxu0 0.0
        %4450 = vmatprep.subr.mxu0 0.0
        %4451 = vmatpush1.xpose.msra.mxu0 0.0
        %4452 = vmatprep.subr.mxu0 0.0
        %4453 = vmatpush1.xpose.msra.mxu0 %v4422
        %4454 = vmatprep.subr.mxu0 0.0
        %4455 = vmatpush1.xpose.msra.mxu0 %v4420
        %4456 = vmatprep.subr.mxu0 0.0
        %4457 = vmatpush2.xpose.msra.mxu0 0.0
        %4458 = vmatprep.subr.mxu0 0.0
        %4459 = vmatpush2.xpose.msra.mxu0 0.0
        %4460 = vmatprep.subr.mxu0 0.0
        %4461 = vmatpush2.xpose.msra.mxu0 0.0
        %4462 = vmatprep.subr.mxu0 0.0
        %4463 = vmatpush2.xpose.msra.mxu0 0.0
        %4464 = vmatprep.subr.mxu0 0.0
        %4465 = vmatpush2.xpose.msra.mxu0 0.0
        %4466 = vmatprep.subr.mxu0 0.0
        %4467 = vmatpush2.xpose.msra.mxu0 0.0
        %4468 = vmatprep.subr.mxu0 0.0
        %4469 = vmatpush2.xpose.msra.mxu0 0.0
        %4470 = vmatprep.subr.mxu0 0.0
        %4471 = vmatpush2.xpose.msra.mxu0 0.0
        %4472 = vmatprep.subr.mxu0 0.0
        %4473 = vmatpush2.xpose.msra.mxu0 0.0
        %4474 = vmatprep.subr.mxu0 0.0
        %4475 = vmatpush2.xpose.msra.mxu0 0.0
        %4476 = vmatprep.subr.mxu0 0.0
        %4477 = vmatpush2.xpose.msra.mxu0 0.0
        %4478 = vmatprep.subr.mxu0 0.0
        %4479 = vmatpush2.xpose.msra.mxu0 0.0
        %4480 = vmatprep.subr.mxu0 0.0
        %4481 = vmatpush2.xpose.msra.mxu0 0.0
        %4482 = vmatprep.subr.mxu0 0.0
        %4483 = vmatpush2.xpose.msra.mxu0 0.0
        %4484 = vmatprep.subr.mxu0 0.0
        %4485 = vmatpush2.xpose.msra.mxu0 0.0
        %4486 = vmatprep.subr.mxu0 0.0
        %4487 = vmatpush2.xpose.msra.mxu0 0.0
        %4488 = vmatprep.mubr.f32.mxu0 0.0
        %4489 = vmatmul.mubr.f32.gmra.mxu0 %v4418
        %v4490 = vpop.f32.mrf.mxu0
        %v4491 = vadd.f32 %v4416, %v4490
        %v4492 = vpop.f32.mrf.mxu0
        %4493 = vdwg.mxu0
        %v4494 = vsel %vm3211, %v4491, -inf
        %4495 = vmax.xlane.f32.xlu0 %v4494
        %v4496 = vpop.xlane.xlu0 %4495
        %v4497 = vsub.f32 %v4491, %v4496
        %v4498 = vmul.f32 %v4497, 1.442695
        %v4499 = vpow.pop %v4498
        %v4500 = vsel %vm3211, %v4499, 0.0
        %4501 = vadd.xlane.f32.xlu0 %v4500
        %v4502 = vpop.xlane.xlu0 %4501
        %v4503 = vrcp.pop %v4502
        %v4504 = vmul.f32 %v4499, %v4503
        %4505 = vst.msk [vmem:[%s500 + $0x10] sm:$0xff] %vm3211, %v4504
        %4506 = vrot.lane.b32.xlu0 %v3948, 48
        %v4507 = vpop.permute.xlu0 %4506
        %4508 = vrot.lane.b32.xlu0 %v3947, 48
        %v4509 = vpop.permute.xlu0 %4508
        %v4513 = vsel %vm3211, %v4504, 0
        %4515 = vmatprep.subr.mxu0 0.0
        %4516 = vmatpush1.msra.mxu0 0.0
        %4517 = vmatprep.subr.mxu0 0.0
        %4518 = vmatpush1.msra.mxu0 0.0
        %4519 = vmatprep.subr.mxu0 0.0
        %4520 = vmatpush1.msra.mxu0 0.0
        %4521 = vmatprep.subr.mxu0 0.0
        %4522 = vmatpush1.msra.mxu0 0.0
        %4523 = vmatprep.subr.mxu0 0.0
        %4524 = vmatpush1.msra.mxu0 0.0
        %4525 = vmatprep.subr.mxu0 0.0
        %4526 = vmatpush1.msra.mxu0 0.0
        %4527 = vmatprep.subr.mxu0 0.0
        %4528 = vmatpush1.msra.mxu0 0.0
        %4529 = vmatprep.subr.mxu0 0.0
        %4530 = vmatpush1.msra.mxu0 0.0
        %4531 = vmatprep.subr.mxu0 0.0
        %4532 = vmatpush1.msra.mxu0 0.0
        %4533 = vmatprep.subr.mxu0 0.0
        %4534 = vmatpush1.msra.mxu0 0.0
        %4535 = vmatprep.subr.mxu0 0.0
        %4536 = vmatpush1.msra.mxu0 0.0
        %4537 = vmatprep.subr.mxu0 0.0
        %4538 = vmatpush1.msra.mxu0 0.0
        %4539 = vmatprep.subr.mxu0 0.0
        %4540 = vmatpush1.msra.mxu0 0.0
        %4541 = vmatprep.subr.mxu0 0.0
        %4542 = vmatpush1.msra.mxu0 0.0
        %4543 = vmatprep.subr.mxu0 0.0
        %4544 = vmatpush1.msra.mxu0 %v4509
        %4545 = vmatprep.subr.mxu0 0.0
        %4546 = vmatpush1.msra.mxu0 %v4507
        %4547 = vmatprep.subr.mxu0 0.0
        %4548 = vmatpush2.msra.mxu0 0.0
        %4549 = vmatprep.subr.mxu0 0.0
        %4550 = vmatpush2.msra.mxu0 0.0
        %4551 = vmatprep.subr.mxu0 0.0
        %4552 = vmatpush2.msra.mxu0 0.0
        %4553 = vmatprep.subr.mxu0 0.0
        %4554 = vmatpush2.msra.mxu0 0.0
        %4555 = vmatprep.subr.mxu0 0.0
        %4556 = vmatpush2.msra.mxu0 0.0
        %4557 = vmatprep.subr.mxu0 0.0
        %4558 = vmatpush2.msra.mxu0 0.0
        %4559 = vmatprep.subr.mxu0 0.0
        %4560 = vmatpush2.msra.mxu0 0.0
        %4561 = vmatprep.subr.mxu0 0.0
        %4562 = vmatpush2.msra.mxu0 0.0
        %4563 = vmatprep.subr.mxu0 0.0
        %4564 = vmatpush2.msra.mxu0 0.0
        %4565 = vmatprep.subr.mxu0 0.0
        %4566 = vmatpush2.msra.mxu0 0.0
        %4567 = vmatprep.subr.mxu0 0.0
        %4568 = vmatpush2.msra.mxu0 0.0
        %4569 = vmatprep.subr.mxu0 0.0
        %4570 = vmatpush2.msra.mxu0 0.0
        %4571 = vmatprep.subr.mxu0 0.0
        %4572 = vmatpush2.msra.mxu0 0.0
        %4573 = vmatprep.subr.mxu0 0.0
        %4574 = vmatpush2.msra.mxu0 0.0
        %4575 = vmatprep.subr.mxu0 0.0
        %4576 = vmatpush2.msra.mxu0 0.0
        %4577 = vmatprep.subr.mxu0 0.0
        %4578 = vmatpush2.msra.mxu0 0.0
        %4579 = vmatprep.mubr.f32.mxu0 0.0
        %4580 = vmatmul.mubr.f32.gmra.mxu0 %v4513
        %v4581 = vpop.f32.mrf.mxu0
        %v4582 = vadd.f32 0.0, %v4581
        %v4583 = vpop.f32.mrf.mxu0
        %4584 = vdwg.mxu0
        %4586 = vrot.lane.b32.xlu0 %v4582, 16
        %v4587 = vpop.permute.xlu0 %4586
        %4589 = vst.msk [vmem:[#allocation3 + $0x8] sm:$0xff] %vm2131, %v4587
        %v4590 = vld [vmem:[#allocation2 + $0x10] sm:$0xff]
        %v4591 = vld [vmem:[#allocation2] sm:$0xff]
        %v4592 = vld [vmem:[#allocation2 + $0x13] ss:$0 sm:$0xff]
        %4594 = vrot.lane.b32.xlu0 %v4592, 32
        %v4595 = vpop.permute.xlu0 %4594
        %4597 = vst.msk [vmem:[#allocation4] sm:$0x1] %vm2671, %v4595
        %v4598 = vld [vmem:[#allocation2 + $0x23] ss:$0 sm:$0xff]
        %4600 = vrot.lane.b32.xlu0 %v4598, 32
        %v4601 = vpop.permute.xlu0 %4600
        %4603 = vst.msk [vmem:[#allocation4 + $0x4] sm:$0x1] %vm2671, %v4601
        %v4604 = vld [vmem:[#allocation2 + $0x1b] ss:$0 sm:$0xff]
        %4605 = vst.msk [vmem:[#allocation4 + $0x1] sm:$0x1] %vm2671, %v4604
        %v4606 = vld [vmem:[#allocation2 + $0x2b] ss:$0 sm:$0xff]
        %4607 = vst.msk [vmem:[#allocation4 + $0x5] sm:$0x1] %vm2671, %v4606
        %v4608 = vld [vmem:[#allocation2 + $0x1b] ss:$0 sm:$0xff]
        %4610 = vrot.lane.b32.xlu0 %v4608, 96
        %v4611 = vpop.permute.xlu0 %4610
        %4613 = vst.msk [vmem:[#allocation4 + $0x2] sm:$0x1] %vm2671, %v4611
        %v4614 = vld [vmem:[#allocation2 + $0x2b] ss:$0 sm:$0xff]
        %4616 = vrot.lane.b32.xlu0 %v4614, 96
        %v4617 = vpop.permute.xlu0 %4616
        %4619 = vst.msk [vmem:[#allocation4 + $0x6] sm:$0x1] %vm2671, %v4617
        %v4620 = vld [vmem:[#allocation2 + $0x1b] ss:$0 sm:$0xff]
        %4622 = vrot.lane.b32.xlu0 %v4620, 64
        %v4623 = vpop.permute.xlu0 %4622
        %4625 = vst.msk [vmem:[#allocation4 + $0x3] sm:$0x1] %vm2671, %v4623
        %v4626 = vld [vmem:[#allocation2 + $0x2b] ss:$0 sm:$0xff]
        %4628 = vrot.lane.b32.xlu0 %v4626, 64
        %v4629 = vpop.permute.xlu0 %4628
        %4631 = vst.msk [vmem:[#allocation4 + $0x7] sm:$0x1] %vm2671, %v4629
        %v4632 = vld [vmem:[#allocation4] sm:$0xff]
        %v4634 = vcombine.high %v4632, %v4632
        %v4636 = vunpack.c.l.s4 1966171168
        %v4637 = vunpack.c.0.s8 %v4636
        %v4638 = vlaneseq
        %v4639 = vshrl.u32 %v4638, 7
        %v4640 = vsub.s32 %v4637, %v4639
        %v4641 = vrot.slane %v4632, %v4640
        %v4643 = vunpack.c.l.s4 1966171168
        %v4644 = vunpack.c.0.s8 %v4643
        %v4645 = vlaneseq
        %v4646 = vshrl.u32 %v4645, 7
        %v4647 = vsub.s32 %v4644, %v4646
        %v4648 = vrot.slane %v4634, %v4647
        %v4649 = vcombine.high %v4641, %v4641
        %v4650 = vcombine.high %v4648, %v4648
        %v4652 = vunpack.c.l.s4 1966171168
        %v4653 = vunpack.c.0.s8 %v4652
        %v4654 = vlaneseq
        %v4655 = vshrl.u32 %v4654, 7
        %v4656 = vsub.s32 %v4653, %v4655
        %v4657 = vrot.slane %v4641, %v4656
        %v4659 = vunpack.c.l.s4 1966171168
        %v4660 = vunpack.c.0.s8 %v4659
        %v4661 = vlaneseq
        %v4662 = vshrl.u32 %v4661, 7
        %v4663 = vsub.s32 %v4660, %v4662
        %v4664 = vrot.slane %v4648, %v4663
        %v4666 = vunpack.c.l.s4 1966171168
        %v4667 = vunpack.c.0.s8 %v4666
        %v4668 = vlaneseq
        %v4669 = vshrl.u32 %v4668, 7
        %v4670 = vsub.s32 %v4667, %v4669
        %v4671 = vrot.slane %v4649, %v4670
        %v4673 = vunpack.c.l.s4 1966171168
        %v4674 = vunpack.c.0.s8 %v4673
        %v4675 = vlaneseq
        %v4676 = vshrl.u32 %v4675, 7
        %v4677 = vsub.s32 %v4674, %v4676
        %v4678 = vrot.slane %v4650, %v4677
        %v4679 = vcombine.high %v4657, %v4657
        %v4680 = vcombine.high %v4664, %v4664
        %v4681 = vcombine.high %v4671, %v4671
        %v4682 = vcombine.high %v4678, %v4678
        %v4683 = vlaneseq
        %v4684 = vshrl.u32 %v4683, 7
        %v4685 = vsub.s32 0, %v4684
        %v4686 = vrot.slane %v4657, %v4685
        %v4687 = vlaneseq
        %v4688 = vshrl.u32 %v4687, 7
        %v4689 = vsub.s32 0, %v4688
        %v4690 = vrot.slane %v4671, %v4689
        %v4691 = vlaneseq
        %v4692 = vshrl.u32 %v4691, 7
        %v4693 = vsub.s32 0, %v4692
        %v4694 = vrot.slane %v4679, %v4693
        %v4695 = vlaneseq
        %v4696 = vshrl.u32 %v4695, 7
        %v4697 = vsub.s32 0, %v4696
        %v4698 = vrot.slane %v4681, %v4697
        %v4699 = vlaneseq
        %v4700 = vshrl.u32 %v4699, 7
        %v4701 = vsub.s32 0, %v4700
        %v4702 = vrot.slane %v4664, %v4701
        %v4703 = vlaneseq
        %v4704 = vshrl.u32 %v4703, 7
        %v4705 = vsub.s32 0, %v4704
        %v4706 = vrot.slane %v4678, %v4705
        %v4707 = vlaneseq
        %v4708 = vshrl.u32 %v4707, 7
        %v4709 = vsub.s32 0, %v4708
        %v4710 = vrot.slane %v4680, %v4709
        %v4711 = vlaneseq
        %v4712 = vshrl.u32 %v4711, 7
        %v4713 = vsub.s32 0, %v4712
        %v4714 = vrot.slane %v4682, %v4713
        %v4723 = vmul.f32 %v4686, %v2648
        %v4724 = vmul.f32 %v4686, %v2649
        %v4725 = vmul.f32 %v4690, %v2650
        %v4726 = vmul.f32 %v4690, %v2651
        %v4727 = vmul.f32 %v4694, %v2652
        %v4728 = vmul.f32 %v4694, %v2653
        %v4729 = vmul.f32 %v4698, %v2654
        %v4730 = vmul.f32 %v4698, %v2655
        %v4731 = vmul.f32 %v4702, %v2656
        %v4732 = vmul.f32 %v4702, %v2657
        %v4733 = vmul.f32 %v4706, %v2658
        %v4734 = vmul.f32 %v4706, %v2659
        %v4735 = vmul.f32 %v4710, %v2660
        %v4736 = vmul.f32 %v4710, %v2661
        %v4737 = vmul.f32 %v4714, %v2662
        %v4738 = vmul.f32 %v4714, %v2663
        %v4739 = vsel %vm590, %v4723, 0.0
        %4740 = vadd.xlane.f32.xlu0 %v4739
        %v4741 = vpop.xlane.xlu0 %4740
        %v4742 = vsel %vm590, %v4724, 0.0
        %4743 = vadd.xlane.f32.xlu0 %v4742
        %v4744 = vpop.xlane.xlu0 %4743
        %v4745 = vsel %vm590, %v4725, 0.0
        %4746 = vadd.xlane.f32.xlu0 %v4745
        %v4747 = vpop.xlane.xlu0 %4746
        %v4748 = vsel %vm590, %v4726, 0.0
        %4749 = vadd.xlane.f32.xlu0 %v4748
        %v4750 = vpop.xlane.xlu0 %4749
        %v4751 = vsel %vm590, %v4727, 0.0
        %4752 = vadd.xlane.f32.xlu0 %v4751
        %v4753 = vpop.xlane.xlu0 %4752
        %v4754 = vsel %vm590, %v4728, 0.0
        %4755 = vadd.xlane.f32.xlu0 %v4754
        %v4756 = vpop.xlane.xlu0 %4755
        %v4757 = vsel %vm590, %v4729, 0.0
        %4758 = vadd.xlane.f32.xlu0 %v4757
        %v4759 = vpop.xlane.xlu0 %4758
        %v4760 = vsel %vm590, %v4730, 0.0
        %4761 = vadd.xlane.f32.xlu0 %v4760
        %v4762 = vpop.xlane.xlu0 %4761
        %v4763 = vsel %vm590, %v4731, 0.0
        %4764 = vadd.xlane.f32.xlu0 %v4763
        %v4765 = vpop.xlane.xlu0 %4764
        %v4766 = vsel %vm590, %v4732, 0.0
        %4767 = vadd.xlane.f32.xlu0 %v4766
        %v4768 = vpop.xlane.xlu0 %4767
        %v4769 = vsel %vm590, %v4733, 0.0
        %4770 = vadd.xlane.f32.xlu0 %v4769
        %v4771 = vpop.xlane.xlu0 %4770
        %v4772 = vsel %vm590, %v4734, 0.0
        %4773 = vadd.xlane.f32.xlu0 %v4772
        %v4774 = vpop.xlane.xlu0 %4773
        %v4775 = vsel %vm590, %v4735, 0.0
        %4776 = vadd.xlane.f32.xlu0 %v4775
        %v4777 = vpop.xlane.xlu0 %4776
        %v4778 = vsel %vm590, %v4736, 0.0
        %4779 = vadd.xlane.f32.xlu0 %v4778
        %v4780 = vpop.xlane.xlu0 %4779
        %v4781 = vsel %vm590, %v4737, 0.0
        %4782 = vadd.xlane.f32.xlu0 %v4781
        %v4783 = vpop.xlane.xlu0 %4782
        %v4784 = vsel %vm590, %v4738, 0.0
        %4785 = vadd.xlane.f32.xlu0 %v4784
        %v4786 = vpop.xlane.xlu0 %4785
        %v4787 = vld [vmem:[%s535 + $0x30] sm:$0xff]
        %v4789 = vlaneseq
        %v4790 = vshrl.u32 %v4789, 7
        %v4791 = vsub.s32 0, %v4790
        %v4792 = vrot.slane %v4787, %v4791
        %4794 = vbcast.lane.b32.xlu0 %v4792, 256
        %v4795 = vpop.permute.xlu0 %4794
        %s4797 = sor.u32 256, 8
        %4798 = vbcast.lane.b32.xlu0 %v4792, %s4797
        %v4799 = vpop.permute.xlu0 %4798
        %v4800 = vlaneseq
        %v4801 = vshrl.u32 %v4800, 7
        %v4802 = vsub.s32 1, %v4801
        %v4803 = vrot.slane %v4787, %v4802
        %4805 = vbcast.lane.b32.xlu0 %v4803, 256
        %v4806 = vpop.permute.xlu0 %4805
        %s4808 = sor.u32 256, 8
        %4809 = vbcast.lane.b32.xlu0 %v4803, %s4808
        %v4810 = vpop.permute.xlu0 %4809
        %v4811 = vlaneseq
        %v4812 = vshrl.u32 %v4811, 7
        %v4813 = vsub.s32 2, %v4812
        %v4814 = vrot.slane %v4787, %v4813
        %4816 = vbcast.lane.b32.xlu0 %v4814, 256
        %v4817 = vpop.permute.xlu0 %4816
        %s4819 = sor.u32 256, 8
        %4820 = vbcast.lane.b32.xlu0 %v4814, %s4819
        %v4821 = vpop.permute.xlu0 %4820
        %v4822 = vlaneseq
        %v4823 = vshrl.u32 %v4822, 7
        %v4824 = vsub.s32 3, %v4823
        %v4825 = vrot.slane %v4787, %v4824
        %4827 = vbcast.lane.b32.xlu0 %v4825, 256
        %v4828 = vpop.permute.xlu0 %4827
        %s4830 = sor.u32 256, 8
        %4831 = vbcast.lane.b32.xlu0 %v4825, %s4830
        %v4832 = vpop.permute.xlu0 %4831
        %v4833 = vlaneseq
        %v4834 = vshrl.u32 %v4833, 7
        %v4835 = vsub.s32 4, %v4834
        %v4836 = vrot.slane %v4787, %v4835
        %4838 = vbcast.lane.b32.xlu0 %v4836, 256
        %v4839 = vpop.permute.xlu0 %4838
        %s4841 = sor.u32 256, 8
        %4842 = vbcast.lane.b32.xlu0 %v4836, %s4841
        %v4843 = vpop.permute.xlu0 %4842
        %v4844 = vlaneseq
        %v4845 = vshrl.u32 %v4844, 7
        %v4846 = vsub.s32 5, %v4845
        %v4847 = vrot.slane %v4787, %v4846
        %4849 = vbcast.lane.b32.xlu0 %v4847, 256
        %v4850 = vpop.permute.xlu0 %4849
        %s4852 = sor.u32 256, 8
        %4853 = vbcast.lane.b32.xlu0 %v4847, %s4852
        %v4854 = vpop.permute.xlu0 %4853
        %v4855 = vlaneseq
        %v4856 = vshrl.u32 %v4855, 7
        %v4857 = vsub.s32 6, %v4856
        %v4858 = vrot.slane %v4787, %v4857
        %4860 = vbcast.lane.b32.xlu0 %v4858, 256
        %v4861 = vpop.permute.xlu0 %4860
        %s4863 = sor.u32 256, 8
        %4864 = vbcast.lane.b32.xlu0 %v4858, %s4863
        %v4865 = vpop.permute.xlu0 %4864
        %v4866 = vlaneseq
        %v4867 = vshrl.u32 %v4866, 7
        %v4868 = vsub.s32 7, %v4867
        %v4869 = vrot.slane %v4787, %v4868
        %4871 = vbcast.lane.b32.xlu0 %v4869, 256
        %v4872 = vpop.permute.xlu0 %4871
        %s4874 = sor.u32 256, 8
        %4875 = vbcast.lane.b32.xlu0 %v4869, %s4874
        %v4876 = vpop.permute.xlu0 %4875
        %v4893 = vadd.f32 %v4741, %v4795
        %v4894 = vadd.f32 %v4744, %v4799
        %v4895 = vadd.f32 %v4747, %v4806
        %v4896 = vadd.f32 %v4750, %v4810
        %v4897 = vadd.f32 %v4753, %v4817
        %v4898 = vadd.f32 %v4756, %v4821
        %v4899 = vadd.f32 %v4759, %v4828
        %v4900 = vadd.f32 %v4762, %v4832
        %v4901 = vadd.f32 %v4765, %v4839
        %v4902 = vadd.f32 %v4768, %v4843
        %v4903 = vadd.f32 %v4771, %v4850
        %v4904 = vadd.f32 %v4774, %v4854
        %v4905 = vadd.f32 %v4777, %v4861
        %v4906 = vadd.f32 %v4780, %v4865
        %v4907 = vadd.f32 %v4783, %v4872
        %v4908 = vadd.f32 %v4786, %v4876
        %4910 = vrot.lane.b32.xlu0 %v4590, 104
        %v4911 = vpop.permute.xlu0 %4910
        %4913 = vrot.lane.b32.xlu0 %v4591, 72
        %v4914 = vpop.permute.xlu0 %4913
        %4915 = vrot.lane.b32.xlu0 %v4590, 72
        %v4916 = vpop.permute.xlu0 %4915
        %4933 = vset.pattern.permute.xlu0 0
        %4934 = vperm.xlu0 %4933, %v4893
        %v4935 = vpop.permute.xlu0 %4934
        %4936 = vset.pattern.permute.xlu0 0
        %4937 = vperm.xlu0 %4936, %v4894
        %v4938 = vpop.permute.xlu0 %4937
        %4939 = vset.pattern.permute.xlu0 0
        %4940 = vperm.xlu0 %4939, %v4895
        %v4941 = vpop.permute.xlu0 %4940
        %4942 = vset.pattern.permute.xlu0 0
        %4943 = vperm.xlu0 %4942, %v4896
        %v4944 = vpop.permute.xlu0 %4943
        %4945 = vset.pattern.permute.xlu0 0
        %4946 = vperm.xlu0 %4945, %v4897
        %v4947 = vpop.permute.xlu0 %4946
        %4948 = vset.pattern.permute.xlu0 0
        %4949 = vperm.xlu0 %4948, %v4898
        %v4950 = vpop.permute.xlu0 %4949
        %4951 = vset.pattern.permute.xlu0 0
        %4952 = vperm.xlu0 %4951, %v4899
        %v4953 = vpop.permute.xlu0 %4952
        %4954 = vset.pattern.permute.xlu0 0
        %4955 = vperm.xlu0 %4954, %v4900
        %v4956 = vpop.permute.xlu0 %4955
        %4957 = vset.pattern.permute.xlu0 0
        %4958 = vperm.xlu0 %4957, %v4901
        %v4959 = vpop.permute.xlu0 %4958
        %4960 = vset.pattern.permute.xlu0 0
        %4961 = vperm.xlu0 %4960, %v4902
        %v4962 = vpop.permute.xlu0 %4961
        %4963 = vset.pattern.permute.xlu0 0
        %4964 = vperm.xlu0 %4963, %v4903
        %v4965 = vpop.permute.xlu0 %4964
        %4966 = vset.pattern.permute.xlu0 0
        %4967 = vperm.xlu0 %4966, %v4904
        %v4968 = vpop.permute.xlu0 %4967
        %4969 = vset.pattern.permute.xlu0 0
        %4970 = vperm.xlu0 %4969, %v4905
        %v4971 = vpop.permute.xlu0 %4970
        %4972 = vset.pattern.permute.xlu0 0
        %4973 = vperm.xlu0 %4972, %v4906
        %v4974 = vpop.permute.xlu0 %4973
        %4975 = vset.pattern.permute.xlu0 0
        %4976 = vperm.xlu0 %4975, %v4907
        %v4977 = vpop.permute.xlu0 %4976
        %4978 = vset.pattern.permute.xlu0 0
        %4979 = vperm.xlu0 %4978, %v4908
        %v4980 = vpop.permute.xlu0 %4979
        %v4981 = vlaneseq
        %v4982 = vshrl.u32 %v4981, 7
        %v4983 = vsub.s32 %v979, %v4982
        %v4984 = vrot.slane %v4935, %v4983
        %v4985 = vlaneseq
        %v4986 = vshrl.u32 %v4985, 7
        %v4987 = vsub.s32 %v3058, %v4986
        %v4988 = vrot.slane %v4938, %v4987
        %v4989 = vsel %vm1632, %v4988, %v4984
        %v4990 = vlaneseq
        %v4991 = vshrl.u32 %v4990, 7
        %v4992 = vsub.s32 %v979, %v4991
        %v4993 = vrot.slane %v4941, %v4992
        %v4994 = vlaneseq
        %v4995 = vshrl.u32 %v4994, 7
        %v4996 = vsub.s32 %v3058, %v4995
        %v4997 = vrot.slane %v4944, %v4996
        %v4998 = vsel %vm1632, %v4997, %v4993
        %v4999 = vlaneseq
        %v5000 = vshrl.u32 %v4999, 7
        %v5001 = vsub.s32 %v979, %v5000
        %v5002 = vrot.slane %v4947, %v5001
        %v5003 = vlaneseq
        %v5004 = vshrl.u32 %v5003, 7
        %v5005 = vsub.s32 %v3058, %v5004
        %v5006 = vrot.slane %v4950, %v5005
        %v5007 = vsel %vm1632, %v5006, %v5002
        %v5008 = vlaneseq
        %v5009 = vshrl.u32 %v5008, 7
        %v5010 = vsub.s32 %v979, %v5009
        %v5011 = vrot.slane %v4953, %v5010
        %v5012 = vlaneseq
        %v5013 = vshrl.u32 %v5012, 7
        %v5014 = vsub.s32 %v3058, %v5013
        %v5015 = vrot.slane %v4956, %v5014
        %v5016 = vsel %vm1632, %v5015, %v5011
        %v5017 = vlaneseq
        %v5018 = vshrl.u32 %v5017, 7
        %v5019 = vsub.s32 %v979, %v5018
        %v5020 = vrot.slane %v4959, %v5019
        %v5021 = vlaneseq
        %v5022 = vshrl.u32 %v5021, 7
        %v5023 = vsub.s32 %v3058, %v5022
        %v5024 = vrot.slane %v4962, %v5023
        %v5025 = vsel %vm1632, %v5024, %v5020
        %v5026 = vlaneseq
        %v5027 = vshrl.u32 %v5026, 7
        %v5028 = vsub.s32 %v979, %v5027
        %v5029 = vrot.slane %v4965, %v5028
        %v5030 = vlaneseq
        %v5031 = vshrl.u32 %v5030, 7
        %v5032 = vsub.s32 %v3058, %v5031
        %v5033 = vrot.slane %v4968, %v5032
        %v5034 = vsel %vm1632, %v5033, %v5029
        %v5035 = vlaneseq
        %v5036 = vshrl.u32 %v5035, 7
        %v5037 = vsub.s32 %v979, %v5036
        %v5038 = vrot.slane %v4971, %v5037
        %v5039 = vlaneseq
        %v5040 = vshrl.u32 %v5039, 7
        %v5041 = vsub.s32 %v3058, %v5040
        %v5042 = vrot.slane %v4974, %v5041
        %v5043 = vsel %vm1632, %v5042, %v5038
        %v5044 = vlaneseq
        %v5045 = vshrl.u32 %v5044, 7
        %v5046 = vsub.s32 %v979, %v5045
        %v5047 = vrot.slane %v4977, %v5046
        %v5048 = vlaneseq
        %v5049 = vshrl.u32 %v5048, 7
        %v5050 = vsub.s32 %v3058, %v5049
        %v5051 = vrot.slane %v4980, %v5050
        %v5052 = vsel %vm1632, %v5051, %v5047
        %v5053 = vsel %vm1012, %v4998, %v4989
        %v5054 = vsel %vm1014, %v5007, %v5053
        %v5055 = vsel %vm1016, %v5016, %v5054
        %v5056 = vsel %vm1018, %v5025, %v5055
        %v5057 = vsel %vm1020, %v5034, %v5056
        %v5058 = vsel %vm1022, %v5043, %v5057
        %v5059 = vsel %vm1024, %v5052, %v5058
        %v5061 = vsel %vm1027, %v4911, 0
        %v5063 = vsel %vm1027, %v4914, 0
        %v5065 = vsel %vm1027, %v4916, 0
        %5067 = vmatprep.subr.mxu0 0.0
        %5068 = vmatpush1.xpose.msra.mxu0 0.0
        %5069 = vmatprep.subr.mxu0 0.0
        %5070 = vmatpush1.xpose.msra.mxu0 0.0
        %5071 = vmatprep.subr.mxu0 0.0
        %5072 = vmatpush1.xpose.msra.mxu0 0.0
        %5073 = vmatprep.subr.mxu0 0.0
        %5074 = vmatpush1.xpose.msra.mxu0 0.0
        %5075 = vmatprep.subr.mxu0 0.0
        %5076 = vmatpush1.xpose.msra.mxu0 0.0
        %5077 = vmatprep.subr.mxu0 0.0
        %5078 = vmatpush1.xpose.msra.mxu0 0.0
        %5079 = vmatprep.subr.mxu0 0.0
        %5080 = vmatpush1.xpose.msra.mxu0 0.0
        %5081 = vmatprep.subr.mxu0 0.0
        %5082 = vmatpush1.xpose.msra.mxu0 0.0
        %5083 = vmatprep.subr.mxu0 0.0
        %5084 = vmatpush1.xpose.msra.mxu0 0.0
        %5085 = vmatprep.subr.mxu0 0.0
        %5086 = vmatpush1.xpose.msra.mxu0 0.0
        %5087 = vmatprep.subr.mxu0 0.0
        %5088 = vmatpush1.xpose.msra.mxu0 0.0
        %5089 = vmatprep.subr.mxu0 0.0
        %5090 = vmatpush1.xpose.msra.mxu0 0.0
        %5091 = vmatprep.subr.mxu0 0.0
        %5092 = vmatpush1.xpose.msra.mxu0 0.0
        %5093 = vmatprep.subr.mxu0 0.0
        %5094 = vmatpush1.xpose.msra.mxu0 0.0
        %5095 = vmatprep.subr.mxu0 0.0
        %5096 = vmatpush1.xpose.msra.mxu0 %v5065
        %5097 = vmatprep.subr.mxu0 0.0
        %5098 = vmatpush1.xpose.msra.mxu0 %v5063
        %5099 = vmatprep.subr.mxu0 0.0
        %5100 = vmatpush2.xpose.msra.mxu0 0.0
        %5101 = vmatprep.subr.mxu0 0.0
        %5102 = vmatpush2.xpose.msra.mxu0 0.0
        %5103 = vmatprep.subr.mxu0 0.0
        %5104 = vmatpush2.xpose.msra.mxu0 0.0
        %5105 = vmatprep.subr.mxu0 0.0
        %5106 = vmatpush2.xpose.msra.mxu0 0.0
        %5107 = vmatprep.subr.mxu0 0.0
        %5108 = vmatpush2.xpose.msra.mxu0 0.0
        %5109 = vmatprep.subr.mxu0 0.0
        %5110 = vmatpush2.xpose.msra.mxu0 0.0
        %5111 = vmatprep.subr.mxu0 0.0
        %5112 = vmatpush2.xpose.msra.mxu0 0.0
        %5113 = vmatprep.subr.mxu0 0.0
        %5114 = vmatpush2.xpose.msra.mxu0 0.0
        %5115 = vmatprep.subr.mxu0 0.0
        %5116 = vmatpush2.xpose.msra.mxu0 0.0
        %5117 = vmatprep.subr.mxu0 0.0
        %5118 = vmatpush2.xpose.msra.mxu0 0.0
        %5119 = vmatprep.subr.mxu0 0.0
        %5120 = vmatpush2.xpose.msra.mxu0 0.0
        %5121 = vmatprep.subr.mxu0 0.0
        %5122 = vmatpush2.xpose.msra.mxu0 0.0
        %5123 = vmatprep.subr.mxu0 0.0
        %5124 = vmatpush2.xpose.msra.mxu0 0.0
        %5125 = vmatprep.subr.mxu0 0.0
        %5126 = vmatpush2.xpose.msra.mxu0 0.0
        %5127 = vmatprep.subr.mxu0 0.0
        %5128 = vmatpush2.xpose.msra.mxu0 0.0
        %5129 = vmatprep.subr.mxu0 0.0
        %5130 = vmatpush2.xpose.msra.mxu0 0.0
        %5131 = vmatprep.mubr.f32.mxu0 0.0
        %5132 = vmatmul.mubr.f32.gmra.mxu0 %v5061
        %v5133 = vpop.f32.mrf.mxu0
        %v5134 = vadd.f32 %v5059, %v5133
        %v5135 = vpop.f32.mrf.mxu0
        %5136 = vdwg.mxu0
        %v5137 = vsel %vm3211, %v5134, -inf
        %5138 = vmax.xlane.f32.xlu0 %v5137
        %v5139 = vpop.xlane.xlu0 %5138
        %v5140 = vsub.f32 %v5134, %v5139
        %v5141 = vmul.f32 %v5140, 1.442695
        %v5142 = vpow.pop %v5141
        %v5143 = vsel %vm3211, %v5142, 0.0
        %5144 = vadd.xlane.f32.xlu0 %v5143
        %v5145 = vpop.xlane.xlu0 %5144
        %v5146 = vrcp.pop %v5145
        %v5147 = vmul.f32 %v5142, %v5146
        %5148 = vst.msk [vmem:[%s500 + $0x18] sm:$0xff] %vm3211, %v5147
        %5149 = vrot.lane.b32.xlu0 %v4591, 40
        %v5150 = vpop.permute.xlu0 %5149
        %5151 = vrot.lane.b32.xlu0 %v4590, 40
        %v5152 = vpop.permute.xlu0 %5151
        %v5156 = vsel %vm3211, %v5147, 0
        %5158 = vmatprep.subr.mxu0 0.0
        %5159 = vmatpush1.msra.mxu0 0.0
        %5160 = vmatprep.subr.mxu0 0.0
        %5161 = vmatpush1.msra.mxu0 0.0
        %5162 = vmatprep.subr.mxu0 0.0
        %5163 = vmatpush1.msra.mxu0 0.0
        %5164 = vmatprep.subr.mxu0 0.0
        %5165 = vmatpush1.msra.mxu0 0.0
        %5166 = vmatprep.subr.mxu0 0.0
        %5167 = vmatpush1.msra.mxu0 0.0
        %5168 = vmatprep.subr.mxu0 0.0
        %5169 = vmatpush1.msra.mxu0 0.0
        %5170 = vmatprep.subr.mxu0 0.0
        %5171 = vmatpush1.msra.mxu0 0.0
        %5172 = vmatprep.subr.mxu0 0.0
        %5173 = vmatpush1.msra.mxu0 0.0
        %5174 = vmatprep.subr.mxu0 0.0
        %5175 = vmatpush1.msra.mxu0 0.0
        %5176 = vmatprep.subr.mxu0 0.0
        %5177 = vmatpush1.msra.mxu0 0.0
        %5178 = vmatprep.subr.mxu0 0.0
        %5179 = vmatpush1.msra.mxu0 0.0
        %5180 = vmatprep.subr.mxu0 0.0
        %5181 = vmatpush1.msra.mxu0 0.0
        %5182 = vmatprep.subr.mxu0 0.0
        %5183 = vmatpush1.msra.mxu0 0.0
        %5184 = vmatprep.subr.mxu0 0.0
        %5185 = vmatpush1.msra.mxu0 0.0
        %5186 = vmatprep.subr.mxu0 0.0
        %5187 = vmatpush1.msra.mxu0 %v5152
        %5188 = vmatprep.subr.mxu0 0.0
        %5189 = vmatpush1.msra.mxu0 %v5150
        %5190 = vmatprep.subr.mxu0 0.0
        %5191 = vmatpush2.msra.mxu0 0.0
        %5192 = vmatprep.subr.mxu0 0.0
        %5193 = vmatpush2.msra.mxu0 0.0
        %5194 = vmatprep.subr.mxu0 0.0
        %5195 = vmatpush2.msra.mxu0 0.0
        %5196 = vmatprep.subr.mxu0 0.0
        %5197 = vmatpush2.msra.mxu0 0.0
        %5198 = vmatprep.subr.mxu0 0.0
        %5199 = vmatpush2.msra.mxu0 0.0
        %5200 = vmatprep.subr.mxu0 0.0
        %5201 = vmatpush2.msra.mxu0 0.0
        %5202 = vmatprep.subr.mxu0 0.0
        %5203 = vmatpush2.msra.mxu0 0.0
        %5204 = vmatprep.subr.mxu0 0.0
        %5205 = vmatpush2.msra.mxu0 0.0
        %5206 = vmatprep.subr.mxu0 0.0
        %5207 = vmatpush2.msra.mxu0 0.0
        %5208 = vmatprep.subr.mxu0 0.0
        %5209 = vmatpush2.msra.mxu0 0.0
        %5210 = vmatprep.subr.mxu0 0.0
        %5211 = vmatpush2.msra.mxu0 0.0
        %5212 = vmatprep.subr.mxu0 0.0
        %5213 = vmatpush2.msra.mxu0 0.0
        %5214 = vmatprep.subr.mxu0 0.0
        %5215 = vmatpush2.msra.mxu0 0.0
        %5216 = vmatprep.subr.mxu0 0.0
        %5217 = vmatpush2.msra.mxu0 0.0
        %5218 = vmatprep.subr.mxu0 0.0
        %5219 = vmatpush2.msra.mxu0 0.0
        %5220 = vmatprep.subr.mxu0 0.0
        %5221 = vmatpush2.msra.mxu0 0.0
        %5222 = vmatprep.mubr.f32.mxu0 0.0
        %5223 = vmatmul.mubr.f32.gmra.mxu0 %v5156
        %v5224 = vpop.f32.mrf.mxu0
        %v5225 = vadd.f32 0.0, %v5224
        %v5226 = vpop.f32.mrf.mxu0
        %5227 = vdwg.mxu0
        %5229 = vrot.lane.b32.xlu0 %v5225, 24
        %v5230 = vpop.permute.xlu0 %5229
        %5232 = vst.msk [vmem:[#allocation3 + $0x8] sm:$0xff] %vm2630, %v5230
        %s5233 = scalar_lea.vmem %s6, 64
        %v5234 = vld [vmem:[%s5233] sm:$0xf]
        %v5235 = vld [vmem:[%s5233 + $0x4] sm:$0xf]
        %v5236 = vld [vmem:[%s5233 + $0x8] sm:$0xf]
        %v5237 = vld [vmem:[%s5233 + $0xc] sm:$0xf]
        %v5238 = vld [vmem:[%s5233 + $0x10] sm:$0xf]
        %v5239 = vld [vmem:[%s5233 + $0x14] sm:$0xf]
        %v5240 = vld [vmem:[%s5233 + $0x18] sm:$0xf]
        %v5241 = vld [vmem:[%s5233 + $0x1c] sm:$0xf]
        %v5242 = vld [vmem:[%s5233 + $0x20] sm:$0xf]
        %v5243 = vld [vmem:[%s5233 + $0x24] sm:$0xf]
        %v5244 = vld [vmem:[%s5233 + $0x28] sm:$0xf]
        %v5245 = vld [vmem:[%s5233 + $0x2c] sm:$0xf]
        %v5246 = vld [vmem:[%s5233 + $0x30] sm:$0xf]
        %v5247 = vld [vmem:[%s5233 + $0x34] sm:$0xf]
        %v5248 = vld [vmem:[%s5233 + $0x38] sm:$0xf]
        %v5249 = vld [vmem:[%s5233 + $0x3c] sm:$0xf]
        %v5250 = vunpack.c.l.bf16 %v5234
        %v5251 = vunpack.c.l.bf16 %v5235
        %v5252 = vunpack.c.l.bf16 %v5236
        %v5253 = vunpack.c.l.bf16 %v5237
        %v5254 = vunpack.c.l.bf16 %v5238
        %v5255 = vunpack.c.l.bf16 %v5239
        %v5256 = vunpack.c.l.bf16 %v5240
        %v5257 = vunpack.c.l.bf16 %v5241
        %v5258 = vunpack.c.l.bf16 %v5242
        %v5259 = vunpack.c.l.bf16 %v5243
        %v5260 = vunpack.c.l.bf16 %v5244
        %v5261 = vunpack.c.l.bf16 %v5245
        %v5262 = vunpack.c.l.bf16 %v5246
        %v5263 = vunpack.c.l.bf16 %v5247
        %v5264 = vunpack.c.l.bf16 %v5248
        %v5265 = vunpack.c.l.bf16 %v5249
        %v5266 = vld [vmem:[#allocation2 + $0x20] sm:$0xff]
        %v5267 = vld [vmem:[#allocation2] sm:$0xff]
        %v5268 = vld [vmem:[#allocation2 + $0x14] ss:$0 sm:$0xff]
        %5270 = vrot.lane.b32.xlu0 %v5268, 32
        %v5271 = vpop.permute.xlu0 %5270
        %5273 = vst.msk [vmem:[#allocation4] sm:$0x1] %vm2671, %v5271
        %v5274 = vld [vmem:[#allocation2 + $0x24] ss:$0 sm:$0xff]
        %5276 = vrot.lane.b32.xlu0 %v5274, 32
        %v5277 = vpop.permute.xlu0 %5276
        %5279 = vst.msk [vmem:[#allocation4 + $0x4] sm:$0x1] %vm2671, %v5277
        %v5280 = vld [vmem:[#allocation2 + $0x1c] ss:$0 sm:$0xff]
        %5281 = vst.msk [vmem:[#allocation4 + $0x1] sm:$0x1] %vm2671, %v5280
        %v5282 = vld [vmem:[#allocation2 + $0x2c] ss:$0 sm:$0xff]
        %5283 = vst.msk [vmem:[#allocation4 + $0x5] sm:$0x1] %vm2671, %v5282
        %v5284 = vld [vmem:[#allocation2 + $0x1c] ss:$0 sm:$0xff]
        %5286 = vrot.lane.b32.xlu0 %v5284, 96
        %v5287 = vpop.permute.xlu0 %5286
        %5289 = vst.msk [vmem:[#allocation4 + $0x2] sm:$0x1] %vm2671, %v5287
        %v5290 = vld [vmem:[#allocation2 + $0x2c] ss:$0 sm:$0xff]
        %5292 = vrot.lane.b32.xlu0 %v5290, 96
        %v5293 = vpop.permute.xlu0 %5292
        %5295 = vst.msk [vmem:[#allocation4 + $0x6] sm:$0x1] %vm2671, %v5293
        %v5296 = vld [vmem:[#allocation2 + $0x1c] ss:$0 sm:$0xff]
        %5298 = vrot.lane.b32.xlu0 %v5296, 64
        %v5299 = vpop.permute.xlu0 %5298
        %5301 = vst.msk [vmem:[#allocation4 + $0x3] sm:$0x1] %vm2671, %v5299
        %v5302 = vld [vmem:[#allocation2 + $0x2c] ss:$0 sm:$0xff]
        %5304 = vrot.lane.b32.xlu0 %v5302, 64
        %v5305 = vpop.permute.xlu0 %5304
        %5307 = vst.msk [vmem:[#allocation4 + $0x7] sm:$0x1] %vm2671, %v5305
        %v5308 = vld [vmem:[#allocation4] sm:$0xff]
        %v5310 = vcombine.high %v5308, %v5308
        %v5312 = vunpack.c.l.s4 1966171168
        %v5313 = vunpack.c.0.s8 %v5312
        %v5314 = vlaneseq
        %v5315 = vshrl.u32 %v5314, 7
        %v5316 = vsub.s32 %v5313, %v5315
        %v5317 = vrot.slane %v5308, %v5316
        %v5319 = vunpack.c.l.s4 1966171168
        %v5320 = vunpack.c.0.s8 %v5319
        %v5321 = vlaneseq
        %v5322 = vshrl.u32 %v5321, 7
        %v5323 = vsub.s32 %v5320, %v5322
        %v5324 = vrot.slane %v5310, %v5323
        %v5325 = vcombine.high %v5317, %v5317
        %v5326 = vcombine.high %v5324, %v5324
        %v5328 = vunpack.c.l.s4 1966171168
        %v5329 = vunpack.c.0.s8 %v5328
        %v5330 = vlaneseq
        %v5331 = vshrl.u32 %v5330, 7
        %v5332 = vsub.s32 %v5329, %v5331
        %v5333 = vrot.slane %v5317, %v5332
        %v5335 = vunpack.c.l.s4 1966171168
        %v5336 = vunpack.c.0.s8 %v5335
        %v5337 = vlaneseq
        %v5338 = vshrl.u32 %v5337, 7
        %v5339 = vsub.s32 %v5336, %v5338
        %v5340 = vrot.slane %v5324, %v5339
        %v5342 = vunpack.c.l.s4 1966171168
        %v5343 = vunpack.c.0.s8 %v5342
        %v5344 = vlaneseq
        %v5345 = vshrl.u32 %v5344, 7
        %v5346 = vsub.s32 %v5343, %v5345
        %v5347 = vrot.slane %v5325, %v5346
        %v5349 = vunpack.c.l.s4 1966171168
        %v5350 = vunpack.c.0.s8 %v5349
        %v5351 = vlaneseq
        %v5352 = vshrl.u32 %v5351, 7
        %v5353 = vsub.s32 %v5350, %v5352
        %v5354 = vrot.slane %v5326, %v5353
        %v5355 = vcombine.high %v5333, %v5333
        %v5356 = vcombine.high %v5340, %v5340
        %v5357 = vcombine.high %v5347, %v5347
        %v5358 = vcombine.high %v5354, %v5354
        %v5359 = vlaneseq
        %v5360 = vshrl.u32 %v5359, 7
        %v5361 = vsub.s32 0, %v5360
        %v5362 = vrot.slane %v5333, %v5361
        %v5363 = vlaneseq
        %v5364 = vshrl.u32 %v5363, 7
        %v5365 = vsub.s32 0, %v5364
        %v5366 = vrot.slane %v5347, %v5365
        %v5367 = vlaneseq
        %v5368 = vshrl.u32 %v5367, 7
        %v5369 = vsub.s32 0, %v5368
        %v5370 = vrot.slane %v5355, %v5369
        %v5371 = vlaneseq
        %v5372 = vshrl.u32 %v5371, 7
        %v5373 = vsub.s32 0, %v5372
        %v5374 = vrot.slane %v5357, %v5373
        %v5375 = vlaneseq
        %v5376 = vshrl.u32 %v5375, 7
        %v5377 = vsub.s32 0, %v5376
        %v5378 = vrot.slane %v5340, %v5377
        %v5379 = vlaneseq
        %v5380 = vshrl.u32 %v5379, 7
        %v5381 = vsub.s32 0, %v5380
        %v5382 = vrot.slane %v5354, %v5381
        %v5383 = vlaneseq
        %v5384 = vshrl.u32 %v5383, 7
        %v5385 = vsub.s32 0, %v5384
        %v5386 = vrot.slane %v5356, %v5385
        %v5387 = vlaneseq
        %v5388 = vshrl.u32 %v5387, 7
        %v5389 = vsub.s32 0, %v5388
        %v5390 = vrot.slane %v5358, %v5389
        %v5399 = vmul.f32 %v5362, %v5250
        %v5400 = vmul.f32 %v5362, %v5251
        %v5401 = vmul.f32 %v5366, %v5252
        %v5402 = vmul.f32 %v5366, %v5253
        %v5403 = vmul.f32 %v5370, %v5254
        %v5404 = vmul.f32 %v5370, %v5255
        %v5405 = vmul.f32 %v5374, %v5256
        %v5406 = vmul.f32 %v5374, %v5257
        %v5407 = vmul.f32 %v5378, %v5258
        %v5408 = vmul.f32 %v5378, %v5259
        %v5409 = vmul.f32 %v5382, %v5260
        %v5410 = vmul.f32 %v5382, %v5261
        %v5411 = vmul.f32 %v5386, %v5262
        %v5412 = vmul.f32 %v5386, %v5263
        %v5413 = vmul.f32 %v5390, %v5264
        %v5414 = vmul.f32 %v5390, %v5265
        %v5415 = vsel %vm590, %v5399, 0.0
        %5416 = vadd.xlane.f32.xlu0 %v5415
        %v5417 = vpop.xlane.xlu0 %5416
        %v5418 = vsel %vm590, %v5400, 0.0
        %5419 = vadd.xlane.f32.xlu0 %v5418
        %v5420 = vpop.xlane.xlu0 %5419
        %v5421 = vsel %vm590, %v5401, 0.0
        %5422 = vadd.xlane.f32.xlu0 %v5421
        %v5423 = vpop.xlane.xlu0 %5422
        %v5424 = vsel %vm590, %v5402, 0.0
        %5425 = vadd.xlane.f32.xlu0 %v5424
        %v5426 = vpop.xlane.xlu0 %5425
        %v5427 = vsel %vm590, %v5403, 0.0
        %5428 = vadd.xlane.f32.xlu0 %v5427
        %v5429 = vpop.xlane.xlu0 %5428
        %v5430 = vsel %vm590, %v5404, 0.0
        %5431 = vadd.xlane.f32.xlu0 %v5430
        %v5432 = vpop.xlane.xlu0 %5431
        %v5433 = vsel %vm590, %v5405, 0.0
        %5434 = vadd.xlane.f32.xlu0 %v5433
        %v5435 = vpop.xlane.xlu0 %5434
        %v5436 = vsel %vm590, %v5406, 0.0
        %5437 = vadd.xlane.f32.xlu0 %v5436
        %v5438 = vpop.xlane.xlu0 %5437
        %v5439 = vsel %vm590, %v5407, 0.0
        %5440 = vadd.xlane.f32.xlu0 %v5439
        %v5441 = vpop.xlane.xlu0 %5440
        %v5442 = vsel %vm590, %v5408, 0.0
        %5443 = vadd.xlane.f32.xlu0 %v5442
        %v5444 = vpop.xlane.xlu0 %5443
        %v5445 = vsel %vm590, %v5409, 0.0
        %5446 = vadd.xlane.f32.xlu0 %v5445
        %v5447 = vpop.xlane.xlu0 %5446
        %v5448 = vsel %vm590, %v5410, 0.0
        %5449 = vadd.xlane.f32.xlu0 %v5448
        %v5450 = vpop.xlane.xlu0 %5449
        %v5451 = vsel %vm590, %v5411, 0.0
        %5452 = vadd.xlane.f32.xlu0 %v5451
        %v5453 = vpop.xlane.xlu0 %5452
        %v5454 = vsel %vm590, %v5412, 0.0
        %5455 = vadd.xlane.f32.xlu0 %v5454
        %v5456 = vpop.xlane.xlu0 %5455
        %v5457 = vsel %vm590, %v5413, 0.0
        %5458 = vadd.xlane.f32.xlu0 %v5457
        %v5459 = vpop.xlane.xlu0 %5458
        %v5460 = vsel %vm590, %v5414, 0.0
        %5461 = vadd.xlane.f32.xlu0 %v5460
        %v5462 = vpop.xlane.xlu0 %5461
        %v5463 = vld [vmem:[%s535 + $0x8] sm:$0xff]
        %v5465 = vlaneseq
        %v5466 = vshrl.u32 %v5465, 7
        %v5467 = vsub.s32 0, %v5466
        %v5468 = vrot.slane %v5463, %v5467
        %5470 = vbcast.lane.b32.xlu0 %v5468, 256
        %v5471 = vpop.permute.xlu0 %5470
        %s5473 = sor.u32 256, 8
        %5474 = vbcast.lane.b32.xlu0 %v5468, %s5473
        %v5475 = vpop.permute.xlu0 %5474
        %v5476 = vlaneseq
        %v5477 = vshrl.u32 %v5476, 7
        %v5478 = vsub.s32 1, %v5477
        %v5479 = vrot.slane %v5463, %v5478
        %5481 = vbcast.lane.b32.xlu0 %v5479, 256
        %v5482 = vpop.permute.xlu0 %5481
        %s5484 = sor.u32 256, 8
        %5485 = vbcast.lane.b32.xlu0 %v5479, %s5484
        %v5486 = vpop.permute.xlu0 %5485
        %v5487 = vlaneseq
        %v5488 = vshrl.u32 %v5487, 7
        %v5489 = vsub.s32 2, %v5488
        %v5490 = vrot.slane %v5463, %v5489
        %5492 = vbcast.lane.b32.xlu0 %v5490, 256
        %v5493 = vpop.permute.xlu0 %5492
        %s5495 = sor.u32 256, 8
        %5496 = vbcast.lane.b32.xlu0 %v5490, %s5495
        %v5497 = vpop.permute.xlu0 %5496
        %v5498 = vlaneseq
        %v5499 = vshrl.u32 %v5498, 7
        %v5500 = vsub.s32 3, %v5499
        %v5501 = vrot.slane %v5463, %v5500
        %5503 = vbcast.lane.b32.xlu0 %v5501, 256
        %v5504 = vpop.permute.xlu0 %5503
        %s5506 = sor.u32 256, 8
        %5507 = vbcast.lane.b32.xlu0 %v5501, %s5506
        %v5508 = vpop.permute.xlu0 %5507
        %v5509 = vlaneseq
        %v5510 = vshrl.u32 %v5509, 7
        %v5511 = vsub.s32 4, %v5510
        %v5512 = vrot.slane %v5463, %v5511
        %5514 = vbcast.lane.b32.xlu0 %v5512, 256
        %v5515 = vpop.permute.xlu0 %5514
        %s5517 = sor.u32 256, 8
        %5518 = vbcast.lane.b32.xlu0 %v5512, %s5517
        %v5519 = vpop.permute.xlu0 %5518
        %v5520 = vlaneseq
        %v5521 = vshrl.u32 %v5520, 7
        %v5522 = vsub.s32 5, %v5521
        %v5523 = vrot.slane %v5463, %v5522
        %5525 = vbcast.lane.b32.xlu0 %v5523, 256
        %v5526 = vpop.permute.xlu0 %5525
        %s5528 = sor.u32 256, 8
        %5529 = vbcast.lane.b32.xlu0 %v5523, %s5528
        %v5530 = vpop.permute.xlu0 %5529
        %v5531 = vlaneseq
        %v5532 = vshrl.u32 %v5531, 7
        %v5533 = vsub.s32 6, %v5532
        %v5534 = vrot.slane %v5463, %v5533
        %5536 = vbcast.lane.b32.xlu0 %v5534, 256
        %v5537 = vpop.permute.xlu0 %5536
        %s5539 = sor.u32 256, 8
        %5540 = vbcast.lane.b32.xlu0 %v5534, %s5539
        %v5541 = vpop.permute.xlu0 %5540
        %v5542 = vlaneseq
        %v5543 = vshrl.u32 %v5542, 7
        %v5544 = vsub.s32 7, %v5543
        %v5545 = vrot.slane %v5463, %v5544
        %5547 = vbcast.lane.b32.xlu0 %v5545, 256
        %v5548 = vpop.permute.xlu0 %5547
        %s5550 = sor.u32 256, 8
        %5551 = vbcast.lane.b32.xlu0 %v5545, %s5550
        %v5552 = vpop.permute.xlu0 %5551
        %v5569 = vadd.f32 %v5417, %v5471
        %v5570 = vadd.f32 %v5420, %v5475
        %v5571 = vadd.f32 %v5423, %v5482
        %v5572 = vadd.f32 %v5426, %v5486
        %v5573 = vadd.f32 %v5429, %v5493
        %v5574 = vadd.f32 %v5432, %v5497
        %v5575 = vadd.f32 %v5435, %v5504
        %v5576 = vadd.f32 %v5438, %v5508
        %v5577 = vadd.f32 %v5441, %v5515
        %v5578 = vadd.f32 %v5444, %v5519
        %v5579 = vadd.f32 %v5447, %v5526
        %v5580 = vadd.f32 %v5450, %v5530
        %v5581 = vadd.f32 %v5453, %v5537
        %v5582 = vadd.f32 %v5456, %v5541
        %v5583 = vadd.f32 %v5459, %v5548
        %v5584 = vadd.f32 %v5462, %v5552
        %5587 = vrot.lane.b32.xlu0 %v5267, 96
        %v5588 = vpop.permute.xlu0 %5587
        %5589 = vrot.lane.b32.xlu0 %v5266, 96
        %v5590 = vpop.permute.xlu0 %5589
        %5607 = vset.pattern.permute.xlu0 0
        %5608 = vperm.xlu0 %5607, %v5569
        %v5609 = vpop.permute.xlu0 %5608
        %5610 = vset.pattern.permute.xlu0 0
        %5611 = vperm.xlu0 %5610, %v5570
        %v5612 = vpop.permute.xlu0 %5611
        %5613 = vset.pattern.permute.xlu0 0
        %5614 = vperm.xlu0 %5613, %v5571
        %v5615 = vpop.permute.xlu0 %5614
        %5616 = vset.pattern.permute.xlu0 0
        %5617 = vperm.xlu0 %5616, %v5572
        %v5618 = vpop.permute.xlu0 %5617
        %5619 = vset.pattern.permute.xlu0 0
        %5620 = vperm.xlu0 %5619, %v5573
        %v5621 = vpop.permute.xlu0 %5620
        %5622 = vset.pattern.permute.xlu0 0
        %5623 = vperm.xlu0 %5622, %v5574
        %v5624 = vpop.permute.xlu0 %5623
        %5625 = vset.pattern.permute.xlu0 0
        %5626 = vperm.xlu0 %5625, %v5575
        %v5627 = vpop.permute.xlu0 %5626
        %5628 = vset.pattern.permute.xlu0 0
        %5629 = vperm.xlu0 %5628, %v5576
        %v5630 = vpop.permute.xlu0 %5629
        %5631 = vset.pattern.permute.xlu0 0
        %5632 = vperm.xlu0 %5631, %v5577
        %v5633 = vpop.permute.xlu0 %5632
        %5634 = vset.pattern.permute.xlu0 0
        %5635 = vperm.xlu0 %5634, %v5578
        %v5636 = vpop.permute.xlu0 %5635
        %5637 = vset.pattern.permute.xlu0 0
        %5638 = vperm.xlu0 %5637, %v5579
        %v5639 = vpop.permute.xlu0 %5638
        %5640 = vset.pattern.permute.xlu0 0
        %5641 = vperm.xlu0 %5640, %v5580
        %v5642 = vpop.permute.xlu0 %5641
        %5643 = vset.pattern.permute.xlu0 0
        %5644 = vperm.xlu0 %5643, %v5581
        %v5645 = vpop.permute.xlu0 %5644
        %5646 = vset.pattern.permute.xlu0 0
        %5647 = vperm.xlu0 %5646, %v5582
        %v5648 = vpop.permute.xlu0 %5647
        %5649 = vset.pattern.permute.xlu0 0
        %5650 = vperm.xlu0 %5649, %v5583
        %v5651 = vpop.permute.xlu0 %5650
        %5652 = vset.pattern.permute.xlu0 0
        %5653 = vperm.xlu0 %5652, %v5584
        %v5654 = vpop.permute.xlu0 %5653
        %v5655 = vlaneseq
        %v5656 = vshrl.u32 %v5655, 7
        %v5657 = vsub.s32 %v979, %v5656
        %v5658 = vrot.slane %v5609, %v5657
        %v5659 = vlaneseq
        %v5660 = vshrl.u32 %v5659, 7
        %v5661 = vsub.s32 %v3058, %v5660
        %v5662 = vrot.slane %v5612, %v5661
        %v5663 = vsel %vm1632, %v5662, %v5658
        %v5664 = vlaneseq
        %v5665 = vshrl.u32 %v5664, 7
        %v5666 = vsub.s32 %v979, %v5665
        %v5667 = vrot.slane %v5615, %v5666
        %v5668 = vlaneseq
        %v5669 = vshrl.u32 %v5668, 7
        %v5670 = vsub.s32 %v3058, %v5669
        %v5671 = vrot.slane %v5618, %v5670
        %v5672 = vsel %vm1632, %v5671, %v5667
        %v5673 = vlaneseq
        %v5674 = vshrl.u32 %v5673, 7
        %v5675 = vsub.s32 %v979, %v5674
        %v5676 = vrot.slane %v5621, %v5675
        %v5677 = vlaneseq
        %v5678 = vshrl.u32 %v5677, 7
        %v5679 = vsub.s32 %v3058, %v5678
        %v5680 = vrot.slane %v5624, %v5679
        %v5681 = vsel %vm1632, %v5680, %v5676
        %v5682 = vlaneseq
        %v5683 = vshrl.u32 %v5682, 7
        %v5684 = vsub.s32 %v979, %v5683
        %v5685 = vrot.slane %v5627, %v5684
        %v5686 = vlaneseq
        %v5687 = vshrl.u32 %v5686, 7
        %v5688 = vsub.s32 %v3058, %v5687
        %v5689 = vrot.slane %v5630, %v5688
        %v5690 = vsel %vm1632, %v5689, %v5685
        %v5691 = vlaneseq
        %v5692 = vshrl.u32 %v5691, 7
        %v5693 = vsub.s32 %v979, %v5692
        %v5694 = vrot.slane %v5633, %v5693
        %v5695 = vlaneseq
        %v5696 = vshrl.u32 %v5695, 7
        %v5697 = vsub.s32 %v3058, %v5696
        %v5698 = vrot.slane %v5636, %v5697
        %v5699 = vsel %vm1632, %v5698, %v5694
        %v5700 = vlaneseq
        %v5701 = vshrl.u32 %v5700, 7
        %v5702 = vsub.s32 %v979, %v5701
        %v5703 = vrot.slane %v5639, %v5702
        %v5704 = vlaneseq
        %v5705 = vshrl.u32 %v5704, 7
        %v5706 = vsub.s32 %v3058, %v5705
        %v5707 = vrot.slane %v5642, %v5706
        %v5708 = vsel %vm1632, %v5707, %v5703
        %v5709 = vlaneseq
        %v5710 = vshrl.u32 %v5709, 7
        %v5711 = vsub.s32 %v979, %v5710
        %v5712 = vrot.slane %v5645, %v5711
        %v5713 = vlaneseq
        %v5714 = vshrl.u32 %v5713, 7
        %v5715 = vsub.s32 %v3058, %v5714
        %v5716 = vrot.slane %v5648, %v5715
        %v5717 = vsel %vm1632, %v5716, %v5712
        %v5718 = vlaneseq
        %v5719 = vshrl.u32 %v5718, 7
        %v5720 = vsub.s32 %v979, %v5719
        %v5721 = vrot.slane %v5651, %v5720
        %v5722 = vlaneseq
        %v5723 = vshrl.u32 %v5722, 7
        %v5724 = vsub.s32 %v3058, %v5723
        %v5725 = vrot.slane %v5654, %v5724
        %v5726 = vsel %vm1632, %v5725, %v5721
        %v5727 = vsel %vm1012, %v5672, %v5663
        %v5728 = vsel %vm1014, %v5681, %v5727
        %v5729 = vsel %vm1016, %v5690, %v5728
        %v5730 = vsel %vm1018, %v5699, %v5729
        %v5731 = vsel %vm1020, %v5708, %v5730
        %v5732 = vsel %vm1022, %v5717, %v5731
        %v5733 = vsel %vm1024, %v5726, %v5732
        %v5735 = vsel %vm1027, %v5266, 0
        %v5737 = vsel %vm1027, %v5588, 0
        %v5739 = vsel %vm1027, %v5590, 0
        %5741 = vmatprep.subr.mxu0 0.0
        %5742 = vmatpush1.xpose.msra.mxu0 0.0
        %5743 = vmatprep.subr.mxu0 0.0
        %5744 = vmatpush1.xpose.msra.mxu0 0.0
        %5745 = vmatprep.subr.mxu0 0.0
        %5746 = vmatpush1.xpose.msra.mxu0 0.0
        %5747 = vmatprep.subr.mxu0 0.0
        %5748 = vmatpush1.xpose.msra.mxu0 0.0
        %5749 = vmatprep.subr.mxu0 0.0
        %5750 = vmatpush1.xpose.msra.mxu0 0.0
        %5751 = vmatprep.subr.mxu0 0.0
        %5752 = vmatpush1.xpose.msra.mxu0 0.0
        %5753 = vmatprep.subr.mxu0 0.0
        %5754 = vmatpush1.xpose.msra.mxu0 0.0
        %5755 = vmatprep.subr.mxu0 0.0
        %5756 = vmatpush1.xpose.msra.mxu0 0.0
        %5757 = vmatprep.subr.mxu0 0.0
        %5758 = vmatpush1.xpose.msra.mxu0 0.0
        %5759 = vmatprep.subr.mxu0 0.0
        %5760 = vmatpush1.xpose.msra.mxu0 0.0
        %5761 = vmatprep.subr.mxu0 0.0
        %5762 = vmatpush1.xpose.msra.mxu0 0.0
        %5763 = vmatprep.subr.mxu0 0.0
        %5764 = vmatpush1.xpose.msra.mxu0 0.0
        %5765 = vmatprep.subr.mxu0 0.0
        %5766 = vmatpush1.xpose.msra.mxu0 0.0
        %5767 = vmatprep.subr.mxu0 0.0
        %5768 = vmatpush1.xpose.msra.mxu0 0.0
        %5769 = vmatprep.subr.mxu0 0.0
        %5770 = vmatpush1.xpose.msra.mxu0 %v5739
        %5771 = vmatprep.subr.mxu0 0.0
        %5772 = vmatpush1.xpose.msra.mxu0 %v5737
        %5773 = vmatprep.subr.mxu0 0.0
        %5774 = vmatpush2.xpose.msra.mxu0 0.0
        %5775 = vmatprep.subr.mxu0 0.0
        %5776 = vmatpush2.xpose.msra.mxu0 0.0
        %5777 = vmatprep.subr.mxu0 0.0
        %5778 = vmatpush2.xpose.msra.mxu0 0.0
        %5779 = vmatprep.subr.mxu0 0.0
        %5780 = vmatpush2.xpose.msra.mxu0 0.0
        %5781 = vmatprep.subr.mxu0 0.0
        %5782 = vmatpush2.xpose.msra.mxu0 0.0
        %5783 = vmatprep.subr.mxu0 0.0
        %5784 = vmatpush2.xpose.msra.mxu0 0.0
        %5785 = vmatprep.subr.mxu0 0.0
        %5786 = vmatpush2.xpose.msra.mxu0 0.0
        %5787 = vmatprep.subr.mxu0 0.0
        %5788 = vmatpush2.xpose.msra.mxu0 0.0
        %5789 = vmatprep.subr.mxu0 0.0
        %5790 = vmatpush2.xpose.msra.mxu0 0.0
        %5791 = vmatprep.subr.mxu0 0.0
        %5792 = vmatpush2.xpose.msra.mxu0 0.0
        %5793 = vmatprep.subr.mxu0 0.0
        %5794 = vmatpush2.xpose.msra.mxu0 0.0
        %5795 = vmatprep.subr.mxu0 0.0
        %5796 = vmatpush2.xpose.msra.mxu0 0.0
        %5797 = vmatprep.subr.mxu0 0.0
        %5798 = vmatpush2.xpose.msra.mxu0 0.0
        %5799 = vmatprep.subr.mxu0 0.0
        %5800 = vmatpush2.xpose.msra.mxu0 0.0
        %5801 = vmatprep.subr.mxu0 0.0
        %5802 = vmatpush2.xpose.msra.mxu0 0.0
        %5803 = vmatprep.subr.mxu0 0.0
        %5804 = vmatpush2.xpose.msra.mxu0 0.0
        %5805 = vmatprep.mubr.f32.mxu0 0.0
        %5806 = vmatmul.mubr.f32.gmra.mxu0 %v5735
        %v5807 = vpop.f32.mrf.mxu0
        %v5808 = vadd.f32 %v5733, %v5807
        %v5809 = vpop.f32.mrf.mxu0
        %5810 = vdwg.mxu0
        %v5811 = vsel %vm3211, %v5808, -inf
        %5812 = vmax.xlane.f32.xlu0 %v5811
        %v5813 = vpop.xlane.xlu0 %5812
        %v5814 = vsub.f32 %v5808, %v5813
        %v5815 = vmul.f32 %v5814, 1.442695
        %v5816 = vpow.pop %v5815
        %v5817 = vsel %vm3211, %v5816, 0.0
        %5818 = vadd.xlane.f32.xlu0 %v5817
        %v5819 = vpop.xlane.xlu0 %5818
        %v5820 = vrcp.pop %v5819
        %v5821 = vmul.f32 %v5816, %v5820
        %5822 = vst.msk [vmem:[%s500 + $0x20] sm:$0xff] %vm3211, %v5821
        %5823 = vrot.lane.b32.xlu0 %v5267, 64
        %v5824 = vpop.permute.xlu0 %5823
        %5825 = vrot.lane.b32.xlu0 %v5266, 64
        %v5826 = vpop.permute.xlu0 %5825
        %v5830 = vsel %vm3211, %v5821, 0
        %5832 = vmatprep.subr.mxu0 0.0
        %5833 = vmatpush1.msra.mxu0 0.0
        %5834 = vmatprep.subr.mxu0 0.0
        %5835 = vmatpush1.msra.mxu0 0.0
        %5836 = vmatprep.subr.mxu0 0.0
        %5837 = vmatpush1.msra.mxu0 0.0
        %5838 = vmatprep.subr.mxu0 0.0
        %5839 = vmatpush1.msra.mxu0 0.0
        %5840 = vmatprep.subr.mxu0 0.0
        %5841 = vmatpush1.msra.mxu0 0.0
        %5842 = vmatprep.subr.mxu0 0.0
        %5843 = vmatpush1.msra.mxu0 0.0
        %5844 = vmatprep.subr.mxu0 0.0
        %5845 = vmatpush1.msra.mxu0 0.0
        %5846 = vmatprep.subr.mxu0 0.0
        %5847 = vmatpush1.msra.mxu0 0.0
        %5848 = vmatprep.subr.mxu0 0.0
        %5849 = vmatpush1.msra.mxu0 0.0
        %5850 = vmatprep.subr.mxu0 0.0
        %5851 = vmatpush1.msra.mxu0 0.0
        %5852 = vmatprep.subr.mxu0 0.0
        %5853 = vmatpush1.msra.mxu0 0.0
        %5854 = vmatprep.subr.mxu0 0.0
        %5855 = vmatpush1.msra.mxu0 0.0
        %5856 = vmatprep.subr.mxu0 0.0
        %5857 = vmatpush1.msra.mxu0 0.0
        %5858 = vmatprep.subr.mxu0 0.0
        %5859 = vmatpush1.msra.mxu0 0.0
        %5860 = vmatprep.subr.mxu0 0.0
        %5861 = vmatpush1.msra.mxu0 %v5826
        %5862 = vmatprep.subr.mxu0 0.0
        %5863 = vmatpush1.msra.mxu0 %v5824
        %5864 = vmatprep.subr.mxu0 0.0
        %5865 = vmatpush2.msra.mxu0 0.0
        %5866 = vmatprep.subr.mxu0 0.0
        %5867 = vmatpush2.msra.mxu0 0.0
        %5868 = vmatprep.subr.mxu0 0.0
        %5869 = vmatpush2.msra.mxu0 0.0
        %5870 = vmatprep.subr.mxu0 0.0
        %5871 = vmatpush2.msra.mxu0 0.0
        %5872 = vmatprep.subr.mxu0 0.0
        %5873 = vmatpush2.msra.mxu0 0.0
        %5874 = vmatprep.subr.mxu0 0.0
        %5875 = vmatpush2.msra.mxu0 0.0
        %5876 = vmatprep.subr.mxu0 0.0
        %5877 = vmatpush2.msra.mxu0 0.0
        %5878 = vmatprep.subr.mxu0 0.0
        %5879 = vmatpush2.msra.mxu0 0.0
        %5880 = vmatprep.subr.mxu0 0.0
        %5881 = vmatpush2.msra.mxu0 0.0
        %5882 = vmatprep.subr.mxu0 0.0
        %5883 = vmatpush2.msra.mxu0 0.0
        %5884 = vmatprep.subr.mxu0 0.0
        %5885 = vmatpush2.msra.mxu0 0.0
        %5886 = vmatprep.subr.mxu0 0.0
        %5887 = vmatpush2.msra.mxu0 0.0
        %5888 = vmatprep.subr.mxu0 0.0
        %5889 = vmatpush2.msra.mxu0 0.0
        %5890 = vmatprep.subr.mxu0 0.0
        %5891 = vmatpush2.msra.mxu0 0.0
        %5892 = vmatprep.subr.mxu0 0.0
        %5893 = vmatpush2.msra.mxu0 0.0
        %5894 = vmatprep.subr.mxu0 0.0
        %5895 = vmatpush2.msra.mxu0 0.0
        %5896 = vmatprep.mubr.f32.mxu0 0.0
        %5897 = vmatmul.mubr.f32.gmra.mxu0 %v5830
        %v5898 = vpop.f32.mrf.mxu0
        %v5899 = vadd.f32 0.0, %v5898
        %v5900 = vpop.f32.mrf.mxu0
        %5901 = vdwg.mxu0
        %5902 = vst.msk [vmem:[#allocation3 + $0x10] sm:$0xff] %vm1027, %v5899
        %v5903 = vld [vmem:[#allocation2 + $0x20] sm:$0xff]
        %v5904 = vld [vmem:[#allocation2] sm:$0xff]
        %v5905 = vld [vmem:[#allocation2 + $0x15] ss:$0 sm:$0xff]
        %5907 = vrot.lane.b32.xlu0 %v5905, 32
        %v5908 = vpop.permute.xlu0 %5907
        %5910 = vst.msk [vmem:[#allocation4] sm:$0x1] %vm2671, %v5908
        %v5911 = vld [vmem:[#allocation2 + $0x25] ss:$0 sm:$0xff]
        %5913 = vrot.lane.b32.xlu0 %v5911, 32
        %v5914 = vpop.permute.xlu0 %5913
        %5916 = vst.msk [vmem:[#allocation4 + $0x4] sm:$0x1] %vm2671, %v5914
        %v5917 = vld [vmem:[#allocation2 + $0x1d] ss:$0 sm:$0xff]
        %5918 = vst.msk [vmem:[#allocation4 + $0x1] sm:$0x1] %vm2671, %v5917
        %v5919 = vld [vmem:[#allocation2 + $0x2d] ss:$0 sm:$0xff]
        %5920 = vst.msk [vmem:[#allocation4 + $0x5] sm:$0x1] %vm2671, %v5919
        %v5921 = vld [vmem:[#allocation2 + $0x1d] ss:$0 sm:$0xff]
        %5923 = vrot.lane.b32.xlu0 %v5921, 96
        %v5924 = vpop.permute.xlu0 %5923
        %5926 = vst.msk [vmem:[#allocation4 + $0x2] sm:$0x1] %vm2671, %v5924
        %v5927 = vld [vmem:[#allocation2 + $0x2d] ss:$0 sm:$0xff]
        %5929 = vrot.lane.b32.xlu0 %v5927, 96
        %v5930 = vpop.permute.xlu0 %5929
        %5932 = vst.msk [vmem:[#allocation4 + $0x6] sm:$0x1] %vm2671, %v5930
        %v5933 = vld [vmem:[#allocation2 + $0x1d] ss:$0 sm:$0xff]
        %5935 = vrot.lane.b32.xlu0 %v5933, 64
        %v5936 = vpop.permute.xlu0 %5935
        %5938 = vst.msk [vmem:[#allocation4 + $0x3] sm:$0x1] %vm2671, %v5936
        %v5939 = vld [vmem:[#allocation2 + $0x2d] ss:$0 sm:$0xff]
        %5941 = vrot.lane.b32.xlu0 %v5939, 64
        %v5942 = vpop.permute.xlu0 %5941
        %5944 = vst.msk [vmem:[#allocation4 + $0x7] sm:$0x1] %vm2671, %v5942
        %v5945 = vld [vmem:[#allocation4] sm:$0xff]
        %v5947 = vcombine.high %v5945, %v5945
        %v5949 = vunpack.c.l.s4 1966171168
        %v5950 = vunpack.c.0.s8 %v5949
        %v5951 = vlaneseq
        %v5952 = vshrl.u32 %v5951, 7
        %v5953 = vsub.s32 %v5950, %v5952
        %v5954 = vrot.slane %v5945, %v5953
        %v5956 = vunpack.c.l.s4 1966171168
        %v5957 = vunpack.c.0.s8 %v5956
        %v5958 = vlaneseq
        %v5959 = vshrl.u32 %v5958, 7
        %v5960 = vsub.s32 %v5957, %v5959
        %v5961 = vrot.slane %v5947, %v5960
        %v5962 = vcombine.high %v5954, %v5954
        %v5963 = vcombine.high %v5961, %v5961
        %v5965 = vunpack.c.l.s4 1966171168
        %v5966 = vunpack.c.0.s8 %v5965
        %v5967 = vlaneseq
        %v5968 = vshrl.u32 %v5967, 7
        %v5969 = vsub.s32 %v5966, %v5968
        %v5970 = vrot.slane %v5954, %v5969
        %v5972 = vunpack.c.l.s4 1966171168
        %v5973 = vunpack.c.0.s8 %v5972
        %v5974 = vlaneseq
        %v5975 = vshrl.u32 %v5974, 7
        %v5976 = vsub.s32 %v5973, %v5975
        %v5977 = vrot.slane %v5961, %v5976
        %v5979 = vunpack.c.l.s4 1966171168
        %v5980 = vunpack.c.0.s8 %v5979
        %v5981 = vlaneseq
        %v5982 = vshrl.u32 %v5981, 7
        %v5983 = vsub.s32 %v5980, %v5982
        %v5984 = vrot.slane %v5962, %v5983
        %v5986 = vunpack.c.l.s4 1966171168
        %v5987 = vunpack.c.0.s8 %v5986
        %v5988 = vlaneseq
        %v5989 = vshrl.u32 %v5988, 7
        %v5990 = vsub.s32 %v5987, %v5989
        %v5991 = vrot.slane %v5963, %v5990
        %v5992 = vcombine.high %v5970, %v5970
        %v5993 = vcombine.high %v5977, %v5977
        %v5994 = vcombine.high %v5984, %v5984
        %v5995 = vcombine.high %v5991, %v5991
        %v5996 = vlaneseq
        %v5997 = vshrl.u32 %v5996, 7
        %v5998 = vsub.s32 0, %v5997
        %v5999 = vrot.slane %v5970, %v5998
        %v6000 = vlaneseq
        %v6001 = vshrl.u32 %v6000, 7
        %v6002 = vsub.s32 0, %v6001
        %v6003 = vrot.slane %v5984, %v6002
        %v6004 = vlaneseq
        %v6005 = vshrl.u32 %v6004, 7
        %v6006 = vsub.s32 0, %v6005
        %v6007 = vrot.slane %v5992, %v6006
        %v6008 = vlaneseq
        %v6009 = vshrl.u32 %v6008, 7
        %v6010 = vsub.s32 0, %v6009
        %v6011 = vrot.slane %v5994, %v6010
        %v6012 = vlaneseq
        %v6013 = vshrl.u32 %v6012, 7
        %v6014 = vsub.s32 0, %v6013
        %v6015 = vrot.slane %v5977, %v6014
        %v6016 = vlaneseq
        %v6017 = vshrl.u32 %v6016, 7
        %v6018 = vsub.s32 0, %v6017
        %v6019 = vrot.slane %v5991, %v6018
        %v6020 = vlaneseq
        %v6021 = vshrl.u32 %v6020, 7
        %v6022 = vsub.s32 0, %v6021
        %v6023 = vrot.slane %v5993, %v6022
        %v6024 = vlaneseq
        %v6025 = vshrl.u32 %v6024, 7
        %v6026 = vsub.s32 0, %v6025
        %v6027 = vrot.slane %v5995, %v6026
        %v6036 = vmul.f32 %v5999, %v5250
        %v6037 = vmul.f32 %v5999, %v5251
        %v6038 = vmul.f32 %v6003, %v5252
        %v6039 = vmul.f32 %v6003, %v5253
        %v6040 = vmul.f32 %v6007, %v5254
        %v6041 = vmul.f32 %v6007, %v5255
        %v6042 = vmul.f32 %v6011, %v5256
        %v6043 = vmul.f32 %v6011, %v5257
        %v6044 = vmul.f32 %v6015, %v5258
        %v6045 = vmul.f32 %v6015, %v5259
        %v6046 = vmul.f32 %v6019, %v5260
        %v6047 = vmul.f32 %v6019, %v5261
        %v6048 = vmul.f32 %v6023, %v5262
        %v6049 = vmul.f32 %v6023, %v5263
        %v6050 = vmul.f32 %v6027, %v5264
        %v6051 = vmul.f32 %v6027, %v5265
        %v6052 = vsel %vm590, %v6036, 0.0
        %6053 = vadd.xlane.f32.xlu0 %v6052
        %v6054 = vpop.xlane.xlu0 %6053
        %v6055 = vsel %vm590, %v6037, 0.0
        %6056 = vadd.xlane.f32.xlu0 %v6055
        %v6057 = vpop.xlane.xlu0 %6056
        %v6058 = vsel %vm590, %v6038, 0.0
        %6059 = vadd.xlane.f32.xlu0 %v6058
        %v6060 = vpop.xlane.xlu0 %6059
        %v6061 = vsel %vm590, %v6039, 0.0
        %6062 = vadd.xlane.f32.xlu0 %v6061
        %v6063 = vpop.xlane.xlu0 %6062
        %v6064 = vsel %vm590, %v6040, 0.0
        %6065 = vadd.xlane.f32.xlu0 %v6064
        %v6066 = vpop.xlane.xlu0 %6065
        %v6067 = vsel %vm590, %v6041, 0.0
        %6068 = vadd.xlane.f32.xlu0 %v6067
        %v6069 = vpop.xlane.xlu0 %6068
        %v6070 = vsel %vm590, %v6042, 0.0
        %6071 = vadd.xlane.f32.xlu0 %v6070
        %v6072 = vpop.xlane.xlu0 %6071
        %v6073 = vsel %vm590, %v6043, 0.0
        %6074 = vadd.xlane.f32.xlu0 %v6073
        %v6075 = vpop.xlane.xlu0 %6074
        %v6076 = vsel %vm590, %v6044, 0.0
        %6077 = vadd.xlane.f32.xlu0 %v6076
        %v6078 = vpop.xlane.xlu0 %6077
        %v6079 = vsel %vm590, %v6045, 0.0
        %6080 = vadd.xlane.f32.xlu0 %v6079
        %v6081 = vpop.xlane.xlu0 %6080
        %v6082 = vsel %vm590, %v6046, 0.0
        %6083 = vadd.xlane.f32.xlu0 %v6082
        %v6084 = vpop.xlane.xlu0 %6083
        %v6085 = vsel %vm590, %v6047, 0.0
        %6086 = vadd.xlane.f32.xlu0 %v6085
        %v6087 = vpop.xlane.xlu0 %6086
        %v6088 = vsel %vm590, %v6048, 0.0
        %6089 = vadd.xlane.f32.xlu0 %v6088
        %v6090 = vpop.xlane.xlu0 %6089
        %v6091 = vsel %vm590, %v6049, 0.0
        %6092 = vadd.xlane.f32.xlu0 %v6091
        %v6093 = vpop.xlane.xlu0 %6092
        %v6094 = vsel %vm590, %v6050, 0.0
        %6095 = vadd.xlane.f32.xlu0 %v6094
        %v6096 = vpop.xlane.xlu0 %6095
        %v6097 = vsel %vm590, %v6051, 0.0
        %6098 = vadd.xlane.f32.xlu0 %v6097
        %v6099 = vpop.xlane.xlu0 %6098
        %v6100 = vld [vmem:[%s535 + $0x18] sm:$0xff]
        %v6102 = vlaneseq
        %v6103 = vshrl.u32 %v6102, 7
        %v6104 = vsub.s32 0, %v6103
        %v6105 = vrot.slane %v6100, %v6104
        %6107 = vbcast.lane.b32.xlu0 %v6105, 256
        %v6108 = vpop.permute.xlu0 %6107
        %s6110 = sor.u32 256, 8
        %6111 = vbcast.lane.b32.xlu0 %v6105, %s6110
        %v6112 = vpop.permute.xlu0 %6111
        %v6113 = vlaneseq
        %v6114 = vshrl.u32 %v6113, 7
        %v6115 = vsub.s32 1, %v6114
        %v6116 = vrot.slane %v6100, %v6115
        %6118 = vbcast.lane.b32.xlu0 %v6116, 256
        %v6119 = vpop.permute.xlu0 %6118
        %s6121 = sor.u32 256, 8
        %6122 = vbcast.lane.b32.xlu0 %v6116, %s6121
        %v6123 = vpop.permute.xlu0 %6122
        %v6124 = vlaneseq
        %v6125 = vshrl.u32 %v6124, 7
        %v6126 = vsub.s32 2, %v6125
        %v6127 = vrot.slane %v6100, %v6126
        %6129 = vbcast.lane.b32.xlu0 %v6127, 256
        %v6130 = vpop.permute.xlu0 %6129
        %s6132 = sor.u32 256, 8
        %6133 = vbcast.lane.b32.xlu0 %v6127, %s6132
        %v6134 = vpop.permute.xlu0 %6133
        %v6135 = vlaneseq
        %v6136 = vshrl.u32 %v6135, 7
        %v6137 = vsub.s32 3, %v6136
        %v6138 = vrot.slane %v6100, %v6137
        %6140 = vbcast.lane.b32.xlu0 %v6138, 256
        %v6141 = vpop.permute.xlu0 %6140
        %s6143 = sor.u32 256, 8
        %6144 = vbcast.lane.b32.xlu0 %v6138, %s6143
        %v6145 = vpop.permute.xlu0 %6144
        %v6146 = vlaneseq
        %v6147 = vshrl.u32 %v6146, 7
        %v6148 = vsub.s32 4, %v6147
        %v6149 = vrot.slane %v6100, %v6148
        %6151 = vbcast.lane.b32.xlu0 %v6149, 256
        %v6152 = vpop.permute.xlu0 %6151
        %s6154 = sor.u32 256, 8
        %6155 = vbcast.lane.b32.xlu0 %v6149, %s6154
        %v6156 = vpop.permute.xlu0 %6155
        %v6157 = vlaneseq
        %v6158 = vshrl.u32 %v6157, 7
        %v6159 = vsub.s32 5, %v6158
        %v6160 = vrot.slane %v6100, %v6159
        %6162 = vbcast.lane.b32.xlu0 %v6160, 256
        %v6163 = vpop.permute.xlu0 %6162
        %s6165 = sor.u32 256, 8
        %6166 = vbcast.lane.b32.xlu0 %v6160, %s6165
        %v6167 = vpop.permute.xlu0 %6166
        %v6168 = vlaneseq
        %v6169 = vshrl.u32 %v6168, 7
        %v6170 = vsub.s32 6, %v6169
        %v6171 = vrot.slane %v6100, %v6170
        %6173 = vbcast.lane.b32.xlu0 %v6171, 256
        %v6174 = vpop.permute.xlu0 %6173
        %s6176 = sor.u32 256, 8
        %6177 = vbcast.lane.b32.xlu0 %v6171, %s6176
        %v6178 = vpop.permute.xlu0 %6177
        %v6179 = vlaneseq
        %v6180 = vshrl.u32 %v6179, 7
        %v6181 = vsub.s32 7, %v6180
        %v6182 = vrot.slane %v6100, %v6181
        %6184 = vbcast.lane.b32.xlu0 %v6182, 256
        %v6185 = vpop.permute.xlu0 %6184
        %s6187 = sor.u32 256, 8
        %6188 = vbcast.lane.b32.xlu0 %v6182, %s6187
        %v6189 = vpop.permute.xlu0 %6188
        %v6206 = vadd.f32 %v6054, %v6108
        %v6207 = vadd.f32 %v6057, %v6112
        %v6208 = vadd.f32 %v6060, %v6119
        %v6209 = vadd.f32 %v6063, %v6123
        %v6210 = vadd.f32 %v6066, %v6130
        %v6211 = vadd.f32 %v6069, %v6134
        %v6212 = vadd.f32 %v6072, %v6141
        %v6213 = vadd.f32 %v6075, %v6145
        %v6214 = vadd.f32 %v6078, %v6152
        %v6215 = vadd.f32 %v6081, %v6156
        %v6216 = vadd.f32 %v6084, %v6163
        %v6217 = vadd.f32 %v6087, %v6167
        %v6218 = vadd.f32 %v6090, %v6174
        %v6219 = vadd.f32 %v6093, %v6178
        %v6220 = vadd.f32 %v6096, %v6185
        %v6221 = vadd.f32 %v6099, %v6189
        %6223 = vrot.lane.b32.xlu0 %v5903, 120
        %v6224 = vpop.permute.xlu0 %6223
        %6226 = vrot.lane.b32.xlu0 %v5904, 88
        %v6227 = vpop.permute.xlu0 %6226
        %6228 = vrot.lane.b32.xlu0 %v5903, 88
        %v6229 = vpop.permute.xlu0 %6228
        %6246 = vset.pattern.permute.xlu0 0
        %6247 = vperm.xlu0 %6246, %v6206
        %v6248 = vpop.permute.xlu0 %6247
        %6249 = vset.pattern.permute.xlu0 0
        %6250 = vperm.xlu0 %6249, %v6207
        %v6251 = vpop.permute.xlu0 %6250
        %6252 = vset.pattern.permute.xlu0 0
        %6253 = vperm.xlu0 %6252, %v6208
        %v6254 = vpop.permute.xlu0 %6253
        %6255 = vset.pattern.permute.xlu0 0
        %6256 = vperm.xlu0 %6255, %v6209
        %v6257 = vpop.permute.xlu0 %6256
        %6258 = vset.pattern.permute.xlu0 0
        %6259 = vperm.xlu0 %6258, %v6210
        %v6260 = vpop.permute.xlu0 %6259
        %6261 = vset.pattern.permute.xlu0 0
        %6262 = vperm.xlu0 %6261, %v6211
        %v6263 = vpop.permute.xlu0 %6262
        %6264 = vset.pattern.permute.xlu0 0
        %6265 = vperm.xlu0 %6264, %v6212
        %v6266 = vpop.permute.xlu0 %6265
        %6267 = vset.pattern.permute.xlu0 0
        %6268 = vperm.xlu0 %6267, %v6213
        %v6269 = vpop.permute.xlu0 %6268
        %6270 = vset.pattern.permute.xlu0 0
        %6271 = vperm.xlu0 %6270, %v6214
        %v6272 = vpop.permute.xlu0 %6271
        %6273 = vset.pattern.permute.xlu0 0
        %6274 = vperm.xlu0 %6273, %v6215
        %v6275 = vpop.permute.xlu0 %6274
        %6276 = vset.pattern.permute.xlu0 0
        %6277 = vperm.xlu0 %6276, %v6216
        %v6278 = vpop.permute.xlu0 %6277
        %6279 = vset.pattern.permute.xlu0 0
        %6280 = vperm.xlu0 %6279, %v6217
        %v6281 = vpop.permute.xlu0 %6280
        %6282 = vset.pattern.permute.xlu0 0
        %6283 = vperm.xlu0 %6282, %v6218
        %v6284 = vpop.permute.xlu0 %6283
        %6285 = vset.pattern.permute.xlu0 0
        %6286 = vperm.xlu0 %6285, %v6219
        %v6287 = vpop.permute.xlu0 %6286
        %6288 = vset.pattern.permute.xlu0 0
        %6289 = vperm.xlu0 %6288, %v6220
        %v6290 = vpop.permute.xlu0 %6289
        %6291 = vset.pattern.permute.xlu0 0
        %6292 = vperm.xlu0 %6291, %v6221
        %v6293 = vpop.permute.xlu0 %6292
        %v6294 = vlaneseq
        %v6295 = vshrl.u32 %v6294, 7
        %v6296 = vsub.s32 %v979, %v6295
        %v6297 = vrot.slane %v6248, %v6296
        %v6298 = vlaneseq
        %v6299 = vshrl.u32 %v6298, 7
        %v6300 = vsub.s32 %v3058, %v6299
        %v6301 = vrot.slane %v6251, %v6300
        %v6302 = vsel %vm1632, %v6301, %v6297
        %v6303 = vlaneseq
        %v6304 = vshrl.u32 %v6303, 7
        %v6305 = vsub.s32 %v979, %v6304
        %v6306 = vrot.slane %v6254, %v6305
        %v6307 = vlaneseq
        %v6308 = vshrl.u32 %v6307, 7
        %v6309 = vsub.s32 %v3058, %v6308
        %v6310 = vrot.slane %v6257, %v6309
        %v6311 = vsel %vm1632, %v6310, %v6306
        %v6312 = vlaneseq
        %v6313 = vshrl.u32 %v6312, 7
        %v6314 = vsub.s32 %v979, %v6313
        %v6315 = vrot.slane %v6260, %v6314
        %v6316 = vlaneseq
        %v6317 = vshrl.u32 %v6316, 7
        %v6318 = vsub.s32 %v3058, %v6317
        %v6319 = vrot.slane %v6263, %v6318
        %v6320 = vsel %vm1632, %v6319, %v6315
        %v6321 = vlaneseq
        %v6322 = vshrl.u32 %v6321, 7
        %v6323 = vsub.s32 %v979, %v6322
        %v6324 = vrot.slane %v6266, %v6323
        %v6325 = vlaneseq
        %v6326 = vshrl.u32 %v6325, 7
        %v6327 = vsub.s32 %v3058, %v6326
        %v6328 = vrot.slane %v6269, %v6327
        %v6329 = vsel %vm1632, %v6328, %v6324
        %v6330 = vlaneseq
        %v6331 = vshrl.u32 %v6330, 7
        %v6332 = vsub.s32 %v979, %v6331
        %v6333 = vrot.slane %v6272, %v6332
        %v6334 = vlaneseq
        %v6335 = vshrl.u32 %v6334, 7
        %v6336 = vsub.s32 %v3058, %v6335
        %v6337 = vrot.slane %v6275, %v6336
        %v6338 = vsel %vm1632, %v6337, %v6333
        %v6339 = vlaneseq
        %v6340 = vshrl.u32 %v6339, 7
        %v6341 = vsub.s32 %v979, %v6340
        %v6342 = vrot.slane %v6278, %v6341
        %v6343 = vlaneseq
        %v6344 = vshrl.u32 %v6343, 7
        %v6345 = vsub.s32 %v3058, %v6344
        %v6346 = vrot.slane %v6281, %v6345
        %v6347 = vsel %vm1632, %v6346, %v6342
        %v6348 = vlaneseq
        %v6349 = vshrl.u32 %v6348, 7
        %v6350 = vsub.s32 %v979, %v6349
        %v6351 = vrot.slane %v6284, %v6350
        %v6352 = vlaneseq
        %v6353 = vshrl.u32 %v6352, 7
        %v6354 = vsub.s32 %v3058, %v6353
        %v6355 = vrot.slane %v6287, %v6354
        %v6356 = vsel %vm1632, %v6355, %v6351
        %v6357 = vlaneseq
        %v6358 = vshrl.u32 %v6357, 7
        %v6359 = vsub.s32 %v979, %v6358
        %v6360 = vrot.slane %v6290, %v6359
        %v6361 = vlaneseq
        %v6362 = vshrl.u32 %v6361, 7
        %v6363 = vsub.s32 %v3058, %v6362
        %v6364 = vrot.slane %v6293, %v6363
        %v6365 = vsel %vm1632, %v6364, %v6360
        %v6366 = vsel %vm1012, %v6311, %v6302
        %v6367 = vsel %vm1014, %v6320, %v6366
        %v6368 = vsel %vm1016, %v6329, %v6367
        %v6369 = vsel %vm1018, %v6338, %v6368
        %v6370 = vsel %vm1020, %v6347, %v6369
        %v6371 = vsel %vm1022, %v6356, %v6370
        %v6372 = vsel %vm1024, %v6365, %v6371
        %v6374 = vsel %vm1027, %v6224, 0
        %v6376 = vsel %vm1027, %v6227, 0
        %v6378 = vsel %vm1027, %v6229, 0
        %6380 = vmatprep.subr.mxu0 0.0
        %6381 = vmatpush1.xpose.msra.mxu0 0.0
        %6382 = vmatprep.subr.mxu0 0.0
        %6383 = vmatpush1.xpose.msra.mxu0 0.0
        %6384 = vmatprep.subr.mxu0 0.0
        %6385 = vmatpush1.xpose.msra.mxu0 0.0
        %6386 = vmatprep.subr.mxu0 0.0
        %6387 = vmatpush1.xpose.msra.mxu0 0.0
        %6388 = vmatprep.subr.mxu0 0.0
        %6389 = vmatpush1.xpose.msra.mxu0 0.0
        %6390 = vmatprep.subr.mxu0 0.0
        %6391 = vmatpush1.xpose.msra.mxu0 0.0
        %6392 = vmatprep.subr.mxu0 0.0
        %6393 = vmatpush1.xpose.msra.mxu0 0.0
        %6394 = vmatprep.subr.mxu0 0.0
        %6395 = vmatpush1.xpose.msra.mxu0 0.0
        %6396 = vmatprep.subr.mxu0 0.0
        %6397 = vmatpush1.xpose.msra.mxu0 0.0
        %6398 = vmatprep.subr.mxu0 0.0
        %6399 = vmatpush1.xpose.msra.mxu0 0.0
        %6400 = vmatprep.subr.mxu0 0.0
        %6401 = vmatpush1.xpose.msra.mxu0 0.0
        %6402 = vmatprep.subr.mxu0 0.0
        %6403 = vmatpush1.xpose.msra.mxu0 0.0
        %6404 = vmatprep.subr.mxu0 0.0
        %6405 = vmatpush1.xpose.msra.mxu0 0.0
        %6406 = vmatprep.subr.mxu0 0.0
        %6407 = vmatpush1.xpose.msra.mxu0 0.0
        %6408 = vmatprep.subr.mxu0 0.0
        %6409 = vmatpush1.xpose.msra.mxu0 %v6378
        %6410 = vmatprep.subr.mxu0 0.0
        %6411 = vmatpush1.xpose.msra.mxu0 %v6376
        %6412 = vmatprep.subr.mxu0 0.0
        %6413 = vmatpush2.xpose.msra.mxu0 0.0
        %6414 = vmatprep.subr.mxu0 0.0
        %6415 = vmatpush2.xpose.msra.mxu0 0.0
        %6416 = vmatprep.subr.mxu0 0.0
        %6417 = vmatpush2.xpose.msra.mxu0 0.0
        %6418 = vmatprep.subr.mxu0 0.0
        %6419 = vmatpush2.xpose.msra.mxu0 0.0
        %6420 = vmatprep.subr.mxu0 0.0
        %6421 = vmatpush2.xpose.msra.mxu0 0.0
        %6422 = vmatprep.subr.mxu0 0.0
        %6423 = vmatpush2.xpose.msra.mxu0 0.0
        %6424 = vmatprep.subr.mxu0 0.0
        %6425 = vmatpush2.xpose.msra.mxu0 0.0
        %6426 = vmatprep.subr.mxu0 0.0
        %6427 = vmatpush2.xpose.msra.mxu0 0.0
        %6428 = vmatprep.subr.mxu0 0.0
        %6429 = vmatpush2.xpose.msra.mxu0 0.0
        %6430 = vmatprep.subr.mxu0 0.0
        %6431 = vmatpush2.xpose.msra.mxu0 0.0
        %6432 = vmatprep.subr.mxu0 0.0
        %6433 = vmatpush2.xpose.msra.mxu0 0.0
        %6434 = vmatprep.subr.mxu0 0.0
        %6435 = vmatpush2.xpose.msra.mxu0 0.0
        %6436 = vmatprep.subr.mxu0 0.0
        %6437 = vmatpush2.xpose.msra.mxu0 0.0
        %6438 = vmatprep.subr.mxu0 0.0
        %6439 = vmatpush2.xpose.msra.mxu0 0.0
        %6440 = vmatprep.subr.mxu0 0.0
        %6441 = vmatpush2.xpose.msra.mxu0 0.0
        %6442 = vmatprep.subr.mxu0 0.0
        %6443 = vmatpush2.xpose.msra.mxu0 0.0
        %6444 = vmatprep.mubr.f32.mxu0 0.0
        %6445 = vmatmul.mubr.f32.gmra.mxu0 %v6374
        %v6446 = vpop.f32.mrf.mxu0
        %v6447 = vadd.f32 %v6372, %v6446
        %v6448 = vpop.f32.mrf.mxu0
        %6449 = vdwg.mxu0
        %v6450 = vsel %vm3211, %v6447, -inf
        %6451 = vmax.xlane.f32.xlu0 %v6450
        %v6452 = vpop.xlane.xlu0 %6451
        %v6453 = vsub.f32 %v6447, %v6452
        %v6454 = vmul.f32 %v6453, 1.442695
        %v6455 = vpow.pop %v6454
        %v6456 = vsel %vm3211, %v6455, 0.0
        %6457 = vadd.xlane.f32.xlu0 %v6456
        %v6458 = vpop.xlane.xlu0 %6457
        %v6459 = vrcp.pop %v6458
        %v6460 = vmul.f32 %v6455, %v6459
        %6461 = vst.msk [vmem:[%s500 + $0x28] sm:$0xff] %vm3211, %v6460
        %6462 = vrot.lane.b32.xlu0 %v5904, 56
        %v6463 = vpop.permute.xlu0 %6462
        %6464 = vrot.lane.b32.xlu0 %v5903, 56
        %v6465 = vpop.permute.xlu0 %6464
        %v6469 = vsel %vm3211, %v6460, 0
        %6471 = vmatprep.subr.mxu0 0.0
        %6472 = vmatpush1.msra.mxu0 0.0
        %6473 = vmatprep.subr.mxu0 0.0
        %6474 = vmatpush1.msra.mxu0 0.0
        %6475 = vmatprep.subr.mxu0 0.0
        %6476 = vmatpush1.msra.mxu0 0.0
        %6477 = vmatprep.subr.mxu0 0.0
        %6478 = vmatpush1.msra.mxu0 0.0
        %6479 = vmatprep.subr.mxu0 0.0
        %6480 = vmatpush1.msra.mxu0 0.0
        %6481 = vmatprep.subr.mxu0 0.0
        %6482 = vmatpush1.msra.mxu0 0.0
        %6483 = vmatprep.subr.mxu0 0.0
        %6484 = vmatpush1.msra.mxu0 0.0
        %6485 = vmatprep.subr.mxu0 0.0
        %6486 = vmatpush1.msra.mxu0 0.0
        %6487 = vmatprep.subr.mxu0 0.0
        %6488 = vmatpush1.msra.mxu0 0.0
        %6489 = vmatprep.subr.mxu0 0.0
        %6490 = vmatpush1.msra.mxu0 0.0
        %6491 = vmatprep.subr.mxu0 0.0
        %6492 = vmatpush1.msra.mxu0 0.0
        %6493 = vmatprep.subr.mxu0 0.0
        %6494 = vmatpush1.msra.mxu0 0.0
        %6495 = vmatprep.subr.mxu0 0.0
        %6496 = vmatpush1.msra.mxu0 0.0
        %6497 = vmatprep.subr.mxu0 0.0
        %6498 = vmatpush1.msra.mxu0 0.0
        %6499 = vmatprep.subr.mxu0 0.0
        %6500 = vmatpush1.msra.mxu0 %v6465
        %6501 = vmatprep.subr.mxu0 0.0
        %6502 = vmatpush1.msra.mxu0 %v6463
        %6503 = vmatprep.subr.mxu0 0.0
        %6504 = vmatpush2.msra.mxu0 0.0
        %6505 = vmatprep.subr.mxu0 0.0
        %6506 = vmatpush2.msra.mxu0 0.0
        %6507 = vmatprep.subr.mxu0 0.0
        %6508 = vmatpush2.msra.mxu0 0.0
        %6509 = vmatprep.subr.mxu0 0.0
        %6510 = vmatpush2.msra.mxu0 0.0
        %6511 = vmatprep.subr.mxu0 0.0
        %6512 = vmatpush2.msra.mxu0 0.0
        %6513 = vmatprep.subr.mxu0 0.0
        %6514 = vmatpush2.msra.mxu0 0.0
        %6515 = vmatprep.subr.mxu0 0.0
        %6516 = vmatpush2.msra.mxu0 0.0
        %6517 = vmatprep.subr.mxu0 0.0
        %6518 = vmatpush2.msra.mxu0 0.0
        %6519 = vmatprep.subr.mxu0 0.0
        %6520 = vmatpush2.msra.mxu0 0.0
        %6521 = vmatprep.subr.mxu0 0.0
        %6522 = vmatpush2.msra.mxu0 0.0
        %6523 = vmatprep.subr.mxu0 0.0
        %6524 = vmatpush2.msra.mxu0 0.0
        %6525 = vmatprep.subr.mxu0 0.0
        %6526 = vmatpush2.msra.mxu0 0.0
        %6527 = vmatprep.subr.mxu0 0.0
        %6528 = vmatpush2.msra.mxu0 0.0
        %6529 = vmatprep.subr.mxu0 0.0
        %6530 = vmatpush2.msra.mxu0 0.0
        %6531 = vmatprep.subr.mxu0 0.0
        %6532 = vmatpush2.msra.mxu0 0.0
        %6533 = vmatprep.subr.mxu0 0.0
        %6534 = vmatpush2.msra.mxu0 0.0
        %6535 = vmatprep.mubr.f32.mxu0 0.0
        %6536 = vmatmul.mubr.f32.gmra.mxu0 %v6469
        %v6537 = vpop.f32.mrf.mxu0
        %v6538 = vadd.f32 0.0, %v6537
        %v6539 = vpop.f32.mrf.mxu0
        %6540 = vdwg.mxu0
        %6542 = vrot.lane.b32.xlu0 %v6538, 8
        %v6543 = vpop.permute.xlu0 %6542
        %6545 = vst.msk [vmem:[#allocation3 + $0x10] sm:$0xff] %vm1632, %v6543
        %v6546 = vld [vmem:[#allocation2 + $0x20] sm:$0xff]
        %v6547 = vld [vmem:[#allocation2] sm:$0xff]
        %v6548 = vld [vmem:[#allocation2 + $0x16] ss:$0 sm:$0xff]
        %6550 = vrot.lane.b32.xlu0 %v6548, 32
        %v6551 = vpop.permute.xlu0 %6550
        %6553 = vst.msk [vmem:[#allocation4] sm:$0x1] %vm2671, %v6551
        %v6554 = vld [vmem:[#allocation2 + $0x26] ss:$0 sm:$0xff]
        %6556 = vrot.lane.b32.xlu0 %v6554, 32
        %v6557 = vpop.permute.xlu0 %6556
        %6559 = vst.msk [vmem:[#allocation4 + $0x4] sm:$0x1] %vm2671, %v6557
        %v6560 = vld [vmem:[#allocation2 + $0x1e] ss:$0 sm:$0xff]
        %6561 = vst.msk [vmem:[#allocation4 + $0x1] sm:$0x1] %vm2671, %v6560
        %v6562 = vld [vmem:[#allocation2 + $0x2e] ss:$0 sm:$0xff]
        %6563 = vst.msk [vmem:[#allocation4 + $0x5] sm:$0x1] %vm2671, %v6562
        %v6564 = vld [vmem:[#allocation2 + $0x1e] ss:$0 sm:$0xff]
        %6566 = vrot.lane.b32.xlu0 %v6564, 96
        %v6567 = vpop.permute.xlu0 %6566
        %6569 = vst.msk [vmem:[#allocation4 + $0x2] sm:$0x1] %vm2671, %v6567
        %v6570 = vld [vmem:[#allocation2 + $0x2e] ss:$0 sm:$0xff]
        %6572 = vrot.lane.b32.xlu0 %v6570, 96
        %v6573 = vpop.permute.xlu0 %6572
        %6575 = vst.msk [vmem:[#allocation4 + $0x6] sm:$0x1] %vm2671, %v6573
        %v6576 = vld [vmem:[#allocation2 + $0x1e] ss:$0 sm:$0xff]
        %6578 = vrot.lane.b32.xlu0 %v6576, 64
        %v6579 = vpop.permute.xlu0 %6578
        %6581 = vst.msk [vmem:[#allocation4 + $0x3] sm:$0x1] %vm2671, %v6579
        %v6582 = vld [vmem:[#allocation2 + $0x2e] ss:$0 sm:$0xff]
        %6584 = vrot.lane.b32.xlu0 %v6582, 64
        %v6585 = vpop.permute.xlu0 %6584
        %6587 = vst.msk [vmem:[#allocation4 + $0x7] sm:$0x1] %vm2671, %v6585
        %v6588 = vld [vmem:[#allocation4] sm:$0xff]
        %v6590 = vcombine.high %v6588, %v6588
        %v6592 = vunpack.c.l.s4 1966171168
        %v6593 = vunpack.c.0.s8 %v6592
        %v6594 = vlaneseq
        %v6595 = vshrl.u32 %v6594, 7
        %v6596 = vsub.s32 %v6593, %v6595
        %v6597 = vrot.slane %v6588, %v6596
        %v6599 = vunpack.c.l.s4 1966171168
        %v6600 = vunpack.c.0.s8 %v6599
        %v6601 = vlaneseq
        %v6602 = vshrl.u32 %v6601, 7
        %v6603 = vsub.s32 %v6600, %v6602
        %v6604 = vrot.slane %v6590, %v6603
        %v6605 = vcombine.high %v6597, %v6597
        %v6606 = vcombine.high %v6604, %v6604
        %v6608 = vunpack.c.l.s4 1966171168
        %v6609 = vunpack.c.0.s8 %v6608
        %v6610 = vlaneseq
        %v6611 = vshrl.u32 %v6610, 7
        %v6612 = vsub.s32 %v6609, %v6611
        %v6613 = vrot.slane %v6597, %v6612
        %v6615 = vunpack.c.l.s4 1966171168
        %v6616 = vunpack.c.0.s8 %v6615
        %v6617 = vlaneseq
        %v6618 = vshrl.u32 %v6617, 7
        %v6619 = vsub.s32 %v6616, %v6618
        %v6620 = vrot.slane %v6604, %v6619
        %v6622 = vunpack.c.l.s4 1966171168
        %v6623 = vunpack.c.0.s8 %v6622
        %v6624 = vlaneseq
        %v6625 = vshrl.u32 %v6624, 7
        %v6626 = vsub.s32 %v6623, %v6625
        %v6627 = vrot.slane %v6605, %v6626
        %v6629 = vunpack.c.l.s4 1966171168
        %v6630 = vunpack.c.0.s8 %v6629
        %v6631 = vlaneseq
        %v6632 = vshrl.u32 %v6631, 7
        %v6633 = vsub.s32 %v6630, %v6632
        %v6634 = vrot.slane %v6606, %v6633
        %v6635 = vcombine.high %v6613, %v6613
        %v6636 = vcombine.high %v6620, %v6620
        %v6637 = vcombine.high %v6627, %v6627
        %v6638 = vcombine.high %v6634, %v6634
        %v6639 = vlaneseq
        %v6640 = vshrl.u32 %v6639, 7
        %v6641 = vsub.s32 0, %v6640
        %v6642 = vrot.slane %v6613, %v6641
        %v6643 = vlaneseq
        %v6644 = vshrl.u32 %v6643, 7
        %v6645 = vsub.s32 0, %v6644
        %v6646 = vrot.slane %v6627, %v6645
        %v6647 = vlaneseq
        %v6648 = vshrl.u32 %v6647, 7
        %v6649 = vsub.s32 0, %v6648
        %v6650 = vrot.slane %v6635, %v6649
        %v6651 = vlaneseq
        %v6652 = vshrl.u32 %v6651, 7
        %v6653 = vsub.s32 0, %v6652
        %v6654 = vrot.slane %v6637, %v6653
        %v6655 = vlaneseq
        %v6656 = vshrl.u32 %v6655, 7
        %v6657 = vsub.s32 0, %v6656
        %v6658 = vrot.slane %v6620, %v6657
        %v6659 = vlaneseq
        %v6660 = vshrl.u32 %v6659, 7
        %v6661 = vsub.s32 0, %v6660
        %v6662 = vrot.slane %v6634, %v6661
        %v6663 = vlaneseq
        %v6664 = vshrl.u32 %v6663, 7
        %v6665 = vsub.s32 0, %v6664
        %v6666 = vrot.slane %v6636, %v6665
        %v6667 = vlaneseq
        %v6668 = vshrl.u32 %v6667, 7
        %v6669 = vsub.s32 0, %v6668
        %v6670 = vrot.slane %v6638, %v6669
        %v6679 = vmul.f32 %v6642, %v5250
        %v6680 = vmul.f32 %v6642, %v5251
        %v6681 = vmul.f32 %v6646, %v5252
        %v6682 = vmul.f32 %v6646, %v5253
        %v6683 = vmul.f32 %v6650, %v5254
        %v6684 = vmul.f32 %v6650, %v5255
        %v6685 = vmul.f32 %v6654, %v5256
        %v6686 = vmul.f32 %v6654, %v5257
        %v6687 = vmul.f32 %v6658, %v5258
        %v6688 = vmul.f32 %v6658, %v5259
        %v6689 = vmul.f32 %v6662, %v5260
        %v6690 = vmul.f32 %v6662, %v5261
        %v6691 = vmul.f32 %v6666, %v5262
        %v6692 = vmul.f32 %v6666, %v5263
        %v6693 = vmul.f32 %v6670, %v5264
        %v6694 = vmul.f32 %v6670, %v5265
        %v6695 = vsel %vm590, %v6679, 0.0
        %6696 = vadd.xlane.f32.xlu0 %v6695
        %v6697 = vpop.xlane.xlu0 %6696
        %v6698 = vsel %vm590, %v6680, 0.0
        %6699 = vadd.xlane.f32.xlu0 %v6698
        %v6700 = vpop.xlane.xlu0 %6699
        %v6701 = vsel %vm590, %v6681, 0.0
        %6702 = vadd.xlane.f32.xlu0 %v6701
        %v6703 = vpop.xlane.xlu0 %6702
        %v6704 = vsel %vm590, %v6682, 0.0
        %6705 = vadd.xlane.f32.xlu0 %v6704
        %v6706 = vpop.xlane.xlu0 %6705
        %v6707 = vsel %vm590, %v6683, 0.0
        %6708 = vadd.xlane.f32.xlu0 %v6707
        %v6709 = vpop.xlane.xlu0 %6708
        %v6710 = vsel %vm590, %v6684, 0.0
        %6711 = vadd.xlane.f32.xlu0 %v6710
        %v6712 = vpop.xlane.xlu0 %6711
        %v6713 = vsel %vm590, %v6685, 0.0
        %6714 = vadd.xlane.f32.xlu0 %v6713
        %v6715 = vpop.xlane.xlu0 %6714
        %v6716 = vsel %vm590, %v6686, 0.0
        %6717 = vadd.xlane.f32.xlu0 %v6716
        %v6718 = vpop.xlane.xlu0 %6717
        %v6719 = vsel %vm590, %v6687, 0.0
        %6720 = vadd.xlane.f32.xlu0 %v6719
        %v6721 = vpop.xlane.xlu0 %6720
        %v6722 = vsel %vm590, %v6688, 0.0
        %6723 = vadd.xlane.f32.xlu0 %v6722
        %v6724 = vpop.xlane.xlu0 %6723
        %v6725 = vsel %vm590, %v6689, 0.0
        %6726 = vadd.xlane.f32.xlu0 %v6725
        %v6727 = vpop.xlane.xlu0 %6726
        %v6728 = vsel %vm590, %v6690, 0.0
        %6729 = vadd.xlane.f32.xlu0 %v6728
        %v6730 = vpop.xlane.xlu0 %6729
        %v6731 = vsel %vm590, %v6691, 0.0
        %6732 = vadd.xlane.f32.xlu0 %v6731
        %v6733 = vpop.xlane.xlu0 %6732
        %v6734 = vsel %vm590, %v6692, 0.0
        %6735 = vadd.xlane.f32.xlu0 %v6734
        %v6736 = vpop.xlane.xlu0 %6735
        %v6737 = vsel %vm590, %v6693, 0.0
        %6738 = vadd.xlane.f32.xlu0 %v6737
        %v6739 = vpop.xlane.xlu0 %6738
        %v6740 = vsel %vm590, %v6694, 0.0
        %6741 = vadd.xlane.f32.xlu0 %v6740
        %v6742 = vpop.xlane.xlu0 %6741
        %v6743 = vld [vmem:[%s535 + $0x28] sm:$0xff]
        %v6745 = vlaneseq
        %v6746 = vshrl.u32 %v6745, 7
        %v6747 = vsub.s32 0, %v6746
        %v6748 = vrot.slane %v6743, %v6747
        %6750 = vbcast.lane.b32.xlu0 %v6748, 256
        %v6751 = vpop.permute.xlu0 %6750
        %s6753 = sor.u32 256, 8
        %6754 = vbcast.lane.b32.xlu0 %v6748, %s6753
        %v6755 = vpop.permute.xlu0 %6754
        %v6756 = vlaneseq
        %v6757 = vshrl.u32 %v6756, 7
        %v6758 = vsub.s32 1, %v6757
        %v6759 = vrot.slane %v6743, %v6758
        %6761 = vbcast.lane.b32.xlu0 %v6759, 256
        %v6762 = vpop.permute.xlu0 %6761
        %s6764 = sor.u32 256, 8
        %6765 = vbcast.lane.b32.xlu0 %v6759, %s6764
        %v6766 = vpop.permute.xlu0 %6765
        %v6767 = vlaneseq
        %v6768 = vshrl.u32 %v6767, 7
        %v6769 = vsub.s32 2, %v6768
        %v6770 = vrot.slane %v6743, %v6769
        %6772 = vbcast.lane.b32.xlu0 %v6770, 256
        %v6773 = vpop.permute.xlu0 %6772
        %s6775 = sor.u32 256, 8
        %6776 = vbcast.lane.b32.xlu0 %v6770, %s6775
        %v6777 = vpop.permute.xlu0 %6776
        %v6778 = vlaneseq
        %v6779 = vshrl.u32 %v6778, 7
        %v6780 = vsub.s32 3, %v6779
        %v6781 = vrot.slane %v6743, %v6780
        %6783 = vbcast.lane.b32.xlu0 %v6781, 256
        %v6784 = vpop.permute.xlu0 %6783
        %s6786 = sor.u32 256, 8
        %6787 = vbcast.lane.b32.xlu0 %v6781, %s6786
        %v6788 = vpop.permute.xlu0 %6787
        %v6789 = vlaneseq
        %v6790 = vshrl.u32 %v6789, 7
        %v6791 = vsub.s32 4, %v6790
        %v6792 = vrot.slane %v6743, %v6791
        %6794 = vbcast.lane.b32.xlu0 %v6792, 256
        %v6795 = vpop.permute.xlu0 %6794
        %s6797 = sor.u32 256, 8
        %6798 = vbcast.lane.b32.xlu0 %v6792, %s6797
        %v6799 = vpop.permute.xlu0 %6798
        %v6800 = vlaneseq
        %v6801 = vshrl.u32 %v6800, 7
        %v6802 = vsub.s32 5, %v6801
        %v6803 = vrot.slane %v6743, %v6802
        %6805 = vbcast.lane.b32.xlu0 %v6803, 256
        %v6806 = vpop.permute.xlu0 %6805
        %s6808 = sor.u32 256, 8
        %6809 = vbcast.lane.b32.xlu0 %v6803, %s6808
        %v6810 = vpop.permute.xlu0 %6809
        %v6811 = vlaneseq
        %v6812 = vshrl.u32 %v6811, 7
        %v6813 = vsub.s32 6, %v6812
        %v6814 = vrot.slane %v6743, %v6813
        %6816 = vbcast.lane.b32.xlu0 %v6814, 256
        %v6817 = vpop.permute.xlu0 %6816
        %s6819 = sor.u32 256, 8
        %6820 = vbcast.lane.b32.xlu0 %v6814, %s6819
        %v6821 = vpop.permute.xlu0 %6820
        %v6822 = vlaneseq
        %v6823 = vshrl.u32 %v6822, 7
        %v6824 = vsub.s32 7, %v6823
        %v6825 = vrot.slane %v6743, %v6824
        %6827 = vbcast.lane.b32.xlu0 %v6825, 256
        %v6828 = vpop.permute.xlu0 %6827
        %s6830 = sor.u32 256, 8
        %6831 = vbcast.lane.b32.xlu0 %v6825, %s6830
        %v6832 = vpop.permute.xlu0 %6831
        %v6849 = vadd.f32 %v6697, %v6751
        %v6850 = vadd.f32 %v6700, %v6755
        %v6851 = vadd.f32 %v6703, %v6762
        %v6852 = vadd.f32 %v6706, %v6766
        %v6853 = vadd.f32 %v6709, %v6773
        %v6854 = vadd.f32 %v6712, %v6777
        %v6855 = vadd.f32 %v6715, %v6784
        %v6856 = vadd.f32 %v6718, %v6788
        %v6857 = vadd.f32 %v6721, %v6795
        %v6858 = vadd.f32 %v6724, %v6799
        %v6859 = vadd.f32 %v6727, %v6806
        %v6860 = vadd.f32 %v6730, %v6810
        %v6861 = vadd.f32 %v6733, %v6817
        %v6862 = vadd.f32 %v6736, %v6821
        %v6863 = vadd.f32 %v6739, %v6828
        %v6864 = vadd.f32 %v6742, %v6832
        %6866 = vrot.lane.b32.xlu0 %v6546, 112
        %v6867 = vpop.permute.xlu0 %6866
        %6869 = vrot.lane.b32.xlu0 %v6547, 80
        %v6870 = vpop.permute.xlu0 %6869
        %6871 = vrot.lane.b32.xlu0 %v6546, 80
        %v6872 = vpop.permute.xlu0 %6871
        %6889 = vset.pattern.permute.xlu0 0
        %6890 = vperm.xlu0 %6889, %v6849
        %v6891 = vpop.permute.xlu0 %6890
        %6892 = vset.pattern.permute.xlu0 0
        %6893 = vperm.xlu0 %6892, %v6850
        %v6894 = vpop.permute.xlu0 %6893
        %6895 = vset.pattern.permute.xlu0 0
        %6896 = vperm.xlu0 %6895, %v6851
        %v6897 = vpop.permute.xlu0 %6896
        %6898 = vset.pattern.permute.xlu0 0
        %6899 = vperm.xlu0 %6898, %v6852
        %v6900 = vpop.permute.xlu0 %6899
        %6901 = vset.pattern.permute.xlu0 0
        %6902 = vperm.xlu0 %6901, %v6853
        %v6903 = vpop.permute.xlu0 %6902
        %6904 = vset.pattern.permute.xlu0 0
        %6905 = vperm.xlu0 %6904, %v6854
        %v6906 = vpop.permute.xlu0 %6905
        %6907 = vset.pattern.permute.xlu0 0
        %6908 = vperm.xlu0 %6907, %v6855
        %v6909 = vpop.permute.xlu0 %6908
        %6910 = vset.pattern.permute.xlu0 0
        %6911 = vperm.xlu0 %6910, %v6856
        %v6912 = vpop.permute.xlu0 %6911
        %6913 = vset.pattern.permute.xlu0 0
        %6914 = vperm.xlu0 %6913, %v6857
        %v6915 = vpop.permute.xlu0 %6914
        %6916 = vset.pattern.permute.xlu0 0
        %6917 = vperm.xlu0 %6916, %v6858
        %v6918 = vpop.permute.xlu0 %6917
        %6919 = vset.pattern.permute.xlu0 0
        %6920 = vperm.xlu0 %6919, %v6859
        %v6921 = vpop.permute.xlu0 %6920
        %6922 = vset.pattern.permute.xlu0 0
        %6923 = vperm.xlu0 %6922, %v6860
        %v6924 = vpop.permute.xlu0 %6923
        %6925 = vset.pattern.permute.xlu0 0
        %6926 = vperm.xlu0 %6925, %v6861
        %v6927 = vpop.permute.xlu0 %6926
        %6928 = vset.pattern.permute.xlu0 0
        %6929 = vperm.xlu0 %6928, %v6862
        %v6930 = vpop.permute.xlu0 %6929
        %6931 = vset.pattern.permute.xlu0 0
        %6932 = vperm.xlu0 %6931, %v6863
        %v6933 = vpop.permute.xlu0 %6932
        %6934 = vset.pattern.permute.xlu0 0
        %6935 = vperm.xlu0 %6934, %v6864
        %v6936 = vpop.permute.xlu0 %6935
        %v6937 = vlaneseq
        %v6938 = vshrl.u32 %v6937, 7
        %v6939 = vsub.s32 %v979, %v6938
        %v6940 = vrot.slane %v6891, %v6939
        %v6941 = vlaneseq
        %v6942 = vshrl.u32 %v6941, 7
        %v6943 = vsub.s32 %v3058, %v6942
        %v6944 = vrot.slane %v6894, %v6943
        %v6945 = vsel %vm1632, %v6944, %v6940
        %v6946 = vlaneseq
        %v6947 = vshrl.u32 %v6946, 7
        %v6948 = vsub.s32 %v979, %v6947
        %v6949 = vrot.slane %v6897, %v6948
        %v6950 = vlaneseq
        %v6951 = vshrl.u32 %v6950, 7
        %v6952 = vsub.s32 %v3058, %v6951
        %v6953 = vrot.slane %v6900, %v6952
        %v6954 = vsel %vm1632, %v6953, %v6949
        %v6955 = vlaneseq
        %v6956 = vshrl.u32 %v6955, 7
        %v6957 = vsub.s32 %v979, %v6956
        %v6958 = vrot.slane %v6903, %v6957
        %v6959 = vlaneseq
        %v6960 = vshrl.u32 %v6959, 7
        %v6961 = vsub.s32 %v3058, %v6960
        %v6962 = vrot.slane %v6906, %v6961
        %v6963 = vsel %vm1632, %v6962, %v6958
        %v6964 = vlaneseq
        %v6965 = vshrl.u32 %v6964, 7
        %v6966 = vsub.s32 %v979, %v6965
        %v6967 = vrot.slane %v6909, %v6966
        %v6968 = vlaneseq
        %v6969 = vshrl.u32 %v6968, 7
        %v6970 = vsub.s32 %v3058, %v6969
        %v6971 = vrot.slane %v6912, %v6970
        %v6972 = vsel %vm1632, %v6971, %v6967
        %v6973 = vlaneseq
        %v6974 = vshrl.u32 %v6973, 7
        %v6975 = vsub.s32 %v979, %v6974
        %v6976 = vrot.slane %v6915, %v6975
        %v6977 = vlaneseq
        %v6978 = vshrl.u32 %v6977, 7
        %v6979 = vsub.s32 %v3058, %v6978
        %v6980 = vrot.slane %v6918, %v6979
        %v6981 = vsel %vm1632, %v6980, %v6976
        %v6982 = vlaneseq
        %v6983 = vshrl.u32 %v6982, 7
        %v6984 = vsub.s32 %v979, %v6983
        %v6985 = vrot.slane %v6921, %v6984
        %v6986 = vlaneseq
        %v6987 = vshrl.u32 %v6986, 7
        %v6988 = vsub.s32 %v3058, %v6987
        %v6989 = vrot.slane %v6924, %v6988
        %v6990 = vsel %vm1632, %v6989, %v6985
        %v6991 = vlaneseq
        %v6992 = vshrl.u32 %v6991, 7
        %v6993 = vsub.s32 %v979, %v6992
        %v6994 = vrot.slane %v6927, %v6993
        %v6995 = vlaneseq
        %v6996 = vshrl.u32 %v6995, 7
        %v6997 = vsub.s32 %v3058, %v6996
        %v6998 = vrot.slane %v6930, %v6997
        %v6999 = vsel %vm1632, %v6998, %v6994
        %v7000 = vlaneseq
        %v7001 = vshrl.u32 %v7000, 7
        %v7002 = vsub.s32 %v979, %v7001
        %v7003 = vrot.slane %v6933, %v7002
        %v7004 = vlaneseq
        %v7005 = vshrl.u32 %v7004, 7
        %v7006 = vsub.s32 %v3058, %v7005
        %v7007 = vrot.slane %v6936, %v7006
        %v7008 = vsel %vm1632, %v7007, %v7003
        %v7009 = vsel %vm1012, %v6954, %v6945
        %v7010 = vsel %vm1014, %v6963, %v7009
        %v7011 = vsel %vm1016, %v6972, %v7010
        %v7012 = vsel %vm1018, %v6981, %v7011
        %v7013 = vsel %vm1020, %v6990, %v7012
        %v7014 = vsel %vm1022, %v6999, %v7013
        %v7015 = vsel %vm1024, %v7008, %v7014
        %v7017 = vsel %vm1027, %v6867, 0
        %v7019 = vsel %vm1027, %v6870, 0
        %v7021 = vsel %vm1027, %v6872, 0
        %7023 = vmatprep.subr.mxu0 0.0
        %7024 = vmatpush1.xpose.msra.mxu0 0.0
        %7025 = vmatprep.subr.mxu0 0.0
        %7026 = vmatpush1.xpose.msra.mxu0 0.0
        %7027 = vmatprep.subr.mxu0 0.0
        %7028 = vmatpush1.xpose.msra.mxu0 0.0
        %7029 = vmatprep.subr.mxu0 0.0
        %7030 = vmatpush1.xpose.msra.mxu0 0.0
        %7031 = vmatprep.subr.mxu0 0.0
        %7032 = vmatpush1.xpose.msra.mxu0 0.0
        %7033 = vmatprep.subr.mxu0 0.0
        %7034 = vmatpush1.xpose.msra.mxu0 0.0
        %7035 = vmatprep.subr.mxu0 0.0
        %7036 = vmatpush1.xpose.msra.mxu0 0.0
        %7037 = vmatprep.subr.mxu0 0.0
        %7038 = vmatpush1.xpose.msra.mxu0 0.0
        %7039 = vmatprep.subr.mxu0 0.0
        %7040 = vmatpush1.xpose.msra.mxu0 0.0
        %7041 = vmatprep.subr.mxu0 0.0
        %7042 = vmatpush1.xpose.msra.mxu0 0.0
        %7043 = vmatprep.subr.mxu0 0.0
        %7044 = vmatpush1.xpose.msra.mxu0 0.0
        %7045 = vmatprep.subr.mxu0 0.0
        %7046 = vmatpush1.xpose.msra.mxu0 0.0
        %7047 = vmatprep.subr.mxu0 0.0
        %7048 = vmatpush1.xpose.msra.mxu0 0.0
        %7049 = vmatprep.subr.mxu0 0.0
        %7050 = vmatpush1.xpose.msra.mxu0 0.0
        %7051 = vmatprep.subr.mxu0 0.0
        %7052 = vmatpush1.xpose.msra.mxu0 %v7021
        %7053 = vmatprep.subr.mxu0 0.0
        %7054 = vmatpush1.xpose.msra.mxu0 %v7019
        %7055 = vmatprep.subr.mxu0 0.0
        %7056 = vmatpush2.xpose.msra.mxu0 0.0
        %7057 = vmatprep.subr.mxu0 0.0
        %7058 = vmatpush2.xpose.msra.mxu0 0.0
        %7059 = vmatprep.subr.mxu0 0.0
        %7060 = vmatpush2.xpose.msra.mxu0 0.0
        %7061 = vmatprep.subr.mxu0 0.0
        %7062 = vmatpush2.xpose.msra.mxu0 0.0
        %7063 = vmatprep.subr.mxu0 0.0
        %7064 = vmatpush2.xpose.msra.mxu0 0.0
        %7065 = vmatprep.subr.mxu0 0.0
        %7066 = vmatpush2.xpose.msra.mxu0 0.0
        %7067 = vmatprep.subr.mxu0 0.0
        %7068 = vmatpush2.xpose.msra.mxu0 0.0
        %7069 = vmatprep.subr.mxu0 0.0
        %7070 = vmatpush2.xpose.msra.mxu0 0.0
        %7071 = vmatprep.subr.mxu0 0.0
        %7072 = vmatpush2.xpose.msra.mxu0 0.0
        %7073 = vmatprep.subr.mxu0 0.0
        %7074 = vmatpush2.xpose.msra.mxu0 0.0
        %7075 = vmatprep.subr.mxu0 0.0
        %7076 = vmatpush2.xpose.msra.mxu0 0.0
        %7077 = vmatprep.subr.mxu0 0.0
        %7078 = vmatpush2.xpose.msra.mxu0 0.0
        %7079 = vmatprep.subr.mxu0 0.0
        %7080 = vmatpush2.xpose.msra.mxu0 0.0
        %7081 = vmatprep.subr.mxu0 0.0
        %7082 = vmatpush2.xpose.msra.mxu0 0.0
        %7083 = vmatprep.subr.mxu0 0.0
        %7084 = vmatpush2.xpose.msra.mxu0 0.0
        %7085 = vmatprep.subr.mxu0 0.0
        %7086 = vmatpush2.xpose.msra.mxu0 0.0
        %7087 = vmatprep.mubr.f32.mxu0 0.0
        %7088 = vmatmul.mubr.f32.gmra.mxu0 %v7017
        %v7089 = vpop.f32.mrf.mxu0
        %v7090 = vadd.f32 %v7015, %v7089
        %v7091 = vpop.f32.mrf.mxu0
        %7092 = vdwg.mxu0
        %v7093 = vsel %vm3211, %v7090, -inf
        %7094 = vmax.xlane.f32.xlu0 %v7093
        %v7095 = vpop.xlane.xlu0 %7094
        %v7096 = vsub.f32 %v7090, %v7095
        %v7097 = vmul.f32 %v7096, 1.442695
        %v7098 = vpow.pop %v7097
        %v7099 = vsel %vm3211, %v7098, 0.0
        %7100 = vadd.xlane.f32.xlu0 %v7099
        %v7101 = vpop.xlane.xlu0 %7100
        %v7102 = vrcp.pop %v7101
        %v7103 = vmul.f32 %v7098, %v7102
        %7104 = vst.msk [vmem:[%s500 + $0x30] sm:$0xff] %vm3211, %v7103
        %7105 = vrot.lane.b32.xlu0 %v6547, 48
        %v7106 = vpop.permute.xlu0 %7105
        %7107 = vrot.lane.b32.xlu0 %v6546, 48
        %v7108 = vpop.permute.xlu0 %7107
        %v7112 = vsel %vm3211, %v7103, 0
        %7114 = vmatprep.subr.mxu0 0.0
        %7115 = vmatpush1.msra.mxu0 0.0
        %7116 = vmatprep.subr.mxu0 0.0
        %7117 = vmatpush1.msra.mxu0 0.0
        %7118 = vmatprep.subr.mxu0 0.0
        %7119 = vmatpush1.msra.mxu0 0.0
        %7120 = vmatprep.subr.mxu0 0.0
        %7121 = vmatpush1.msra.mxu0 0.0
        %7122 = vmatprep.subr.mxu0 0.0
        %7123 = vmatpush1.msra.mxu0 0.0
        %7124 = vmatprep.subr.mxu0 0.0
        %7125 = vmatpush1.msra.mxu0 0.0
        %7126 = vmatprep.subr.mxu0 0.0
        %7127 = vmatpush1.msra.mxu0 0.0
        %7128 = vmatprep.subr.mxu0 0.0
        %7129 = vmatpush1.msra.mxu0 0.0
        %7130 = vmatprep.subr.mxu0 0.0
        %7131 = vmatpush1.msra.mxu0 0.0
        %7132 = vmatprep.subr.mxu0 0.0
        %7133 = vmatpush1.msra.mxu0 0.0
        %7134 = vmatprep.subr.mxu0 0.0
        %7135 = vmatpush1.msra.mxu0 0.0
        %7136 = vmatprep.subr.mxu0 0.0
        %7137 = vmatpush1.msra.mxu0 0.0
        %7138 = vmatprep.subr.mxu0 0.0
        %7139 = vmatpush1.msra.mxu0 0.0
        %7140 = vmatprep.subr.mxu0 0.0
        %7141 = vmatpush1.msra.mxu0 0.0
        %7142 = vmatprep.subr.mxu0 0.0
        %7143 = vmatpush1.msra.mxu0 %v7108
        %7144 = vmatprep.subr.mxu0 0.0
        %7145 = vmatpush1.msra.mxu0 %v7106
        %7146 = vmatprep.subr.mxu0 0.0
        %7147 = vmatpush2.msra.mxu0 0.0
        %7148 = vmatprep.subr.mxu0 0.0
        %7149 = vmatpush2.msra.mxu0 0.0
        %7150 = vmatprep.subr.mxu0 0.0
        %7151 = vmatpush2.msra.mxu0 0.0
        %7152 = vmatprep.subr.mxu0 0.0
        %7153 = vmatpush2.msra.mxu0 0.0
        %7154 = vmatprep.subr.mxu0 0.0
        %7155 = vmatpush2.msra.mxu0 0.0
        %7156 = vmatprep.subr.mxu0 0.0
        %7157 = vmatpush2.msra.mxu0 0.0
        %7158 = vmatprep.subr.mxu0 0.0
        %7159 = vmatpush2.msra.mxu0 0.0
        %7160 = vmatprep.subr.mxu0 0.0
        %7161 = vmatpush2.msra.mxu0 0.0
        %7162 = vmatprep.subr.mxu0 0.0
        %7163 = vmatpush2.msra.mxu0 0.0
        %7164 = vmatprep.subr.mxu0 0.0
        %7165 = vmatpush2.msra.mxu0 0.0
        %7166 = vmatprep.subr.mxu0 0.0
        %7167 = vmatpush2.msra.mxu0 0.0
        %7168 = vmatprep.subr.mxu0 0.0
        %7169 = vmatpush2.msra.mxu0 0.0
        %7170 = vmatprep.subr.mxu0 0.0
        %7171 = vmatpush2.msra.mxu0 0.0
        %7172 = vmatprep.subr.mxu0 0.0
        %7173 = vmatpush2.msra.mxu0 0.0
        %7174 = vmatprep.subr.mxu0 0.0
        %7175 = vmatpush2.msra.mxu0 0.0
        %7176 = vmatprep.subr.mxu0 0.0
        %7177 = vmatpush2.msra.mxu0 0.0
        %7178 = vmatprep.mubr.f32.mxu0 0.0
        %7179 = vmatmul.mubr.f32.gmra.mxu0 %v7112
        %v7180 = vpop.f32.mrf.mxu0
        %v7181 = vadd.f32 0.0, %v7180
        %v7182 = vpop.f32.mrf.mxu0
        %7183 = vdwg.mxu0
        %7185 = vrot.lane.b32.xlu0 %v7181, 16
        %v7186 = vpop.permute.xlu0 %7185
        %7188 = vst.msk [vmem:[#allocation3 + $0x10] sm:$0xff] %vm2131, %v7186
        %v7189 = vld [vmem:[#allocation2 + $0x20] sm:$0xff]
        %v7190 = vld [vmem:[#allocation2] sm:$0xff]
        %v7191 = vld [vmem:[#allocation2 + $0x17] ss:$0 sm:$0xff]
        %7193 = vrot.lane.b32.xlu0 %v7191, 32
        %v7194 = vpop.permute.xlu0 %7193
        %7196 = vst.msk [vmem:[#allocation4] sm:$0x1] %vm2671, %v7194
        %v7197 = vld [vmem:[#allocation2 + $0x27] ss:$0 sm:$0xff]
        %7199 = vrot.lane.b32.xlu0 %v7197, 32
        %v7200 = vpop.permute.xlu0 %7199
        %7202 = vst.msk [vmem:[#allocation4 + $0x4] sm:$0x1] %vm2671, %v7200
        %v7203 = vld [vmem:[#allocation2 + $0x1f] ss:$0 sm:$0xff]
        %7204 = vst.msk [vmem:[#allocation4 + $0x1] sm:$0x1] %vm2671, %v7203
        %v7205 = vld [vmem:[#allocation2 + $0x2f] ss:$0 sm:$0xff]
        %7206 = vst.msk [vmem:[#allocation4 + $0x5] sm:$0x1] %vm2671, %v7205
        %v7207 = vld [vmem:[#allocation2 + $0x1f] ss:$0 sm:$0xff]
        %7209 = vrot.lane.b32.xlu0 %v7207, 96
        %v7210 = vpop.permute.xlu0 %7209
        %7212 = vst.msk [vmem:[#allocation4 + $0x2] sm:$0x1] %vm2671, %v7210
        %v7213 = vld [vmem:[#allocation2 + $0x2f] ss:$0 sm:$0xff]
        %7215 = vrot.lane.b32.xlu0 %v7213, 96
        %v7216 = vpop.permute.xlu0 %7215
        %7218 = vst.msk [vmem:[#allocation4 + $0x6] sm:$0x1] %vm2671, %v7216
        %v7219 = vld [vmem:[#allocation2 + $0x1f] ss:$0 sm:$0xff]
        %7221 = vrot.lane.b32.xlu0 %v7219, 64
        %v7222 = vpop.permute.xlu0 %7221
        %7224 = vst.msk [vmem:[#allocation4 + $0x3] sm:$0x1] %vm2671, %v7222
        %v7225 = vld [vmem:[#allocation2 + $0x2f] ss:$0 sm:$0xff]
        %7227 = vrot.lane.b32.xlu0 %v7225, 64
        %v7228 = vpop.permute.xlu0 %7227
        %7230 = vst.msk [vmem:[#allocation4 + $0x7] sm:$0x1] %vm2671, %v7228
        %v7231 = vld [vmem:[#allocation4] sm:$0xff]
        %v7233 = vcombine.high %v7231, %v7231
        %v7235 = vunpack.c.l.s4 1966171168
        %v7236 = vunpack.c.0.s8 %v7235
        %v7237 = vlaneseq
        %v7238 = vshrl.u32 %v7237, 7
        %v7239 = vsub.s32 %v7236, %v7238
        %v7240 = vrot.slane %v7231, %v7239
        %v7242 = vunpack.c.l.s4 1966171168
        %v7243 = vunpack.c.0.s8 %v7242
        %v7244 = vlaneseq
        %v7245 = vshrl.u32 %v7244, 7
        %v7246 = vsub.s32 %v7243, %v7245
        %v7247 = vrot.slane %v7233, %v7246
        %v7248 = vcombine.high %v7240, %v7240
        %v7249 = vcombine.high %v7247, %v7247
        %v7251 = vunpack.c.l.s4 1966171168
        %v7252 = vunpack.c.0.s8 %v7251
        %v7253 = vlaneseq
        %v7254 = vshrl.u32 %v7253, 7
        %v7255 = vsub.s32 %v7252, %v7254
        %v7256 = vrot.slane %v7240, %v7255
        %v7258 = vunpack.c.l.s4 1966171168
        %v7259 = vunpack.c.0.s8 %v7258
        %v7260 = vlaneseq
        %v7261 = vshrl.u32 %v7260, 7
        %v7262 = vsub.s32 %v7259, %v7261
        %v7263 = vrot.slane %v7247, %v7262
        %v7265 = vunpack.c.l.s4 1966171168
        %v7266 = vunpack.c.0.s8 %v7265
        %v7267 = vlaneseq
        %v7268 = vshrl.u32 %v7267, 7
        %v7269 = vsub.s32 %v7266, %v7268
        %v7270 = vrot.slane %v7248, %v7269
        %v7272 = vunpack.c.l.s4 1966171168
        %v7273 = vunpack.c.0.s8 %v7272
        %v7274 = vlaneseq
        %v7275 = vshrl.u32 %v7274, 7
        %v7276 = vsub.s32 %v7273, %v7275
        %v7277 = vrot.slane %v7249, %v7276
        %v7278 = vcombine.high %v7256, %v7256
        %v7279 = vcombine.high %v7263, %v7263
        %v7280 = vcombine.high %v7270, %v7270
        %v7281 = vcombine.high %v7277, %v7277
        %v7282 = vlaneseq
        %v7283 = vshrl.u32 %v7282, 7
        %v7284 = vsub.s32 0, %v7283
        %v7285 = vrot.slane %v7256, %v7284
        %v7286 = vlaneseq
        %v7287 = vshrl.u32 %v7286, 7
        %v7288 = vsub.s32 0, %v7287
        %v7289 = vrot.slane %v7270, %v7288
        %v7290 = vlaneseq
        %v7291 = vshrl.u32 %v7290, 7
        %v7292 = vsub.s32 0, %v7291
        %v7293 = vrot.slane %v7278, %v7292
        %v7294 = vlaneseq
        %v7295 = vshrl.u32 %v7294, 7
        %v7296 = vsub.s32 0, %v7295
        %v7297 = vrot.slane %v7280, %v7296
        %v7298 = vlaneseq
        %v7299 = vshrl.u32 %v7298, 7
        %v7300 = vsub.s32 0, %v7299
        %v7301 = vrot.slane %v7263, %v7300
        %v7302 = vlaneseq
        %v7303 = vshrl.u32 %v7302, 7
        %v7304 = vsub.s32 0, %v7303
        %v7305 = vrot.slane %v7277, %v7304
        %v7306 = vlaneseq
        %v7307 = vshrl.u32 %v7306, 7
        %v7308 = vsub.s32 0, %v7307
        %v7309 = vrot.slane %v7279, %v7308
        %v7310 = vlaneseq
        %v7311 = vshrl.u32 %v7310, 7
        %v7312 = vsub.s32 0, %v7311
        %v7313 = vrot.slane %v7281, %v7312
        %v7322 = vmul.f32 %v7285, %v5250
        %v7323 = vmul.f32 %v7285, %v5251
        %v7324 = vmul.f32 %v7289, %v5252
        %v7325 = vmul.f32 %v7289, %v5253
        %v7326 = vmul.f32 %v7293, %v5254
        %v7327 = vmul.f32 %v7293, %v5255
        %v7328 = vmul.f32 %v7297, %v5256
        %v7329 = vmul.f32 %v7297, %v5257
        %v7330 = vmul.f32 %v7301, %v5258
        %v7331 = vmul.f32 %v7301, %v5259
        %v7332 = vmul.f32 %v7305, %v5260
        %v7333 = vmul.f32 %v7305, %v5261
        %v7334 = vmul.f32 %v7309, %v5262
        %v7335 = vmul.f32 %v7309, %v5263
        %v7336 = vmul.f32 %v7313, %v5264
        %v7337 = vmul.f32 %v7313, %v5265
        %v7338 = vsel %vm590, %v7322, 0.0
        %7339 = vadd.xlane.f32.xlu0 %v7338
        %v7340 = vpop.xlane.xlu0 %7339
        %v7341 = vsel %vm590, %v7323, 0.0
        %7342 = vadd.xlane.f32.xlu0 %v7341
        %v7343 = vpop.xlane.xlu0 %7342
        %v7344 = vsel %vm590, %v7324, 0.0
        %7345 = vadd.xlane.f32.xlu0 %v7344
        %v7346 = vpop.xlane.xlu0 %7345
        %v7347 = vsel %vm590, %v7325, 0.0
        %7348 = vadd.xlane.f32.xlu0 %v7347
        %v7349 = vpop.xlane.xlu0 %7348
        %v7350 = vsel %vm590, %v7326, 0.0
        %7351 = vadd.xlane.f32.xlu0 %v7350
        %v7352 = vpop.xlane.xlu0 %7351
        %v7353 = vsel %vm590, %v7327, 0.0
        %7354 = vadd.xlane.f32.xlu0 %v7353
        %v7355 = vpop.xlane.xlu0 %7354
        %v7356 = vsel %vm590, %v7328, 0.0
        %7357 = vadd.xlane.f32.xlu0 %v7356
        %v7358 = vpop.xlane.xlu0 %7357
        %v7359 = vsel %vm590, %v7329, 0.0
        %7360 = vadd.xlane.f32.xlu0 %v7359
        %v7361 = vpop.xlane.xlu0 %7360
        %v7362 = vsel %vm590, %v7330, 0.0
        %7363 = vadd.xlane.f32.xlu0 %v7362
        %v7364 = vpop.xlane.xlu0 %7363
        %v7365 = vsel %vm590, %v7331, 0.0
        %7366 = vadd.xlane.f32.xlu0 %v7365
        %v7367 = vpop.xlane.xlu0 %7366
        %v7368 = vsel %vm590, %v7332, 0.0
        %7369 = vadd.xlane.f32.xlu0 %v7368
        %v7370 = vpop.xlane.xlu0 %7369
        %v7371 = vsel %vm590, %v7333, 0.0
        %7372 = vadd.xlane.f32.xlu0 %v7371
        %v7373 = vpop.xlane.xlu0 %7372
        %v7374 = vsel %vm590, %v7334, 0.0
        %7375 = vadd.xlane.f32.xlu0 %v7374
        %v7376 = vpop.xlane.xlu0 %7375
        %v7377 = vsel %vm590, %v7335, 0.0
        %7378 = vadd.xlane.f32.xlu0 %v7377
        %v7379 = vpop.xlane.xlu0 %7378
        %v7380 = vsel %vm590, %v7336, 0.0
        %7381 = vadd.xlane.f32.xlu0 %v7380
        %v7382 = vpop.xlane.xlu0 %7381
        %v7383 = vsel %vm590, %v7337, 0.0
        %7384 = vadd.xlane.f32.xlu0 %v7383
        %v7385 = vpop.xlane.xlu0 %7384
        %v7386 = vld [vmem:[%s535 + $0x38] sm:$0xff]
        %v7388 = vlaneseq
        %v7389 = vshrl.u32 %v7388, 7
        %v7390 = vsub.s32 0, %v7389
        %v7391 = vrot.slane %v7386, %v7390
        %7393 = vbcast.lane.b32.xlu0 %v7391, 256
        %v7394 = vpop.permute.xlu0 %7393
        %s7396 = sor.u32 256, 8
        %7397 = vbcast.lane.b32.xlu0 %v7391, %s7396
        %v7398 = vpop.permute.xlu0 %7397
        %v7399 = vlaneseq
        %v7400 = vshrl.u32 %v7399, 7
        %v7401 = vsub.s32 1, %v7400
        %v7402 = vrot.slane %v7386, %v7401
        %7404 = vbcast.lane.b32.xlu0 %v7402, 256
        %v7405 = vpop.permute.xlu0 %7404
        %s7407 = sor.u32 256, 8
        %7408 = vbcast.lane.b32.xlu0 %v7402, %s7407
        %v7409 = vpop.permute.xlu0 %7408
        %v7410 = vlaneseq
        %v7411 = vshrl.u32 %v7410, 7
        %v7412 = vsub.s32 2, %v7411
        %v7413 = vrot.slane %v7386, %v7412
        %7415 = vbcast.lane.b32.xlu0 %v7413, 256
        %v7416 = vpop.permute.xlu0 %7415
        %s7418 = sor.u32 256, 8
        %7419 = vbcast.lane.b32.xlu0 %v7413, %s7418
        %v7420 = vpop.permute.xlu0 %7419
        %v7421 = vlaneseq
        %v7422 = vshrl.u32 %v7421, 7
        %v7423 = vsub.s32 3, %v7422
        %v7424 = vrot.slane %v7386, %v7423
        %7426 = vbcast.lane.b32.xlu0 %v7424, 256
        %v7427 = vpop.permute.xlu0 %7426
        %s7429 = sor.u32 256, 8
        %7430 = vbcast.lane.b32.xlu0 %v7424, %s7429
        %v7431 = vpop.permute.xlu0 %7430
        %v7432 = vlaneseq
        %v7433 = vshrl.u32 %v7432, 7
        %v7434 = vsub.s32 4, %v7433
        %v7435 = vrot.slane %v7386, %v7434
        %7437 = vbcast.lane.b32.xlu0 %v7435, 256
        %v7438 = vpop.permute.xlu0 %7437
        %s7440 = sor.u32 256, 8
        %7441 = vbcast.lane.b32.xlu0 %v7435, %s7440
        %v7442 = vpop.permute.xlu0 %7441
        %v7443 = vlaneseq
        %v7444 = vshrl.u32 %v7443, 7
        %v7445 = vsub.s32 5, %v7444
        %v7446 = vrot.slane %v7386, %v7445
        %7448 = vbcast.lane.b32.xlu0 %v7446, 256
        %v7449 = vpop.permute.xlu0 %7448
        %s7451 = sor.u32 256, 8
        %7452 = vbcast.lane.b32.xlu0 %v7446, %s7451
        %v7453 = vpop.permute.xlu0 %7452
        %v7454 = vlaneseq
        %v7455 = vshrl.u32 %v7454, 7
        %v7456 = vsub.s32 6, %v7455
        %v7457 = vrot.slane %v7386, %v7456
        %7459 = vbcast.lane.b32.xlu0 %v7457, 256
        %v7460 = vpop.permute.xlu0 %7459
        %s7462 = sor.u32 256, 8
        %7463 = vbcast.lane.b32.xlu0 %v7457, %s7462
        %v7464 = vpop.permute.xlu0 %7463
        %v7465 = vlaneseq
        %v7466 = vshrl.u32 %v7465, 7
        %v7467 = vsub.s32 7, %v7466
        %v7468 = vrot.slane %v7386, %v7467
        %7470 = vbcast.lane.b32.xlu0 %v7468, 256
        %v7471 = vpop.permute.xlu0 %7470
        %s7473 = sor.u32 256, 8
        %7474 = vbcast.lane.b32.xlu0 %v7468, %s7473
        %v7475 = vpop.permute.xlu0 %7474
        %v7492 = vadd.f32 %v7340, %v7394
        %v7493 = vadd.f32 %v7343, %v7398
        %v7494 = vadd.f32 %v7346, %v7405
        %v7495 = vadd.f32 %v7349, %v7409
        %v7496 = vadd.f32 %v7352, %v7416
        %v7497 = vadd.f32 %v7355, %v7420
        %v7498 = vadd.f32 %v7358, %v7427
        %v7499 = vadd.f32 %v7361, %v7431
        %v7500 = vadd.f32 %v7364, %v7438
        %v7501 = vadd.f32 %v7367, %v7442
        %v7502 = vadd.f32 %v7370, %v7449
        %v7503 = vadd.f32 %v7373, %v7453
        %v7504 = vadd.f32 %v7376, %v7460
        %v7505 = vadd.f32 %v7379, %v7464
        %v7506 = vadd.f32 %v7382, %v7471
        %v7507 = vadd.f32 %v7385, %v7475
        %7509 = vrot.lane.b32.xlu0 %v7189, 104
        %v7510 = vpop.permute.xlu0 %7509
        %7512 = vrot.lane.b32.xlu0 %v7190, 72
        %v7513 = vpop.permute.xlu0 %7512
        %7514 = vrot.lane.b32.xlu0 %v7189, 72
        %v7515 = vpop.permute.xlu0 %7514
        %7532 = vset.pattern.permute.xlu0 0
        %7533 = vperm.xlu0 %7532, %v7492
        %v7534 = vpop.permute.xlu0 %7533
        %7535 = vset.pattern.permute.xlu0 0
        %7536 = vperm.xlu0 %7535, %v7493
        %v7537 = vpop.permute.xlu0 %7536
        %7538 = vset.pattern.permute.xlu0 0
        %7539 = vperm.xlu0 %7538, %v7494
        %v7540 = vpop.permute.xlu0 %7539
        %7541 = vset.pattern.permute.xlu0 0
        %7542 = vperm.xlu0 %7541, %v7495
        %v7543 = vpop.permute.xlu0 %7542
        %7544 = vset.pattern.permute.xlu0 0
        %7545 = vperm.xlu0 %7544, %v7496
        %v7546 = vpop.permute.xlu0 %7545
        %7547 = vset.pattern.permute.xlu0 0
        %7548 = vperm.xlu0 %7547, %v7497
        %v7549 = vpop.permute.xlu0 %7548
        %7550 = vset.pattern.permute.xlu0 0
        %7551 = vperm.xlu0 %7550, %v7498
        %v7552 = vpop.permute.xlu0 %7551
        %7553 = vset.pattern.permute.xlu0 0
        %7554 = vperm.xlu0 %7553, %v7499
        %v7555 = vpop.permute.xlu0 %7554
        %7556 = vset.pattern.permute.xlu0 0
        %7557 = vperm.xlu0 %7556, %v7500
        %v7558 = vpop.permute.xlu0 %7557
        %7559 = vset.pattern.permute.xlu0 0
        %7560 = vperm.xlu0 %7559, %v7501
        %v7561 = vpop.permute.xlu0 %7560
        %7562 = vset.pattern.permute.xlu0 0
        %7563 = vperm.xlu0 %7562, %v7502
        %v7564 = vpop.permute.xlu0 %7563
        %7565 = vset.pattern.permute.xlu0 0
        %7566 = vperm.xlu0 %7565, %v7503
        %v7567 = vpop.permute.xlu0 %7566
        %7568 = vset.pattern.permute.xlu0 0
        %7569 = vperm.xlu0 %7568, %v7504
        %v7570 = vpop.permute.xlu0 %7569
        %7571 = vset.pattern.permute.xlu0 0
        %7572 = vperm.xlu0 %7571, %v7505
        %v7573 = vpop.permute.xlu0 %7572
        %7574 = vset.pattern.permute.xlu0 0
        %7575 = vperm.xlu0 %7574, %v7506
        %v7576 = vpop.permute.xlu0 %7575
        %7577 = vset.pattern.permute.xlu0 0
        %7578 = vperm.xlu0 %7577, %v7507
        %v7579 = vpop.permute.xlu0 %7578
        %v7580 = vlaneseq
        %v7581 = vshrl.u32 %v7580, 7
        %v7582 = vsub.s32 %v979, %v7581
        %v7583 = vrot.slane %v7534, %v7582
        %v7584 = vlaneseq
        %v7585 = vshrl.u32 %v7584, 7
        %v7586 = vsub.s32 %v3058, %v7585
        %v7587 = vrot.slane %v7537, %v7586
        %v7588 = vsel %vm1632, %v7587, %v7583
        %v7589 = vlaneseq
        %v7590 = vshrl.u32 %v7589, 7
        %v7591 = vsub.s32 %v979, %v7590
        %v7592 = vrot.slane %v7540, %v7591
        %v7593 = vlaneseq
        %v7594 = vshrl.u32 %v7593, 7
        %v7595 = vsub.s32 %v3058, %v7594
        %v7596 = vrot.slane %v7543, %v7595
        %v7597 = vsel %vm1632, %v7596, %v7592
        %v7598 = vlaneseq
        %v7599 = vshrl.u32 %v7598, 7
        %v7600 = vsub.s32 %v979, %v7599
        %v7601 = vrot.slane %v7546, %v7600
        %v7602 = vlaneseq
        %v7603 = vshrl.u32 %v7602, 7
        %v7604 = vsub.s32 %v3058, %v7603
        %v7605 = vrot.slane %v7549, %v7604
        %v7606 = vsel %vm1632, %v7605, %v7601
        %v7607 = vlaneseq
        %v7608 = vshrl.u32 %v7607, 7
        %v7609 = vsub.s32 %v979, %v7608
        %v7610 = vrot.slane %v7552, %v7609
        %v7611 = vlaneseq
        %v7612 = vshrl.u32 %v7611, 7
        %v7613 = vsub.s32 %v3058, %v7612
        %v7614 = vrot.slane %v7555, %v7613
        %v7615 = vsel %vm1632, %v7614, %v7610
        %v7616 = vlaneseq
        %v7617 = vshrl.u32 %v7616, 7
        %v7618 = vsub.s32 %v979, %v7617
        %v7619 = vrot.slane %v7558, %v7618
        %v7620 = vlaneseq
        %v7621 = vshrl.u32 %v7620, 7
        %v7622 = vsub.s32 %v3058, %v7621
        %v7623 = vrot.slane %v7561, %v7622
        %v7624 = vsel %vm1632, %v7623, %v7619
        %v7625 = vlaneseq
        %v7626 = vshrl.u32 %v7625, 7
        %v7627 = vsub.s32 %v979, %v7626
        %v7628 = vrot.slane %v7564, %v7627
        %v7629 = vlaneseq
        %v7630 = vshrl.u32 %v7629, 7
        %v7631 = vsub.s32 %v3058, %v7630
        %v7632 = vrot.slane %v7567, %v7631
        %v7633 = vsel %vm1632, %v7632, %v7628
        %v7634 = vlaneseq
        %v7635 = vshrl.u32 %v7634, 7
        %v7636 = vsub.s32 %v979, %v7635
        %v7637 = vrot.slane %v7570, %v7636
        %v7638 = vlaneseq
        %v7639 = vshrl.u32 %v7638, 7
        %v7640 = vsub.s32 %v3058, %v7639
        %v7641 = vrot.slane %v7573, %v7640
        %v7642 = vsel %vm1632, %v7641, %v7637
        %v7643 = vlaneseq
        %v7644 = vshrl.u32 %v7643, 7
        %v7645 = vsub.s32 %v979, %v7644
        %v7646 = vrot.slane %v7576, %v7645
        %v7647 = vlaneseq
        %v7648 = vshrl.u32 %v7647, 7
        %v7649 = vsub.s32 %v3058, %v7648
        %v7650 = vrot.slane %v7579, %v7649
        %v7651 = vsel %vm1632, %v7650, %v7646
        %v7652 = vsel %vm1012, %v7597, %v7588
        %v7653 = vsel %vm1014, %v7606, %v7652
        %v7654 = vsel %vm1016, %v7615, %v7653
        %v7655 = vsel %vm1018, %v7624, %v7654
        %v7656 = vsel %vm1020, %v7633, %v7655
        %v7657 = vsel %vm1022, %v7642, %v7656
        %v7658 = vsel %vm1024, %v7651, %v7657
        %v7660 = vsel %vm1027, %v7510, 0
        %v7662 = vsel %vm1027, %v7513, 0
        %v7664 = vsel %vm1027, %v7515, 0
        %7666 = vmatprep.subr.mxu0 0.0
        %7667 = vmatpush1.xpose.msra.mxu0 0.0
        %7668 = vmatprep.subr.mxu0 0.0
        %7669 = vmatpush1.xpose.msra.mxu0 0.0
        %7670 = vmatprep.subr.mxu0 0.0
        %7671 = vmatpush1.xpose.msra.mxu0 0.0
        %7672 = vmatprep.subr.mxu0 0.0
        %7673 = vmatpush1.xpose.msra.mxu0 0.0
        %7674 = vmatprep.subr.mxu0 0.0
        %7675 = vmatpush1.xpose.msra.mxu0 0.0
        %7676 = vmatprep.subr.mxu0 0.0
        %7677 = vmatpush1.xpose.msra.mxu0 0.0
        %7678 = vmatprep.subr.mxu0 0.0
        %7679 = vmatpush1.xpose.msra.mxu0 0.0
        %7680 = vmatprep.subr.mxu0 0.0
        %7681 = vmatpush1.xpose.msra.mxu0 0.0
        %7682 = vmatprep.subr.mxu0 0.0
        %7683 = vmatpush1.xpose.msra.mxu0 0.0
        %7684 = vmatprep.subr.mxu0 0.0
        %7685 = vmatpush1.xpose.msra.mxu0 0.0
        %7686 = vmatprep.subr.mxu0 0.0
        %7687 = vmatpush1.xpose.msra.mxu0 0.0
        %7688 = vmatprep.subr.mxu0 0.0
        %7689 = vmatpush1.xpose.msra.mxu0 0.0
        %7690 = vmatprep.subr.mxu0 0.0
        %7691 = vmatpush1.xpose.msra.mxu0 0.0
        %7692 = vmatprep.subr.mxu0 0.0
        %7693 = vmatpush1.xpose.msra.mxu0 0.0
        %7694 = vmatprep.subr.mxu0 0.0
        %7695 = vmatpush1.xpose.msra.mxu0 %v7664
        %7696 = vmatprep.subr.mxu0 0.0
        %7697 = vmatpush1.xpose.msra.mxu0 %v7662
        %7698 = vmatprep.subr.mxu0 0.0
        %7699 = vmatpush2.xpose.msra.mxu0 0.0
        %7700 = vmatprep.subr.mxu0 0.0
        %7701 = vmatpush2.xpose.msra.mxu0 0.0
        %7702 = vmatprep.subr.mxu0 0.0
        %7703 = vmatpush2.xpose.msra.mxu0 0.0
        %7704 = vmatprep.subr.mxu0 0.0
        %7705 = vmatpush2.xpose.msra.mxu0 0.0
        %7706 = vmatprep.subr.mxu0 0.0
        %7707 = vmatpush2.xpose.msra.mxu0 0.0
        %7708 = vmatprep.subr.mxu0 0.0
        %7709 = vmatpush2.xpose.msra.mxu0 0.0
        %7710 = vmatprep.subr.mxu0 0.0
        %7711 = vmatpush2.xpose.msra.mxu0 0.0
        %7712 = vmatprep.subr.mxu0 0.0
        %7713 = vmatpush2.xpose.msra.mxu0 0.0
        %7714 = vmatprep.subr.mxu0 0.0
        %7715 = vmatpush2.xpose.msra.mxu0 0.0
        %7716 = vmatprep.subr.mxu0 0.0
        %7717 = vmatpush2.xpose.msra.mxu0 0.0
        %7718 = vmatprep.subr.mxu0 0.0
        %7719 = vmatpush2.xpose.msra.mxu0 0.0
        %7720 = vmatprep.subr.mxu0 0.0
        %7721 = vmatpush2.xpose.msra.mxu0 0.0
        %7722 = vmatprep.subr.mxu0 0.0
        %7723 = vmatpush2.xpose.msra.mxu0 0.0
        %7724 = vmatprep.subr.mxu0 0.0
        %7725 = vmatpush2.xpose.msra.mxu0 0.0
        %7726 = vmatprep.subr.mxu0 0.0
        %7727 = vmatpush2.xpose.msra.mxu0 0.0
        %7728 = vmatprep.subr.mxu0 0.0
        %7729 = vmatpush2.xpose.msra.mxu0 0.0
        %7730 = vmatprep.mubr.f32.mxu0 0.0
        %7731 = vmatmul.mubr.f32.gmra.mxu0 %v7660
        %v7732 = vpop.f32.mrf.mxu0
        %v7733 = vadd.f32 %v7658, %v7732
        %v7734 = vpop.f32.mrf.mxu0
        %7735 = vdwg.mxu0
        %v7736 = vsel %vm3211, %v7733, -inf
        %7737 = vmax.xlane.f32.xlu0 %v7736
        %v7738 = vpop.xlane.xlu0 %7737
        %v7739 = vsub.f32 %v7733, %v7738
        %v7740 = vmul.f32 %v7739, 1.442695
        %v7741 = vpow.pop %v7740
        %v7742 = vsel %vm3211, %v7741, 0.0
        %7743 = vadd.xlane.f32.xlu0 %v7742
        %v7744 = vpop.xlane.xlu0 %7743
        %v7745 = vrcp.pop %v7744
        %v7746 = vmul.f32 %v7741, %v7745
        %7747 = vst.msk [vmem:[%s500 + $0x38] sm:$0xff] %vm3211, %v7746
        %7748 = vrot.lane.b32.xlu0 %v7190, 40
        %v7749 = vpop.permute.xlu0 %7748
        %7750 = vrot.lane.b32.xlu0 %v7189, 40
        %v7751 = vpop.permute.xlu0 %7750
        %v7755 = vsel %vm3211, %v7746, 0
        %7757 = vmatprep.subr.mxu0 0.0
        %7758 = vmatpush1.msra.mxu0 0.0
        %7759 = vmatprep.subr.mxu0 0.0
        %7760 = vmatpush1.msra.mxu0 0.0
        %7761 = vmatprep.subr.mxu0 0.0
        %7762 = vmatpush1.msra.mxu0 0.0
        %7763 = vmatprep.subr.mxu0 0.0
        %7764 = vmatpush1.msra.mxu0 0.0
        %7765 = vmatprep.subr.mxu0 0.0
        %7766 = vmatpush1.msra.mxu0 0.0
        %7767 = vmatprep.subr.mxu0 0.0
        %7768 = vmatpush1.msra.mxu0 0.0
        %7769 = vmatprep.subr.mxu0 0.0
        %7770 = vmatpush1.msra.mxu0 0.0
        %7771 = vmatprep.subr.mxu0 0.0
        %7772 = vmatpush1.msra.mxu0 0.0
        %7773 = vmatprep.subr.mxu0 0.0
        %7774 = vmatpush1.msra.mxu0 0.0
        %7775 = vmatprep.subr.mxu0 0.0
        %7776 = vmatpush1.msra.mxu0 0.0
        %7777 = vmatprep.subr.mxu0 0.0
        %7778 = vmatpush1.msra.mxu0 0.0
        %7779 = vmatprep.subr.mxu0 0.0
        %7780 = vmatpush1.msra.mxu0 0.0
        %7781 = vmatprep.subr.mxu0 0.0
        %7782 = vmatpush1.msra.mxu0 0.0
        %7783 = vmatprep.subr.mxu0 0.0
        %7784 = vmatpush1.msra.mxu0 0.0
        %7785 = vmatprep.subr.mxu0 0.0
        %7786 = vmatpush1.msra.mxu0 %v7751
        %7787 = vmatprep.subr.mxu0 0.0
        %7788 = vmatpush1.msra.mxu0 %v7749
        %7789 = vmatprep.subr.mxu0 0.0
        %7790 = vmatpush2.msra.mxu0 0.0
        %7791 = vmatprep.subr.mxu0 0.0
        %7792 = vmatpush2.msra.mxu0 0.0
        %7793 = vmatprep.subr.mxu0 0.0
        %7794 = vmatpush2.msra.mxu0 0.0
        %7795 = vmatprep.subr.mxu0 0.0
        %7796 = vmatpush2.msra.mxu0 0.0
        %7797 = vmatprep.subr.mxu0 0.0
        %7798 = vmatpush2.msra.mxu0 0.0
        %7799 = vmatprep.subr.mxu0 0.0
        %7800 = vmatpush2.msra.mxu0 0.0
        %7801 = vmatprep.subr.mxu0 0.0
        %7802 = vmatpush2.msra.mxu0 0.0
        %7803 = vmatprep.subr.mxu0 0.0
        %7804 = vmatpush2.msra.mxu0 0.0
        %7805 = vmatprep.subr.mxu0 0.0
        %7806 = vmatpush2.msra.mxu0 0.0
        %7807 = vmatprep.subr.mxu0 0.0
        %7808 = vmatpush2.msra.mxu0 0.0
        %7809 = vmatprep.subr.mxu0 0.0
        %7810 = vmatpush2.msra.mxu0 0.0
        %7811 = vmatprep.subr.mxu0 0.0
        %7812 = vmatpush2.msra.mxu0 0.0
        %7813 = vmatprep.subr.mxu0 0.0
        %7814 = vmatpush2.msra.mxu0 0.0
        %7815 = vmatprep.subr.mxu0 0.0
        %7816 = vmatpush2.msra.mxu0 0.0
        %7817 = vmatprep.subr.mxu0 0.0
        %7818 = vmatpush2.msra.mxu0 0.0
        %7819 = vmatprep.subr.mxu0 0.0
        %7820 = vmatpush2.msra.mxu0 0.0
        %7821 = vmatprep.mubr.f32.mxu0 0.0
        %7822 = vmatmul.mubr.f32.gmra.mxu0 %v7755
        %v7823 = vpop.f32.mrf.mxu0
        %v7824 = vadd.f32 0.0, %v7823
        %v7825 = vpop.f32.mrf.mxu0
        %7826 = vdwg.mxu0
        %7828 = vrot.lane.b32.xlu0 %v7824, 24
        %v7829 = vpop.permute.xlu0 %7828
        %7831 = vst.msk [vmem:[#allocation3 + $0x10] sm:$0xff] %vm2630, %v7829
        %v7832 = vld [vmem:[#allocation3] sm:$0xff]
        %v7833 = vld [vmem:[#allocation3 + $0x8] sm:$0xff]
        %v7834 = vld [vmem:[#allocation3 + $0x10] sm:$0xff]
        %v7835 = vld [vmem:[%s3] sm:$0xff]
        %v7836 = vld [vmem:[%s3 + $0x8] sm:$0xff]
        %v7837 = vld [vmem:[%s3 + $0x10] sm:$0xff]
        %v7838 = vld [vmem:[%s3 + $0x18] sm:$0xff]
        %v7839 = vld [vmem:[%s4] sm:$0x1]
        %v7841 = vlaneseq
        %v7842 = vshrl.u32 %v7841, 7
        %v7843 = vsub.s32 0, %v7842
        %v7844 = vrot.slane %v7839, %v7843
        %v7847 = vsel %vm590, %v7832, 0
        %v7850 = vsel %vm590, %v7833, 0
        %v7853 = vsel %vm590, %v7834, 0
        %7855 = vmatprep.subr.mxu0 0.0
        %7856 = vmatpush1.msra.mxu0 0.0
        %7857 = vmatprep.subr.mxu0 0.0
        %7858 = vmatpush1.msra.mxu0 0.0
        %7859 = vmatprep.subr.mxu0 0.0
        %7860 = vmatpush1.msra.mxu0 0.0
        %7861 = vmatprep.subr.mxu0 0.0
        %7862 = vmatpush1.msra.mxu0 0.0
        %7863 = vmatprep.subr.mxu0 0.0
        %7864 = vmatpush1.msra.mxu0 0.0
        %7865 = vmatprep.subr.mxu0 0.0
        %7866 = vmatpush1.msra.mxu0 0.0
        %7867 = vmatprep.subr.mxu0 0.0
        %7868 = vmatpush1.msra.mxu0 0.0
        %7869 = vmatprep.subr.mxu0 0.0
        %7870 = vmatpush1.msra.mxu0 0.0
        %7871 = vmatprep.subr.mxu0 0.0
        %7872 = vmatpush1.msra.mxu0 0.0
        %7873 = vmatprep.subr.mxu0 0.0
        %7874 = vmatpush1.msra.mxu0 0.0
        %7875 = vmatprep.subr.mxu0 0.0
        %7876 = vmatpush1.msra.mxu0 0.0
        %7877 = vmatprep.subr.mxu0 0.0
        %7878 = vmatpush1.msra.mxu0 0.0
        %7879 = vmatprep.subr.mxu0 0.0
        %7880 = vmatpush1.msra.mxu0 %v7838
        %7881 = vmatprep.subr.mxu0 0.0
        %7882 = vmatpush1.msra.mxu0 %v7837
        %7883 = vmatprep.subr.mxu0 0.0
        %7884 = vmatpush1.msra.mxu0 %v7836
        %7885 = vmatprep.subr.mxu0 0.0
        %7886 = vmatpush1.msra.mxu0 %v7835
        %7887 = vmatprep.subr.mxu0 0.0
        %7888 = vmatpush2.msra.mxu0 0.0
        %7889 = vmatprep.subr.mxu0 0.0
        %7890 = vmatpush2.msra.mxu0 0.0
        %7891 = vmatprep.subr.mxu0 0.0
        %7892 = vmatpush2.msra.mxu0 0.0
        %7893 = vmatprep.subr.mxu0 0.0
        %7894 = vmatpush2.msra.mxu0 0.0
        %7895 = vmatprep.subr.mxu0 0.0
        %7896 = vmatpush2.msra.mxu0 0.0
        %7897 = vmatprep.subr.mxu0 0.0
        %7898 = vmatpush2.msra.mxu0 0.0
        %7899 = vmatprep.subr.mxu0 0.0
        %7900 = vmatpush2.msra.mxu0 0.0
        %7901 = vmatprep.subr.mxu0 0.0
        %7902 = vmatpush2.msra.mxu0 0.0
        %7903 = vmatprep.subr.mxu0 0.0
        %7904 = vmatpush2.msra.mxu0 0.0
        %7905 = vmatprep.subr.mxu0 0.0
        %7906 = vmatpush2.msra.mxu0 0.0
        %7907 = vmatprep.subr.mxu0 0.0
        %7908 = vmatpush2.msra.mxu0 0.0
        %7909 = vmatprep.subr.mxu0 0.0
        %7910 = vmatpush2.msra.mxu0 0.0
        %7911 = vmatprep.subr.mxu0 0.0
        %7912 = vmatpush2.msra.mxu0 0.0
        %7913 = vmatprep.subr.mxu0 0.0
        %7914 = vmatpush2.msra.mxu0 0.0
        %7915 = vmatprep.subr.mxu0 0.0
        %7916 = vmatpush2.msra.mxu0 0.0
        %7917 = vmatprep.subr.mxu0 0.0
        %7918 = vmatpush2.msra.mxu0 0.0
        %7919 = vmatprep.mubr.f32.mxu0 0.0
        %7920 = vmatmul.mubr.f32.gmra.mxu0 %v7847
        %v7921 = vpop.f32.mrf.mxu0
        %v7922 = vadd.f32 %v7844, %v7921
        %v7923 = vpop.f32.mrf.mxu0
        %7924 = vmatprep.mubr.f32.mxu0 0.0
        %7925 = vmatmul.mubr.f32.gmra.mxu0 %v7850
        %v7926 = vpop.f32.mrf.mxu0
        %v7927 = vadd.f32 %v7844, %v7926
        %v7928 = vpop.f32.mrf.mxu0
        %7929 = vmatprep.mubr.f32.mxu0 0.0
        %7930 = vmatmul.mubr.f32.gmra.mxu0 %v7853
        %v7931 = vpop.f32.mrf.mxu0
        %v7932 = vadd.f32 %v7844, %v7931
        %v7933 = vpop.f32.mrf.mxu0
        %7934 = vdwg.mxu0
        %7935 = vst.msk [vmem:[%s486] sm:$0xff] %vm590, %v7922
        %7936 = vst.msk [vmem:[%s486 + $0x8] sm:$0xff] %vm590, %v7927
        %7937 = vst.msk [vmem:[%s486 + $0x10] sm:$0xff] %vm590, %v7932
        %s7938 = sand.u32 %s248, 1
        %s7939 = scalar_lea.sflag [#allocation6], %s7938
        %s7940 = sand.u32 %s248, 1
        %s7941 = smul.addr %s7940, 24
        %s7942 = scalar_lea.vmem [#allocation5], %s7941
        %s7943 = sand.u32 %s31, 1
        %s7944 = scalar_lea.sflag [#allocation8], %s7943
        %s7945 = sand.u32 %s274, 1
        %s7946 = smul.addr %s7945, 32
        %s7947 = scalar_lea.vmem [#allocation7], %s7946
        %s7948 = sand.u32 %s31, 1
        %s7949 = scalar_lea.sflag [#allocation8], %s7948
        %s7950 = sand.u32 %s300, 1
        %s7951 = smul.addr %s7950, 64
        %s7952 = scalar_lea.vmem [#allocation9], %s7951
        %p7953 = scmp.lt.s32.totalorder %s31, 1
        %s7954 = scalar_select %p7953, %s31, 1
        %s7955 = smul.addr %s7954, 8
        %s7956 = scalar_lea.vmem %s12, %s7955
        %p7957 = scmp.lt.s32.totalorder %s31, 1
        %s7958 = scalar_select %p7957, %s31, 1
        %s7959 = smul.addr %s7958, 8
        %s7960 = scalar_lea.vmem %s13, %s7959
        // Predicated region
        $region57: #{prophetnet_ngram_attention_pallas.1} parent=55 // pred_check
          %p7961 = pneg %p258
        $region58: #{prophetnet_ngram_attention_pallas.1} parent=55 // pred_check_branch
          %7963 = sbr.rel (%p7961) target = $region60
        $region59: #{prophetnet_ngram_attention_pallas.1} parent=55 // pred_region
          %s7964 = smul.u32 3, %s31
          %s7966 = ssub.s32 384, 384
          %7967 = vsyncadd %s7939, %s7966
          %s7968 = smul.addr %s7964, 128
          %s7969 = scalar_lea.hbm %s9, %s7968
          %s7970 = sshll.u32 %s7942, 4
          %s7971 = int_to_ptr.vmem [resolvable:$true] %s7970
          %7976 = dma.vmem_to_hbm [thread:$0]  %s7971, 384, %s7969, %s7939, 128, 128, 8
        $region60: #{prophetnet_ngram_attention_pallas.1} parent=55 // pred_fallthru
          _
        // Predicated region
        $region61: #{prophetnet_ngram_attention_pallas.1} parent=55 // pred_check
          %p7977 = pneg %p284
        $region62: #{prophetnet_ngram_attention_pallas.1} parent=55 // pred_check_branch
          %7979 = sbr.rel (%p7977) target = $region64
        $region63: #{prophetnet_ngram_attention_pallas.1} parent=55 // pred_region
          %s7980 = smul.u32 4, %s31
          %s7982 = ssub.s32 512, 512
          %7983 = vsyncadd %s7944, %s7982
          %s7984 = smul.addr %s7980, 128
          %s7985 = scalar_lea.hbm %s10, %s7984
          %s7986 = sshll.u32 %s7947, 4
          %s7987 = int_to_ptr.vmem [resolvable:$true] %s7986
          %7992 = dma.vmem_to_hbm [thread:$0]  %s7987, 512, %s7985, %s7944, 128, 128, 8
        $region64: #{prophetnet_ngram_attention_pallas.1} parent=55 // pred_fallthru
          _
        // Predicated region
        $region65: #{prophetnet_ngram_attention_pallas.1} parent=55 // pred_check
          %p7993 = pneg %p310
        $region66: #{prophetnet_ngram_attention_pallas.1} parent=55 // pred_check_branch
          %7995 = sbr.rel (%p7993) target = $region68
        $region67: #{prophetnet_ngram_attention_pallas.1} parent=55 // pred_region
          %s7996 = smul.u32 8, %s31
          %s7998 = ssub.s32 1024, 1024
          %7999 = vsyncadd %s7949, %s7998
          %s8000 = smul.addr %s7996, 128
          %s8001 = scalar_lea.hbm %s11, %s8000
          %s8002 = sshll.u32 %s7952, 4
          %s8003 = int_to_ptr.vmem [resolvable:$true] %s8002
          %8008 = dma.vmem_to_hbm [thread:$0]  %s8003, 1024, %s8001, %s7949, 128, 128, 8
        $region68: #{prophetnet_ngram_attention_pallas.1} parent=55 // pred_fallthru
          _
        // Predicated region
        $region69: #{prophetnet_ngram_attention_pallas.1} parent=55 // pred_check
          %p8009 = pneg %p336
        $region70: #{prophetnet_ngram_attention_pallas.1} parent=55 // pred_check_branch
          %8011 = sbr.rel (%p8009) target = $region72
        $region71: #{prophetnet_ngram_attention_pallas.1} parent=55 // pred_region
          _
        $region72: #{prophetnet_ngram_attention_pallas.1} parent=55 // pred_fallthru
          _
        // Predicated region
        $region73: #{prophetnet_ngram_attention_pallas.1} parent=55 // pred_check
          %p8012 = pneg %p362
        $region74: #{prophetnet_ngram_attention_pallas.1} parent=55 // pred_check_branch
          %8014 = sbr.rel (%p8012) target = $region76
        $region75: #{prophetnet_ngram_attention_pallas.1} parent=55 // pred_region
          _
        $region76: #{prophetnet_ngram_attention_pallas.1} parent=55 // pred_fallthru
          _
      $region56: #{prophetnet_ngram_attention_pallas.1} parent=5 // pred_fallthru
        _
      %p8015 = scmp.le.s32.totalorder 2, %s26
      // Predicated region
      $region77: #{prophetnet_ngram_attention_pallas.1} parent=5 // pred_check
        %p8016 = pneg %p8015
      $region78: #{prophetnet_ngram_attention_pallas.1} parent=5 // pred_check_branch
        %8018 = sbr.rel (%p8016) target = $region80
      $region79: #{prophetnet_ngram_attention_pallas.1} parent=5 // pred_region
        %s8019 = ssub.s32 %s26, 2
        // Predicated region
        $region81: #{prophetnet_ngram_attention_pallas.1} parent=79 // pred_check
          %p8020 = pneg %p264
        $region82: #{prophetnet_ngram_attention_pallas.1} parent=79 // pred_check_branch
          %8022 = sbr.rel (%p8020) target = $region84
        $region83: #{prophetnet_ngram_attention_pallas.1} parent=79 // pred_region
          %s8023 = sand.u32 %s249, 1
          %s8024 = scalar_lea.sflag [#allocation6], %s8023
          %s8025 = sand.u32 %s249, 1
          %s8026 = smul.addr %s8025, 24
          %s8027 = scalar_lea.vmem [#allocation5], %s8026
          %8028 = dma.done %s8024, 384
        $region84: #{prophetnet_ngram_attention_pallas.1} parent=79 // pred_fallthru
          _
        // Predicated region
        $region85: #{prophetnet_ngram_attention_pallas.1} parent=79 // pred_check
          %p8029 = pneg %p290
        $region86: #{prophetnet_ngram_attention_pallas.1} parent=79 // pred_check_branch
          %8031 = sbr.rel (%p8029) target = $region88
        $region87: #{prophetnet_ngram_attention_pallas.1} parent=79 // pred_region
          %s8032 = sand.u32 %s32, 1
          %s8033 = scalar_lea.sflag [#allocation8], %s8032
          %s8034 = sand.u32 %s275, 1
          %s8035 = smul.addr %s8034, 32
          %s8036 = scalar_lea.vmem [#allocation7], %s8035
          %8037 = dma.done %s8033, 512
        $region88: #{prophetnet_ngram_attention_pallas.1} parent=79 // pred_fallthru
          _
        // Predicated region
        $region89: #{prophetnet_ngram_attention_pallas.1} parent=79 // pred_check
          %p8038 = pneg %p316
        $region90: #{prophetnet_ngram_attention_pallas.1} parent=79 // pred_check_branch
          %8040 = sbr.rel (%p8038) target = $region92
        $region91: #{prophetnet_ngram_attention_pallas.1} parent=79 // pred_region
          %s8041 = sand.u32 %s32, 1
          %s8042 = scalar_lea.sflag [#allocation8], %s8041
          %s8043 = sand.u32 %s301, 1
          %s8044 = smul.addr %s8043, 64
          %s8045 = scalar_lea.vmem [#allocation9], %s8044
          %8046 = dma.done %s8042, 1024
        $region92: #{prophetnet_ngram_attention_pallas.1} parent=79 // pred_fallthru
          _
        // Predicated region
        $region93: #{prophetnet_ngram_attention_pallas.1} parent=79 // pred_check
          %p8047 = pneg %p342
        $region94: #{prophetnet_ngram_attention_pallas.1} parent=79 // pred_check_branch
          %8049 = sbr.rel (%p8047) target = $region96
        $region95: #{prophetnet_ngram_attention_pallas.1} parent=79 // pred_region
          %p8050 = scmp.lt.s32.totalorder %s32, 1
          %s8051 = scalar_select %p8050, %s32, 1
          %s8052 = smul.addr %s8051, 8
          %s8053 = scalar_lea.vmem %s12, %s8052
        $region96: #{prophetnet_ngram_attention_pallas.1} parent=79 // pred_fallthru
          _
        // Predicated region
        $region97: #{prophetnet_ngram_attention_pallas.1} parent=79 // pred_check
          %p8054 = pneg %p368
        $region98: #{prophetnet_ngram_attention_pallas.1} parent=79 // pred_check_branch
          %8056 = sbr.rel (%p8054) target = $region100
        $region99: #{prophetnet_ngram_attention_pallas.1} parent=79 // pred_region
          %p8057 = scmp.lt.s32.totalorder %s32, 1
          %s8058 = scalar_select %p8057, %s32, 1
          %s8059 = smul.addr %s8058, 8
          %s8060 = scalar_lea.vmem %s13, %s8059
        $region100: #{prophetnet_ngram_attention_pallas.1} parent=79 // pred_fallthru
          _
      $region80: #{prophetnet_ngram_attention_pallas.1} parent=5 // pred_fallthru
        _
    $region6: #{prophetnet_ngram_attention_pallas.1} parent=1 // loop_footer
      %s30 = sadd.s32 1, %s26
    $region7: #{prophetnet_ngram_attention_pallas.1} parent=1 // loop_footer_branch
      %25 = sbr.rel target = $region3
    $region8: #{prophetnet_ngram_attention_pallas.1} parent=1 // loop_exit
      _
    %8061 = vsyncpa [#allocation6], 1
    %s8062 = scalar_lea.sflag [#allocation6], 1
    %8063 = vsyncpa %s8062, 1
    %8064 = vsyncpa [#allocation8], 1
    %s8065 = scalar_lea.sflag [#allocation8], 1
    %8066 = vsyncpa %s8065, 1

</llo_original>
